<compile_context>
chip_gen: v6e
topology: v6e:2x2x1
jax: 0.10.0
libtpu: 0.0.40
codegen_flags: <defaults>
</compile_context>

<pallas_src>
import jax
import jax.numpy as jnp
from jax.experimental import pallas as pl
from jax.experimental.pallas import tpu as pltpu

BN_EPS = 1e-5


def down_kernel(x_ref, w1_ref, w2_ref, aff_ref, o_ref, h1pad_ref):
    # x_ref: (4, Hp+2, Wp+2, B, Cin) -- 4 packed 2x2-pool slots, pre-padded.
    # (batch, channel) sit on (sublane, lane); H/W are plain outer dims, so every
    # window slice below is tile-aligned (no sublane relayouts, no masked vst).
    _, Hp2, Wp2, B, Cin = x_ref.shape
    Hp, Wp = Hp2 - 2, Wp2 - 2
    Cmid = w1_ref.shape[-1]
    Cout = w2_ref.shape[-1]
    M = Hp * Wp * B

    # ---- MaxPool2d(2): elementwise max over the 4 packed window slots (f32) ----
    pooled = jnp.maximum(jnp.maximum(x_ref[0], x_ref[1]),
                         jnp.maximum(x_ref[2], x_ref[3]))   # (Hp+2, Wp+2, B, Cin)
    # border slots are all zero -> pooled border == conv1's zero padding.

    aff = aff_ref[...]                                      # (4, C): folded bias+BN

    # ---- conv1 (3x3, pad=1): 9 tap matmuls, bf16 operands, f32 accumulate ----
    acc1 = None
    for dh in range(3):
        for dw in range(3):
            win = pooled[dh:dh + Hp, dw:dw + Wp, :, :]      # aligned outer-dim slice
            lhs = win.reshape(M, Cin).astype(jnp.bfloat16)
            c = jnp.dot(lhs, w1_ref[dh, dw],
                        preferred_element_type=jnp.float32)
            acc1 = c if acc1 is None else acc1 + c          # first tap inits acc
    h1 = jnp.maximum(acc1 * aff[0:1, :] + aff[1:2, :], 0.0)  # bias+BN+ReLU (f32)

    # ---- zero-pad h1 into a tile-aligned VMEM scratch for conv2 ----
    h1pad_ref[0:1, :, :, :] = jnp.zeros((1, Wp + 2, B, Cmid), jnp.float32)
    h1pad_ref[Hp + 1:Hp + 2, :, :, :] = jnp.zeros((1, Wp + 2, B, Cmid), jnp.float32)
    h1pad_ref[1:Hp + 1, 0:1, :, :] = jnp.zeros((Hp, 1, B, Cmid), jnp.float32)
    h1pad_ref[1:Hp + 1, Wp + 1:Wp + 2, :, :] = jnp.zeros((Hp, 1, B, Cmid), jnp.float32)
    h1pad_ref[1:Hp + 1, 1:Wp + 1, :, :] = h1.reshape(Hp, Wp, B, Cmid)

    # ---- conv2 (3x3, pad=1): 9 tap matmuls from the aligned scratch ----
    # TODO(synk): on v6e/v7x a W-direction mini-im2col (K=3*Cmid=384) would fill
    # the 256-deep MXU better; only worth it if a bundle dump shows MXU-bound.
    acc2 = None
    for dh in range(3):
        for dw in range(3):
            win = h1pad_ref[dh:dh + Hp, dw:dw + Wp, :, :]   # aligned window load
            lhs = win.reshape(M, Cmid).astype(jnp.bfloat16)
            c = jnp.dot(lhs, w2_ref[dh, dw],
                        preferred_element_type=jnp.float32)
            acc2 = c if acc2 is None else acc2 + c
    h2 = jnp.maximum(acc2 * aff[2:3, :] + aff[3:4, :], 0.0)

    # lane-dense, sublane-aligned store: minor block dims = (B=8, Cout=128).
    o_ref[...] = h2.reshape(Hp, Wp, B, Cout).astype(o_ref.dtype)


def down_forward(x_nchw, params, *, block_b=8):
    """x_nchw: (N, C_in, H, W) f32 -> (N, C_out, H//2, W//2) f32."""
    w1, w2, affine = params
    N, C_in, H, W = x_nchw.shape
    assert H % 2 == 0 and W % 2 == 0
    Hp, Wp = H // 2, W // 2
    C_mid, C_out = w1.shape[-1], w2.shape[-1]
    assert C_mid == C_out and affine.shape == (4, C_mid)

    # Batch block: multiple of 8 so (batch, channel) exactly fill the f32
    # (sublane, lane) tile; capped so the flattened M = Hp*Wp*B stays ~512 rows
    # (f32 accumulator <= ~256 KiB), per perf review.
    b_cap = max(8, (512 // max(Hp * Wp, 1)) // 8 * 8)
    B = min(max(8, (block_b // 8) * 8), b_cap)
    n_blocks = -(-N // B)
    Npad = n_blocks * B
    # TODO(synk): for UNet-scale spatial sizes (H=W>=128) add a row-striped grid
    # axis over Hp with a 1-row halo instead of whole-image blocks (v7x VMEM).

    # Layout plumbing (pure XLA reshapes/transposes):
    # NCHW -> NHWC -> pull the 2x2 pool window out as a leading slot axis and move
    # batch next to channels (so (batch, channel) land on (sublane, lane)), then
    # pre-pad spatially so max(0,0,0,0)=0 doubles as conv1's zero padding.
    x = jnp.transpose(x_nchw, (0, 2, 3, 1))                     # (N, H, W, C)
    if Npad != N:
        x = jnp.pad(x, ((0, Npad - N), (0, 0), (0, 0), (0, 0)))
    x = x.reshape(Npad, Hp, 2, Wp, 2, C_in)
    x = jnp.transpose(x, (2, 4, 1, 3, 0, 5))                    # (2, 2, Hp, Wp, N, C)
    x = x.reshape(4, Hp, Wp, Npad, C_in)
    x = jnp.pad(x, ((0, 0), (1, 1), (1, 1), (0, 0), (0, 0)))    # (4, Hp+2, Wp+2, N, C)

    # VMEM budget: double-buffered in/out blocks + weights + scratch + work slack.
    in_blk = 4 * (Hp + 2) * (Wp + 2) * B * C_in * 4
    out_blk = Hp * Wp * B * C_out * 4
    w_bytes = 9 * (C_in * C_mid + C_mid * C_out) * 2
    scratch = (Hp + 2) * (Wp + 2) * B * C_mid * 4
    work = Hp * Wp * B * (C_mid + C_out) * 4 * 3
    vmem_limit = min(max(32 * 1024 * 1024,
                         2 * (in_blk + out_blk + w_bytes) + scratch + work),
                     100 * 1024 * 1024)

    out = pl.pallas_call(
        down_kernel,
        out_shape=jax.ShapeDtypeStruct((Hp, Wp, Npad, C_out), jnp.float32),
        grid=(n_blocks,),
        in_specs=[
            pl.BlockSpec((4, Hp + 2, Wp + 2, B, C_in), lambda i: (0, 0, 0, i, 0)),
            pl.BlockSpec((3, 3, C_in, C_mid), lambda i: (0, 0, 0, 0)),
            pl.BlockSpec((3, 3, C_mid, C_out), lambda i: (0, 0, 0, 0)),
            pl.BlockSpec((4, C_mid), lambda i: (0, 0)),
        ],
        out_specs=pl.BlockSpec((Hp, Wp, B, C_out), lambda i: (0, 0, i, 0)),
        scratch_shapes=[pltpu.VMEM((Hp + 2, Wp + 2, B, C_mid), jnp.float32)],
        compiler_params=pltpu.CompilerParams(
            dimension_semantics=("parallel",),
            vmem_limit_bytes=vmem_limit),
    )(x, w1, w2, affine)

    out = out[:, :, :N, :]
    return jnp.transpose(out, (2, 3, 0, 1))                     # (N, C_out, Hp, Wp)


def init_raw_params(key, c_in, c_out):
    """Deterministic synthetic parameters (shapes match the PyTorch module)."""
    c_mid = c_out
    ks = jax.random.split(key, 12)

    def uni(k, shape, bound):
        return jax.random.uniform(k, shape, jnp.float32, -bound, bound)

    fan1 = c_in * 9
    fan2 = c_mid * 9
    return dict(
        w1=uni(ks[0], (3, 3, c_in, c_mid), fan1 ** -0.5),       # HWIO
        b1=uni(ks[1], (c_mid,), fan1 ** -0.5),
        g1=jax.random.uniform(ks[2], (c_mid,), jnp.float32, 0.5, 1.5),
        be1=uni(ks[3], (c_mid,), 0.5),
        m1=jax.random.normal(ks[4], (c_mid,), jnp.float32) * 0.1,
        v1=jax.random.uniform(ks[5], (c_mid,), jnp.float32, 0.5, 1.5),
        w2=uni(ks[6], (3, 3, c_mid, c_out), fan2 ** -0.5),
        b2=uni(ks[7], (c_out,), fan2 ** -0.5),
        g2=jax.random.uniform(ks[8], (c_out,), jnp.float32, 0.5, 1.5),
        be2=uni(ks[9], (c_out,), 0.5),
        m2=jax.random.normal(ks[10], (c_out,), jnp.float32) * 0.1,
        v2=jax.random.uniform(ks[11], (c_out,), jnp.float32, 0.5, 1.5),
    )


def fold_params(raw):
    """Fold conv bias + eval-mode BatchNorm into per-channel (scale, shift);
    weights are handed to the kernel as bf16 MXU operands."""
    def fold(bias, gamma, beta, mean, var):
        scale = gamma / jnp.sqrt(var + BN_EPS)
        shift = beta + (bias - mean) * scale
        return scale, shift

    s1, t1 = fold(raw["b1"], raw["g1"], raw["be1"], raw["m1"], raw["v1"])
    s2, t2 = fold(raw["b2"], raw["g2"], raw["be2"], raw["m2"], raw["v2"])
    affine = jnp.stack([s1, t1, s2, t2], axis=0).astype(jnp.float32)  # (4, C)
    return (raw["w1"].astype(jnp.bfloat16),
            raw["w2"].astype(jnp.bfloat16),
            affine)


def ref_forward(x_nchw, raw):
    """Plain-JAX reference (maxpool + lax.conv) with raw (unfolded) f32 params."""
    x = jnp.transpose(x_nchw, (0, 2, 3, 1))                     # NHWC
    n, h, w, c = x.shape
    x = x.reshape(n, h // 2, 2, w // 2, 2, c).max(axis=(2, 4))  # MaxPool2d(2)

    def conv(a, wt):
        return jax.lax.conv_general_dilated(
            a, wt, window_strides=(1, 1), padding=[(1, 1), (1, 1)],
            dimension_numbers=("NHWC", "HWIO", "NHWC"),
            precision=jax.lax.Precision.HIGHEST)

    def bn(a, g, be, m, v):
        return (a - m) / jnp.sqrt(v + BN_EPS) * g + be

    a = conv(x, raw["w1"]) + raw["b1"]
    a = jax.nn.relu(bn(a, raw["g1"], raw["be1"], raw["m1"], raw["v1"]))
    a = conv(a, raw["w2"]) + raw["b2"]
    a = jax.nn.relu(bn(a, raw["g2"], raw["be2"], raw["m2"], raw["v2"]))
    return jnp.transpose(a, (0, 3, 1, 2))


if __name__ == "__main__":
    key = jax.random.PRNGKey(0)
    kx, kp = jax.random.split(key)

    # Down(64, 128) on a 16x16 input.  N=16 -> 2 grid steps of B=8, so the
    # flattened matmul M is 512 and v7x megacore gets both TensorCores busy.
    N, C_IN, C_OUT, H, W = 16, 64, 128, 16, 16
    x = jax.random.normal(kx, (N, C_IN, H, W), jnp.float32)     # NCHW like PyTorch
    raw = init_raw_params(kp, C_IN, C_OUT)
    params = fold_params(raw)

    out = jax.block_until_ready(down_forward(x, params, block_b=8))
    assert out.shape == (N, C_OUT, H // 2, W // 2), out.shape

    ref = ref_forward(x, raw)
    if not jnp.allclose(out, ref, atol=2e-2, rtol=2e-2):
        raise AssertionError("Pallas output does not match JAX reference")

    print("KERNEL_OK")
</pallas_src>

<mosaic_0001>
module attributes {stable_mosaic.version = 11 : i64} {
  func.func @down_kernel(%arg0: i32, %arg1: memref<4x10x10x8x64xf32, #tpu.memory_space<vmem>>, %arg2: memref<3x3x64x128xbf16, #tpu.memory_space<vmem>>, %arg3: memref<3x3x128x128xbf16, #tpu.memory_space<vmem>>, %arg4: memref<4x128xf32, #tpu.memory_space<vmem>>, %arg5: memref<8x8x8x128xf32, #tpu.memory_space<vmem>>, %arg6: memref<10x10x8x128xf32, #tpu.memory_space<vmem>>) attributes {dimension_semantics = [#tpu.dimension_semantics<parallel>], iteration_bounds = array<i64: 2>, scalar_prefetch = 0 : i64, scratch_operands = 1 : i64, tpu.core_type = #tpu.core_type<tc>, window_params = [{transform_indices = @transform_0, window_bounds = array<i64: 4, 10, 10, 8, 64>}, {pipeline_mode = #tpu.pipeline_mode<synchronous>, transform_indices = @transform_1, window_bounds = array<i64: 3, 3, 64, 128>}, {pipeline_mode = #tpu.pipeline_mode<synchronous>, transform_indices = @transform_2, window_bounds = array<i64: 3, 3, 128, 128>}, {pipeline_mode = #tpu.pipeline_mode<synchronous>, transform_indices = @transform_3, window_bounds = array<i64: 4, 128>}, {transform_indices = @transform_4, window_bounds = array<i64: 8, 8, 8, 128>}]} {
    %c0 = arith.constant 0 : index
    %c0_0 = arith.constant 0 : index
    %c0_1 = arith.constant 0 : index
    %c0_2 = arith.constant 0 : index
    %c0_3 = arith.constant 0 : index
    %0 = vector.load %arg1[%c0, %c0_0, %c0_1, %c0_2, %c0_3] : memref<4x10x10x8x64xf32, #tpu.memory_space<vmem>>, vector<1x10x10x8x64xf32>
    %1 = vector.shape_cast %0 : vector<1x10x10x8x64xf32> to vector<10x10x8x64xf32>
    %c1 = arith.constant 1 : index
    %c0_4 = arith.constant 0 : index
    %c0_5 = arith.constant 0 : index
    %c0_6 = arith.constant 0 : index
    %c0_7 = arith.constant 0 : index
    %2 = vector.load %arg1[%c1, %c0_4, %c0_5, %c0_6, %c0_7] : memref<4x10x10x8x64xf32, #tpu.memory_space<vmem>>, vector<1x10x10x8x64xf32>
    %3 = vector.shape_cast %2 : vector<1x10x10x8x64xf32> to vector<10x10x8x64xf32>
    %4 = arith.maximumf %1, %3 : vector<10x10x8x64xf32>
    %c2 = arith.constant 2 : index
    %c0_8 = arith.constant 0 : index
    %c0_9 = arith.constant 0 : index
    %c0_10 = arith.constant 0 : index
    %c0_11 = arith.constant 0 : index
    %5 = vector.load %arg1[%c2, %c0_8, %c0_9, %c0_10, %c0_11] : memref<4x10x10x8x64xf32, #tpu.memory_space<vmem>>, vector<1x10x10x8x64xf32>
    %6 = vector.shape_cast %5 : vector<1x10x10x8x64xf32> to vector<10x10x8x64xf32>
    %c3 = arith.constant 3 : index
    %c0_12 = arith.constant 0 : index
    %c0_13 = arith.constant 0 : index
    %c0_14 = arith.constant 0 : index
    %c0_15 = arith.constant 0 : index
    %7 = vector.load %arg1[%c3, %c0_12, %c0_13, %c0_14, %c0_15] : memref<4x10x10x8x64xf32, #tpu.memory_space<vmem>>, vector<1x10x10x8x64xf32>
    %8 = vector.shape_cast %7 : vector<1x10x10x8x64xf32> to vector<10x10x8x64xf32>
    %9 = arith.maximumf %6, %8 : vector<10x10x8x64xf32>
    %10 = arith.maximumf %4, %9 : vector<10x10x8x64xf32>
    %c0_16 = arith.constant 0 : index
    %c0_17 = arith.constant 0 : index
    %11 = vector.load %arg4[%c0_16, %c0_17] : memref<4x128xf32, #tpu.memory_space<vmem>>, vector<4x128xf32>
    %12 = vector.extract_strided_slice %10 {offsets = [0, 0, 0, 0], sizes = [8, 8, 8, 64], strides = [1, 1, 1, 1]} : vector<10x10x8x64xf32> to vector<8x8x8x64xf32>
    %13 = vector.shape_cast %12 : vector<8x8x8x64xf32> to vector<512x64xf32>
    %14 = arith.truncf %13 : vector<512x64xf32> to vector<512x64xbf16>
    %c0_18 = arith.constant 0 : index
    %c0_19 = arith.constant 0 : index
    %c0_20 = arith.constant 0 : index
    %c0_21 = arith.constant 0 : index
    %15 = vector.load %arg2[%c0_18, %c0_19, %c0_20, %c0_21] : memref<3x3x64x128xbf16, #tpu.memory_space<vmem>>, vector<1x1x64x128xbf16>
    %16 = vector.shape_cast %15 : vector<1x1x64x128xbf16> to vector<64x128xbf16>
    %cst = arith.constant dense<0.000000e+00> : vector<512x128xf32>
    %17 = tpu.matmul %14, %16, %cst {dimension_numbers = #tpu.dot_dimension_numbers<[1], [0], [0], [1], [0, 0, 1, 1], [], []>} : vector<512x64xbf16>, vector<64x128xbf16>, vector<512x128xf32> -> vector<512x128xf32>
    %18 = vector.extract_strided_slice %10 {offsets = [0, 1, 0, 0], sizes = [8, 8, 8, 64], strides = [1, 1, 1, 1]} : vector<10x10x8x64xf32> to vector<8x8x8x64xf32>
    %19 = vector.shape_cast %18 : vector<8x8x8x64xf32> to vector<512x64xf32>
    %20 = arith.truncf %19 : vector<512x64xf32> to vector<512x64xbf16>
    %c0_22 = arith.constant 0 : index
    %c1_23 = arith.constant 1 : index
    %c0_24 = arith.constant 0 : index
    %c0_25 = arith.constant 0 : index
    %21 = vector.load %arg2[%c0_22, %c1_23, %c0_24, %c0_25] : memref<3x3x64x128xbf16, #tpu.memory_space<vmem>>, vector<1x1x64x128xbf16>
    %22 = vector.shape_cast %21 : vector<1x1x64x128xbf16> to vector<64x128xbf16>
    %cst_26 = arith.constant dense<0.000000e+00> : vector<512x128xf32>
    %23 = tpu.matmul %20, %22, %cst_26 {dimension_numbers = #tpu.dot_dimension_numbers<[1], [0], [0], [1], [0, 0, 1, 1], [], []>} : vector<512x64xbf16>, vector<64x128xbf16>, vector<512x128xf32> -> vector<512x128xf32>
    %24 = arith.addf %17, %23 : vector<512x128xf32>
    %25 = vector.extract_strided_slice %10 {offsets = [0, 2, 0, 0], sizes = [8, 8, 8, 64], strides = [1, 1, 1, 1]} : vector<10x10x8x64xf32> to vector<8x8x8x64xf32>
    %26 = vector.shape_cast %25 : vector<8x8x8x64xf32> to vector<512x64xf32>
    %27 = arith.truncf %26 : vector<512x64xf32> to vector<512x64xbf16>
    %c0_27 = arith.constant 0 : index
    %c2_28 = arith.constant 2 : index
    %c0_29 = arith.constant 0 : index
    %c0_30 = arith.constant 0 : index
    %28 = vector.load %arg2[%c0_27, %c2_28, %c0_29, %c0_30] : memref<3x3x64x128xbf16, #tpu.memory_space<vmem>>, vector<1x1x64x128xbf16>
    %29 = vector.shape_cast %28 : vector<1x1x64x128xbf16> to vector<64x128xbf16>
    %cst_31 = arith.constant dense<0.000000e+00> : vector<512x128xf32>
    %30 = tpu.matmul %27, %29, %cst_31 {dimension_numbers = #tpu.dot_dimension_numbers<[1], [0], [0], [1], [0, 0, 1, 1], [], []>} : vector<512x64xbf16>, vector<64x128xbf16>, vector<512x128xf32> -> vector<512x128xf32>
    %31 = arith.addf %24, %30 : vector<512x128xf32>
    %32 = vector.extract_strided_slice %10 {offsets = [1, 0, 0, 0], sizes = [8, 8, 8, 64], strides = [1, 1, 1, 1]} : vector<10x10x8x64xf32> to vector<8x8x8x64xf32>
    %33 = vector.shape_cast %32 : vector<8x8x8x64xf32> to vector<512x64xf32>
    %34 = arith.truncf %33 : vector<512x64xf32> to vector<512x64xbf16>
    %c1_32 = arith.constant 1 : index
    %c0_33 = arith.constant 0 : index
    %c0_34 = arith.constant 0 : index
    %c0_35 = arith.constant 0 : index
    %35 = vector.load %arg2[%c1_32, %c0_33, %c0_34, %c0_35] : memref<3x3x64x128xbf16, #tpu.memory_space<vmem>>, vector<1x1x64x128xbf16>
    %36 = vector.shape_cast %35 : vector<1x1x64x128xbf16> to vector<64x128xbf16>
    %cst_36 = arith.constant dense<0.000000e+00> : vector<512x128xf32>
    %37 = tpu.matmul %34, %36, %cst_36 {dimension_numbers = #tpu.dot_dimension_numbers<[1], [0], [0], [1], [0, 0, 1, 1], [], []>} : vector<512x64xbf16>, vector<64x128xbf16>, vector<512x128xf32> -> vector<512x128xf32>
    %38 = arith.addf %31, %37 : vector<512x128xf32>
    %39 = vector.extract_strided_slice %10 {offsets = [1, 1, 0, 0], sizes = [8, 8, 8, 64], strides = [1, 1, 1, 1]} : vector<10x10x8x64xf32> to vector<8x8x8x64xf32>
    %40 = vector.shape_cast %39 : vector<8x8x8x64xf32> to vector<512x64xf32>
    %41 = arith.truncf %40 : vector<512x64xf32> to vector<512x64xbf16>
    %c1_37 = arith.constant 1 : index
    %c1_38 = arith.constant 1 : index
    %c0_39 = arith.constant 0 : index
    %c0_40 = arith.constant 0 : index
    %42 = vector.load %arg2[%c1_37, %c1_38, %c0_39, %c0_40] : memref<3x3x64x128xbf16, #tpu.memory_space<vmem>>, vector<1x1x64x128xbf16>
    %43 = vector.shape_cast %42 : vector<1x1x64x128xbf16> to vector<64x128xbf16>
    %cst_41 = arith.constant dense<0.000000e+00> : vector<512x128xf32>
    %44 = tpu.matmul %41, %43, %cst_41 {dimension_numbers = #tpu.dot_dimension_numbers<[1], [0], [0], [1], [0, 0, 1, 1], [], []>} : vector<512x64xbf16>, vector<64x128xbf16>, vector<512x128xf32> -> vector<512x128xf32>
    %45 = arith.addf %38, %44 : vector<512x128xf32>
    %46 = vector.extract_strided_slice %10 {offsets = [1, 2, 0, 0], sizes = [8, 8, 8, 64], strides = [1, 1, 1, 1]} : vector<10x10x8x64xf32> to vector<8x8x8x64xf32>
    %47 = vector.shape_cast %46 : vector<8x8x8x64xf32> to vector<512x64xf32>
    %48 = arith.truncf %47 : vector<512x64xf32> to vector<512x64xbf16>
    %c1_42 = arith.constant 1 : index
    %c2_43 = arith.constant 2 : index
    %c0_44 = arith.constant 0 : index
    %c0_45 = arith.constant 0 : index
    %49 = vector.load %arg2[%c1_42, %c2_43, %c0_44, %c0_45] : memref<3x3x64x128xbf16, #tpu.memory_space<vmem>>, vector<1x1x64x128xbf16>
    %50 = vector.shape_cast %49 : vector<1x1x64x128xbf16> to vector<64x128xbf16>
    %cst_46 = arith.constant dense<0.000000e+00> : vector<512x128xf32>
    %51 = tpu.matmul %48, %50, %cst_46 {dimension_numbers = #tpu.dot_dimension_numbers<[1], [0], [0], [1], [0, 0, 1, 1], [], []>} : vector<512x64xbf16>, vector<64x128xbf16>, vector<512x128xf32> -> vector<512x128xf32>
    %52 = arith.addf %45, %51 : vector<512x128xf32>
    %53 = vector.extract_strided_slice %10 {offsets = [2, 0, 0, 0], sizes = [8, 8, 8, 64], strides = [1, 1, 1, 1]} : vector<10x10x8x64xf32> to vector<8x8x8x64xf32>
    %54 = vector.shape_cast %53 : vector<8x8x8x64xf32> to vector<512x64xf32>
    %55 = arith.truncf %54 : vector<512x64xf32> to vector<512x64xbf16>
    %c2_47 = arith.constant 2 : index
    %c0_48 = arith.constant 0 : index
    %c0_49 = arith.constant 0 : index
    %c0_50 = arith.constant 0 : index
    %56 = vector.load %arg2[%c2_47, %c0_48, %c0_49, %c0_50] : memref<3x3x64x128xbf16, #tpu.memory_space<vmem>>, vector<1x1x64x128xbf16>
    %57 = vector.shape_cast %56 : vector<1x1x64x128xbf16> to vector<64x128xbf16>
    %cst_51 = arith.constant dense<0.000000e+00> : vector<512x128xf32>
    %58 = tpu.matmul %55, %57, %cst_51 {dimension_numbers = #tpu.dot_dimension_numbers<[1], [0], [0], [1], [0, 0, 1, 1], [], []>} : vector<512x64xbf16>, vector<64x128xbf16>, vector<512x128xf32> -> vector<512x128xf32>
    %59 = arith.addf %52, %58 : vector<512x128xf32>
    %60 = vector.extract_strided_slice %10 {offsets = [2, 1, 0, 0], sizes = [8, 8, 8, 64], strides = [1, 1, 1, 1]} : vector<10x10x8x64xf32> to vector<8x8x8x64xf32>
    %61 = vector.shape_cast %60 : vector<8x8x8x64xf32> to vector<512x64xf32>
    %62 = arith.truncf %61 : vector<512x64xf32> to vector<512x64xbf16>
    %c2_52 = arith.constant 2 : index
    %c1_53 = arith.constant 1 : index
    %c0_54 = arith.constant 0 : index
    %c0_55 = arith.constant 0 : index
    %63 = vector.load %arg2[%c2_52, %c1_53, %c0_54, %c0_55] : memref<3x3x64x128xbf16, #tpu.memory_space<vmem>>, vector<1x1x64x128xbf16>
    %64 = vector.shape_cast %63 : vector<1x1x64x128xbf16> to vector<64x128xbf16>
    %cst_56 = arith.constant dense<0.000000e+00> : vector<512x128xf32>
    %65 = tpu.matmul %62, %64, %cst_56 {dimension_numbers = #tpu.dot_dimension_numbers<[1], [0], [0], [1], [0, 0, 1, 1], [], []>} : vector<512x64xbf16>, vector<64x128xbf16>, vector<512x128xf32> -> vector<512x128xf32>
    %66 = arith.addf %59, %65 : vector<512x128xf32>
    %67 = vector.extract_strided_slice %10 {offsets = [2, 2, 0, 0], sizes = [8, 8, 8, 64], strides = [1, 1, 1, 1]} : vector<10x10x8x64xf32> to vector<8x8x8x64xf32>
    %68 = vector.shape_cast %67 : vector<8x8x8x64xf32> to vector<512x64xf32>
    %69 = arith.truncf %68 : vector<512x64xf32> to vector<512x64xbf16>
    %c2_57 = arith.constant 2 : index
    %c2_58 = arith.constant 2 : index
    %c0_59 = arith.constant 0 : index
    %c0_60 = arith.constant 0 : index
    %70 = vector.load %arg2[%c2_57, %c2_58, %c0_59, %c0_60] : memref<3x3x64x128xbf16, #tpu.memory_space<vmem>>, vector<1x1x64x128xbf16>
    %71 = vector.shape_cast %70 : vector<1x1x64x128xbf16> to vector<64x128xbf16>
    %cst_61 = arith.constant dense<0.000000e+00> : vector<512x128xf32>
    %72 = tpu.matmul %69, %71, %cst_61 {dimension_numbers = #tpu.dot_dimension_numbers<[1], [0], [0], [1], [0, 0, 1, 1], [], []>} : vector<512x64xbf16>, vector<64x128xbf16>, vector<512x128xf32> -> vector<512x128xf32>
    %73 = arith.addf %66, %72 : vector<512x128xf32>
    %74 = vector.extract_strided_slice %11 {offsets = [0, 0], sizes = [1, 128], strides = [1, 1]} : vector<4x128xf32> to vector<1x128xf32>
    %75 = vector.broadcast %74 : vector<1x128xf32> to vector<512x128xf32>
    %76 = arith.mulf %73, %75 : vector<512x128xf32>
    %77 = vector.extract_strided_slice %11 {offsets = [1, 0], sizes = [1, 128], strides = [1, 1]} : vector<4x128xf32> to vector<1x128xf32>
    %78 = vector.broadcast %77 : vector<1x128xf32> to vector<512x128xf32>
    %79 = arith.addf %76, %78 : vector<512x128xf32>
    %cst_62 = arith.constant 0.000000e+00 : f32
    %80 = vector.broadcast %cst_62 : f32 to vector<512x128xf32>
    %81 = arith.maximumf %79, %80 : vector<512x128xf32>
    %cst_63 = arith.constant 0.000000e+00 : f32
    %82 = vector.broadcast %cst_63 : f32 to vector<1x10x8x128xf32>
    %c0_64 = arith.constant 0 : index
    %c0_65 = arith.constant 0 : index
    %c0_66 = arith.constant 0 : index
    %c0_67 = arith.constant 0 : index
    %83 = vector.load %arg6[%c0_64, %c0_65, %c0_66, %c0_67] : memref<10x10x8x128xf32, #tpu.memory_space<vmem>>, vector<1x10x8x128xf32>
    tpu.vector_store %arg6[%c0_64, %c0_65, %c0_66, %c0_67], %82 {strides = array<i32>} : memref<10x10x8x128xf32, #tpu.memory_space<vmem>>, vector<1x10x8x128xf32>,
    %cst_68 = arith.constant 0.000000e+00 : f32
    %84 = vector.broadcast %cst_68 : f32 to vector<1x10x8x128xf32>
    %c9 = arith.constant 9 : index
    %c0_69 = arith.constant 0 : index
    %c0_70 = arith.constant 0 : index
    %c0_71 = arith.constant 0 : index
    %85 = vector.load %arg6[%c9, %c0_69, %c0_70, %c0_71] : memref<10x10x8x128xf32, #tpu.memory_space<vmem>>, vector<1x10x8x128xf32>
    tpu.vector_store %arg6[%c9, %c0_69, %c0_70, %c0_71], %84 {strides = array<i32>} : memref<10x10x8x128xf32, #tpu.memory_space<vmem>>, vector<1x10x8x128xf32>,
    %cst_72 = arith.constant 0.000000e+00 : f32
    %86 = vector.broadcast %cst_72 : f32 to vector<8x1x8x128xf32>
    %c1_73 = arith.constant 1 : index
    %c0_74 = arith.constant 0 : index
    %c0_75 = arith.constant 0 : index
    %c0_76 = arith.constant 0 : index
    %87 = vector.load %arg6[%c1_73, %c0_74, %c0_75, %c0_76] : memref<10x10x8x128xf32, #tpu.memory_space<vmem>>, vector<8x1x8x128xf32>
    tpu.vector_store %arg6[%c1_73, %c0_74, %c0_75, %c0_76], %86 {strides = array<i32>} : memref<10x10x8x128xf32, #tpu.memory_space<vmem>>, vector<8x1x8x128xf32>,
    %cst_77 = arith.constant 0.000000e+00 : f32
    %88 = vector.broadcast %cst_77 : f32 to vector<8x1x8x128xf32>
    %c1_78 = arith.constant 1 : index
    %c9_79 = arith.constant 9 : index
    %c0_80 = arith.constant 0 : index
    %c0_81 = arith.constant 0 : index
    %89 = vector.load %arg6[%c1_78, %c9_79, %c0_80, %c0_81] : memref<10x10x8x128xf32, #tpu.memory_space<vmem>>, vector<8x1x8x128xf32>
    tpu.vector_store %arg6[%c1_78, %c9_79, %c0_80, %c0_81], %88 {strides = array<i32>} : memref<10x10x8x128xf32, #tpu.memory_space<vmem>>, vector<8x1x8x128xf32>,
    %90 = vector.shape_cast %81 : vector<512x128xf32> to vector<8x8x8x128xf32>
    %c1_82 = arith.constant 1 : index
    %c1_83 = arith.constant 1 : index
    %c0_84 = arith.constant 0 : index
    %c0_85 = arith.constant 0 : index
    %91 = vector.load %arg6[%c1_82, %c1_83, %c0_84, %c0_85] : memref<10x10x8x128xf32, #tpu.memory_space<vmem>>, vector<8x8x8x128xf32>
    tpu.vector_store %arg6[%c1_82, %c1_83, %c0_84, %c0_85], %90 {strides = array<i32>} : memref<10x10x8x128xf32, #tpu.memory_space<vmem>>, vector<8x8x8x128xf32>,
    %c0_86 = arith.constant 0 : index
    %c0_87 = arith.constant 0 : index
    %c0_88 = arith.constant 0 : index
    %c0_89 = arith.constant 0 : index
    %92 = vector.load %arg6[%c0_86, %c0_87, %c0_88, %c0_89] : memref<10x10x8x128xf32, #tpu.memory_space<vmem>>, vector<8x8x8x128xf32>
    %93 = vector.shape_cast %92 : vector<8x8x8x128xf32> to vector<512x128xf32>
    %94 = arith.truncf %93 : vector<512x128xf32> to vector<512x128xbf16>
    %c0_90 = arith.constant 0 : index
    %c0_91 = arith.constant 0 : index
    %c0_92 = arith.constant 0 : index
    %c0_93 = arith.constant 0 : index
    %95 = vector.load %arg3[%c0_90, %c0_91, %c0_92, %c0_93] : memref<3x3x128x128xbf16, #tpu.memory_space<vmem>>, vector<1x1x128x128xbf16>
    %96 = vector.shape_cast %95 : vector<1x1x128x128xbf16> to vector<128x128xbf16>
    %cst_94 = arith.constant dense<0.000000e+00> : vector<512x128xf32>
    %97 = tpu.matmul %94, %96, %cst_94 {dimension_numbers = #tpu.dot_dimension_numbers<[1], [0], [0], [1], [0, 0, 1, 1], [], []>} : vector<512x128xbf16>, vector<128x128xbf16>, vector<512x128xf32> -> vector<512x128xf32>
    %c0_95 = arith.constant 0 : index
    %c1_96 = arith.constant 1 : index
    %c0_97 = arith.constant 0 : index
    %c0_98 = arith.constant 0 : index
    %98 = vector.load %arg6[%c0_95, %c1_96, %c0_97, %c0_98] : memref<10x10x8x128xf32, #tpu.memory_space<vmem>>, vector<8x8x8x128xf32>
    %99 = vector.shape_cast %98 : vector<8x8x8x128xf32> to vector<512x128xf32>
    %100 = arith.truncf %99 : vector<512x128xf32> to vector<512x128xbf16>
    %c0_99 = arith.constant 0 : index
    %c1_100 = arith.constant 1 : index
    %c0_101 = arith.constant 0 : index
    %c0_102 = arith.constant 0 : index
    %101 = vector.load %arg3[%c0_99, %c1_100, %c0_101, %c0_102] : memref<3x3x128x128xbf16, #tpu.memory_space<vmem>>, vector<1x1x128x128xbf16>
    %102 = vector.shape_cast %101 : vector<1x1x128x128xbf16> to vector<128x128xbf16>
    %cst_103 = arith.constant dense<0.000000e+00> : vector<512x128xf32>
    %103 = tpu.matmul %100, %102, %cst_103 {dimension_numbers = #tpu.dot_dimension_numbers<[1], [0], [0], [1], [0, 0, 1, 1], [], []>} : vector<512x128xbf16>, vector<128x128xbf16>, vector<512x128xf32> -> vector<512x128xf32>
    %104 = arith.addf %97, %103 : vector<512x128xf32>
    %c0_104 = arith.constant 0 : index
    %c2_105 = arith.constant 2 : index
    %c0_106 = arith.constant 0 : index
    %c0_107 = arith.constant 0 : index
    %105 = vector.load %arg6[%c0_104, %c2_105, %c0_106, %c0_107] : memref<10x10x8x128xf32, #tpu.memory_space<vmem>>, vector<8x8x8x128xf32>
    %106 = vector.shape_cast %105 : vector<8x8x8x128xf32> to vector<512x128xf32>
    %107 = arith.truncf %106 : vector<512x128xf32> to vector<512x128xbf16>
    %c0_108 = arith.constant 0 : index
    %c2_109 = arith.constant 2 : index
    %c0_110 = arith.constant 0 : index
    %c0_111 = arith.constant 0 : index
    %108 = vector.load %arg3[%c0_108, %c2_109, %c0_110, %c0_111] : memref<3x3x128x128xbf16, #tpu.memory_space<vmem>>, vector<1x1x128x128xbf16>
    %109 = vector.shape_cast %108 : vector<1x1x128x128xbf16> to vector<128x128xbf16>
    %cst_112 = arith.constant dense<0.000000e+00> : vector<512x128xf32>
    %110 = tpu.matmul %107, %109, %cst_112 {dimension_numbers = #tpu.dot_dimension_numbers<[1], [0], [0], [1], [0, 0, 1, 1], [], []>} : vector<512x128xbf16>, vector<128x128xbf16>, vector<512x128xf32> -> vector<512x128xf32>
    %111 = arith.addf %104, %110 : vector<512x128xf32>
    %c1_113 = arith.constant 1 : index
    %c0_114 = arith.constant 0 : index
    %c0_115 = arith.constant 0 : index
    %c0_116 = arith.constant 0 : index
    %112 = vector.load %arg6[%c1_113, %c0_114, %c0_115, %c0_116] : memref<10x10x8x128xf32, #tpu.memory_space<vmem>>, vector<8x8x8x128xf32>
    %113 = vector.shape_cast %112 : vector<8x8x8x128xf32> to vector<512x128xf32>
    %114 = arith.truncf %113 : vector<512x128xf32> to vector<512x128xbf16>
    %c1_117 = arith.constant 1 : index
    %c0_118 = arith.constant 0 : index
    %c0_119 = arith.constant 0 : index
    %c0_120 = arith.constant 0 : index
    %115 = vector.load %arg3[%c1_117, %c0_118, %c0_119, %c0_120] : memref<3x3x128x128xbf16, #tpu.memory_space<vmem>>, vector<1x1x128x128xbf16>
    %116 = vector.shape_cast %115 : vector<1x1x128x128xbf16> to vector<128x128xbf16>
    %cst_121 = arith.constant dense<0.000000e+00> : vector<512x128xf32>
    %117 = tpu.matmul %114, %116, %cst_121 {dimension_numbers = #tpu.dot_dimension_numbers<[1], [0], [0], [1], [0, 0, 1, 1], [], []>} : vector<512x128xbf16>, vector<128x128xbf16>, vector<512x128xf32> -> vector<512x128xf32>
    %118 = arith.addf %111, %117 : vector<512x128xf32>
    %c1_122 = arith.constant 1 : index
    %c1_123 = arith.constant 1 : index
    %c0_124 = arith.constant 0 : index
    %c0_125 = arith.constant 0 : index
    %119 = vector.load %arg6[%c1_122, %c1_123, %c0_124, %c0_125] : memref<10x10x8x128xf32, #tpu.memory_space<vmem>>, vector<8x8x8x128xf32>
    %120 = vector.shape_cast %119 : vector<8x8x8x128xf32> to vector<512x128xf32>
    %121 = arith.truncf %120 : vector<512x128xf32> to vector<512x128xbf16>
    %c1_126 = arith.constant 1 : index
    %c1_127 = arith.constant 1 : index
    %c0_128 = arith.constant 0 : index
    %c0_129 = arith.constant 0 : index
    %122 = vector.load %arg3[%c1_126, %c1_127, %c0_128, %c0_129] : memref<3x3x128x128xbf16, #tpu.memory_space<vmem>>, vector<1x1x128x128xbf16>
    %123 = vector.shape_cast %122 : vector<1x1x128x128xbf16> to vector<128x128xbf16>
    %cst_130 = arith.constant dense<0.000000e+00> : vector<512x128xf32>
    %124 = tpu.matmul %121, %123, %cst_130 {dimension_numbers = #tpu.dot_dimension_numbers<[1], [0], [0], [1], [0, 0, 1, 1], [], []>} : vector<512x128xbf16>, vector<128x128xbf16>, vector<512x128xf32> -> vector<512x128xf32>
    %125 = arith.addf %118, %124 : vector<512x128xf32>
    %c1_131 = arith.constant 1 : index
    %c2_132 = arith.constant 2 : index
    %c0_133 = arith.constant 0 : index
    %c0_134 = arith.constant 0 : index
    %126 = vector.load %arg6[%c1_131, %c2_132, %c0_133, %c0_134] : memref<10x10x8x128xf32, #tpu.memory_space<vmem>>, vector<8x8x8x128xf32>
    %127 = vector.shape_cast %126 : vector<8x8x8x128xf32> to vector<512x128xf32>
    %128 = arith.truncf %127 : vector<512x128xf32> to vector<512x128xbf16>
    %c1_135 = arith.constant 1 : index
    %c2_136 = arith.constant 2 : index
    %c0_137 = arith.constant 0 : index
    %c0_138 = arith.constant 0 : index
    %129 = vector.load %arg3[%c1_135, %c2_136, %c0_137, %c0_138] : memref<3x3x128x128xbf16, #tpu.memory_space<vmem>>, vector<1x1x128x128xbf16>
    %130 = vector.shape_cast %129 : vector<1x1x128x128xbf16> to vector<128x128xbf16>
    %cst_139 = arith.constant dense<0.000000e+00> : vector<512x128xf32>
    %131 = tpu.matmul %128, %130, %cst_139 {dimension_numbers = #tpu.dot_dimension_numbers<[1], [0], [0], [1], [0, 0, 1, 1], [], []>} : vector<512x128xbf16>, vector<128x128xbf16>, vector<512x128xf32> -> vector<512x128xf32>
    %132 = arith.addf %125, %131 : vector<512x128xf32>
    %c2_140 = arith.constant 2 : index
    %c0_141 = arith.constant 0 : index
    %c0_142 = arith.constant 0 : index
    %c0_143 = arith.constant 0 : index
    %133 = vector.load %arg6[%c2_140, %c0_141, %c0_142, %c0_143] : memref<10x10x8x128xf32, #tpu.memory_space<vmem>>, vector<8x8x8x128xf32>
    %134 = vector.shape_cast %133 : vector<8x8x8x128xf32> to vector<512x128xf32>
    %135 = arith.truncf %134 : vector<512x128xf32> to vector<512x128xbf16>
    %c2_144 = arith.constant 2 : index
    %c0_145 = arith.constant 0 : index
    %c0_146 = arith.constant 0 : index
    %c0_147 = arith.constant 0 : index
    %136 = vector.load %arg3[%c2_144, %c0_145, %c0_146, %c0_147] : memref<3x3x128x128xbf16, #tpu.memory_space<vmem>>, vector<1x1x128x128xbf16>
    %137 = vector.shape_cast %136 : vector<1x1x128x128xbf16> to vector<128x128xbf16>
    %cst_148 = arith.constant dense<0.000000e+00> : vector<512x128xf32>
    %138 = tpu.matmul %135, %137, %cst_148 {dimension_numbers = #tpu.dot_dimension_numbers<[1], [0], [0], [1], [0, 0, 1, 1], [], []>} : vector<512x128xbf16>, vector<128x128xbf16>, vector<512x128xf32> -> vector<512x128xf32>
    %139 = arith.addf %132, %138 : vector<512x128xf32>
    %c2_149 = arith.constant 2 : index
    %c1_150 = arith.constant 1 : index
    %c0_151 = arith.constant 0 : index
    %c0_152 = arith.constant 0 : index
    %140 = vector.load %arg6[%c2_149, %c1_150, %c0_151, %c0_152] : memref<10x10x8x128xf32, #tpu.memory_space<vmem>>, vector<8x8x8x128xf32>
    %141 = vector.shape_cast %140 : vector<8x8x8x128xf32> to vector<512x128xf32>
    %142 = arith.truncf %141 : vector<512x128xf32> to vector<512x128xbf16>
    %c2_153 = arith.constant 2 : index
    %c1_154 = arith.constant 1 : index
    %c0_155 = arith.constant 0 : index
    %c0_156 = arith.constant 0 : index
    %143 = vector.load %arg3[%c2_153, %c1_154, %c0_155, %c0_156] : memref<3x3x128x128xbf16, #tpu.memory_space<vmem>>, vector<1x1x128x128xbf16>
    %144 = vector.shape_cast %143 : vector<1x1x128x128xbf16> to vector<128x128xbf16>
    %cst_157 = arith.constant dense<0.000000e+00> : vector<512x128xf32>
    %145 = tpu.matmul %142, %144, %cst_157 {dimension_numbers = #tpu.dot_dimension_numbers<[1], [0], [0], [1], [0, 0, 1, 1], [], []>} : vector<512x128xbf16>, vector<128x128xbf16>, vector<512x128xf32> -> vector<512x128xf32>
    %146 = arith.addf %139, %145 : vector<512x128xf32>
    %c2_158 = arith.constant 2 : index
    %c2_159 = arith.constant 2 : index
    %c0_160 = arith.constant 0 : index
    %c0_161 = arith.constant 0 : index
    %147 = vector.load %arg6[%c2_158, %c2_159, %c0_160, %c0_161] : memref<10x10x8x128xf32, #tpu.memory_space<vmem>>, vector<8x8x8x128xf32>
    %148 = vector.shape_cast %147 : vector<8x8x8x128xf32> to vector<512x128xf32>
    %149 = arith.truncf %148 : vector<512x128xf32> to vector<512x128xbf16>
    %c2_162 = arith.constant 2 : index
    %c2_163 = arith.constant 2 : index
    %c0_164 = arith.constant 0 : index
    %c0_165 = arith.constant 0 : index
    %150 = vector.load %arg3[%c2_162, %c2_163, %c0_164, %c0_165] : memref<3x3x128x128xbf16, #tpu.memory_space<vmem>>, vector<1x1x128x128xbf16>
    %151 = vector.shape_cast %150 : vector<1x1x128x128xbf16> to vector<128x128xbf16>
    %cst_166 = arith.constant dense<0.000000e+00> : vector<512x128xf32>
    %152 = tpu.matmul %149, %151, %cst_166 {dimension_numbers = #tpu.dot_dimension_numbers<[1], [0], [0], [1], [0, 0, 1, 1], [], []>} : vector<512x128xbf16>, vector<128x128xbf16>, vector<512x128xf32> -> vector<512x128xf32>
    %153 = arith.addf %146, %152 : vector<512x128xf32>
    %154 = vector.extract_strided_slice %11 {offsets = [2, 0], sizes = [1, 128], strides = [1, 1]} : vector<4x128xf32> to vector<1x128xf32>
    %155 = vector.broadcast %154 : vector<1x128xf32> to vector<512x128xf32>
    %156 = arith.mulf %153, %155 : vector<512x128xf32>
    %157 = vector.extract_strided_slice %11 {offsets = [3, 0], sizes = [1, 128], strides = [1, 1]} : vector<4x128xf32> to vector<1x128xf32>
    %158 = vector.broadcast %157 : vector<1x128xf32> to vector<512x128xf32>
    %159 = arith.addf %156, %158 : vector<512x128xf32>
    %cst_167 = arith.constant 0.000000e+00 : f32
    %160 = vector.broadcast %cst_167 : f32 to vector<512x128xf32>
    %161 = arith.maximumf %159, %160 : vector<512x128xf32>
    %162 = vector.shape_cast %161 : vector<512x128xf32> to vector<8x8x8x128xf32>
    %c0_168 = arith.constant 0 : index
    %c0_169 = arith.constant 0 : index
    %c0_170 = arith.constant 0 : index
    %c0_171 = arith.constant 0 : index
    %163 = vector.load %arg5[%c0_168, %c0_169, %c0_170, %c0_171] : memref<8x8x8x128xf32, #tpu.memory_space<vmem>>, vector<8x8x8x128xf32>
    tpu.vector_store %arg5[%c0_168, %c0_169, %c0_170, %c0_171], %162 {strides = array<i32>} : memref<8x8x8x128xf32, #tpu.memory_space<vmem>>, vector<8x8x8x128xf32>,
    return
  }
  func.func @transform_0(%arg0: i32) -> (i32, i32, i32, i32, i32) {
    %c0_i32 = arith.constant 0 : i32
    %c0_i32_0 = arith.constant 0 : i32
    %c0_i32_1 = arith.constant 0 : i32
    %c0_i32_2 = arith.constant 0 : i32
    %c0_i32_3 = arith.constant 0 : i32
    return %c0_i32, %c0_i32_0, %c0_i32_1, %arg0, %c0_i32_2 : i32, i32, i32, i32, i32
  }
  func.func @transform_1(%arg0: i32) -> (i32, i32, i32, i32) {
    %c0_i32 = arith.constant 0 : i32
    %c0_i32_0 = arith.constant 0 : i32
    %c0_i32_1 = arith.constant 0 : i32
    %c0_i32_2 = arith.constant 0 : i32
    %c0_i32_3 = arith.constant 0 : i32
    return %c0_i32, %c0_i32_0, %c0_i32_1, %c0_i32_2 : i32, i32, i32, i32
  }
  func.func @transform_2(%arg0: i32) -> (i32, i32, i32, i32) {
    %c0_i32 = arith.constant 0 : i32
    %c0_i32_0 = arith.constant 0 : i32
    %c0_i32_1 = arith.constant 0 : i32
    %c0_i32_2 = arith.constant 0 : i32
    %c0_i32_3 = arith.constant 0 : i32
    return %c0_i32, %c0_i32_0, %c0_i32_1, %c0_i32_2 : i32, i32, i32, i32
  }
  func.func @transform_3(%arg0: i32) -> (i32, i32) {
    %c0_i32 = arith.constant 0 : i32
    %c0_i32_0 = arith.constant 0 : i32
    %c0_i32_1 = arith.constant 0 : i32
    return %c0_i32, %c0_i32_0 : i32, i32
  }
  func.func @transform_4(%arg0: i32) -> (i32, i32, i32, i32) {
    %c0_i32 = arith.constant 0 : i32
    %c0_i32_0 = arith.constant 0 : i32
    %c0_i32_1 = arith.constant 0 : i32
    %c0_i32_2 = arith.constant 0 : i32
    return %c0_i32, %c0_i32_0, %arg0, %c0_i32_1 : i32, i32, i32, i32
  }
}

</mosaic_0001>

<llo_original>
// kernel: tpu_custom_call.1
$region0: #{tpu_custom_call.1}
  #allocation0 [shape = 'u32[]', space=smem, size = 0x4, offset = 0x4, fixed_abs, tag = 'smem constant byte address 0x4 - core index']
  #allocation1 [shape = 'u32[144,128]{1,0:T(1,128)}', space=vmem, size = 0x12000, scoped, tag = 'internal scratch']
  #allocation2 [shape = 'f32[10,10,8,128]{3,2,1,0:T(8,128)}', space=vmem, size = 0x64000, scoped, tag = 'scratch operand']
  %s0 = inlined_call_operand.hbm [shape: f32[4,10,10,16,64], index: 0, kind: input, shape index: {}]
  %s1 = inlined_call_operand.hbm [shape: bf16[3,3,64,128], index: 1, kind: input, shape index: {}]
  %s2 = inlined_call_operand.hbm [shape: bf16[3,3,128,128], index: 2, kind: input, shape index: {}]
  %s3 = inlined_call_operand.hbm [shape: f32[4,128], index: 3, kind: input, shape index: {}]
  %s4 = inlined_call_operand.hbm [shape: f32[8,8,16,128], index: 4, kind: output, shape index: {}]
  %s5 = sld [smem:[#allocation0]]
  $region65: #{tpu_custom_call.1} parent=0
    _
  %s7 = ssub.s32 1, %s5
  %s8 = scalar_select 0, %s7, %s5
  $region1: #{tpu_custom_call.1} parent=0
    #allocation3 [shape = 'u8[3276800]{0}', space=vmem, size = 0x320000, scoped, tag = 'input window, operand 0']
    #allocation4 [shape = 's32[2]{0}', space=sflag, size = 0x8, scoped, tag = 'scoped memory for tpu_custom_call.1']
    #allocation5 [shape = 's32[2]{0}', space=sflag, size = 0x8, scoped, tag = 'scoped memory for tpu_custom_call.1']
    #allocation6 [shape = 'u8[147456]{0}', space=vmem, size = 0x24000, scoped, tag = 'input window, operand 1, single buffered']
    #allocation7 [shape = 's32[1]{0}', space=sflag, size = 0x4, scoped, tag = 'scoped memory for tpu_custom_call.1']
    #allocation8 [shape = 'u8[294912]{0}', space=vmem, size = 0x48000, scoped, tag = 'input window, operand 2, single buffered']
    #allocation9 [shape = 'u8[2048]{0}', space=vmem, size = 0x800, scoped, tag = 'input window, operand 3, single buffered']
    #allocation10 [shape = 's32[1]{0}', space=sflag, size = 0x4, scoped, tag = 'scoped memory for tpu_custom_call.1']
    #allocation11 [shape = 'u8[524288]{0}', space=vmem, size = 0x80000, scoped, tag = 'output window, operand 0']
    %9 = vsyncpa [#allocation4], 0
    %s10 = scalar_lea.sflag [#allocation4], 1
    %11 = vsyncpa %s10, 0
    %12 = vsyncpa [#allocation7], 0
    %13 = vsyncpa [#allocation10], 0
    %14 = vsyncpa [#allocation5], 0
    %s15 = scalar_lea.sflag [#allocation5], 1
    %16 = vsyncpa %s15, 0
    loop: start=0, step=1, limit=4
    $region2: #{tpu_custom_call.1} parent=1 // loop_pre_header
      _
    $region3: #{tpu_custom_call.1} parent=1 // loop_header
      %s18 = sphi 0, %s22
      %p19 = scmp.ge.s32.totalorder %s18, 4
      %s28 = sphi 0, %s30
      %s31 = sphi 0, %s28
      %s32 = sphi 0, %s31
      %s48 = sphi 0, %s32
      %s52 = sphi 0, %s52
      %s54 = sphi 0, %s52
      %s55 = sphi 0, %s54
      %s69 = sphi 0, %s55
      %s73 = sphi 0, %s73
      %s75 = sphi 0, %s73
      %s76 = sphi 0, %s75
      %s90 = sphi 0, %s76
      %s94 = sphi 0, %s94
      %s96 = sphi 0, %s94
      %s97 = sphi 0, %s96
      %s111 = sphi 0, %s97
      %s117 = sphi 0, %s119
      %s120 = sphi 0, %s117
      %s121 = sphi 0, %s120
      %s137 = sphi 0, %s121
    $region4: #{tpu_custom_call.1} parent=1 // loop_header_branch
      %21 = sbr.rel (%p19) target = $region8
    $region5: #{tpu_custom_call.1} parent=1 // loop_body
      %s23 = ssub.s32 %s18, 1
      %s24 = ssub.s32 %s18, 2
      %s25 = sadd.s32 %s18, 1
      %s26 = ssub.s32 %s18, %s25
      %p27 = scmp.eq.s32.totalorder %s26, 0
      %s29 = sadd.s32 %s28, 1
      %s30 = scalar_select %p27, %s28, %s29
      %p33 = pneg %p27
      %p34 = scmp.eq.s32.totalorder %s18, 1
      %p35 = por %p33, %p34
      %p36 = scmp.ne.s32.totalorder %s28, %s31
      %p37 = scmp.eq.s32.totalorder %s18, 0
      %p38 = por %p36, %p37
      %p39 = scmp.ne.s32.totalorder %s28, %s31
      %p40 = scmp.eq.s32.totalorder %s23, 1
      %p41 = por %p39, %p40
      %p42 = scmp.ne.s32.totalorder %s31, %s32
      %p43 = scmp.eq.s32.totalorder %s23, 0
      %p44 = por %p42, %p43
      %p45 = scmp.ne.s32.totalorder %s31, %s32
      %p46 = scmp.eq.s32.totalorder %s24, 1
      %p47 = por %p45, %p46
      %p49 = scmp.ne.s32.totalorder %s32, %s48
      %p50 = scmp.eq.s32.totalorder %s24, 0
      %p51 = por %p49, %p50
      %s53 = sadd.s32 %s52, 1
      %p56 = scmp.eq.s32.totalorder %s18, 1
      %p57 = scmp.ne.s32.totalorder %s52, %s54
      %p58 = scmp.eq.s32.totalorder %s18, 0
      %p59 = por %p57, %p58
      %p60 = scmp.ne.s32.totalorder %s52, %s54
      %p61 = scmp.eq.s32.totalorder %s23, 1
      %p62 = por %p60, %p61
      %p63 = scmp.ne.s32.totalorder %s54, %s55
      %p64 = scmp.eq.s32.totalorder %s23, 0
      %p65 = por %p63, %p64
      %p66 = scmp.ne.s32.totalorder %s54, %s55
      %p67 = scmp.eq.s32.totalorder %s24, 1
      %p68 = por %p66, %p67
      %p70 = scmp.ne.s32.totalorder %s55, %s69
      %p71 = scmp.eq.s32.totalorder %s24, 0
      %p72 = por %p70, %p71
      %s74 = sadd.s32 %s73, 1
      %p77 = scmp.eq.s32.totalorder %s18, 1
      %p78 = scmp.ne.s32.totalorder %s73, %s75
      %p79 = scmp.eq.s32.totalorder %s18, 0
      %p80 = por %p78, %p79
      %p81 = scmp.ne.s32.totalorder %s73, %s75
      %p82 = scmp.eq.s32.totalorder %s23, 1
      %p83 = por %p81, %p82
      %p84 = scmp.ne.s32.totalorder %s75, %s76
      %p85 = scmp.eq.s32.totalorder %s23, 0
      %p86 = por %p84, %p85
      %p87 = scmp.ne.s32.totalorder %s75, %s76
      %p88 = scmp.eq.s32.totalorder %s24, 1
      %p89 = por %p87, %p88
      %p91 = scmp.ne.s32.totalorder %s76, %s90
      %p92 = scmp.eq.s32.totalorder %s24, 0
      %p93 = por %p91, %p92
      %s95 = sadd.s32 %s94, 1
      %p98 = scmp.eq.s32.totalorder %s18, 1
      %p99 = scmp.ne.s32.totalorder %s94, %s96
      %p100 = scmp.eq.s32.totalorder %s18, 0
      %p101 = por %p99, %p100
      %p102 = scmp.ne.s32.totalorder %s94, %s96
      %p103 = scmp.eq.s32.totalorder %s23, 1
      %p104 = por %p102, %p103
      %p105 = scmp.ne.s32.totalorder %s96, %s97
      %p106 = scmp.eq.s32.totalorder %s23, 0
      %p107 = por %p105, %p106
      %p108 = scmp.ne.s32.totalorder %s96, %s97
      %p109 = scmp.eq.s32.totalorder %s24, 1
      %p110 = por %p108, %p109
      %p112 = scmp.ne.s32.totalorder %s97, %s111
      %p113 = scmp.eq.s32.totalorder %s24, 0
      %p114 = por %p112, %p113
      %s115 = ssub.s32 %s18, %s25
      %p116 = scmp.eq.s32.totalorder %s115, 0
      %s118 = sadd.s32 %s117, 1
      %s119 = scalar_select %p116, %s117, %s118
      %p122 = pneg %p116
      %p123 = scmp.eq.s32.totalorder %s18, 1
      %p124 = por %p122, %p123
      %p125 = scmp.ne.s32.totalorder %s117, %s120
      %p126 = scmp.eq.s32.totalorder %s18, 0
      %p127 = por %p125, %p126
      %p128 = scmp.ne.s32.totalorder %s117, %s120
      %p129 = scmp.eq.s32.totalorder %s23, 1
      %p130 = por %p128, %p129
      %p131 = scmp.ne.s32.totalorder %s120, %s121
      %p132 = scmp.eq.s32.totalorder %s23, 0
      %p133 = por %p131, %p132
      %p134 = scmp.ne.s32.totalorder %s120, %s121
      %p135 = scmp.eq.s32.totalorder %s24, 1
      %p136 = por %p134, %p135
      %p138 = scmp.ne.s32.totalorder %s121, %s137
      %p139 = scmp.eq.s32.totalorder %s24, 0
      %p140 = por %p138, %p139
      %p141 = scmp.le.s32.totalorder 1, %s18
      %p142 = scmp.lt.s32.totalorder %s18, 3
      %p143 = pnand %p141, %p142
      %p144 = pneg %p143
      // Predicated region
      $region9: #{tpu_custom_call.1} parent=5 // pred_check
        _
      $region10: #{tpu_custom_call.1} parent=5 // pred_check_branch
        %146 = sbr.rel (%p143) target = $region12
      $region11: #{tpu_custom_call.1} parent=5 // pred_region
        %s147 = ssub.s32 %s18, 1
        // Predicated region
        $region13: #{tpu_custom_call.1} parent=11 // pred_check
          %p148 = pneg %p65
        $region14: #{tpu_custom_call.1} parent=11 // pred_check_branch
          %150 = sbr.rel (%p148) target = $region16
        $region15: #{tpu_custom_call.1} parent=11 // pred_region
          %s152 = ssub.s32 4608, 4608
          %153 = vsyncadd [#allocation7], %s152
          %s154 = sshll.u32 [#allocation6], 4
          %s155 = int_to_ptr.vmem [resolvable:$true] %s154
          %160 = dma.hbm_to_vmem [thread:$0]  %s1, 4608, %s155, [#allocation7], 64, 64, 4
        $region16: #{tpu_custom_call.1} parent=11 // pred_fallthru
          _
        // Predicated region
        $region17: #{tpu_custom_call.1} parent=11 // pred_check
          %p161 = pneg %p86
        $region18: #{tpu_custom_call.1} parent=11 // pred_check_branch
          %163 = sbr.rel (%p161) target = $region20
        $region19: #{tpu_custom_call.1} parent=11 // pred_region
          %s165 = ssub.s32 9216, 9216
          %166 = vsyncadd [#allocation7], %s165
          %s167 = sshll.u32 [#allocation8], 4
          %s168 = int_to_ptr.vmem [resolvable:$true] %s167
          %173 = dma.hbm_to_vmem [thread:$0]  %s2, 9216, %s168, [#allocation7], 64, 64, 4
        $region20: #{tpu_custom_call.1} parent=11 // pred_fallthru
          _
        // Predicated region
        $region21: #{tpu_custom_call.1} parent=11 // pred_check
          %p174 = pneg %p107
        $region22: #{tpu_custom_call.1} parent=11 // pred_check_branch
          %176 = sbr.rel (%p174) target = $region24
        $region23: #{tpu_custom_call.1} parent=11 // pred_region
          %s178 = ssub.s32 64, 64
          %179 = vsyncadd [#allocation10], %s178
          %s181 = sshll.u32 [#allocation9], 4
          %s182 = int_to_ptr.vmem [resolvable:$true] %s181
          %184 = dma.hbm_to_vmem [thread:$0]  %s3, 64, %s182, [#allocation10]
        $region24: #{tpu_custom_call.1} parent=11 // pred_fallthru
          _
      $region12: #{tpu_custom_call.1} parent=5 // pred_fallthru
        _
      %p185 = scmp.lt.s32.totalorder %s18, 2
      // Predicated region
      $region25: #{tpu_custom_call.1} parent=5 // pred_check
        %p186 = pneg %p185
      $region26: #{tpu_custom_call.1} parent=5 // pred_check_branch
        %188 = sbr.rel (%p186) target = $region28
      $region27: #{tpu_custom_call.1} parent=5 // pred_region
        // Predicated region
        $region29: #{tpu_custom_call.1} parent=27 // pred_check
          %p189 = pneg %p38
        $region30: #{tpu_custom_call.1} parent=27 // pred_check_branch
          %191 = sbr.rel (%p189) target = $region32
        $region31: #{tpu_custom_call.1} parent=27 // pred_region
          %s192 = sand.u32 %s28, 1
          %s193 = scalar_lea.sflag [#allocation4], %s192
          %s194 = sand.u32 %s28, 1
          %s195 = smul.addr %s194, 3200
          %s196 = scalar_lea.vmem [#allocation3], %s195
          %s198 = ssub.s32 51200, 51200
          %199 = vsyncadd %s193, %s198
          %s200 = smul.addr %s18, 128
          %s201 = scalar_lea.hbm %s0, %s200
          %s202 = sshll.u32 %s196, 4
          %s203 = int_to_ptr.vmem [resolvable:$true] %s202
          %208 = dma.hbm_to_vmem [thread:$0]  %s201, 51200, %s203, %s193, 256, 128, 8
        $region32: #{tpu_custom_call.1} parent=27 // pred_fallthru
          _
      $region28: #{tpu_custom_call.1} parent=5 // pred_fallthru
        _
      %p209 = scmp.le.s32.totalorder 1, %s18
      %p210 = scmp.lt.s32.totalorder %s18, 3
      %p211 = pnand %p209, %p210
      %p212 = pneg %p211
      // Predicated region
      $region33: #{tpu_custom_call.1} parent=5 // pred_check
        _
      $region34: #{tpu_custom_call.1} parent=5 // pred_check_branch
        %214 = sbr.rel (%p211) target = $region36
      $region35: #{tpu_custom_call.1} parent=5 // pred_region
        %s215 = ssub.s32 %s18, 1
        %s216 = sand.u32 %s31, 1
        %s217 = scalar_lea.sflag [#allocation4], %s216
        %s218 = sand.u32 %s31, 1
        %s219 = smul.addr %s218, 3200
        %s220 = scalar_lea.vmem [#allocation3], %s219
        // Predicated region
        $region37: #{tpu_custom_call.1} parent=35 // pred_check
          %p221 = pneg %p44
        $region38: #{tpu_custom_call.1} parent=35 // pred_check_branch
          %223 = sbr.rel (%p221) target = $region40
        $region39: #{tpu_custom_call.1} parent=35 // pred_region
          %224 = dma.done %s217, 51200
        $region40: #{tpu_custom_call.1} parent=35 // pred_fallthru
          _
        // Predicated region
        $region41: #{tpu_custom_call.1} parent=35 // pred_check
          %p225 = pneg %p65
        $region42: #{tpu_custom_call.1} parent=35 // pred_check_branch
          %227 = sbr.rel (%p225) target = $region44
        $region43: #{tpu_custom_call.1} parent=35 // pred_region
          %228 = dma.done [#allocation7], 4608
        $region44: #{tpu_custom_call.1} parent=35 // pred_fallthru
          _
        // Predicated region
        $region45: #{tpu_custom_call.1} parent=35 // pred_check
          %p229 = pneg %p86
        $region46: #{tpu_custom_call.1} parent=35 // pred_check_branch
          %231 = sbr.rel (%p229) target = $region48
        $region47: #{tpu_custom_call.1} parent=35 // pred_region
          %232 = dma.done [#allocation7], 9216
        $region48: #{tpu_custom_call.1} parent=35 // pred_fallthru
          _
        // Predicated region
        $region49: #{tpu_custom_call.1} parent=35 // pred_check
          %p233 = pneg %p107
        $region50: #{tpu_custom_call.1} parent=35 // pred_check_branch
          %235 = sbr.rel (%p233) target = $region52
        $region51: #{tpu_custom_call.1} parent=35 // pred_region
          %236 = dma.done [#allocation10], 64
        $region52: #{tpu_custom_call.1} parent=35 // pred_fallthru
          _
        %s237 = sand.u32 %s31, 1
        %s238 = scalar_lea.sflag [#allocation4], %s237
        %s239 = sand.u32 %s31, 1
        %s240 = smul.addr %s239, 3200
        %s241 = scalar_lea.vmem [#allocation3], %s240
        %p242 = pneg %p44
        %p243 = pneg %p41
        %p244 = pneg %p65
        %p245 = pneg %p62
        %p246 = pneg %p86
        %p247 = pneg %p83
        %p248 = pneg %p107
        %p249 = pneg %p104
        %p250 = pneg %p133
        %p251 = pneg %p130
        %s252 = sand.u32 %s120, 1
        %s253 = scalar_lea.sflag [#allocation5], %s252
        %s254 = sand.u32 %s120, 1
        %s255 = smul.addr %s254, 512
        %s256 = scalar_lea.vmem [#allocation11], %s255
        %v258 = vld [vmem:[%s220] sm:$0xff]
        %v259 = vld [vmem:[%s220 + $0x8] sm:$0xff]
        %v260 = vld [vmem:[%s220 + $0x10] sm:$0xff]
        %v261 = vld [vmem:[%s220 + $0x18] sm:$0xff]
        %v262 = vld [vmem:[%s220 + $0x20] sm:$0xff]
        %v263 = vld [vmem:[%s220 + $0x28] sm:$0xff]
        %v264 = vld [vmem:[%s220 + $0x30] sm:$0xff]
        %v265 = vld [vmem:[%s220 + $0x38] sm:$0xff]
        %v266 = vld [vmem:[%s220 + $0x40] sm:$0xff]
        %v267 = vld [vmem:[%s220 + $0x48] sm:$0xff]
        %v268 = vld [vmem:[%s220 + $0x50] sm:$0xff]
        %v269 = vld [vmem:[%s220 + $0x58] sm:$0xff]
        %v270 = vld [vmem:[%s220 + $0x60] sm:$0xff]
        %v271 = vld [vmem:[%s220 + $0x68] sm:$0xff]
        %v272 = vld [vmem:[%s220 + $0x70] sm:$0xff]
        %v273 = vld [vmem:[%s220 + $0x78] sm:$0xff]
        %v274 = vld [vmem:[%s220 + $0x80] sm:$0xff]
        %v275 = vld [vmem:[%s220 + $0x88] sm:$0xff]
        %v276 = vld [vmem:[%s220 + $0x90] sm:$0xff]
        %v277 = vld [vmem:[%s220 + $0x98] sm:$0xff]
        %v278 = vld [vmem:[%s220 + $0xa0] sm:$0xff]
        %v279 = vld [vmem:[%s220 + $0xa8] sm:$0xff]
        %v280 = vld [vmem:[%s220 + $0xb0] sm:$0xff]
        %v281 = vld [vmem:[%s220 + $0xb8] sm:$0xff]
        %v282 = vld [vmem:[%s220 + $0xc0] sm:$0xff]
        %v283 = vld [vmem:[%s220 + $0xc8] sm:$0xff]
        %v284 = vld [vmem:[%s220 + $0xd0] sm:$0xff]
        %v285 = vld [vmem:[%s220 + $0xd8] sm:$0xff]
        %v286 = vld [vmem:[%s220 + $0xe0] sm:$0xff]
        %v287 = vld [vmem:[%s220 + $0xe8] sm:$0xff]
        %v288 = vld [vmem:[%s220 + $0xf0] sm:$0xff]
        %v289 = vld [vmem:[%s220 + $0xf8] sm:$0xff]
        %v290 = vld [vmem:[%s220 + $0x100] sm:$0xff]
        %v291 = vld [vmem:[%s220 + $0x108] sm:$0xff]
        %v292 = vld [vmem:[%s220 + $0x110] sm:$0xff]
        %v293 = vld [vmem:[%s220 + $0x118] sm:$0xff]
        %v294 = vld [vmem:[%s220 + $0x120] sm:$0xff]
        %v295 = vld [vmem:[%s220 + $0x128] sm:$0xff]
        %v296 = vld [vmem:[%s220 + $0x130] sm:$0xff]
        %v297 = vld [vmem:[%s220 + $0x138] sm:$0xff]
        %v298 = vld [vmem:[%s220 + $0x140] sm:$0xff]
        %v299 = vld [vmem:[%s220 + $0x148] sm:$0xff]
        %v300 = vld [vmem:[%s220 + $0x150] sm:$0xff]
        %v301 = vld [vmem:[%s220 + $0x158] sm:$0xff]
        %v302 = vld [vmem:[%s220 + $0x160] sm:$0xff]
        %v303 = vld [vmem:[%s220 + $0x168] sm:$0xff]
        %v304 = vld [vmem:[%s220 + $0x170] sm:$0xff]
        %v305 = vld [vmem:[%s220 + $0x178] sm:$0xff]
        %v306 = vld [vmem:[%s220 + $0x180] sm:$0xff]
        %v307 = vld [vmem:[%s220 + $0x188] sm:$0xff]
        %v308 = vld [vmem:[%s220 + $0x190] sm:$0xff]
        %v309 = vld [vmem:[%s220 + $0x198] sm:$0xff]
        %v310 = vld [vmem:[%s220 + $0x1a0] sm:$0xff]
        %v311 = vld [vmem:[%s220 + $0x1a8] sm:$0xff]
        %v312 = vld [vmem:[%s220 + $0x1b0] sm:$0xff]
        %v313 = vld [vmem:[%s220 + $0x1b8] sm:$0xff]
        %v314 = vld [vmem:[%s220 + $0x1c0] sm:$0xff]
        %v315 = vld [vmem:[%s220 + $0x1c8] sm:$0xff]
        %v316 = vld [vmem:[%s220 + $0x1d0] sm:$0xff]
        %v317 = vld [vmem:[%s220 + $0x1d8] sm:$0xff]
        %v318 = vld [vmem:[%s220 + $0x1e0] sm:$0xff]
        %v319 = vld [vmem:[%s220 + $0x1e8] sm:$0xff]
        %v320 = vld [vmem:[%s220 + $0x1f0] sm:$0xff]
        %v321 = vld [vmem:[%s220 + $0x1f8] sm:$0xff]
        %v322 = vld [vmem:[%s220 + $0x200] sm:$0xff]
        %v323 = vld [vmem:[%s220 + $0x208] sm:$0xff]
        %v324 = vld [vmem:[%s220 + $0x210] sm:$0xff]
        %v325 = vld [vmem:[%s220 + $0x218] sm:$0xff]
        %v326 = vld [vmem:[%s220 + $0x220] sm:$0xff]
        %v327 = vld [vmem:[%s220 + $0x228] sm:$0xff]
        %v328 = vld [vmem:[%s220 + $0x230] sm:$0xff]
        %v329 = vld [vmem:[%s220 + $0x238] sm:$0xff]
        %v330 = vld [vmem:[%s220 + $0x240] sm:$0xff]
        %v331 = vld [vmem:[%s220 + $0x248] sm:$0xff]
        %v332 = vld [vmem:[%s220 + $0x250] sm:$0xff]
        %v333 = vld [vmem:[%s220 + $0x258] sm:$0xff]
        %v334 = vld [vmem:[%s220 + $0x260] sm:$0xff]
        %v335 = vld [vmem:[%s220 + $0x268] sm:$0xff]
        %v336 = vld [vmem:[%s220 + $0x270] sm:$0xff]
        %v337 = vld [vmem:[%s220 + $0x278] sm:$0xff]
        %v338 = vld [vmem:[%s220 + $0x280] sm:$0xff]
        %v339 = vld [vmem:[%s220 + $0x288] sm:$0xff]
        %v340 = vld [vmem:[%s220 + $0x290] sm:$0xff]
        %v341 = vld [vmem:[%s220 + $0x298] sm:$0xff]
        %v342 = vld [vmem:[%s220 + $0x2a0] sm:$0xff]
        %v343 = vld [vmem:[%s220 + $0x2a8] sm:$0xff]
        %v344 = vld [vmem:[%s220 + $0x2b0] sm:$0xff]
        %v345 = vld [vmem:[%s220 + $0x2b8] sm:$0xff]
        %v346 = vld [vmem:[%s220 + $0x2c0] sm:$0xff]
        %v347 = vld [vmem:[%s220 + $0x2c8] sm:$0xff]
        %v348 = vld [vmem:[%s220 + $0x2d0] sm:$0xff]
        %v349 = vld [vmem:[%s220 + $0x2d8] sm:$0xff]
        %v350 = vld [vmem:[%s220 + $0x2e0] sm:$0xff]
        %v351 = vld [vmem:[%s220 + $0x2e8] sm:$0xff]
        %v352 = vld [vmem:[%s220 + $0x2f0] sm:$0xff]
        %v353 = vld [vmem:[%s220 + $0x2f8] sm:$0xff]
        %v354 = vld [vmem:[%s220 + $0x300] sm:$0xff]
        %v355 = vld [vmem:[%s220 + $0x308] sm:$0xff]
        %v356 = vld [vmem:[%s220 + $0x310] sm:$0xff]
        %v357 = vld [vmem:[%s220 + $0x318] sm:$0xff]
        %s358 = scalar_lea.vmem %s220, 800 [#allocation3]
        %v359 = vld [vmem:[%s358] sm:$0xff]
        %v360 = vld [vmem:[%s358 + $0x8] sm:$0xff]
        %v361 = vld [vmem:[%s358 + $0x10] sm:$0xff]
        %v362 = vld [vmem:[%s358 + $0x18] sm:$0xff]
        %v363 = vld [vmem:[%s358 + $0x20] sm:$0xff]
        %v364 = vld [vmem:[%s358 + $0x28] sm:$0xff]
        %v365 = vld [vmem:[%s358 + $0x30] sm:$0xff]
        %v366 = vld [vmem:[%s358 + $0x38] sm:$0xff]
        %v367 = vld [vmem:[%s358 + $0x40] sm:$0xff]
        %v368 = vld [vmem:[%s358 + $0x48] sm:$0xff]
        %v369 = vld [vmem:[%s358 + $0x50] sm:$0xff]
        %v370 = vld [vmem:[%s358 + $0x58] sm:$0xff]
        %v371 = vld [vmem:[%s358 + $0x60] sm:$0xff]
        %v372 = vld [vmem:[%s358 + $0x68] sm:$0xff]
        %v373 = vld [vmem:[%s358 + $0x70] sm:$0xff]
        %v374 = vld [vmem:[%s358 + $0x78] sm:$0xff]
        %v375 = vld [vmem:[%s358 + $0x80] sm:$0xff]
        %v376 = vld [vmem:[%s358 + $0x88] sm:$0xff]
        %v377 = vld [vmem:[%s358 + $0x90] sm:$0xff]
        %v378 = vld [vmem:[%s358 + $0x98] sm:$0xff]
        %v379 = vld [vmem:[%s358 + $0xa0] sm:$0xff]
        %v380 = vld [vmem:[%s358 + $0xa8] sm:$0xff]
        %v381 = vld [vmem:[%s358 + $0xb0] sm:$0xff]
        %v382 = vld [vmem:[%s358 + $0xb8] sm:$0xff]
        %v383 = vld [vmem:[%s358 + $0xc0] sm:$0xff]
        %v384 = vld [vmem:[%s358 + $0xc8] sm:$0xff]
        %v385 = vld [vmem:[%s358 + $0xd0] sm:$0xff]
        %v386 = vld [vmem:[%s358 + $0xd8] sm:$0xff]
        %v387 = vld [vmem:[%s358 + $0xe0] sm:$0xff]
        %v388 = vld [vmem:[%s358 + $0xe8] sm:$0xff]
        %v389 = vld [vmem:[%s358 + $0xf0] sm:$0xff]
        %v390 = vld [vmem:[%s358 + $0xf8] sm:$0xff]
        %v391 = vld [vmem:[%s358 + $0x100] sm:$0xff]
        %v392 = vld [vmem:[%s358 + $0x108] sm:$0xff]
        %v393 = vld [vmem:[%s358 + $0x110] sm:$0xff]
        %v394 = vld [vmem:[%s358 + $0x118] sm:$0xff]
        %v395 = vld [vmem:[%s358 + $0x120] sm:$0xff]
        %v396 = vld [vmem:[%s358 + $0x128] sm:$0xff]
        %v397 = vld [vmem:[%s358 + $0x130] sm:$0xff]
        %v398 = vld [vmem:[%s358 + $0x138] sm:$0xff]
        %v399 = vld [vmem:[%s358 + $0x140] sm:$0xff]
        %v400 = vld [vmem:[%s358 + $0x148] sm:$0xff]
        %v401 = vld [vmem:[%s358 + $0x150] sm:$0xff]
        %v402 = vld [vmem:[%s358 + $0x158] sm:$0xff]
        %v403 = vld [vmem:[%s358 + $0x160] sm:$0xff]
        %v404 = vld [vmem:[%s358 + $0x168] sm:$0xff]
        %v405 = vld [vmem:[%s358 + $0x170] sm:$0xff]
        %v406 = vld [vmem:[%s358 + $0x178] sm:$0xff]
        %v407 = vld [vmem:[%s358 + $0x180] sm:$0xff]
        %v408 = vld [vmem:[%s358 + $0x188] sm:$0xff]
        %v409 = vld [vmem:[%s358 + $0x190] sm:$0xff]
        %v410 = vld [vmem:[%s358 + $0x198] sm:$0xff]
        %v411 = vld [vmem:[%s358 + $0x1a0] sm:$0xff]
        %v412 = vld [vmem:[%s358 + $0x1a8] sm:$0xff]
        %v413 = vld [vmem:[%s358 + $0x1b0] sm:$0xff]
        %v414 = vld [vmem:[%s358 + $0x1b8] sm:$0xff]
        %v415 = vld [vmem:[%s358 + $0x1c0] sm:$0xff]
        %v416 = vld [vmem:[%s358 + $0x1c8] sm:$0xff]
        %v417 = vld [vmem:[%s358 + $0x1d0] sm:$0xff]
        %v418 = vld [vmem:[%s358 + $0x1d8] sm:$0xff]
        %v419 = vld [vmem:[%s358 + $0x1e0] sm:$0xff]
        %v420 = vld [vmem:[%s358 + $0x1e8] sm:$0xff]
        %v421 = vld [vmem:[%s358 + $0x1f0] sm:$0xff]
        %v422 = vld [vmem:[%s358 + $0x1f8] sm:$0xff]
        %v423 = vld [vmem:[%s358 + $0x200] sm:$0xff]
        %v424 = vld [vmem:[%s358 + $0x208] sm:$0xff]
        %v425 = vld [vmem:[%s358 + $0x210] sm:$0xff]
        %v426 = vld [vmem:[%s358 + $0x218] sm:$0xff]
        %v427 = vld [vmem:[%s358 + $0x220] sm:$0xff]
        %v428 = vld [vmem:[%s358 + $0x228] sm:$0xff]
        %v429 = vld [vmem:[%s358 + $0x230] sm:$0xff]
        %v430 = vld [vmem:[%s358 + $0x238] sm:$0xff]
        %v431 = vld [vmem:[%s358 + $0x240] sm:$0xff]
        %v432 = vld [vmem:[%s358 + $0x248] sm:$0xff]
        %v433 = vld [vmem:[%s358 + $0x250] sm:$0xff]
        %v434 = vld [vmem:[%s358 + $0x258] sm:$0xff]
        %v435 = vld [vmem:[%s358 + $0x260] sm:$0xff]
        %v436 = vld [vmem:[%s358 + $0x268] sm:$0xff]
        %v437 = vld [vmem:[%s358 + $0x270] sm:$0xff]
        %v438 = vld [vmem:[%s358 + $0x278] sm:$0xff]
        %v439 = vld [vmem:[%s358 + $0x280] sm:$0xff]
        %v440 = vld [vmem:[%s358 + $0x288] sm:$0xff]
        %v441 = vld [vmem:[%s358 + $0x290] sm:$0xff]
        %v442 = vld [vmem:[%s358 + $0x298] sm:$0xff]
        %v443 = vld [vmem:[%s358 + $0x2a0] sm:$0xff]
        %v444 = vld [vmem:[%s358 + $0x2a8] sm:$0xff]
        %v445 = vld [vmem:[%s358 + $0x2b0] sm:$0xff]
        %v446 = vld [vmem:[%s358 + $0x2b8] sm:$0xff]
        %v447 = vld [vmem:[%s358 + $0x2c0] sm:$0xff]
        %v448 = vld [vmem:[%s358 + $0x2c8] sm:$0xff]
        %v449 = vld [vmem:[%s358 + $0x2d0] sm:$0xff]
        %v450 = vld [vmem:[%s358 + $0x2d8] sm:$0xff]
        %v451 = vld [vmem:[%s358 + $0x2e0] sm:$0xff]
        %v452 = vld [vmem:[%s358 + $0x2e8] sm:$0xff]
        %v453 = vld [vmem:[%s358 + $0x2f0] sm:$0xff]
        %v454 = vld [vmem:[%s358 + $0x2f8] sm:$0xff]
        %v455 = vld [vmem:[%s358 + $0x300] sm:$0xff]
        %v456 = vld [vmem:[%s358 + $0x308] sm:$0xff]
        %v457 = vld [vmem:[%s358 + $0x310] sm:$0xff]
        %v458 = vld [vmem:[%s358 + $0x318] sm:$0xff]
        %v459 = vmax.f32 %v258, %v359
        %v460 = vmax.f32 %v259, %v360
        %v461 = vmax.f32 %v260, %v361
        %v462 = vmax.f32 %v261, %v362
        %v463 = vmax.f32 %v262, %v363
        %v464 = vmax.f32 %v263, %v364
        %v465 = vmax.f32 %v264, %v365
        %v466 = vmax.f32 %v265, %v366
        %v467 = vmax.f32 %v266, %v367
        %v468 = vmax.f32 %v267, %v368
        %v469 = vmax.f32 %v268, %v369
        %v470 = vmax.f32 %v269, %v370
        %v471 = vmax.f32 %v270, %v371
        %v472 = vmax.f32 %v271, %v372
        %v473 = vmax.f32 %v272, %v373
        %v474 = vmax.f32 %v273, %v374
        %v475 = vmax.f32 %v274, %v375
        %v476 = vmax.f32 %v275, %v376
        %v477 = vmax.f32 %v276, %v377
        %v478 = vmax.f32 %v277, %v378
        %v479 = vmax.f32 %v278, %v379
        %v480 = vmax.f32 %v279, %v380
        %v481 = vmax.f32 %v280, %v381
        %v482 = vmax.f32 %v281, %v382
        %v483 = vmax.f32 %v282, %v383
        %v484 = vmax.f32 %v283, %v384
        %v485 = vmax.f32 %v284, %v385
        %v486 = vmax.f32 %v285, %v386
        %v487 = vmax.f32 %v286, %v387
        %v488 = vmax.f32 %v287, %v388
        %v489 = vmax.f32 %v288, %v389
        %v490 = vmax.f32 %v289, %v390
        %v491 = vmax.f32 %v290, %v391
        %v492 = vmax.f32 %v291, %v392
        %v493 = vmax.f32 %v292, %v393
        %v494 = vmax.f32 %v293, %v394
        %v495 = vmax.f32 %v294, %v395
        %v496 = vmax.f32 %v295, %v396
        %v497 = vmax.f32 %v296, %v397
        %v498 = vmax.f32 %v297, %v398
        %v499 = vmax.f32 %v298, %v399
        %v500 = vmax.f32 %v299, %v400
        %v501 = vmax.f32 %v300, %v401
        %v502 = vmax.f32 %v301, %v402
        %v503 = vmax.f32 %v302, %v403
        %v504 = vmax.f32 %v303, %v404
        %v505 = vmax.f32 %v304, %v405
        %v506 = vmax.f32 %v305, %v406
        %v507 = vmax.f32 %v306, %v407
        %v508 = vmax.f32 %v307, %v408
        %v509 = vmax.f32 %v308, %v409
        %v510 = vmax.f32 %v309, %v410
        %v511 = vmax.f32 %v310, %v411
        %v512 = vmax.f32 %v311, %v412
        %v513 = vmax.f32 %v312, %v413
        %v514 = vmax.f32 %v313, %v414
        %v515 = vmax.f32 %v314, %v415
        %v516 = vmax.f32 %v315, %v416
        %v517 = vmax.f32 %v316, %v417
        %v518 = vmax.f32 %v317, %v418
        %v519 = vmax.f32 %v318, %v419
        %v520 = vmax.f32 %v319, %v420
        %v521 = vmax.f32 %v320, %v421
        %v522 = vmax.f32 %v321, %v422
        %v523 = vmax.f32 %v322, %v423
        %v524 = vmax.f32 %v323, %v424
        %v525 = vmax.f32 %v324, %v425
        %v526 = vmax.f32 %v325, %v426
        %v527 = vmax.f32 %v326, %v427
        %v528 = vmax.f32 %v327, %v428
        %v529 = vmax.f32 %v328, %v429
        %v530 = vmax.f32 %v329, %v430
        %v531 = vmax.f32 %v330, %v431
        %v532 = vmax.f32 %v331, %v432
        %v533 = vmax.f32 %v332, %v433
        %v534 = vmax.f32 %v333, %v434
        %v535 = vmax.f32 %v334, %v435
        %v536 = vmax.f32 %v335, %v436
        %v537 = vmax.f32 %v336, %v437
        %v538 = vmax.f32 %v337, %v438
        %v539 = vmax.f32 %v338, %v439
        %v540 = vmax.f32 %v339, %v440
        %v541 = vmax.f32 %v340, %v441
        %v542 = vmax.f32 %v341, %v442
        %v543 = vmax.f32 %v342, %v443
        %v544 = vmax.f32 %v343, %v444
        %v545 = vmax.f32 %v344, %v445
        %v546 = vmax.f32 %v345, %v446
        %v547 = vmax.f32 %v346, %v447
        %v548 = vmax.f32 %v347, %v448
        %v549 = vmax.f32 %v348, %v449
        %v550 = vmax.f32 %v349, %v450
        %v551 = vmax.f32 %v350, %v451
        %v552 = vmax.f32 %v351, %v452
        %v553 = vmax.f32 %v352, %v453
        %v554 = vmax.f32 %v353, %v454
        %v555 = vmax.f32 %v354, %v455
        %v556 = vmax.f32 %v355, %v456
        %v557 = vmax.f32 %v356, %v457
        %v558 = vmax.f32 %v357, %v458
        %s559 = scalar_lea.vmem %s220, 1600 [#allocation3]
        %v560 = vld [vmem:[%s559] sm:$0xff]
        %v561 = vld [vmem:[%s559 + $0x8] sm:$0xff]
        %v562 = vld [vmem:[%s559 + $0x10] sm:$0xff]
        %v563 = vld [vmem:[%s559 + $0x18] sm:$0xff]
        %v564 = vld [vmem:[%s559 + $0x20] sm:$0xff]
        %v565 = vld [vmem:[%s559 + $0x28] sm:$0xff]
        %v566 = vld [vmem:[%s559 + $0x30] sm:$0xff]
        %v567 = vld [vmem:[%s559 + $0x38] sm:$0xff]
        %v568 = vld [vmem:[%s559 + $0x40] sm:$0xff]
        %v569 = vld [vmem:[%s559 + $0x48] sm:$0xff]
        %v570 = vld [vmem:[%s559 + $0x50] sm:$0xff]
        %v571 = vld [vmem:[%s559 + $0x58] sm:$0xff]
        %v572 = vld [vmem:[%s559 + $0x60] sm:$0xff]
        %v573 = vld [vmem:[%s559 + $0x68] sm:$0xff]
        %v574 = vld [vmem:[%s559 + $0x70] sm:$0xff]
        %v575 = vld [vmem:[%s559 + $0x78] sm:$0xff]
        %v576 = vld [vmem:[%s559 + $0x80] sm:$0xff]
        %v577 = vld [vmem:[%s559 + $0x88] sm:$0xff]
        %v578 = vld [vmem:[%s559 + $0x90] sm:$0xff]
        %v579 = vld [vmem:[%s559 + $0x98] sm:$0xff]
        %v580 = vld [vmem:[%s559 + $0xa0] sm:$0xff]
        %v581 = vld [vmem:[%s559 + $0xa8] sm:$0xff]
        %v582 = vld [vmem:[%s559 + $0xb0] sm:$0xff]
        %v583 = vld [vmem:[%s559 + $0xb8] sm:$0xff]
        %v584 = vld [vmem:[%s559 + $0xc0] sm:$0xff]
        %v585 = vld [vmem:[%s559 + $0xc8] sm:$0xff]
        %v586 = vld [vmem:[%s559 + $0xd0] sm:$0xff]
        %v587 = vld [vmem:[%s559 + $0xd8] sm:$0xff]
        %v588 = vld [vmem:[%s559 + $0xe0] sm:$0xff]
        %v589 = vld [vmem:[%s559 + $0xe8] sm:$0xff]
        %v590 = vld [vmem:[%s559 + $0xf0] sm:$0xff]
        %v591 = vld [vmem:[%s559 + $0xf8] sm:$0xff]
        %v592 = vld [vmem:[%s559 + $0x100] sm:$0xff]
        %v593 = vld [vmem:[%s559 + $0x108] sm:$0xff]
        %v594 = vld [vmem:[%s559 + $0x110] sm:$0xff]
        %v595 = vld [vmem:[%s559 + $0x118] sm:$0xff]
        %v596 = vld [vmem:[%s559 + $0x120] sm:$0xff]
        %v597 = vld [vmem:[%s559 + $0x128] sm:$0xff]
        %v598 = vld [vmem:[%s559 + $0x130] sm:$0xff]
        %v599 = vld [vmem:[%s559 + $0x138] sm:$0xff]
        %v600 = vld [vmem:[%s559 + $0x140] sm:$0xff]
        %v601 = vld [vmem:[%s559 + $0x148] sm:$0xff]
        %v602 = vld [vmem:[%s559 + $0x150] sm:$0xff]
        %v603 = vld [vmem:[%s559 + $0x158] sm:$0xff]
        %v604 = vld [vmem:[%s559 + $0x160] sm:$0xff]
        %v605 = vld [vmem:[%s559 + $0x168] sm:$0xff]
        %v606 = vld [vmem:[%s559 + $0x170] sm:$0xff]
        %v607 = vld [vmem:[%s559 + $0x178] sm:$0xff]
        %v608 = vld [vmem:[%s559 + $0x180] sm:$0xff]
        %v609 = vld [vmem:[%s559 + $0x188] sm:$0xff]
        %v610 = vld [vmem:[%s559 + $0x190] sm:$0xff]
        %v611 = vld [vmem:[%s559 + $0x198] sm:$0xff]
        %v612 = vld [vmem:[%s559 + $0x1a0] sm:$0xff]
        %v613 = vld [vmem:[%s559 + $0x1a8] sm:$0xff]
        %v614 = vld [vmem:[%s559 + $0x1b0] sm:$0xff]
        %v615 = vld [vmem:[%s559 + $0x1b8] sm:$0xff]
        %v616 = vld [vmem:[%s559 + $0x1c0] sm:$0xff]
        %v617 = vld [vmem:[%s559 + $0x1c8] sm:$0xff]
        %v618 = vld [vmem:[%s559 + $0x1d0] sm:$0xff]
        %v619 = vld [vmem:[%s559 + $0x1d8] sm:$0xff]
        %v620 = vld [vmem:[%s559 + $0x1e0] sm:$0xff]
        %v621 = vld [vmem:[%s559 + $0x1e8] sm:$0xff]
        %v622 = vld [vmem:[%s559 + $0x1f0] sm:$0xff]
        %v623 = vld [vmem:[%s559 + $0x1f8] sm:$0xff]
        %v624 = vld [vmem:[%s559 + $0x200] sm:$0xff]
        %v625 = vld [vmem:[%s559 + $0x208] sm:$0xff]
        %v626 = vld [vmem:[%s559 + $0x210] sm:$0xff]
        %v627 = vld [vmem:[%s559 + $0x218] sm:$0xff]
        %v628 = vld [vmem:[%s559 + $0x220] sm:$0xff]
        %v629 = vld [vmem:[%s559 + $0x228] sm:$0xff]
        %v630 = vld [vmem:[%s559 + $0x230] sm:$0xff]
        %v631 = vld [vmem:[%s559 + $0x238] sm:$0xff]
        %v632 = vld [vmem:[%s559 + $0x240] sm:$0xff]
        %v633 = vld [vmem:[%s559 + $0x248] sm:$0xff]
        %v634 = vld [vmem:[%s559 + $0x250] sm:$0xff]
        %v635 = vld [vmem:[%s559 + $0x258] sm:$0xff]
        %v636 = vld [vmem:[%s559 + $0x260] sm:$0xff]
        %v637 = vld [vmem:[%s559 + $0x268] sm:$0xff]
        %v638 = vld [vmem:[%s559 + $0x270] sm:$0xff]
        %v639 = vld [vmem:[%s559 + $0x278] sm:$0xff]
        %v640 = vld [vmem:[%s559 + $0x280] sm:$0xff]
        %v641 = vld [vmem:[%s559 + $0x288] sm:$0xff]
        %v642 = vld [vmem:[%s559 + $0x290] sm:$0xff]
        %v643 = vld [vmem:[%s559 + $0x298] sm:$0xff]
        %v644 = vld [vmem:[%s559 + $0x2a0] sm:$0xff]
        %v645 = vld [vmem:[%s559 + $0x2a8] sm:$0xff]
        %v646 = vld [vmem:[%s559 + $0x2b0] sm:$0xff]
        %v647 = vld [vmem:[%s559 + $0x2b8] sm:$0xff]
        %v648 = vld [vmem:[%s559 + $0x2c0] sm:$0xff]
        %v649 = vld [vmem:[%s559 + $0x2c8] sm:$0xff]
        %v650 = vld [vmem:[%s559 + $0x2d0] sm:$0xff]
        %v651 = vld [vmem:[%s559 + $0x2d8] sm:$0xff]
        %v652 = vld [vmem:[%s559 + $0x2e0] sm:$0xff]
        %v653 = vld [vmem:[%s559 + $0x2e8] sm:$0xff]
        %v654 = vld [vmem:[%s559 + $0x2f0] sm:$0xff]
        %v655 = vld [vmem:[%s559 + $0x2f8] sm:$0xff]
        %v656 = vld [vmem:[%s559 + $0x300] sm:$0xff]
        %v657 = vld [vmem:[%s559 + $0x308] sm:$0xff]
        %v658 = vld [vmem:[%s559 + $0x310] sm:$0xff]
        %v659 = vld [vmem:[%s559 + $0x318] sm:$0xff]
        %s660 = scalar_lea.vmem %s220, 2400 [#allocation3]
        %v661 = vld [vmem:[%s660] sm:$0xff]
        %v662 = vld [vmem:[%s660 + $0x8] sm:$0xff]
        %v663 = vld [vmem:[%s660 + $0x10] sm:$0xff]
        %v664 = vld [vmem:[%s660 + $0x18] sm:$0xff]
        %v665 = vld [vmem:[%s660 + $0x20] sm:$0xff]
        %v666 = vld [vmem:[%s660 + $0x28] sm:$0xff]
        %v667 = vld [vmem:[%s660 + $0x30] sm:$0xff]
        %v668 = vld [vmem:[%s660 + $0x38] sm:$0xff]
        %v669 = vld [vmem:[%s660 + $0x40] sm:$0xff]
        %v670 = vld [vmem:[%s660 + $0x48] sm:$0xff]
        %v671 = vld [vmem:[%s660 + $0x50] sm:$0xff]
        %v672 = vld [vmem:[%s660 + $0x58] sm:$0xff]
        %v673 = vld [vmem:[%s660 + $0x60] sm:$0xff]
        %v674 = vld [vmem:[%s660 + $0x68] sm:$0xff]
        %v675 = vld [vmem:[%s660 + $0x70] sm:$0xff]
        %v676 = vld [vmem:[%s660 + $0x78] sm:$0xff]
        %v677 = vld [vmem:[%s660 + $0x80] sm:$0xff]
        %v678 = vld [vmem:[%s660 + $0x88] sm:$0xff]
        %v679 = vld [vmem:[%s660 + $0x90] sm:$0xff]
        %v680 = vld [vmem:[%s660 + $0x98] sm:$0xff]
        %v681 = vld [vmem:[%s660 + $0xa0] sm:$0xff]
        %v682 = vld [vmem:[%s660 + $0xa8] sm:$0xff]
        %v683 = vld [vmem:[%s660 + $0xb0] sm:$0xff]
        %v684 = vld [vmem:[%s660 + $0xb8] sm:$0xff]
        %v685 = vld [vmem:[%s660 + $0xc0] sm:$0xff]
        %v686 = vld [vmem:[%s660 + $0xc8] sm:$0xff]
        %v687 = vld [vmem:[%s660 + $0xd0] sm:$0xff]
        %v688 = vld [vmem:[%s660 + $0xd8] sm:$0xff]
        %v689 = vld [vmem:[%s660 + $0xe0] sm:$0xff]
        %v690 = vld [vmem:[%s660 + $0xe8] sm:$0xff]
        %v691 = vld [vmem:[%s660 + $0xf0] sm:$0xff]
        %v692 = vld [vmem:[%s660 + $0xf8] sm:$0xff]
        %v693 = vld [vmem:[%s660 + $0x100] sm:$0xff]
        %v694 = vld [vmem:[%s660 + $0x108] sm:$0xff]
        %v695 = vld [vmem:[%s660 + $0x110] sm:$0xff]
        %v696 = vld [vmem:[%s660 + $0x118] sm:$0xff]
        %v697 = vld [vmem:[%s660 + $0x120] sm:$0xff]
        %v698 = vld [vmem:[%s660 + $0x128] sm:$0xff]
        %v699 = vld [vmem:[%s660 + $0x130] sm:$0xff]
        %v700 = vld [vmem:[%s660 + $0x138] sm:$0xff]
        %v701 = vld [vmem:[%s660 + $0x140] sm:$0xff]
        %v702 = vld [vmem:[%s660 + $0x148] sm:$0xff]
        %v703 = vld [vmem:[%s660 + $0x150] sm:$0xff]
        %v704 = vld [vmem:[%s660 + $0x158] sm:$0xff]
        %v705 = vld [vmem:[%s660 + $0x160] sm:$0xff]
        %v706 = vld [vmem:[%s660 + $0x168] sm:$0xff]
        %v707 = vld [vmem:[%s660 + $0x170] sm:$0xff]
        %v708 = vld [vmem:[%s660 + $0x178] sm:$0xff]
        %v709 = vld [vmem:[%s660 + $0x180] sm:$0xff]
        %v710 = vld [vmem:[%s660 + $0x188] sm:$0xff]
        %v711 = vld [vmem:[%s660 + $0x190] sm:$0xff]
        %v712 = vld [vmem:[%s660 + $0x198] sm:$0xff]
        %v713 = vld [vmem:[%s660 + $0x1a0] sm:$0xff]
        %v714 = vld [vmem:[%s660 + $0x1a8] sm:$0xff]
        %v715 = vld [vmem:[%s660 + $0x1b0] sm:$0xff]
        %v716 = vld [vmem:[%s660 + $0x1b8] sm:$0xff]
        %v717 = vld [vmem:[%s660 + $0x1c0] sm:$0xff]
        %v718 = vld [vmem:[%s660 + $0x1c8] sm:$0xff]
        %v719 = vld [vmem:[%s660 + $0x1d0] sm:$0xff]
        %v720 = vld [vmem:[%s660 + $0x1d8] sm:$0xff]
        %v721 = vld [vmem:[%s660 + $0x1e0] sm:$0xff]
        %v722 = vld [vmem:[%s660 + $0x1e8] sm:$0xff]
        %v723 = vld [vmem:[%s660 + $0x1f0] sm:$0xff]
        %v724 = vld [vmem:[%s660 + $0x1f8] sm:$0xff]
        %v725 = vld [vmem:[%s660 + $0x200] sm:$0xff]
        %v726 = vld [vmem:[%s660 + $0x208] sm:$0xff]
        %v727 = vld [vmem:[%s660 + $0x210] sm:$0xff]
        %v728 = vld [vmem:[%s660 + $0x218] sm:$0xff]
        %v729 = vld [vmem:[%s660 + $0x220] sm:$0xff]
        %v730 = vld [vmem:[%s660 + $0x228] sm:$0xff]
        %v731 = vld [vmem:[%s660 + $0x230] sm:$0xff]
        %v732 = vld [vmem:[%s660 + $0x238] sm:$0xff]
        %v733 = vld [vmem:[%s660 + $0x240] sm:$0xff]
        %v734 = vld [vmem:[%s660 + $0x248] sm:$0xff]
        %v735 = vld [vmem:[%s660 + $0x250] sm:$0xff]
        %v736 = vld [vmem:[%s660 + $0x258] sm:$0xff]
        %v737 = vld [vmem:[%s660 + $0x260] sm:$0xff]
        %v738 = vld [vmem:[%s660 + $0x268] sm:$0xff]
        %v739 = vld [vmem:[%s660 + $0x270] sm:$0xff]
        %v740 = vld [vmem:[%s660 + $0x278] sm:$0xff]
        %v741 = vld [vmem:[%s660 + $0x280] sm:$0xff]
        %v742 = vld [vmem:[%s660 + $0x288] sm:$0xff]
        %v743 = vld [vmem:[%s660 + $0x290] sm:$0xff]
        %v744 = vld [vmem:[%s660 + $0x298] sm:$0xff]
        %v745 = vld [vmem:[%s660 + $0x2a0] sm:$0xff]
        %v746 = vld [vmem:[%s660 + $0x2a8] sm:$0xff]
        %v747 = vld [vmem:[%s660 + $0x2b0] sm:$0xff]
        %v748 = vld [vmem:[%s660 + $0x2b8] sm:$0xff]
        %v749 = vld [vmem:[%s660 + $0x2c0] sm:$0xff]
        %v750 = vld [vmem:[%s660 + $0x2c8] sm:$0xff]
        %v751 = vld [vmem:[%s660 + $0x2d0] sm:$0xff]
        %v752 = vld [vmem:[%s660 + $0x2d8] sm:$0xff]
        %v753 = vld [vmem:[%s660 + $0x2e0] sm:$0xff]
        %v754 = vld [vmem:[%s660 + $0x2e8] sm:$0xff]
        %v755 = vld [vmem:[%s660 + $0x2f0] sm:$0xff]
        %v756 = vld [vmem:[%s660 + $0x2f8] sm:$0xff]
        %v757 = vld [vmem:[%s660 + $0x300] sm:$0xff]
        %v758 = vld [vmem:[%s660 + $0x308] sm:$0xff]
        %v759 = vld [vmem:[%s660 + $0x310] sm:$0xff]
        %v760 = vld [vmem:[%s660 + $0x318] sm:$0xff]
        %v761 = vmax.f32 %v560, %v661
        %v762 = vmax.f32 %v561, %v662
        %v763 = vmax.f32 %v562, %v663
        %v764 = vmax.f32 %v563, %v664
        %v765 = vmax.f32 %v564, %v665
        %v766 = vmax.f32 %v565, %v666
        %v767 = vmax.f32 %v566, %v667
        %v768 = vmax.f32 %v567, %v668
        %v769 = vmax.f32 %v568, %v669
        %v770 = vmax.f32 %v569, %v670
        %v771 = vmax.f32 %v570, %v671
        %v772 = vmax.f32 %v571, %v672
        %v773 = vmax.f32 %v572, %v673
        %v774 = vmax.f32 %v573, %v674
        %v775 = vmax.f32 %v574, %v675
        %v776 = vmax.f32 %v575, %v676
        %v777 = vmax.f32 %v576, %v677
        %v778 = vmax.f32 %v577, %v678
        %v779 = vmax.f32 %v578, %v679
        %v780 = vmax.f32 %v579, %v680
        %v781 = vmax.f32 %v580, %v681
        %v782 = vmax.f32 %v581, %v682
        %v783 = vmax.f32 %v582, %v683
        %v784 = vmax.f32 %v583, %v684
        %v785 = vmax.f32 %v584, %v685
        %v786 = vmax.f32 %v585, %v686
        %v787 = vmax.f32 %v586, %v687
        %v788 = vmax.f32 %v587, %v688
        %v789 = vmax.f32 %v588, %v689
        %v790 = vmax.f32 %v589, %v690
        %v791 = vmax.f32 %v590, %v691
        %v792 = vmax.f32 %v591, %v692
        %v793 = vmax.f32 %v592, %v693
        %v794 = vmax.f32 %v593, %v694
        %v795 = vmax.f32 %v594, %v695
        %v796 = vmax.f32 %v595, %v696
        %v797 = vmax.f32 %v596, %v697
        %v798 = vmax.f32 %v597, %v698
        %v799 = vmax.f32 %v598, %v699
        %v800 = vmax.f32 %v599, %v700
        %v801 = vmax.f32 %v600, %v701
        %v802 = vmax.f32 %v601, %v702
        %v803 = vmax.f32 %v602, %v703
        %v804 = vmax.f32 %v603, %v704
        %v805 = vmax.f32 %v604, %v705
        %v806 = vmax.f32 %v605, %v706
        %v807 = vmax.f32 %v606, %v707
        %v808 = vmax.f32 %v607, %v708
        %v809 = vmax.f32 %v608, %v709
        %v810 = vmax.f32 %v609, %v710
        %v811 = vmax.f32 %v610, %v711
        %v812 = vmax.f32 %v611, %v712
        %v813 = vmax.f32 %v612, %v713
        %v814 = vmax.f32 %v613, %v714
        %v815 = vmax.f32 %v614, %v715
        %v816 = vmax.f32 %v615, %v716
        %v817 = vmax.f32 %v616, %v717
        %v818 = vmax.f32 %v617, %v718
        %v819 = vmax.f32 %v618, %v719
        %v820 = vmax.f32 %v619, %v720
        %v821 = vmax.f32 %v620, %v721
        %v822 = vmax.f32 %v621, %v722
        %v823 = vmax.f32 %v622, %v723
        %v824 = vmax.f32 %v623, %v724
        %v825 = vmax.f32 %v624, %v725
        %v826 = vmax.f32 %v625, %v726
        %v827 = vmax.f32 %v626, %v727
        %v828 = vmax.f32 %v627, %v728
        %v829 = vmax.f32 %v628, %v729
        %v830 = vmax.f32 %v629, %v730
        %v831 = vmax.f32 %v630, %v731
        %v832 = vmax.f32 %v631, %v732
        %v833 = vmax.f32 %v632, %v733
        %v834 = vmax.f32 %v633, %v734
        %v835 = vmax.f32 %v634, %v735
        %v836 = vmax.f32 %v635, %v736
        %v837 = vmax.f32 %v636, %v737
        %v838 = vmax.f32 %v637, %v738
        %v839 = vmax.f32 %v638, %v739
        %v840 = vmax.f32 %v639, %v740
        %v841 = vmax.f32 %v640, %v741
        %v842 = vmax.f32 %v641, %v742
        %v843 = vmax.f32 %v642, %v743
        %v844 = vmax.f32 %v643, %v744
        %v845 = vmax.f32 %v644, %v745
        %v846 = vmax.f32 %v645, %v746
        %v847 = vmax.f32 %v646, %v747
        %v848 = vmax.f32 %v647, %v748
        %v849 = vmax.f32 %v648, %v749
        %v850 = vmax.f32 %v649, %v750
        %v851 = vmax.f32 %v650, %v751
        %v852 = vmax.f32 %v651, %v752
        %v853 = vmax.f32 %v652, %v753
        %v854 = vmax.f32 %v653, %v754
        %v855 = vmax.f32 %v654, %v755
        %v856 = vmax.f32 %v655, %v756
        %v857 = vmax.f32 %v656, %v757
        %v858 = vmax.f32 %v657, %v758
        %v859 = vmax.f32 %v658, %v759
        %v860 = vmax.f32 %v659, %v760
        %v861 = vmax.f32 %v459, %v761
        %v862 = vmax.f32 %v460, %v762
        %v863 = vmax.f32 %v461, %v763
        %v864 = vmax.f32 %v462, %v764
        %v865 = vmax.f32 %v463, %v765
        %v866 = vmax.f32 %v464, %v766
        %v867 = vmax.f32 %v465, %v767
        %v868 = vmax.f32 %v466, %v768
        %v869 = vmax.f32 %v467, %v769
        %v870 = vmax.f32 %v468, %v770
        %v871 = vmax.f32 %v469, %v771
        %v872 = vmax.f32 %v470, %v772
        %v873 = vmax.f32 %v471, %v773
        %v874 = vmax.f32 %v472, %v774
        %v875 = vmax.f32 %v473, %v775
        %v876 = vmax.f32 %v474, %v776
        %v877 = vmax.f32 %v475, %v777
        %v878 = vmax.f32 %v476, %v778
        %v879 = vmax.f32 %v477, %v779
        %v880 = vmax.f32 %v478, %v780
        %v881 = vmax.f32 %v479, %v781
        %v882 = vmax.f32 %v480, %v782
        %v883 = vmax.f32 %v481, %v783
        %v884 = vmax.f32 %v482, %v784
        %v885 = vmax.f32 %v483, %v785
        %v886 = vmax.f32 %v484, %v786
        %v887 = vmax.f32 %v485, %v787
        %v888 = vmax.f32 %v486, %v788
        %v889 = vmax.f32 %v487, %v789
        %v890 = vmax.f32 %v488, %v790
        %v891 = vmax.f32 %v489, %v791
        %v892 = vmax.f32 %v490, %v792
        %v893 = vmax.f32 %v491, %v793
        %v894 = vmax.f32 %v492, %v794
        %v895 = vmax.f32 %v493, %v795
        %v896 = vmax.f32 %v494, %v796
        %v897 = vmax.f32 %v495, %v797
        %v898 = vmax.f32 %v496, %v798
        %v899 = vmax.f32 %v497, %v799
        %v900 = vmax.f32 %v498, %v800
        %v901 = vmax.f32 %v499, %v801
        %v902 = vmax.f32 %v500, %v802
        %v903 = vmax.f32 %v501, %v803
        %v904 = vmax.f32 %v502, %v804
        %v905 = vmax.f32 %v503, %v805
        %v906 = vmax.f32 %v504, %v806
        %v907 = vmax.f32 %v505, %v807
        %v908 = vmax.f32 %v506, %v808
        %v909 = vmax.f32 %v507, %v809
        %v910 = vmax.f32 %v508, %v810
        %v911 = vmax.f32 %v509, %v811
        %v912 = vmax.f32 %v510, %v812
        %v913 = vmax.f32 %v511, %v813
        %v914 = vmax.f32 %v512, %v814
        %v915 = vmax.f32 %v513, %v815
        %v916 = vmax.f32 %v514, %v816
        %v917 = vmax.f32 %v515, %v817
        %v918 = vmax.f32 %v516, %v818
        %v919 = vmax.f32 %v517, %v819
        %v920 = vmax.f32 %v518, %v820
        %v921 = vmax.f32 %v519, %v821
        %v922 = vmax.f32 %v520, %v822
        %v923 = vmax.f32 %v521, %v823
        %v924 = vmax.f32 %v522, %v824
        %v925 = vmax.f32 %v523, %v825
        %v926 = vmax.f32 %v524, %v826
        %v927 = vmax.f32 %v525, %v827
        %v928 = vmax.f32 %v526, %v828
        %v929 = vmax.f32 %v527, %v829
        %v930 = vmax.f32 %v528, %v830
        %v931 = vmax.f32 %v529, %v831
        %v932 = vmax.f32 %v530, %v832
        %v933 = vmax.f32 %v531, %v833
        %v934 = vmax.f32 %v532, %v834
        %v935 = vmax.f32 %v533, %v835
        %v936 = vmax.f32 %v534, %v836
        %v937 = vmax.f32 %v535, %v837
        %v938 = vmax.f32 %v536, %v838
        %v939 = vmax.f32 %v537, %v839
        %v940 = vmax.f32 %v538, %v840
        %v941 = vmax.f32 %v539, %v841
        %v942 = vmax.f32 %v540, %v842
        %v943 = vmax.f32 %v541, %v843
        %v944 = vmax.f32 %v542, %v844
        %v945 = vmax.f32 %v543, %v845
        %v946 = vmax.f32 %v544, %v846
        %v947 = vmax.f32 %v545, %v847
        %v948 = vmax.f32 %v546, %v848
        %v949 = vmax.f32 %v547, %v849
        %v950 = vmax.f32 %v548, %v850
        %v951 = vmax.f32 %v549, %v851
        %v952 = vmax.f32 %v550, %v852
        %v953 = vmax.f32 %v551, %v853
        %v954 = vmax.f32 %v552, %v854
        %v955 = vmax.f32 %v553, %v855
        %v956 = vmax.f32 %v554, %v856
        %v957 = vmax.f32 %v555, %v857
        %v958 = vmax.f32 %v556, %v858
        %v959 = vmax.f32 %v557, %v859
        %v960 = vmax.f32 %v558, %v860
        %v961 = vld [vmem:[#allocation9] sm:$0xf]
        %v962 = vpack.c.bf16 %v862, %v861
        %v963 = vpack.c.bf16 %v864, %v863
        %v964 = vpack.c.bf16 %v866, %v865
        %v965 = vpack.c.bf16 %v868, %v867
        %v966 = vpack.c.bf16 %v872, %v871
        %v967 = vpack.c.bf16 %v874, %v873
        %v968 = vpack.c.bf16 %v876, %v875
        %v969 = vpack.c.bf16 %v878, %v877
        %v970 = vpack.c.bf16 %v882, %v881
        %v971 = vpack.c.bf16 %v884, %v883
        %v972 = vpack.c.bf16 %v886, %v885
        %v973 = vpack.c.bf16 %v888, %v887
        %v974 = vpack.c.bf16 %v892, %v891
        %v975 = vpack.c.bf16 %v894, %v893
        %v976 = vpack.c.bf16 %v896, %v895
        %v977 = vpack.c.bf16 %v898, %v897
        %v978 = vpack.c.bf16 %v902, %v901
        %v979 = vpack.c.bf16 %v904, %v903
        %v980 = vpack.c.bf16 %v906, %v905
        %v981 = vpack.c.bf16 %v908, %v907
        %v982 = vpack.c.bf16 %v912, %v911
        %v983 = vpack.c.bf16 %v914, %v913
        %v984 = vpack.c.bf16 %v916, %v915
        %v985 = vpack.c.bf16 %v918, %v917
        %v986 = vpack.c.bf16 %v922, %v921
        %v987 = vpack.c.bf16 %v924, %v923
        %v988 = vpack.c.bf16 %v926, %v925
        %v989 = vpack.c.bf16 %v928, %v927
        %v990 = vpack.c.bf16 %v932, %v931
        %v991 = vpack.c.bf16 %v934, %v933
        %v992 = vpack.c.bf16 %v936, %v935
        %v993 = vpack.c.bf16 %v938, %v937
        %v994 = vld [vmem:[#allocation6] sm:$0xf]
        %v995 = vld [vmem:[#allocation6 + $0x4] sm:$0xf]
        %v996 = vld [vmem:[#allocation6 + $0x8] sm:$0xf]
        %v997 = vld [vmem:[#allocation6 + $0xc] sm:$0xf]
        %v998 = vld [vmem:[#allocation6 + $0x10] sm:$0xf]
        %v999 = vld [vmem:[#allocation6 + $0x14] sm:$0xf]
        %v1000 = vld [vmem:[#allocation6 + $0x18] sm:$0xf]
        %v1001 = vld [vmem:[#allocation6 + $0x1c] sm:$0xf]
        %v1002 = vpack.c.bf16 %v863, %v862
        %v1003 = vpack.c.bf16 %v865, %v864
        %v1004 = vpack.c.bf16 %v867, %v866
        %v1005 = vpack.c.bf16 %v869, %v868
        %v1006 = vpack.c.bf16 %v873, %v872
        %v1007 = vpack.c.bf16 %v875, %v874
        %v1008 = vpack.c.bf16 %v877, %v876
        %v1009 = vpack.c.bf16 %v879, %v878
        %v1010 = vpack.c.bf16 %v883, %v882
        %v1011 = vpack.c.bf16 %v885, %v884
        %v1012 = vpack.c.bf16 %v887, %v886
        %v1013 = vpack.c.bf16 %v889, %v888
        %v1014 = vpack.c.bf16 %v893, %v892
        %v1015 = vpack.c.bf16 %v895, %v894
        %v1016 = vpack.c.bf16 %v897, %v896
        %v1017 = vpack.c.bf16 %v899, %v898
        %v1018 = vpack.c.bf16 %v903, %v902
        %v1019 = vpack.c.bf16 %v905, %v904
        %v1020 = vpack.c.bf16 %v907, %v906
        %v1021 = vpack.c.bf16 %v909, %v908
        %v1022 = vpack.c.bf16 %v913, %v912
        %v1023 = vpack.c.bf16 %v915, %v914
        %v1024 = vpack.c.bf16 %v917, %v916
        %v1025 = vpack.c.bf16 %v919, %v918
        %v1026 = vpack.c.bf16 %v923, %v922
        %v1027 = vpack.c.bf16 %v925, %v924
        %v1028 = vpack.c.bf16 %v927, %v926
        %v1029 = vpack.c.bf16 %v929, %v928
        %v1030 = vpack.c.bf16 %v933, %v932
        %v1031 = vpack.c.bf16 %v935, %v934
        %v1032 = vpack.c.bf16 %v937, %v936
        %v1033 = vpack.c.bf16 %v939, %v938
        %s1034 = scalar_lea.vmem [#allocation6], 32
        %v1035 = vld [vmem:[%s1034] sm:$0xf]
        %v1036 = vld [vmem:[%s1034 + $0x4] sm:$0xf]
        %v1037 = vld [vmem:[%s1034 + $0x8] sm:$0xf]
        %v1038 = vld [vmem:[%s1034 + $0xc] sm:$0xf]
        %v1039 = vld [vmem:[%s1034 + $0x10] sm:$0xf]
        %v1040 = vld [vmem:[%s1034 + $0x14] sm:$0xf]
        %v1041 = vld [vmem:[%s1034 + $0x18] sm:$0xf]
        %v1042 = vld [vmem:[%s1034 + $0x1c] sm:$0xf]
        %v1051 = vunpack.c.l.b16 %v1035
        %v1052 = vunpack.c.l.b16 %v1036
        %v1053 = vunpack.c.l.b16 %v1037
        %v1054 = vunpack.c.l.b16 %v1038
        %v1055 = vunpack.c.l.b16 %v1039
        %v1056 = vunpack.c.l.b16 %v1040
        %v1057 = vunpack.c.l.b16 %v1041
        %v1058 = vunpack.c.l.b16 %v1042
        %v1059 = vpack.c.b16 %v1052, %v1051
        %v1060 = vpack.c.b16 %v1054, %v1053
        %v1061 = vpack.c.b16 %v1056, %v1055
        %v1062 = vpack.c.b16 %v1058, %v1057
        %vm1067 = vcmask 523264
        %v1069 = vsel %vm1067, %v1002, 0
        %v1072 = vsel %vm1067, %v1003, 0
        %v1075 = vsel %vm1067, %v1004, 0
        %v1078 = vsel %vm1067, %v1005, 0
        %v1081 = vsel %vm1067, %v1006, 0
        %v1084 = vsel %vm1067, %v1007, 0
        %v1087 = vsel %vm1067, %v1008, 0
        %v1090 = vsel %vm1067, %v1009, 0
        %v1093 = vsel %vm1067, %v1010, 0
        %v1096 = vsel %vm1067, %v1011, 0
        %v1099 = vsel %vm1067, %v1012, 0
        %v1102 = vsel %vm1067, %v1013, 0
        %v1105 = vsel %vm1067, %v1014, 0
        %v1108 = vsel %vm1067, %v1015, 0
        %v1111 = vsel %vm1067, %v1016, 0
        %v1114 = vsel %vm1067, %v1017, 0
        %v1117 = vsel %vm1067, %v1018, 0
        %v1120 = vsel %vm1067, %v1019, 0
        %v1123 = vsel %vm1067, %v1020, 0
        %v1126 = vsel %vm1067, %v1021, 0
        %v1129 = vsel %vm1067, %v1022, 0
        %v1132 = vsel %vm1067, %v1023, 0
        %v1135 = vsel %vm1067, %v1024, 0
        %v1138 = vsel %vm1067, %v1025, 0
        %v1141 = vsel %vm1067, %v1026, 0
        %v1144 = vsel %vm1067, %v1027, 0
        %v1147 = vsel %vm1067, %v1028, 0
        %v1150 = vsel %vm1067, %v1029, 0
        %v1153 = vsel %vm1067, %v1030, 0
        %v1156 = vsel %vm1067, %v1031, 0
        %v1159 = vsel %vm1067, %v1032, 0
        %v1162 = vsel %vm1067, %v1033, 0
        %1164 = vmatprep.subr.bf16.mxu0 0
        %1165 = vmatpush1.bf16.msra.mxu0 0
        %1166 = vmatprep.subr.bf16.mxu0 0
        %1167 = vmatpush1.bf16.msra.mxu0 0
        %1168 = vmatprep.subr.bf16.mxu0 0
        %1169 = vmatpush1.bf16.msra.mxu0 0
        %1170 = vmatprep.subr.bf16.mxu0 0
        %1171 = vmatpush1.bf16.msra.mxu0 0
        %1172 = vmatprep.subr.bf16.mxu0 0
        %1173 = vmatpush1.bf16.msra.mxu0 %v1062
        %1174 = vmatprep.subr.bf16.mxu0 0
        %1175 = vmatpush1.bf16.msra.mxu0 %v1061
        %1176 = vmatprep.subr.bf16.mxu0 0
        %1177 = vmatpush1.bf16.msra.mxu0 %v1060
        %1178 = vmatprep.subr.bf16.mxu0 0
        %1179 = vmatpush1.bf16.msra.mxu0 %v1059
        %1180 = vmatprep.subr.bf16.mxu0 0
        %1181 = vmatpush2.bf16.msra.mxu0 0
        %1182 = vmatprep.subr.bf16.mxu0 0
        %1183 = vmatpush2.bf16.msra.mxu0 0
        %1184 = vmatprep.subr.bf16.mxu0 0
        %1185 = vmatpush2.bf16.msra.mxu0 0
        %1186 = vmatprep.subr.bf16.mxu0 0
        %1187 = vmatpush2.bf16.msra.mxu0 0
        %1188 = vmatprep.subr.bf16.mxu0 0
        %1189 = vmatpush2.bf16.msra.mxu0 0
        %1190 = vmatprep.subr.bf16.mxu0 0
        %1191 = vmatpush2.bf16.msra.mxu0 0
        %1192 = vmatprep.subr.bf16.mxu0 0
        %1193 = vmatpush2.bf16.msra.mxu0 0
        %1194 = vmatprep.subr.bf16.mxu0 0
        %1195 = vmatpush2.bf16.msra.mxu0 0
        %1196 = vmatprep.mubr.bf16.mxu0 0
        %1197 = vmatmul.mubr.bf16.gmra.mxu0 %v1069
        %v1198 = vpop.f32.mrf.mxu0
        %v1199 = vadd.f32 0.0, %v1198
        %v1200 = vpop.f32.mrf.mxu0
        %v1201 = vpop.f32.mrf.mxu0
        %v1202 = vadd.f32 0.0, %v1201
        %v1203 = vpop.f32.mrf.mxu0
        %1204 = vmatprep.mubr.bf16.mxu0 0
        %1205 = vmatmul.mubr.bf16.gmra.mxu0 %v1072
        %v1206 = vpop.f32.mrf.mxu0
        %v1207 = vadd.f32 0.0, %v1206
        %v1208 = vpop.f32.mrf.mxu0
        %v1209 = vpop.f32.mrf.mxu0
        %v1210 = vadd.f32 0.0, %v1209
        %v1211 = vpop.f32.mrf.mxu0
        %1212 = vmatprep.mubr.bf16.mxu0 0
        %1213 = vmatmul.mubr.bf16.gmra.mxu0 %v1075
        %v1214 = vpop.f32.mrf.mxu0
        %v1215 = vadd.f32 0.0, %v1214
        %v1216 = vpop.f32.mrf.mxu0
        %v1217 = vpop.f32.mrf.mxu0
        %v1218 = vadd.f32 0.0, %v1217
        %v1219 = vpop.f32.mrf.mxu0
        %1220 = vmatprep.mubr.bf16.mxu0 0
        %1221 = vmatmul.mubr.bf16.gmra.mxu0 %v1078
        %v1222 = vpop.f32.mrf.mxu0
        %v1223 = vadd.f32 0.0, %v1222
        %v1224 = vpop.f32.mrf.mxu0
        %v1225 = vpop.f32.mrf.mxu0
        %v1226 = vadd.f32 0.0, %v1225
        %v1227 = vpop.f32.mrf.mxu0
        %1228 = vmatprep.mubr.bf16.mxu0 0
        %1229 = vmatmul.mubr.bf16.gmra.mxu0 %v1081
        %v1230 = vpop.f32.mrf.mxu0
        %v1231 = vadd.f32 0.0, %v1230
        %v1232 = vpop.f32.mrf.mxu0
        %v1233 = vpop.f32.mrf.mxu0
        %v1234 = vadd.f32 0.0, %v1233
        %v1235 = vpop.f32.mrf.mxu0
        %1236 = vmatprep.mubr.bf16.mxu0 0
        %1237 = vmatmul.mubr.bf16.gmra.mxu0 %v1084
        %v1238 = vpop.f32.mrf.mxu0
        %v1239 = vadd.f32 0.0, %v1238
        %v1240 = vpop.f32.mrf.mxu0
        %v1241 = vpop.f32.mrf.mxu0
        %v1242 = vadd.f32 0.0, %v1241
        %v1243 = vpop.f32.mrf.mxu0
        %1244 = vmatprep.mubr.bf16.mxu0 0
        %1245 = vmatmul.mubr.bf16.gmra.mxu0 %v1087
        %v1246 = vpop.f32.mrf.mxu0
        %v1247 = vadd.f32 0.0, %v1246
        %v1248 = vpop.f32.mrf.mxu0
        %v1249 = vpop.f32.mrf.mxu0
        %v1250 = vadd.f32 0.0, %v1249
        %v1251 = vpop.f32.mrf.mxu0
        %1252 = vmatprep.mubr.bf16.mxu0 0
        %1253 = vmatmul.mubr.bf16.gmra.mxu0 %v1090
        %v1254 = vpop.f32.mrf.mxu0
        %v1255 = vadd.f32 0.0, %v1254
        %v1256 = vpop.f32.mrf.mxu0
        %v1257 = vpop.f32.mrf.mxu0
        %v1258 = vadd.f32 0.0, %v1257
        %v1259 = vpop.f32.mrf.mxu0
        %1260 = vmatprep.mubr.bf16.mxu0 0
        %1261 = vmatmul.mubr.bf16.gmra.mxu0 %v1093
        %v1262 = vpop.f32.mrf.mxu0
        %v1263 = vadd.f32 0.0, %v1262
        %v1264 = vpop.f32.mrf.mxu0
        %v1265 = vpop.f32.mrf.mxu0
        %v1266 = vadd.f32 0.0, %v1265
        %v1267 = vpop.f32.mrf.mxu0
        %1268 = vmatprep.mubr.bf16.mxu0 0
        %1269 = vmatmul.mubr.bf16.gmra.mxu0 %v1096
        %v1270 = vpop.f32.mrf.mxu0
        %v1271 = vadd.f32 0.0, %v1270
        %v1272 = vpop.f32.mrf.mxu0
        %v1273 = vpop.f32.mrf.mxu0
        %v1274 = vadd.f32 0.0, %v1273
        %v1275 = vpop.f32.mrf.mxu0
        %1276 = vmatprep.mubr.bf16.mxu0 0
        %1277 = vmatmul.mubr.bf16.gmra.mxu0 %v1099
        %v1278 = vpop.f32.mrf.mxu0
        %v1279 = vadd.f32 0.0, %v1278
        %v1280 = vpop.f32.mrf.mxu0
        %v1281 = vpop.f32.mrf.mxu0
        %v1282 = vadd.f32 0.0, %v1281
        %v1283 = vpop.f32.mrf.mxu0
        %1284 = vmatprep.mubr.bf16.mxu0 0
        %1285 = vmatmul.mubr.bf16.gmra.mxu0 %v1102
        %v1286 = vpop.f32.mrf.mxu0
        %v1287 = vadd.f32 0.0, %v1286
        %v1288 = vpop.f32.mrf.mxu0
        %v1289 = vpop.f32.mrf.mxu0
        %v1290 = vadd.f32 0.0, %v1289
        %v1291 = vpop.f32.mrf.mxu0
        %1292 = vmatprep.mubr.bf16.mxu0 0
        %1293 = vmatmul.mubr.bf16.gmra.mxu0 %v1105
        %v1294 = vpop.f32.mrf.mxu0
        %v1295 = vadd.f32 0.0, %v1294
        %v1296 = vpop.f32.mrf.mxu0
        %v1297 = vpop.f32.mrf.mxu0
        %v1298 = vadd.f32 0.0, %v1297
        %v1299 = vpop.f32.mrf.mxu0
        %1300 = vmatprep.mubr.bf16.mxu0 0
        %1301 = vmatmul.mubr.bf16.gmra.mxu0 %v1108
        %v1302 = vpop.f32.mrf.mxu0
        %v1303 = vadd.f32 0.0, %v1302
        %v1304 = vpop.f32.mrf.mxu0
        %v1305 = vpop.f32.mrf.mxu0
        %v1306 = vadd.f32 0.0, %v1305
        %v1307 = vpop.f32.mrf.mxu0
        %1308 = vmatprep.mubr.bf16.mxu0 0
        %1309 = vmatmul.mubr.bf16.gmra.mxu0 %v1111
        %v1310 = vpop.f32.mrf.mxu0
        %v1311 = vadd.f32 0.0, %v1310
        %v1312 = vpop.f32.mrf.mxu0
        %v1313 = vpop.f32.mrf.mxu0
        %v1314 = vadd.f32 0.0, %v1313
        %v1315 = vpop.f32.mrf.mxu0
        %1316 = vmatprep.mubr.bf16.mxu0 0
        %1317 = vmatmul.mubr.bf16.gmra.mxu0 %v1114
        %v1318 = vpop.f32.mrf.mxu0
        %v1319 = vadd.f32 0.0, %v1318
        %v1320 = vpop.f32.mrf.mxu0
        %v1321 = vpop.f32.mrf.mxu0
        %v1322 = vadd.f32 0.0, %v1321
        %v1323 = vpop.f32.mrf.mxu0
        %1324 = vmatprep.mubr.bf16.mxu0 0
        %1325 = vmatmul.mubr.bf16.gmra.mxu0 %v1117
        %v1326 = vpop.f32.mrf.mxu0
        %v1327 = vadd.f32 0.0, %v1326
        %v1328 = vpop.f32.mrf.mxu0
        %v1329 = vpop.f32.mrf.mxu0
        %v1330 = vadd.f32 0.0, %v1329
        %v1331 = vpop.f32.mrf.mxu0
        %1332 = vmatprep.mubr.bf16.mxu0 0
        %1333 = vmatmul.mubr.bf16.gmra.mxu0 %v1120
        %v1334 = vpop.f32.mrf.mxu0
        %v1335 = vadd.f32 0.0, %v1334
        %v1336 = vpop.f32.mrf.mxu0
        %v1337 = vpop.f32.mrf.mxu0
        %v1338 = vadd.f32 0.0, %v1337
        %v1339 = vpop.f32.mrf.mxu0
        %1340 = vmatprep.mubr.bf16.mxu0 0
        %1341 = vmatmul.mubr.bf16.gmra.mxu0 %v1123
        %v1342 = vpop.f32.mrf.mxu0
        %v1343 = vadd.f32 0.0, %v1342
        %v1344 = vpop.f32.mrf.mxu0
        %v1345 = vpop.f32.mrf.mxu0
        %v1346 = vadd.f32 0.0, %v1345
        %v1347 = vpop.f32.mrf.mxu0
        %1348 = vmatprep.mubr.bf16.mxu0 0
        %1349 = vmatmul.mubr.bf16.gmra.mxu0 %v1126
        %v1350 = vpop.f32.mrf.mxu0
        %v1351 = vadd.f32 0.0, %v1350
        %v1352 = vpop.f32.mrf.mxu0
        %v1353 = vpop.f32.mrf.mxu0
        %v1354 = vadd.f32 0.0, %v1353
        %v1355 = vpop.f32.mrf.mxu0
        %1356 = vmatprep.mubr.bf16.mxu0 0
        %1357 = vmatmul.mubr.bf16.gmra.mxu0 %v1129
        %v1358 = vpop.f32.mrf.mxu0
        %v1359 = vadd.f32 0.0, %v1358
        %v1360 = vpop.f32.mrf.mxu0
        %v1361 = vpop.f32.mrf.mxu0
        %v1362 = vadd.f32 0.0, %v1361
        %v1363 = vpop.f32.mrf.mxu0
        %1364 = vmatprep.mubr.bf16.mxu0 0
        %1365 = vmatmul.mubr.bf16.gmra.mxu0 %v1132
        %v1366 = vpop.f32.mrf.mxu0
        %v1367 = vadd.f32 0.0, %v1366
        %v1368 = vpop.f32.mrf.mxu0
        %v1369 = vpop.f32.mrf.mxu0
        %v1370 = vadd.f32 0.0, %v1369
        %v1371 = vpop.f32.mrf.mxu0
        %1372 = vmatprep.mubr.bf16.mxu0 0
        %1373 = vmatmul.mubr.bf16.gmra.mxu0 %v1135
        %v1374 = vpop.f32.mrf.mxu0
        %v1375 = vadd.f32 0.0, %v1374
        %v1376 = vpop.f32.mrf.mxu0
        %v1377 = vpop.f32.mrf.mxu0
        %v1378 = vadd.f32 0.0, %v1377
        %v1379 = vpop.f32.mrf.mxu0
        %1380 = vmatprep.mubr.bf16.mxu0 0
        %1381 = vmatmul.mubr.bf16.gmra.mxu0 %v1138
        %v1382 = vpop.f32.mrf.mxu0
        %v1383 = vadd.f32 0.0, %v1382
        %v1384 = vpop.f32.mrf.mxu0
        %v1385 = vpop.f32.mrf.mxu0
        %v1386 = vadd.f32 0.0, %v1385
        %v1387 = vpop.f32.mrf.mxu0
        %1388 = vmatprep.mubr.bf16.mxu0 0
        %1389 = vmatmul.mubr.bf16.gmra.mxu0 %v1141
        %v1390 = vpop.f32.mrf.mxu0
        %v1391 = vadd.f32 0.0, %v1390
        %v1392 = vpop.f32.mrf.mxu0
        %v1393 = vpop.f32.mrf.mxu0
        %v1394 = vadd.f32 0.0, %v1393
        %v1395 = vpop.f32.mrf.mxu0
        %1396 = vmatprep.mubr.bf16.mxu0 0
        %1397 = vmatmul.mubr.bf16.gmra.mxu0 %v1144
        %v1398 = vpop.f32.mrf.mxu0
        %v1399 = vadd.f32 0.0, %v1398
        %v1400 = vpop.f32.mrf.mxu0
        %v1401 = vpop.f32.mrf.mxu0
        %v1402 = vadd.f32 0.0, %v1401
        %v1403 = vpop.f32.mrf.mxu0
        %1404 = vmatprep.mubr.bf16.mxu0 0
        %1405 = vmatmul.mubr.bf16.gmra.mxu0 %v1147
        %v1406 = vpop.f32.mrf.mxu0
        %v1407 = vadd.f32 0.0, %v1406
        %v1408 = vpop.f32.mrf.mxu0
        %v1409 = vpop.f32.mrf.mxu0
        %v1410 = vadd.f32 0.0, %v1409
        %v1411 = vpop.f32.mrf.mxu0
        %1412 = vmatprep.mubr.bf16.mxu0 0
        %1413 = vmatmul.mubr.bf16.gmra.mxu0 %v1150
        %v1414 = vpop.f32.mrf.mxu0
        %v1415 = vadd.f32 0.0, %v1414
        %v1416 = vpop.f32.mrf.mxu0
        %v1417 = vpop.f32.mrf.mxu0
        %v1418 = vadd.f32 0.0, %v1417
        %v1419 = vpop.f32.mrf.mxu0
        %1420 = vmatprep.mubr.bf16.mxu0 0
        %1421 = vmatmul.mubr.bf16.gmra.mxu0 %v1153
        %v1422 = vpop.f32.mrf.mxu0
        %v1423 = vadd.f32 0.0, %v1422
        %v1424 = vpop.f32.mrf.mxu0
        %v1425 = vpop.f32.mrf.mxu0
        %v1426 = vadd.f32 0.0, %v1425
        %v1427 = vpop.f32.mrf.mxu0
        %1428 = vmatprep.mubr.bf16.mxu0 0
        %1429 = vmatmul.mubr.bf16.gmra.mxu0 %v1156
        %v1430 = vpop.f32.mrf.mxu0
        %v1431 = vadd.f32 0.0, %v1430
        %v1432 = vpop.f32.mrf.mxu0
        %v1433 = vpop.f32.mrf.mxu0
        %v1434 = vadd.f32 0.0, %v1433
        %v1435 = vpop.f32.mrf.mxu0
        %1436 = vmatprep.mubr.bf16.mxu0 0
        %1437 = vmatmul.mubr.bf16.gmra.mxu0 %v1159
        %v1438 = vpop.f32.mrf.mxu0
        %v1439 = vadd.f32 0.0, %v1438
        %v1440 = vpop.f32.mrf.mxu0
        %v1441 = vpop.f32.mrf.mxu0
        %v1442 = vadd.f32 0.0, %v1441
        %v1443 = vpop.f32.mrf.mxu0
        %1444 = vmatprep.mubr.bf16.mxu0 0
        %1445 = vmatmul.mubr.bf16.gmra.mxu0 %v1162
        %v1446 = vpop.f32.mrf.mxu0
        %v1447 = vadd.f32 0.0, %v1446
        %v1448 = vpop.f32.mrf.mxu0
        %v1449 = vpop.f32.mrf.mxu0
        %v1450 = vadd.f32 0.0, %v1449
        %v1451 = vpop.f32.mrf.mxu0
        %1452 = vdwg.mxu0
        %v1461 = vunpack.c.l.b16 %v994
        %v1462 = vunpack.c.l.b16 %v995
        %v1463 = vunpack.c.l.b16 %v996
        %v1464 = vunpack.c.l.b16 %v997
        %v1465 = vunpack.c.l.b16 %v998
        %v1466 = vunpack.c.l.b16 %v999
        %v1467 = vunpack.c.l.b16 %v1000
        %v1468 = vunpack.c.l.b16 %v1001
        %v1469 = vpack.c.b16 %v1462, %v1461
        %v1470 = vpack.c.b16 %v1464, %v1463
        %v1471 = vpack.c.b16 %v1466, %v1465
        %v1472 = vpack.c.b16 %v1468, %v1467
        %v1478 = vsel %vm1067, %v962, 0
        %v1481 = vsel %vm1067, %v963, 0
        %v1484 = vsel %vm1067, %v964, 0
        %v1487 = vsel %vm1067, %v965, 0
        %v1490 = vsel %vm1067, %v966, 0
        %v1493 = vsel %vm1067, %v967, 0
        %v1496 = vsel %vm1067, %v968, 0
        %v1499 = vsel %vm1067, %v969, 0
        %v1502 = vsel %vm1067, %v970, 0
        %v1505 = vsel %vm1067, %v971, 0
        %v1508 = vsel %vm1067, %v972, 0
        %v1511 = vsel %vm1067, %v973, 0
        %v1514 = vsel %vm1067, %v974, 0
        %v1517 = vsel %vm1067, %v975, 0
        %v1520 = vsel %vm1067, %v976, 0
        %v1523 = vsel %vm1067, %v977, 0
        %v1526 = vsel %vm1067, %v978, 0
        %v1529 = vsel %vm1067, %v979, 0
        %v1532 = vsel %vm1067, %v980, 0
        %v1535 = vsel %vm1067, %v981, 0
        %v1538 = vsel %vm1067, %v982, 0
        %v1541 = vsel %vm1067, %v983, 0
        %v1544 = vsel %vm1067, %v984, 0
        %v1547 = vsel %vm1067, %v985, 0
        %v1550 = vsel %vm1067, %v986, 0
        %v1553 = vsel %vm1067, %v987, 0
        %v1556 = vsel %vm1067, %v988, 0
        %v1559 = vsel %vm1067, %v989, 0
        %v1562 = vsel %vm1067, %v990, 0
        %v1565 = vsel %vm1067, %v991, 0
        %v1568 = vsel %vm1067, %v992, 0
        %v1571 = vsel %vm1067, %v993, 0
        %1573 = vmatprep.subr.bf16.mxu0 0
        %1574 = vmatpush1.bf16.msra.mxu0 0
        %1575 = vmatprep.subr.bf16.mxu0 0
        %1576 = vmatpush1.bf16.msra.mxu0 0
        %1577 = vmatprep.subr.bf16.mxu0 0
        %1578 = vmatpush1.bf16.msra.mxu0 0
        %1579 = vmatprep.subr.bf16.mxu0 0
        %1580 = vmatpush1.bf16.msra.mxu0 0
        %1581 = vmatprep.subr.bf16.mxu0 0
        %1582 = vmatpush1.bf16.msra.mxu0 %v1472
        %1583 = vmatprep.subr.bf16.mxu0 0
        %1584 = vmatpush1.bf16.msra.mxu0 %v1471
        %1585 = vmatprep.subr.bf16.mxu0 0
        %1586 = vmatpush1.bf16.msra.mxu0 %v1470
        %1587 = vmatprep.subr.bf16.mxu0 0
        %1588 = vmatpush1.bf16.msra.mxu0 %v1469
        %1589 = vmatprep.subr.bf16.mxu0 0
        %1590 = vmatpush2.bf16.msra.mxu0 0
        %1591 = vmatprep.subr.bf16.mxu0 0
        %1592 = vmatpush2.bf16.msra.mxu0 0
        %1593 = vmatprep.subr.bf16.mxu0 0
        %1594 = vmatpush2.bf16.msra.mxu0 0
        %1595 = vmatprep.subr.bf16.mxu0 0
        %1596 = vmatpush2.bf16.msra.mxu0 0
        %1597 = vmatprep.subr.bf16.mxu0 0
        %1598 = vmatpush2.bf16.msra.mxu0 0
        %1599 = vmatprep.subr.bf16.mxu0 0
        %1600 = vmatpush2.bf16.msra.mxu0 0
        %1601 = vmatprep.subr.bf16.mxu0 0
        %1602 = vmatpush2.bf16.msra.mxu0 0
        %1603 = vmatprep.subr.bf16.mxu0 0
        %1604 = vmatpush2.bf16.msra.mxu0 0
        %1605 = vmatprep.mubr.bf16.mxu0 0
        %1606 = vmatmul.mubr.bf16.gmra.mxu0 %v1478
        %v1607 = vpop.f32.mrf.mxu0
        %v1608 = vadd.f32 %v1199, %v1607
        %v1609 = vpop.f32.mrf.mxu0
        %v1610 = vpop.f32.mrf.mxu0
        %v1611 = vadd.f32 %v1202, %v1610
        %v1612 = vpop.f32.mrf.mxu0
        %1613 = vmatprep.mubr.bf16.mxu0 0
        %1614 = vmatmul.mubr.bf16.gmra.mxu0 %v1481
        %v1615 = vpop.f32.mrf.mxu0
        %v1616 = vadd.f32 %v1207, %v1615
        %v1617 = vpop.f32.mrf.mxu0
        %v1618 = vpop.f32.mrf.mxu0
        %v1619 = vadd.f32 %v1210, %v1618
        %v1620 = vpop.f32.mrf.mxu0
        %1621 = vmatprep.mubr.bf16.mxu0 0
        %1622 = vmatmul.mubr.bf16.gmra.mxu0 %v1484
        %v1623 = vpop.f32.mrf.mxu0
        %v1624 = vadd.f32 %v1215, %v1623
        %v1625 = vpop.f32.mrf.mxu0
        %v1626 = vpop.f32.mrf.mxu0
        %v1627 = vadd.f32 %v1218, %v1626
        %v1628 = vpop.f32.mrf.mxu0
        %1629 = vmatprep.mubr.bf16.mxu0 0
        %1630 = vmatmul.mubr.bf16.gmra.mxu0 %v1487
        %v1631 = vpop.f32.mrf.mxu0
        %v1632 = vadd.f32 %v1223, %v1631
        %v1633 = vpop.f32.mrf.mxu0
        %v1634 = vpop.f32.mrf.mxu0
        %v1635 = vadd.f32 %v1226, %v1634
        %v1636 = vpop.f32.mrf.mxu0
        %1637 = vmatprep.mubr.bf16.mxu0 0
        %1638 = vmatmul.mubr.bf16.gmra.mxu0 %v1490
        %v1639 = vpop.f32.mrf.mxu0
        %v1640 = vadd.f32 %v1231, %v1639
        %v1641 = vpop.f32.mrf.mxu0
        %v1642 = vpop.f32.mrf.mxu0
        %v1643 = vadd.f32 %v1234, %v1642
        %v1644 = vpop.f32.mrf.mxu0
        %1645 = vmatprep.mubr.bf16.mxu0 0
        %1646 = vmatmul.mubr.bf16.gmra.mxu0 %v1493
        %v1647 = vpop.f32.mrf.mxu0
        %v1648 = vadd.f32 %v1239, %v1647
        %v1649 = vpop.f32.mrf.mxu0
        %v1650 = vpop.f32.mrf.mxu0
        %v1651 = vadd.f32 %v1242, %v1650
        %v1652 = vpop.f32.mrf.mxu0
        %1653 = vmatprep.mubr.bf16.mxu0 0
        %1654 = vmatmul.mubr.bf16.gmra.mxu0 %v1496
        %v1655 = vpop.f32.mrf.mxu0
        %v1656 = vadd.f32 %v1247, %v1655
        %v1657 = vpop.f32.mrf.mxu0
        %v1658 = vpop.f32.mrf.mxu0
        %v1659 = vadd.f32 %v1250, %v1658
        %v1660 = vpop.f32.mrf.mxu0
        %1661 = vmatprep.mubr.bf16.mxu0 0
        %1662 = vmatmul.mubr.bf16.gmra.mxu0 %v1499
        %v1663 = vpop.f32.mrf.mxu0
        %v1664 = vadd.f32 %v1255, %v1663
        %v1665 = vpop.f32.mrf.mxu0
        %v1666 = vpop.f32.mrf.mxu0
        %v1667 = vadd.f32 %v1258, %v1666
        %v1668 = vpop.f32.mrf.mxu0
        %1669 = vmatprep.mubr.bf16.mxu0 0
        %1670 = vmatmul.mubr.bf16.gmra.mxu0 %v1502
        %v1671 = vpop.f32.mrf.mxu0
        %v1672 = vadd.f32 %v1263, %v1671
        %v1673 = vpop.f32.mrf.mxu0
        %v1674 = vpop.f32.mrf.mxu0
        %v1675 = vadd.f32 %v1266, %v1674
        %v1676 = vpop.f32.mrf.mxu0
        %1677 = vmatprep.mubr.bf16.mxu0 0
        %1678 = vmatmul.mubr.bf16.gmra.mxu0 %v1505
        %v1679 = vpop.f32.mrf.mxu0
        %v1680 = vadd.f32 %v1271, %v1679
        %v1681 = vpop.f32.mrf.mxu0
        %v1682 = vpop.f32.mrf.mxu0
        %v1683 = vadd.f32 %v1274, %v1682
        %v1684 = vpop.f32.mrf.mxu0
        %1685 = vmatprep.mubr.bf16.mxu0 0
        %1686 = vmatmul.mubr.bf16.gmra.mxu0 %v1508
        %v1687 = vpop.f32.mrf.mxu0
        %v1688 = vadd.f32 %v1279, %v1687
        %v1689 = vpop.f32.mrf.mxu0
        %v1690 = vpop.f32.mrf.mxu0
        %v1691 = vadd.f32 %v1282, %v1690
        %v1692 = vpop.f32.mrf.mxu0
        %1693 = vmatprep.mubr.bf16.mxu0 0
        %1694 = vmatmul.mubr.bf16.gmra.mxu0 %v1511
        %v1695 = vpop.f32.mrf.mxu0
        %v1696 = vadd.f32 %v1287, %v1695
        %v1697 = vpop.f32.mrf.mxu0
        %v1698 = vpop.f32.mrf.mxu0
        %v1699 = vadd.f32 %v1290, %v1698
        %v1700 = vpop.f32.mrf.mxu0
        %1701 = vmatprep.mubr.bf16.mxu0 0
        %1702 = vmatmul.mubr.bf16.gmra.mxu0 %v1514
        %v1703 = vpop.f32.mrf.mxu0
        %v1704 = vadd.f32 %v1295, %v1703
        %v1705 = vpop.f32.mrf.mxu0
        %v1706 = vpop.f32.mrf.mxu0
        %v1707 = vadd.f32 %v1298, %v1706
        %v1708 = vpop.f32.mrf.mxu0
        %1709 = vmatprep.mubr.bf16.mxu0 0
        %1710 = vmatmul.mubr.bf16.gmra.mxu0 %v1517
        %v1711 = vpop.f32.mrf.mxu0
        %v1712 = vadd.f32 %v1303, %v1711
        %v1713 = vpop.f32.mrf.mxu0
        %v1714 = vpop.f32.mrf.mxu0
        %v1715 = vadd.f32 %v1306, %v1714
        %v1716 = vpop.f32.mrf.mxu0
        %1717 = vmatprep.mubr.bf16.mxu0 0
        %1718 = vmatmul.mubr.bf16.gmra.mxu0 %v1520
        %v1719 = vpop.f32.mrf.mxu0
        %v1720 = vadd.f32 %v1311, %v1719
        %v1721 = vpop.f32.mrf.mxu0
        %v1722 = vpop.f32.mrf.mxu0
        %v1723 = vadd.f32 %v1314, %v1722
        %v1724 = vpop.f32.mrf.mxu0
        %1725 = vmatprep.mubr.bf16.mxu0 0
        %1726 = vmatmul.mubr.bf16.gmra.mxu0 %v1523
        %v1727 = vpop.f32.mrf.mxu0
        %v1728 = vadd.f32 %v1319, %v1727
        %v1729 = vpop.f32.mrf.mxu0
        %v1730 = vpop.f32.mrf.mxu0
        %v1731 = vadd.f32 %v1322, %v1730
        %v1732 = vpop.f32.mrf.mxu0
        %1733 = vmatprep.mubr.bf16.mxu0 0
        %1734 = vmatmul.mubr.bf16.gmra.mxu0 %v1526
        %v1735 = vpop.f32.mrf.mxu0
        %v1736 = vadd.f32 %v1327, %v1735
        %v1737 = vpop.f32.mrf.mxu0
        %v1738 = vpop.f32.mrf.mxu0
        %v1739 = vadd.f32 %v1330, %v1738
        %v1740 = vpop.f32.mrf.mxu0
        %1741 = vmatprep.mubr.bf16.mxu0 0
        %1742 = vmatmul.mubr.bf16.gmra.mxu0 %v1529
        %v1743 = vpop.f32.mrf.mxu0
        %v1744 = vadd.f32 %v1335, %v1743
        %v1745 = vpop.f32.mrf.mxu0
        %v1746 = vpop.f32.mrf.mxu0
        %v1747 = vadd.f32 %v1338, %v1746
        %v1748 = vpop.f32.mrf.mxu0
        %1749 = vmatprep.mubr.bf16.mxu0 0
        %1750 = vmatmul.mubr.bf16.gmra.mxu0 %v1532
        %v1751 = vpop.f32.mrf.mxu0
        %v1752 = vadd.f32 %v1343, %v1751
        %v1753 = vpop.f32.mrf.mxu0
        %v1754 = vpop.f32.mrf.mxu0
        %v1755 = vadd.f32 %v1346, %v1754
        %v1756 = vpop.f32.mrf.mxu0
        %1757 = vmatprep.mubr.bf16.mxu0 0
        %1758 = vmatmul.mubr.bf16.gmra.mxu0 %v1535
        %v1759 = vpop.f32.mrf.mxu0
        %v1760 = vadd.f32 %v1351, %v1759
        %v1761 = vpop.f32.mrf.mxu0
        %v1762 = vpop.f32.mrf.mxu0
        %v1763 = vadd.f32 %v1354, %v1762
        %v1764 = vpop.f32.mrf.mxu0
        %1765 = vmatprep.mubr.bf16.mxu0 0
        %1766 = vmatmul.mubr.bf16.gmra.mxu0 %v1538
        %v1767 = vpop.f32.mrf.mxu0
        %v1768 = vadd.f32 %v1359, %v1767
        %v1769 = vpop.f32.mrf.mxu0
        %v1770 = vpop.f32.mrf.mxu0
        %v1771 = vadd.f32 %v1362, %v1770
        %v1772 = vpop.f32.mrf.mxu0
        %1773 = vmatprep.mubr.bf16.mxu0 0
        %1774 = vmatmul.mubr.bf16.gmra.mxu0 %v1541
        %v1775 = vpop.f32.mrf.mxu0
        %v1776 = vadd.f32 %v1367, %v1775
        %v1777 = vpop.f32.mrf.mxu0
        %v1778 = vpop.f32.mrf.mxu0
        %v1779 = vadd.f32 %v1370, %v1778
        %v1780 = vpop.f32.mrf.mxu0
        %1781 = vmatprep.mubr.bf16.mxu0 0
        %1782 = vmatmul.mubr.bf16.gmra.mxu0 %v1544
        %v1783 = vpop.f32.mrf.mxu0
        %v1784 = vadd.f32 %v1375, %v1783
        %v1785 = vpop.f32.mrf.mxu0
        %v1786 = vpop.f32.mrf.mxu0
        %v1787 = vadd.f32 %v1378, %v1786
        %v1788 = vpop.f32.mrf.mxu0
        %1789 = vmatprep.mubr.bf16.mxu0 0
        %1790 = vmatmul.mubr.bf16.gmra.mxu0 %v1547
        %v1791 = vpop.f32.mrf.mxu0
        %v1792 = vadd.f32 %v1383, %v1791
        %v1793 = vpop.f32.mrf.mxu0
        %v1794 = vpop.f32.mrf.mxu0
        %v1795 = vadd.f32 %v1386, %v1794
        %v1796 = vpop.f32.mrf.mxu0
        %1797 = vmatprep.mubr.bf16.mxu0 0
        %1798 = vmatmul.mubr.bf16.gmra.mxu0 %v1550
        %v1799 = vpop.f32.mrf.mxu0
        %v1800 = vadd.f32 %v1391, %v1799
        %v1801 = vpop.f32.mrf.mxu0
        %v1802 = vpop.f32.mrf.mxu0
        %v1803 = vadd.f32 %v1394, %v1802
        %v1804 = vpop.f32.mrf.mxu0
        %1805 = vmatprep.mubr.bf16.mxu0 0
        %1806 = vmatmul.mubr.bf16.gmra.mxu0 %v1553
        %v1807 = vpop.f32.mrf.mxu0
        %v1808 = vadd.f32 %v1399, %v1807
        %v1809 = vpop.f32.mrf.mxu0
        %v1810 = vpop.f32.mrf.mxu0
        %v1811 = vadd.f32 %v1402, %v1810
        %v1812 = vpop.f32.mrf.mxu0
        %1813 = vmatprep.mubr.bf16.mxu0 0
        %1814 = vmatmul.mubr.bf16.gmra.mxu0 %v1556
        %v1815 = vpop.f32.mrf.mxu0
        %v1816 = vadd.f32 %v1407, %v1815
        %v1817 = vpop.f32.mrf.mxu0
        %v1818 = vpop.f32.mrf.mxu0
        %v1819 = vadd.f32 %v1410, %v1818
        %v1820 = vpop.f32.mrf.mxu0
        %1821 = vmatprep.mubr.bf16.mxu0 0
        %1822 = vmatmul.mubr.bf16.gmra.mxu0 %v1559
        %v1823 = vpop.f32.mrf.mxu0
        %v1824 = vadd.f32 %v1415, %v1823
        %v1825 = vpop.f32.mrf.mxu0
        %v1826 = vpop.f32.mrf.mxu0
        %v1827 = vadd.f32 %v1418, %v1826
        %v1828 = vpop.f32.mrf.mxu0
        %1829 = vmatprep.mubr.bf16.mxu0 0
        %1830 = vmatmul.mubr.bf16.gmra.mxu0 %v1562
        %v1831 = vpop.f32.mrf.mxu0
        %v1832 = vadd.f32 %v1423, %v1831
        %v1833 = vpop.f32.mrf.mxu0
        %v1834 = vpop.f32.mrf.mxu0
        %v1835 = vadd.f32 %v1426, %v1834
        %v1836 = vpop.f32.mrf.mxu0
        %1837 = vmatprep.mubr.bf16.mxu0 0
        %1838 = vmatmul.mubr.bf16.gmra.mxu0 %v1565
        %v1839 = vpop.f32.mrf.mxu0
        %v1840 = vadd.f32 %v1431, %v1839
        %v1841 = vpop.f32.mrf.mxu0
        %v1842 = vpop.f32.mrf.mxu0
        %v1843 = vadd.f32 %v1434, %v1842
        %v1844 = vpop.f32.mrf.mxu0
        %1845 = vmatprep.mubr.bf16.mxu0 0
        %1846 = vmatmul.mubr.bf16.gmra.mxu0 %v1568
        %v1847 = vpop.f32.mrf.mxu0
        %v1848 = vadd.f32 %v1439, %v1847
        %v1849 = vpop.f32.mrf.mxu0
        %v1850 = vpop.f32.mrf.mxu0
        %v1851 = vadd.f32 %v1442, %v1850
        %v1852 = vpop.f32.mrf.mxu0
        %1853 = vmatprep.mubr.bf16.mxu0 0
        %1854 = vmatmul.mubr.bf16.gmra.mxu0 %v1571
        %v1855 = vpop.f32.mrf.mxu0
        %v1856 = vadd.f32 %v1447, %v1855
        %v1857 = vpop.f32.mrf.mxu0
        %v1858 = vpop.f32.mrf.mxu0
        %v1859 = vadd.f32 %v1450, %v1858
        %v1860 = vpop.f32.mrf.mxu0
        %1861 = vdwg.mxu0
        %v1862 = vpack.c.bf16 %v870, %v869
        %v1863 = vpack.c.bf16 %v880, %v879
        %v1864 = vpack.c.bf16 %v890, %v889
        %v1865 = vpack.c.bf16 %v900, %v899
        %v1866 = vpack.c.bf16 %v910, %v909
        %v1867 = vpack.c.bf16 %v920, %v919
        %v1868 = vpack.c.bf16 %v930, %v929
        %v1869 = vpack.c.bf16 %v940, %v939
        %s1870 = scalar_lea.vmem [#allocation6], 64
        %v1871 = vld [vmem:[%s1870] sm:$0xf]
        %v1872 = vld [vmem:[%s1870 + $0x4] sm:$0xf]
        %v1873 = vld [vmem:[%s1870 + $0x8] sm:$0xf]
        %v1874 = vld [vmem:[%s1870 + $0xc] sm:$0xf]
        %v1875 = vld [vmem:[%s1870 + $0x10] sm:$0xf]
        %v1876 = vld [vmem:[%s1870 + $0x14] sm:$0xf]
        %v1877 = vld [vmem:[%s1870 + $0x18] sm:$0xf]
        %v1878 = vld [vmem:[%s1870 + $0x1c] sm:$0xf]
        %v1887 = vunpack.c.l.b16 %v1871
        %v1888 = vunpack.c.l.b16 %v1872
        %v1889 = vunpack.c.l.b16 %v1873
        %v1890 = vunpack.c.l.b16 %v1874
        %v1891 = vunpack.c.l.b16 %v1875
        %v1892 = vunpack.c.l.b16 %v1876
        %v1893 = vunpack.c.l.b16 %v1877
        %v1894 = vunpack.c.l.b16 %v1878
        %v1895 = vpack.c.b16 %v1888, %v1887
        %v1896 = vpack.c.b16 %v1890, %v1889
        %v1897 = vpack.c.b16 %v1892, %v1891
        %v1898 = vpack.c.b16 %v1894, %v1893
        %v1904 = vsel %vm1067, %v1862, 0
        %v1907 = vsel %vm1067, %v1863, 0
        %v1910 = vsel %vm1067, %v1864, 0
        %v1913 = vsel %vm1067, %v1865, 0
        %v1916 = vsel %vm1067, %v1866, 0
        %v1919 = vsel %vm1067, %v1867, 0
        %v1922 = vsel %vm1067, %v1868, 0
        %v1925 = vsel %vm1067, %v1869, 0
        %1927 = vmatprep.subr.bf16.mxu0 0
        %1928 = vmatpush1.bf16.msra.mxu0 0
        %1929 = vmatprep.subr.bf16.mxu0 0
        %1930 = vmatpush1.bf16.msra.mxu0 0
        %1931 = vmatprep.subr.bf16.mxu0 0
        %1932 = vmatpush1.bf16.msra.mxu0 0
        %1933 = vmatprep.subr.bf16.mxu0 0
        %1934 = vmatpush1.bf16.msra.mxu0 0
        %1935 = vmatprep.subr.bf16.mxu0 0
        %1936 = vmatpush1.bf16.msra.mxu0 %v1898
        %1937 = vmatprep.subr.bf16.mxu0 0
        %1938 = vmatpush1.bf16.msra.mxu0 %v1897
        %1939 = vmatprep.subr.bf16.mxu0 0
        %1940 = vmatpush1.bf16.msra.mxu0 %v1896
        %1941 = vmatprep.subr.bf16.mxu0 0
        %1942 = vmatpush1.bf16.msra.mxu0 %v1895
        %1943 = vmatprep.subr.bf16.mxu0 0
        %1944 = vmatpush2.bf16.msra.mxu0 0
        %1945 = vmatprep.subr.bf16.mxu0 0
        %1946 = vmatpush2.bf16.msra.mxu0 0
        %1947 = vmatprep.subr.bf16.mxu0 0
        %1948 = vmatpush2.bf16.msra.mxu0 0
        %1949 = vmatprep.subr.bf16.mxu0 0
        %1950 = vmatpush2.bf16.msra.mxu0 0
        %1951 = vmatprep.subr.bf16.mxu0 0
        %1952 = vmatpush2.bf16.msra.mxu0 0
        %1953 = vmatprep.subr.bf16.mxu0 0
        %1954 = vmatpush2.bf16.msra.mxu0 0
        %1955 = vmatprep.subr.bf16.mxu0 0
        %1956 = vmatpush2.bf16.msra.mxu0 0
        %1957 = vmatprep.subr.bf16.mxu0 0
        %1958 = vmatpush2.bf16.msra.mxu0 0
        %1959 = vmatprep.mubr.bf16.mxu0 0
        %1960 = vmatmul.mubr.bf16.gmra.mxu0 %v1481
        %v1961 = vpop.f32.mrf.mxu0
        %v1962 = vadd.f32 0.0, %v1961
        %v1963 = vpop.f32.mrf.mxu0
        %v1964 = vpop.f32.mrf.mxu0
        %v1965 = vadd.f32 0.0, %v1964
        %v1966 = vpop.f32.mrf.mxu0
        %1967 = vmatprep.mubr.bf16.mxu0 0
        %1968 = vmatmul.mubr.bf16.gmra.mxu0 %v1484
        %v1969 = vpop.f32.mrf.mxu0
        %v1970 = vadd.f32 0.0, %v1969
        %v1971 = vpop.f32.mrf.mxu0
        %v1972 = vpop.f32.mrf.mxu0
        %v1973 = vadd.f32 0.0, %v1972
        %v1974 = vpop.f32.mrf.mxu0
        %1975 = vmatprep.mubr.bf16.mxu0 0
        %1976 = vmatmul.mubr.bf16.gmra.mxu0 %v1487
        %v1977 = vpop.f32.mrf.mxu0
        %v1978 = vadd.f32 0.0, %v1977
        %v1979 = vpop.f32.mrf.mxu0
        %v1980 = vpop.f32.mrf.mxu0
        %v1981 = vadd.f32 0.0, %v1980
        %v1982 = vpop.f32.mrf.mxu0
        %1983 = vmatprep.mubr.bf16.mxu0 0
        %1984 = vmatmul.mubr.bf16.gmra.mxu0 %v1904
        %v1985 = vpop.f32.mrf.mxu0
        %v1986 = vadd.f32 0.0, %v1985
        %v1987 = vpop.f32.mrf.mxu0
        %v1988 = vpop.f32.mrf.mxu0
        %v1989 = vadd.f32 0.0, %v1988
        %v1990 = vpop.f32.mrf.mxu0
        %1991 = vmatprep.mubr.bf16.mxu0 0
        %1992 = vmatmul.mubr.bf16.gmra.mxu0 %v1493
        %v1993 = vpop.f32.mrf.mxu0
        %v1994 = vadd.f32 0.0, %v1993
        %v1995 = vpop.f32.mrf.mxu0
        %v1996 = vpop.f32.mrf.mxu0
        %v1997 = vadd.f32 0.0, %v1996
        %v1998 = vpop.f32.mrf.mxu0
        %1999 = vmatprep.mubr.bf16.mxu0 0
        %2000 = vmatmul.mubr.bf16.gmra.mxu0 %v1496
        %v2001 = vpop.f32.mrf.mxu0
        %v2002 = vadd.f32 0.0, %v2001
        %v2003 = vpop.f32.mrf.mxu0
        %v2004 = vpop.f32.mrf.mxu0
        %v2005 = vadd.f32 0.0, %v2004
        %v2006 = vpop.f32.mrf.mxu0
        %2007 = vmatprep.mubr.bf16.mxu0 0
        %2008 = vmatmul.mubr.bf16.gmra.mxu0 %v1499
        %v2009 = vpop.f32.mrf.mxu0
        %v2010 = vadd.f32 0.0, %v2009
        %v2011 = vpop.f32.mrf.mxu0
        %v2012 = vpop.f32.mrf.mxu0
        %v2013 = vadd.f32 0.0, %v2012
        %v2014 = vpop.f32.mrf.mxu0
        %2015 = vmatprep.mubr.bf16.mxu0 0
        %2016 = vmatmul.mubr.bf16.gmra.mxu0 %v1907
        %v2017 = vpop.f32.mrf.mxu0
        %v2018 = vadd.f32 0.0, %v2017
        %v2019 = vpop.f32.mrf.mxu0
        %v2020 = vpop.f32.mrf.mxu0
        %v2021 = vadd.f32 0.0, %v2020
        %v2022 = vpop.f32.mrf.mxu0
        %2023 = vmatprep.mubr.bf16.mxu0 0
        %2024 = vmatmul.mubr.bf16.gmra.mxu0 %v1505
        %v2025 = vpop.f32.mrf.mxu0
        %v2026 = vadd.f32 0.0, %v2025
        %v2027 = vpop.f32.mrf.mxu0
        %v2028 = vpop.f32.mrf.mxu0
        %v2029 = vadd.f32 0.0, %v2028
        %v2030 = vpop.f32.mrf.mxu0
        %2031 = vmatprep.mubr.bf16.mxu0 0
        %2032 = vmatmul.mubr.bf16.gmra.mxu0 %v1508
        %v2033 = vpop.f32.mrf.mxu0
        %v2034 = vadd.f32 0.0, %v2033
        %v2035 = vpop.f32.mrf.mxu0
        %v2036 = vpop.f32.mrf.mxu0
        %v2037 = vadd.f32 0.0, %v2036
        %v2038 = vpop.f32.mrf.mxu0
        %2039 = vmatprep.mubr.bf16.mxu0 0
        %2040 = vmatmul.mubr.bf16.gmra.mxu0 %v1511
        %v2041 = vpop.f32.mrf.mxu0
        %v2042 = vadd.f32 0.0, %v2041
        %v2043 = vpop.f32.mrf.mxu0
        %v2044 = vpop.f32.mrf.mxu0
        %v2045 = vadd.f32 0.0, %v2044
        %v2046 = vpop.f32.mrf.mxu0
        %2047 = vmatprep.mubr.bf16.mxu0 0
        %2048 = vmatmul.mubr.bf16.gmra.mxu0 %v1910
        %v2049 = vpop.f32.mrf.mxu0
        %v2050 = vadd.f32 0.0, %v2049
        %v2051 = vpop.f32.mrf.mxu0
        %v2052 = vpop.f32.mrf.mxu0
        %v2053 = vadd.f32 0.0, %v2052
        %v2054 = vpop.f32.mrf.mxu0
        %2055 = vmatprep.mubr.bf16.mxu0 0
        %2056 = vmatmul.mubr.bf16.gmra.mxu0 %v1517
        %v2057 = vpop.f32.mrf.mxu0
        %v2058 = vadd.f32 0.0, %v2057
        %v2059 = vpop.f32.mrf.mxu0
        %v2060 = vpop.f32.mrf.mxu0
        %v2061 = vadd.f32 0.0, %v2060
        %v2062 = vpop.f32.mrf.mxu0
        %2063 = vmatprep.mubr.bf16.mxu0 0
        %2064 = vmatmul.mubr.bf16.gmra.mxu0 %v1520
        %v2065 = vpop.f32.mrf.mxu0
        %v2066 = vadd.f32 0.0, %v2065
        %v2067 = vpop.f32.mrf.mxu0
        %v2068 = vpop.f32.mrf.mxu0
        %v2069 = vadd.f32 0.0, %v2068
        %v2070 = vpop.f32.mrf.mxu0
        %2071 = vmatprep.mubr.bf16.mxu0 0
        %2072 = vmatmul.mubr.bf16.gmra.mxu0 %v1523
        %v2073 = vpop.f32.mrf.mxu0
        %v2074 = vadd.f32 0.0, %v2073
        %v2075 = vpop.f32.mrf.mxu0
        %v2076 = vpop.f32.mrf.mxu0
        %v2077 = vadd.f32 0.0, %v2076
        %v2078 = vpop.f32.mrf.mxu0
        %2079 = vmatprep.mubr.bf16.mxu0 0
        %2080 = vmatmul.mubr.bf16.gmra.mxu0 %v1913
        %v2081 = vpop.f32.mrf.mxu0
        %v2082 = vadd.f32 0.0, %v2081
        %v2083 = vpop.f32.mrf.mxu0
        %v2084 = vpop.f32.mrf.mxu0
        %v2085 = vadd.f32 0.0, %v2084
        %v2086 = vpop.f32.mrf.mxu0
        %2087 = vmatprep.mubr.bf16.mxu0 0
        %2088 = vmatmul.mubr.bf16.gmra.mxu0 %v1529
        %v2089 = vpop.f32.mrf.mxu0
        %v2090 = vadd.f32 0.0, %v2089
        %v2091 = vpop.f32.mrf.mxu0
        %v2092 = vpop.f32.mrf.mxu0
        %v2093 = vadd.f32 0.0, %v2092
        %v2094 = vpop.f32.mrf.mxu0
        %2095 = vmatprep.mubr.bf16.mxu0 0
        %2096 = vmatmul.mubr.bf16.gmra.mxu0 %v1532
        %v2097 = vpop.f32.mrf.mxu0
        %v2098 = vadd.f32 0.0, %v2097
        %v2099 = vpop.f32.mrf.mxu0
        %v2100 = vpop.f32.mrf.mxu0
        %v2101 = vadd.f32 0.0, %v2100
        %v2102 = vpop.f32.mrf.mxu0
        %2103 = vmatprep.mubr.bf16.mxu0 0
        %2104 = vmatmul.mubr.bf16.gmra.mxu0 %v1535
        %v2105 = vpop.f32.mrf.mxu0
        %v2106 = vadd.f32 0.0, %v2105
        %v2107 = vpop.f32.mrf.mxu0
        %v2108 = vpop.f32.mrf.mxu0
        %v2109 = vadd.f32 0.0, %v2108
        %v2110 = vpop.f32.mrf.mxu0
        %2111 = vmatprep.mubr.bf16.mxu0 0
        %2112 = vmatmul.mubr.bf16.gmra.mxu0 %v1916
        %v2113 = vpop.f32.mrf.mxu0
        %v2114 = vadd.f32 0.0, %v2113
        %v2115 = vpop.f32.mrf.mxu0
        %v2116 = vpop.f32.mrf.mxu0
        %v2117 = vadd.f32 0.0, %v2116
        %v2118 = vpop.f32.mrf.mxu0
        %2119 = vmatprep.mubr.bf16.mxu0 0
        %2120 = vmatmul.mubr.bf16.gmra.mxu0 %v1541
        %v2121 = vpop.f32.mrf.mxu0
        %v2122 = vadd.f32 0.0, %v2121
        %v2123 = vpop.f32.mrf.mxu0
        %v2124 = vpop.f32.mrf.mxu0
        %v2125 = vadd.f32 0.0, %v2124
        %v2126 = vpop.f32.mrf.mxu0
        %2127 = vmatprep.mubr.bf16.mxu0 0
        %2128 = vmatmul.mubr.bf16.gmra.mxu0 %v1544
        %v2129 = vpop.f32.mrf.mxu0
        %v2130 = vadd.f32 0.0, %v2129
        %v2131 = vpop.f32.mrf.mxu0
        %v2132 = vpop.f32.mrf.mxu0
        %v2133 = vadd.f32 0.0, %v2132
        %v2134 = vpop.f32.mrf.mxu0
        %2135 = vmatprep.mubr.bf16.mxu0 0
        %2136 = vmatmul.mubr.bf16.gmra.mxu0 %v1547
        %v2137 = vpop.f32.mrf.mxu0
        %v2138 = vadd.f32 0.0, %v2137
        %v2139 = vpop.f32.mrf.mxu0
        %v2140 = vpop.f32.mrf.mxu0
        %v2141 = vadd.f32 0.0, %v2140
        %v2142 = vpop.f32.mrf.mxu0
        %2143 = vmatprep.mubr.bf16.mxu0 0
        %2144 = vmatmul.mubr.bf16.gmra.mxu0 %v1919
        %v2145 = vpop.f32.mrf.mxu0
        %v2146 = vadd.f32 0.0, %v2145
        %v2147 = vpop.f32.mrf.mxu0
        %v2148 = vpop.f32.mrf.mxu0
        %v2149 = vadd.f32 0.0, %v2148
        %v2150 = vpop.f32.mrf.mxu0
        %2151 = vmatprep.mubr.bf16.mxu0 0
        %2152 = vmatmul.mubr.bf16.gmra.mxu0 %v1553
        %v2153 = vpop.f32.mrf.mxu0
        %v2154 = vadd.f32 0.0, %v2153
        %v2155 = vpop.f32.mrf.mxu0
        %v2156 = vpop.f32.mrf.mxu0
        %v2157 = vadd.f32 0.0, %v2156
        %v2158 = vpop.f32.mrf.mxu0
        %2159 = vmatprep.mubr.bf16.mxu0 0
        %2160 = vmatmul.mubr.bf16.gmra.mxu0 %v1556
        %v2161 = vpop.f32.mrf.mxu0
        %v2162 = vadd.f32 0.0, %v2161
        %v2163 = vpop.f32.mrf.mxu0
        %v2164 = vpop.f32.mrf.mxu0
        %v2165 = vadd.f32 0.0, %v2164
        %v2166 = vpop.f32.mrf.mxu0
        %2167 = vmatprep.mubr.bf16.mxu0 0
        %2168 = vmatmul.mubr.bf16.gmra.mxu0 %v1559
        %v2169 = vpop.f32.mrf.mxu0
        %v2170 = vadd.f32 0.0, %v2169
        %v2171 = vpop.f32.mrf.mxu0
        %v2172 = vpop.f32.mrf.mxu0
        %v2173 = vadd.f32 0.0, %v2172
        %v2174 = vpop.f32.mrf.mxu0
        %2175 = vmatprep.mubr.bf16.mxu0 0
        %2176 = vmatmul.mubr.bf16.gmra.mxu0 %v1922
        %v2177 = vpop.f32.mrf.mxu0
        %v2178 = vadd.f32 0.0, %v2177
        %v2179 = vpop.f32.mrf.mxu0
        %v2180 = vpop.f32.mrf.mxu0
        %v2181 = vadd.f32 0.0, %v2180
        %v2182 = vpop.f32.mrf.mxu0
        %2183 = vmatprep.mubr.bf16.mxu0 0
        %2184 = vmatmul.mubr.bf16.gmra.mxu0 %v1565
        %v2185 = vpop.f32.mrf.mxu0
        %v2186 = vadd.f32 0.0, %v2185
        %v2187 = vpop.f32.mrf.mxu0
        %v2188 = vpop.f32.mrf.mxu0
        %v2189 = vadd.f32 0.0, %v2188
        %v2190 = vpop.f32.mrf.mxu0
        %2191 = vmatprep.mubr.bf16.mxu0 0
        %2192 = vmatmul.mubr.bf16.gmra.mxu0 %v1568
        %v2193 = vpop.f32.mrf.mxu0
        %v2194 = vadd.f32 0.0, %v2193
        %v2195 = vpop.f32.mrf.mxu0
        %v2196 = vpop.f32.mrf.mxu0
        %v2197 = vadd.f32 0.0, %v2196
        %v2198 = vpop.f32.mrf.mxu0
        %2199 = vmatprep.mubr.bf16.mxu0 0
        %2200 = vmatmul.mubr.bf16.gmra.mxu0 %v1571
        %v2201 = vpop.f32.mrf.mxu0
        %v2202 = vadd.f32 0.0, %v2201
        %v2203 = vpop.f32.mrf.mxu0
        %v2204 = vpop.f32.mrf.mxu0
        %v2205 = vadd.f32 0.0, %v2204
        %v2206 = vpop.f32.mrf.mxu0
        %2207 = vmatprep.mubr.bf16.mxu0 0
        %2208 = vmatmul.mubr.bf16.gmra.mxu0 %v1925
        %v2209 = vpop.f32.mrf.mxu0
        %v2210 = vadd.f32 0.0, %v2209
        %v2211 = vpop.f32.mrf.mxu0
        %v2212 = vpop.f32.mrf.mxu0
        %v2213 = vadd.f32 0.0, %v2212
        %v2214 = vpop.f32.mrf.mxu0
        %2215 = vdwg.mxu0
        %v2216 = vadd.f32 %v1608, %v1962
        %v2217 = vadd.f32 %v1611, %v1965
        %v2218 = vadd.f32 %v1616, %v1970
        %v2219 = vadd.f32 %v1619, %v1973
        %v2220 = vadd.f32 %v1624, %v1978
        %v2221 = vadd.f32 %v1627, %v1981
        %v2222 = vadd.f32 %v1632, %v1986
        %v2223 = vadd.f32 %v1635, %v1989
        %v2224 = vadd.f32 %v1640, %v1994
        %v2225 = vadd.f32 %v1643, %v1997
        %v2226 = vadd.f32 %v1648, %v2002
        %v2227 = vadd.f32 %v1651, %v2005
        %v2228 = vadd.f32 %v1656, %v2010
        %v2229 = vadd.f32 %v1659, %v2013
        %v2230 = vadd.f32 %v1664, %v2018
        %v2231 = vadd.f32 %v1667, %v2021
        %v2232 = vadd.f32 %v1672, %v2026
        %v2233 = vadd.f32 %v1675, %v2029
        %v2234 = vadd.f32 %v1680, %v2034
        %v2235 = vadd.f32 %v1683, %v2037
        %v2236 = vadd.f32 %v1688, %v2042
        %v2237 = vadd.f32 %v1691, %v2045
        %v2238 = vadd.f32 %v1696, %v2050
        %v2239 = vadd.f32 %v1699, %v2053
        %v2240 = vadd.f32 %v1704, %v2058
        %v2241 = vadd.f32 %v1707, %v2061
        %v2242 = vadd.f32 %v1712, %v2066
        %v2243 = vadd.f32 %v1715, %v2069
        %v2244 = vadd.f32 %v1720, %v2074
        %v2245 = vadd.f32 %v1723, %v2077
        %v2246 = vadd.f32 %v1728, %v2082
        %v2247 = vadd.f32 %v1731, %v2085
        %v2248 = vadd.f32 %v1736, %v2090
        %v2249 = vadd.f32 %v1739, %v2093
        %v2250 = vadd.f32 %v1744, %v2098
        %v2251 = vadd.f32 %v1747, %v2101
        %v2252 = vadd.f32 %v1752, %v2106
        %v2253 = vadd.f32 %v1755, %v2109
        %v2254 = vadd.f32 %v1760, %v2114
        %v2255 = vadd.f32 %v1763, %v2117
        %v2256 = vadd.f32 %v1768, %v2122
        %v2257 = vadd.f32 %v1771, %v2125
        %v2258 = vadd.f32 %v1776, %v2130
        %v2259 = vadd.f32 %v1779, %v2133
        %v2260 = vadd.f32 %v1784, %v2138
        %v2261 = vadd.f32 %v1787, %v2141
        %v2262 = vadd.f32 %v1792, %v2146
        %v2263 = vadd.f32 %v1795, %v2149
        %v2264 = vadd.f32 %v1800, %v2154
        %v2265 = vadd.f32 %v1803, %v2157
        %v2266 = vadd.f32 %v1808, %v2162
        %v2267 = vadd.f32 %v1811, %v2165
        %v2268 = vadd.f32 %v1816, %v2170
        %v2269 = vadd.f32 %v1819, %v2173
        %v2270 = vadd.f32 %v1824, %v2178
        %v2271 = vadd.f32 %v1827, %v2181
        %v2272 = vadd.f32 %v1832, %v2186
        %v2273 = vadd.f32 %v1835, %v2189
        %v2274 = vadd.f32 %v1840, %v2194
        %v2275 = vadd.f32 %v1843, %v2197
        %v2276 = vadd.f32 %v1848, %v2202
        %v2277 = vadd.f32 %v1851, %v2205
        %v2278 = vadd.f32 %v1856, %v2210
        %v2279 = vadd.f32 %v1859, %v2213
        %v2280 = vpack.c.bf16 %v942, %v941
        %v2281 = vpack.c.bf16 %v944, %v943
        %v2282 = vpack.c.bf16 %v946, %v945
        %v2283 = vpack.c.bf16 %v948, %v947
        %s2284 = scalar_lea.vmem [#allocation6], 96
        %v2285 = vld [vmem:[%s2284] sm:$0xf]
        %v2286 = vld [vmem:[%s2284 + $0x4] sm:$0xf]
        %v2287 = vld [vmem:[%s2284 + $0x8] sm:$0xf]
        %v2288 = vld [vmem:[%s2284 + $0xc] sm:$0xf]
        %v2289 = vld [vmem:[%s2284 + $0x10] sm:$0xf]
        %v2290 = vld [vmem:[%s2284 + $0x14] sm:$0xf]
        %v2291 = vld [vmem:[%s2284 + $0x18] sm:$0xf]
        %v2292 = vld [vmem:[%s2284 + $0x1c] sm:$0xf]
        %v2301 = vunpack.c.l.b16 %v2285
        %v2302 = vunpack.c.l.b16 %v2286
        %v2303 = vunpack.c.l.b16 %v2287
        %v2304 = vunpack.c.l.b16 %v2288
        %v2305 = vunpack.c.l.b16 %v2289
        %v2306 = vunpack.c.l.b16 %v2290
        %v2307 = vunpack.c.l.b16 %v2291
        %v2308 = vunpack.c.l.b16 %v2292
        %v2309 = vpack.c.b16 %v2302, %v2301
        %v2310 = vpack.c.b16 %v2304, %v2303
        %v2311 = vpack.c.b16 %v2306, %v2305
        %v2312 = vpack.c.b16 %v2308, %v2307
        %v2318 = vsel %vm1067, %v2280, 0
        %v2321 = vsel %vm1067, %v2281, 0
        %v2324 = vsel %vm1067, %v2282, 0
        %v2327 = vsel %vm1067, %v2283, 0
        %2329 = vmatprep.subr.bf16.mxu0 0
        %2330 = vmatpush1.bf16.msra.mxu0 0
        %2331 = vmatprep.subr.bf16.mxu0 0
        %2332 = vmatpush1.bf16.msra.mxu0 0
        %2333 = vmatprep.subr.bf16.mxu0 0
        %2334 = vmatpush1.bf16.msra.mxu0 0
        %2335 = vmatprep.subr.bf16.mxu0 0
        %2336 = vmatpush1.bf16.msra.mxu0 0
        %2337 = vmatprep.subr.bf16.mxu0 0
        %2338 = vmatpush1.bf16.msra.mxu0 %v2312
        %2339 = vmatprep.subr.bf16.mxu0 0
        %2340 = vmatpush1.bf16.msra.mxu0 %v2311
        %2341 = vmatprep.subr.bf16.mxu0 0
        %2342 = vmatpush1.bf16.msra.mxu0 %v2310
        %2343 = vmatprep.subr.bf16.mxu0 0
        %2344 = vmatpush1.bf16.msra.mxu0 %v2309
        %2345 = vmatprep.subr.bf16.mxu0 0
        %2346 = vmatpush2.bf16.msra.mxu0 0
        %2347 = vmatprep.subr.bf16.mxu0 0
        %2348 = vmatpush2.bf16.msra.mxu0 0
        %2349 = vmatprep.subr.bf16.mxu0 0
        %2350 = vmatpush2.bf16.msra.mxu0 0
        %2351 = vmatprep.subr.bf16.mxu0 0
        %2352 = vmatpush2.bf16.msra.mxu0 0
        %2353 = vmatprep.subr.bf16.mxu0 0
        %2354 = vmatpush2.bf16.msra.mxu0 0
        %2355 = vmatprep.subr.bf16.mxu0 0
        %2356 = vmatpush2.bf16.msra.mxu0 0
        %2357 = vmatprep.subr.bf16.mxu0 0
        %2358 = vmatpush2.bf16.msra.mxu0 0
        %2359 = vmatprep.subr.bf16.mxu0 0
        %2360 = vmatpush2.bf16.msra.mxu0 0
        %2361 = vmatprep.mubr.bf16.mxu0 0
        %2362 = vmatmul.mubr.bf16.gmra.mxu0 %v1490
        %v2363 = vpop.f32.mrf.mxu0
        %v2364 = vadd.f32 0.0, %v2363
        %v2365 = vpop.f32.mrf.mxu0
        %v2366 = vpop.f32.mrf.mxu0
        %v2367 = vadd.f32 0.0, %v2366
        %v2368 = vpop.f32.mrf.mxu0
        %2369 = vmatprep.mubr.bf16.mxu0 0
        %2370 = vmatmul.mubr.bf16.gmra.mxu0 %v1493
        %v2371 = vpop.f32.mrf.mxu0
        %v2372 = vadd.f32 0.0, %v2371
        %v2373 = vpop.f32.mrf.mxu0
        %v2374 = vpop.f32.mrf.mxu0
        %v2375 = vadd.f32 0.0, %v2374
        %v2376 = vpop.f32.mrf.mxu0
        %2377 = vmatprep.mubr.bf16.mxu0 0
        %2378 = vmatmul.mubr.bf16.gmra.mxu0 %v1496
        %v2379 = vpop.f32.mrf.mxu0
        %v2380 = vadd.f32 0.0, %v2379
        %v2381 = vpop.f32.mrf.mxu0
        %v2382 = vpop.f32.mrf.mxu0
        %v2383 = vadd.f32 0.0, %v2382
        %v2384 = vpop.f32.mrf.mxu0
        %2385 = vmatprep.mubr.bf16.mxu0 0
        %2386 = vmatmul.mubr.bf16.gmra.mxu0 %v1499
        %v2387 = vpop.f32.mrf.mxu0
        %v2388 = vadd.f32 0.0, %v2387
        %v2389 = vpop.f32.mrf.mxu0
        %v2390 = vpop.f32.mrf.mxu0
        %v2391 = vadd.f32 0.0, %v2390
        %v2392 = vpop.f32.mrf.mxu0
        %2393 = vmatprep.mubr.bf16.mxu0 0
        %2394 = vmatmul.mubr.bf16.gmra.mxu0 %v1502
        %v2395 = vpop.f32.mrf.mxu0
        %v2396 = vadd.f32 0.0, %v2395
        %v2397 = vpop.f32.mrf.mxu0
        %v2398 = vpop.f32.mrf.mxu0
        %v2399 = vadd.f32 0.0, %v2398
        %v2400 = vpop.f32.mrf.mxu0
        %2401 = vmatprep.mubr.bf16.mxu0 0
        %2402 = vmatmul.mubr.bf16.gmra.mxu0 %v1505
        %v2403 = vpop.f32.mrf.mxu0
        %v2404 = vadd.f32 0.0, %v2403
        %v2405 = vpop.f32.mrf.mxu0
        %v2406 = vpop.f32.mrf.mxu0
        %v2407 = vadd.f32 0.0, %v2406
        %v2408 = vpop.f32.mrf.mxu0
        %2409 = vmatprep.mubr.bf16.mxu0 0
        %2410 = vmatmul.mubr.bf16.gmra.mxu0 %v1508
        %v2411 = vpop.f32.mrf.mxu0
        %v2412 = vadd.f32 0.0, %v2411
        %v2413 = vpop.f32.mrf.mxu0
        %v2414 = vpop.f32.mrf.mxu0
        %v2415 = vadd.f32 0.0, %v2414
        %v2416 = vpop.f32.mrf.mxu0
        %2417 = vmatprep.mubr.bf16.mxu0 0
        %2418 = vmatmul.mubr.bf16.gmra.mxu0 %v1511
        %v2419 = vpop.f32.mrf.mxu0
        %v2420 = vadd.f32 0.0, %v2419
        %v2421 = vpop.f32.mrf.mxu0
        %v2422 = vpop.f32.mrf.mxu0
        %v2423 = vadd.f32 0.0, %v2422
        %v2424 = vpop.f32.mrf.mxu0
        %2425 = vmatprep.mubr.bf16.mxu0 0
        %2426 = vmatmul.mubr.bf16.gmra.mxu0 %v1514
        %v2427 = vpop.f32.mrf.mxu0
        %v2428 = vadd.f32 0.0, %v2427
        %v2429 = vpop.f32.mrf.mxu0
        %v2430 = vpop.f32.mrf.mxu0
        %v2431 = vadd.f32 0.0, %v2430
        %v2432 = vpop.f32.mrf.mxu0
        %2433 = vmatprep.mubr.bf16.mxu0 0
        %2434 = vmatmul.mubr.bf16.gmra.mxu0 %v1517
        %v2435 = vpop.f32.mrf.mxu0
        %v2436 = vadd.f32 0.0, %v2435
        %v2437 = vpop.f32.mrf.mxu0
        %v2438 = vpop.f32.mrf.mxu0
        %v2439 = vadd.f32 0.0, %v2438
        %v2440 = vpop.f32.mrf.mxu0
        %2441 = vmatprep.mubr.bf16.mxu0 0
        %2442 = vmatmul.mubr.bf16.gmra.mxu0 %v1520
        %v2443 = vpop.f32.mrf.mxu0
        %v2444 = vadd.f32 0.0, %v2443
        %v2445 = vpop.f32.mrf.mxu0
        %v2446 = vpop.f32.mrf.mxu0
        %v2447 = vadd.f32 0.0, %v2446
        %v2448 = vpop.f32.mrf.mxu0
        %2449 = vmatprep.mubr.bf16.mxu0 0
        %2450 = vmatmul.mubr.bf16.gmra.mxu0 %v1523
        %v2451 = vpop.f32.mrf.mxu0
        %v2452 = vadd.f32 0.0, %v2451
        %v2453 = vpop.f32.mrf.mxu0
        %v2454 = vpop.f32.mrf.mxu0
        %v2455 = vadd.f32 0.0, %v2454
        %v2456 = vpop.f32.mrf.mxu0
        %2457 = vmatprep.mubr.bf16.mxu0 0
        %2458 = vmatmul.mubr.bf16.gmra.mxu0 %v1526
        %v2459 = vpop.f32.mrf.mxu0
        %v2460 = vadd.f32 0.0, %v2459
        %v2461 = vpop.f32.mrf.mxu0
        %v2462 = vpop.f32.mrf.mxu0
        %v2463 = vadd.f32 0.0, %v2462
        %v2464 = vpop.f32.mrf.mxu0
        %2465 = vmatprep.mubr.bf16.mxu0 0
        %2466 = vmatmul.mubr.bf16.gmra.mxu0 %v1529
        %v2467 = vpop.f32.mrf.mxu0
        %v2468 = vadd.f32 0.0, %v2467
        %v2469 = vpop.f32.mrf.mxu0
        %v2470 = vpop.f32.mrf.mxu0
        %v2471 = vadd.f32 0.0, %v2470
        %v2472 = vpop.f32.mrf.mxu0
        %2473 = vmatprep.mubr.bf16.mxu0 0
        %2474 = vmatmul.mubr.bf16.gmra.mxu0 %v1532
        %v2475 = vpop.f32.mrf.mxu0
        %v2476 = vadd.f32 0.0, %v2475
        %v2477 = vpop.f32.mrf.mxu0
        %v2478 = vpop.f32.mrf.mxu0
        %v2479 = vadd.f32 0.0, %v2478
        %v2480 = vpop.f32.mrf.mxu0
        %2481 = vmatprep.mubr.bf16.mxu0 0
        %2482 = vmatmul.mubr.bf16.gmra.mxu0 %v1535
        %v2483 = vpop.f32.mrf.mxu0
        %v2484 = vadd.f32 0.0, %v2483
        %v2485 = vpop.f32.mrf.mxu0
        %v2486 = vpop.f32.mrf.mxu0
        %v2487 = vadd.f32 0.0, %v2486
        %v2488 = vpop.f32.mrf.mxu0
        %2489 = vmatprep.mubr.bf16.mxu0 0
        %2490 = vmatmul.mubr.bf16.gmra.mxu0 %v1538
        %v2491 = vpop.f32.mrf.mxu0
        %v2492 = vadd.f32 0.0, %v2491
        %v2493 = vpop.f32.mrf.mxu0
        %v2494 = vpop.f32.mrf.mxu0
        %v2495 = vadd.f32 0.0, %v2494
        %v2496 = vpop.f32.mrf.mxu0
        %2497 = vmatprep.mubr.bf16.mxu0 0
        %2498 = vmatmul.mubr.bf16.gmra.mxu0 %v1541
        %v2499 = vpop.f32.mrf.mxu0
        %v2500 = vadd.f32 0.0, %v2499
        %v2501 = vpop.f32.mrf.mxu0
        %v2502 = vpop.f32.mrf.mxu0
        %v2503 = vadd.f32 0.0, %v2502
        %v2504 = vpop.f32.mrf.mxu0
        %2505 = vmatprep.mubr.bf16.mxu0 0
        %2506 = vmatmul.mubr.bf16.gmra.mxu0 %v1544
        %v2507 = vpop.f32.mrf.mxu0
        %v2508 = vadd.f32 0.0, %v2507
        %v2509 = vpop.f32.mrf.mxu0
        %v2510 = vpop.f32.mrf.mxu0
        %v2511 = vadd.f32 0.0, %v2510
        %v2512 = vpop.f32.mrf.mxu0
        %2513 = vmatprep.mubr.bf16.mxu0 0
        %2514 = vmatmul.mubr.bf16.gmra.mxu0 %v1547
        %v2515 = vpop.f32.mrf.mxu0
        %v2516 = vadd.f32 0.0, %v2515
        %v2517 = vpop.f32.mrf.mxu0
        %v2518 = vpop.f32.mrf.mxu0
        %v2519 = vadd.f32 0.0, %v2518
        %v2520 = vpop.f32.mrf.mxu0
        %2521 = vmatprep.mubr.bf16.mxu0 0
        %2522 = vmatmul.mubr.bf16.gmra.mxu0 %v1550
        %v2523 = vpop.f32.mrf.mxu0
        %v2524 = vadd.f32 0.0, %v2523
        %v2525 = vpop.f32.mrf.mxu0
        %v2526 = vpop.f32.mrf.mxu0
        %v2527 = vadd.f32 0.0, %v2526
        %v2528 = vpop.f32.mrf.mxu0
        %2529 = vmatprep.mubr.bf16.mxu0 0
        %2530 = vmatmul.mubr.bf16.gmra.mxu0 %v1553
        %v2531 = vpop.f32.mrf.mxu0
        %v2532 = vadd.f32 0.0, %v2531
        %v2533 = vpop.f32.mrf.mxu0
        %v2534 = vpop.f32.mrf.mxu0
        %v2535 = vadd.f32 0.0, %v2534
        %v2536 = vpop.f32.mrf.mxu0
        %2537 = vmatprep.mubr.bf16.mxu0 0
        %2538 = vmatmul.mubr.bf16.gmra.mxu0 %v1556
        %v2539 = vpop.f32.mrf.mxu0
        %v2540 = vadd.f32 0.0, %v2539
        %v2541 = vpop.f32.mrf.mxu0
        %v2542 = vpop.f32.mrf.mxu0
        %v2543 = vadd.f32 0.0, %v2542
        %v2544 = vpop.f32.mrf.mxu0
        %2545 = vmatprep.mubr.bf16.mxu0 0
        %2546 = vmatmul.mubr.bf16.gmra.mxu0 %v1559
        %v2547 = vpop.f32.mrf.mxu0
        %v2548 = vadd.f32 0.0, %v2547
        %v2549 = vpop.f32.mrf.mxu0
        %v2550 = vpop.f32.mrf.mxu0
        %v2551 = vadd.f32 0.0, %v2550
        %v2552 = vpop.f32.mrf.mxu0
        %2553 = vmatprep.mubr.bf16.mxu0 0
        %2554 = vmatmul.mubr.bf16.gmra.mxu0 %v1562
        %v2555 = vpop.f32.mrf.mxu0
        %v2556 = vadd.f32 0.0, %v2555
        %v2557 = vpop.f32.mrf.mxu0
        %v2558 = vpop.f32.mrf.mxu0
        %v2559 = vadd.f32 0.0, %v2558
        %v2560 = vpop.f32.mrf.mxu0
        %2561 = vmatprep.mubr.bf16.mxu0 0
        %2562 = vmatmul.mubr.bf16.gmra.mxu0 %v1565
        %v2563 = vpop.f32.mrf.mxu0
        %v2564 = vadd.f32 0.0, %v2563
        %v2565 = vpop.f32.mrf.mxu0
        %v2566 = vpop.f32.mrf.mxu0
        %v2567 = vadd.f32 0.0, %v2566
        %v2568 = vpop.f32.mrf.mxu0
        %2569 = vmatprep.mubr.bf16.mxu0 0
        %2570 = vmatmul.mubr.bf16.gmra.mxu0 %v1568
        %v2571 = vpop.f32.mrf.mxu0
        %v2572 = vadd.f32 0.0, %v2571
        %v2573 = vpop.f32.mrf.mxu0
        %v2574 = vpop.f32.mrf.mxu0
        %v2575 = vadd.f32 0.0, %v2574
        %v2576 = vpop.f32.mrf.mxu0
        %2577 = vmatprep.mubr.bf16.mxu0 0
        %2578 = vmatmul.mubr.bf16.gmra.mxu0 %v1571
        %v2579 = vpop.f32.mrf.mxu0
        %v2580 = vadd.f32 0.0, %v2579
        %v2581 = vpop.f32.mrf.mxu0
        %v2582 = vpop.f32.mrf.mxu0
        %v2583 = vadd.f32 0.0, %v2582
        %v2584 = vpop.f32.mrf.mxu0
        %2585 = vmatprep.mubr.bf16.mxu0 0
        %2586 = vmatmul.mubr.bf16.gmra.mxu0 %v2318
        %v2587 = vpop.f32.mrf.mxu0
        %v2588 = vadd.f32 0.0, %v2587
        %v2589 = vpop.f32.mrf.mxu0
        %v2590 = vpop.f32.mrf.mxu0
        %v2591 = vadd.f32 0.0, %v2590
        %v2592 = vpop.f32.mrf.mxu0
        %2593 = vmatprep.mubr.bf16.mxu0 0
        %2594 = vmatmul.mubr.bf16.gmra.mxu0 %v2321
        %v2595 = vpop.f32.mrf.mxu0
        %v2596 = vadd.f32 0.0, %v2595
        %v2597 = vpop.f32.mrf.mxu0
        %v2598 = vpop.f32.mrf.mxu0
        %v2599 = vadd.f32 0.0, %v2598
        %v2600 = vpop.f32.mrf.mxu0
        %2601 = vmatprep.mubr.bf16.mxu0 0
        %2602 = vmatmul.mubr.bf16.gmra.mxu0 %v2324
        %v2603 = vpop.f32.mrf.mxu0
        %v2604 = vadd.f32 0.0, %v2603
        %v2605 = vpop.f32.mrf.mxu0
        %v2606 = vpop.f32.mrf.mxu0
        %v2607 = vadd.f32 0.0, %v2606
        %v2608 = vpop.f32.mrf.mxu0
        %2609 = vmatprep.mubr.bf16.mxu0 0
        %2610 = vmatmul.mubr.bf16.gmra.mxu0 %v2327
        %v2611 = vpop.f32.mrf.mxu0
        %v2612 = vadd.f32 0.0, %v2611
        %v2613 = vpop.f32.mrf.mxu0
        %v2614 = vpop.f32.mrf.mxu0
        %v2615 = vadd.f32 0.0, %v2614
        %v2616 = vpop.f32.mrf.mxu0
        %2617 = vdwg.mxu0
        %v2618 = vadd.f32 %v2216, %v2364
        %v2619 = vadd.f32 %v2217, %v2367
        %v2620 = vadd.f32 %v2218, %v2372
        %v2621 = vadd.f32 %v2219, %v2375
        %v2622 = vadd.f32 %v2220, %v2380
        %v2623 = vadd.f32 %v2221, %v2383
        %v2624 = vadd.f32 %v2222, %v2388
        %v2625 = vadd.f32 %v2223, %v2391
        %v2626 = vadd.f32 %v2224, %v2396
        %v2627 = vadd.f32 %v2225, %v2399
        %v2628 = vadd.f32 %v2226, %v2404
        %v2629 = vadd.f32 %v2227, %v2407
        %v2630 = vadd.f32 %v2228, %v2412
        %v2631 = vadd.f32 %v2229, %v2415
        %v2632 = vadd.f32 %v2230, %v2420
        %v2633 = vadd.f32 %v2231, %v2423
        %v2634 = vadd.f32 %v2232, %v2428
        %v2635 = vadd.f32 %v2233, %v2431
        %v2636 = vadd.f32 %v2234, %v2436
        %v2637 = vadd.f32 %v2235, %v2439
        %v2638 = vadd.f32 %v2236, %v2444
        %v2639 = vadd.f32 %v2237, %v2447
        %v2640 = vadd.f32 %v2238, %v2452
        %v2641 = vadd.f32 %v2239, %v2455
        %v2642 = vadd.f32 %v2240, %v2460
        %v2643 = vadd.f32 %v2241, %v2463
        %v2644 = vadd.f32 %v2242, %v2468
        %v2645 = vadd.f32 %v2243, %v2471
        %v2646 = vadd.f32 %v2244, %v2476
        %v2647 = vadd.f32 %v2245, %v2479
        %v2648 = vadd.f32 %v2246, %v2484
        %v2649 = vadd.f32 %v2247, %v2487
        %v2650 = vadd.f32 %v2248, %v2492
        %v2651 = vadd.f32 %v2249, %v2495
        %v2652 = vadd.f32 %v2250, %v2500
        %v2653 = vadd.f32 %v2251, %v2503
        %v2654 = vadd.f32 %v2252, %v2508
        %v2655 = vadd.f32 %v2253, %v2511
        %v2656 = vadd.f32 %v2254, %v2516
        %v2657 = vadd.f32 %v2255, %v2519
        %v2658 = vadd.f32 %v2256, %v2524
        %v2659 = vadd.f32 %v2257, %v2527
        %v2660 = vadd.f32 %v2258, %v2532
        %v2661 = vadd.f32 %v2259, %v2535
        %v2662 = vadd.f32 %v2260, %v2540
        %v2663 = vadd.f32 %v2261, %v2543
        %v2664 = vadd.f32 %v2262, %v2548
        %v2665 = vadd.f32 %v2263, %v2551
        %v2666 = vadd.f32 %v2264, %v2556
        %v2667 = vadd.f32 %v2265, %v2559
        %v2668 = vadd.f32 %v2266, %v2564
        %v2669 = vadd.f32 %v2267, %v2567
        %v2670 = vadd.f32 %v2268, %v2572
        %v2671 = vadd.f32 %v2269, %v2575
        %v2672 = vadd.f32 %v2270, %v2580
        %v2673 = vadd.f32 %v2271, %v2583
        %v2674 = vadd.f32 %v2272, %v2588
        %v2675 = vadd.f32 %v2273, %v2591
        %v2676 = vadd.f32 %v2274, %v2596
        %v2677 = vadd.f32 %v2275, %v2599
        %v2678 = vadd.f32 %v2276, %v2604
        %v2679 = vadd.f32 %v2277, %v2607
        %v2680 = vadd.f32 %v2278, %v2612
        %v2681 = vadd.f32 %v2279, %v2615
        %v2682 = vpack.c.bf16 %v943, %v942
        %v2683 = vpack.c.bf16 %v945, %v944
        %v2684 = vpack.c.bf16 %v947, %v946
        %v2685 = vpack.c.bf16 %v949, %v948
        %s2686 = scalar_lea.vmem [#allocation6], 128
        %v2687 = vld [vmem:[%s2686] sm:$0xf]
        %v2688 = vld [vmem:[%s2686 + $0x4] sm:$0xf]
        %v2689 = vld [vmem:[%s2686 + $0x8] sm:$0xf]
        %v2690 = vld [vmem:[%s2686 + $0xc] sm:$0xf]
        %v2691 = vld [vmem:[%s2686 + $0x10] sm:$0xf]
        %v2692 = vld [vmem:[%s2686 + $0x14] sm:$0xf]
        %v2693 = vld [vmem:[%s2686 + $0x18] sm:$0xf]
        %v2694 = vld [vmem:[%s2686 + $0x1c] sm:$0xf]
        %v2703 = vunpack.c.l.b16 %v2687
        %v2704 = vunpack.c.l.b16 %v2688
        %v2705 = vunpack.c.l.b16 %v2689
        %v2706 = vunpack.c.l.b16 %v2690
        %v2707 = vunpack.c.l.b16 %v2691
        %v2708 = vunpack.c.l.b16 %v2692
        %v2709 = vunpack.c.l.b16 %v2693
        %v2710 = vunpack.c.l.b16 %v2694
        %v2711 = vpack.c.b16 %v2704, %v2703
        %v2712 = vpack.c.b16 %v2706, %v2705
        %v2713 = vpack.c.b16 %v2708, %v2707
        %v2714 = vpack.c.b16 %v2710, %v2709
        %v2720 = vsel %vm1067, %v2682, 0
        %v2723 = vsel %vm1067, %v2683, 0
        %v2726 = vsel %vm1067, %v2684, 0
        %v2729 = vsel %vm1067, %v2685, 0
        %2731 = vmatprep.subr.bf16.mxu0 0
        %2732 = vmatpush1.bf16.msra.mxu0 0
        %2733 = vmatprep.subr.bf16.mxu0 0
        %2734 = vmatpush1.bf16.msra.mxu0 0
        %2735 = vmatprep.subr.bf16.mxu0 0
        %2736 = vmatpush1.bf16.msra.mxu0 0
        %2737 = vmatprep.subr.bf16.mxu0 0
        %2738 = vmatpush1.bf16.msra.mxu0 0
        %2739 = vmatprep.subr.bf16.mxu0 0
        %2740 = vmatpush1.bf16.msra.mxu0 %v2714
        %2741 = vmatprep.subr.bf16.mxu0 0
        %2742 = vmatpush1.bf16.msra.mxu0 %v2713
        %2743 = vmatprep.subr.bf16.mxu0 0
        %2744 = vmatpush1.bf16.msra.mxu0 %v2712
        %2745 = vmatprep.subr.bf16.mxu0 0
        %2746 = vmatpush1.bf16.msra.mxu0 %v2711
        %2747 = vmatprep.subr.bf16.mxu0 0
        %2748 = vmatpush2.bf16.msra.mxu0 0
        %2749 = vmatprep.subr.bf16.mxu0 0
        %2750 = vmatpush2.bf16.msra.mxu0 0
        %2751 = vmatprep.subr.bf16.mxu0 0
        %2752 = vmatpush2.bf16.msra.mxu0 0
        %2753 = vmatprep.subr.bf16.mxu0 0
        %2754 = vmatpush2.bf16.msra.mxu0 0
        %2755 = vmatprep.subr.bf16.mxu0 0
        %2756 = vmatpush2.bf16.msra.mxu0 0
        %2757 = vmatprep.subr.bf16.mxu0 0
        %2758 = vmatpush2.bf16.msra.mxu0 0
        %2759 = vmatprep.subr.bf16.mxu0 0
        %2760 = vmatpush2.bf16.msra.mxu0 0
        %2761 = vmatprep.subr.bf16.mxu0 0
        %2762 = vmatpush2.bf16.msra.mxu0 0
        %2763 = vmatprep.mubr.bf16.mxu0 0
        %2764 = vmatmul.mubr.bf16.gmra.mxu0 %v1081
        %v2765 = vpop.f32.mrf.mxu0
        %v2766 = vadd.f32 0.0, %v2765
        %v2767 = vpop.f32.mrf.mxu0
        %v2768 = vpop.f32.mrf.mxu0
        %v2769 = vadd.f32 0.0, %v2768
        %v2770 = vpop.f32.mrf.mxu0
        %2771 = vmatprep.mubr.bf16.mxu0 0
        %2772 = vmatmul.mubr.bf16.gmra.mxu0 %v1084
        %v2773 = vpop.f32.mrf.mxu0
        %v2774 = vadd.f32 0.0, %v2773
        %v2775 = vpop.f32.mrf.mxu0
        %v2776 = vpop.f32.mrf.mxu0
        %v2777 = vadd.f32 0.0, %v2776
        %v2778 = vpop.f32.mrf.mxu0
        %2779 = vmatprep.mubr.bf16.mxu0 0
        %2780 = vmatmul.mubr.bf16.gmra.mxu0 %v1087
        %v2781 = vpop.f32.mrf.mxu0
        %v2782 = vadd.f32 0.0, %v2781
        %v2783 = vpop.f32.mrf.mxu0
        %v2784 = vpop.f32.mrf.mxu0
        %v2785 = vadd.f32 0.0, %v2784
        %v2786 = vpop.f32.mrf.mxu0
        %2787 = vmatprep.mubr.bf16.mxu0 0
        %2788 = vmatmul.mubr.bf16.gmra.mxu0 %v1090
        %v2789 = vpop.f32.mrf.mxu0
        %v2790 = vadd.f32 0.0, %v2789
        %v2791 = vpop.f32.mrf.mxu0
        %v2792 = vpop.f32.mrf.mxu0
        %v2793 = vadd.f32 0.0, %v2792
        %v2794 = vpop.f32.mrf.mxu0
        %2795 = vmatprep.mubr.bf16.mxu0 0
        %2796 = vmatmul.mubr.bf16.gmra.mxu0 %v1093
        %v2797 = vpop.f32.mrf.mxu0
        %v2798 = vadd.f32 0.0, %v2797
        %v2799 = vpop.f32.mrf.mxu0
        %v2800 = vpop.f32.mrf.mxu0
        %v2801 = vadd.f32 0.0, %v2800
        %v2802 = vpop.f32.mrf.mxu0
        %2803 = vmatprep.mubr.bf16.mxu0 0
        %2804 = vmatmul.mubr.bf16.gmra.mxu0 %v1096
        %v2805 = vpop.f32.mrf.mxu0
        %v2806 = vadd.f32 0.0, %v2805
        %v2807 = vpop.f32.mrf.mxu0
        %v2808 = vpop.f32.mrf.mxu0
        %v2809 = vadd.f32 0.0, %v2808
        %v2810 = vpop.f32.mrf.mxu0
        %2811 = vmatprep.mubr.bf16.mxu0 0
        %2812 = vmatmul.mubr.bf16.gmra.mxu0 %v1099
        %v2813 = vpop.f32.mrf.mxu0
        %v2814 = vadd.f32 0.0, %v2813
        %v2815 = vpop.f32.mrf.mxu0
        %v2816 = vpop.f32.mrf.mxu0
        %v2817 = vadd.f32 0.0, %v2816
        %v2818 = vpop.f32.mrf.mxu0
        %2819 = vmatprep.mubr.bf16.mxu0 0
        %2820 = vmatmul.mubr.bf16.gmra.mxu0 %v1102
        %v2821 = vpop.f32.mrf.mxu0
        %v2822 = vadd.f32 0.0, %v2821
        %v2823 = vpop.f32.mrf.mxu0
        %v2824 = vpop.f32.mrf.mxu0
        %v2825 = vadd.f32 0.0, %v2824
        %v2826 = vpop.f32.mrf.mxu0
        %2827 = vmatprep.mubr.bf16.mxu0 0
        %2828 = vmatmul.mubr.bf16.gmra.mxu0 %v1105
        %v2829 = vpop.f32.mrf.mxu0
        %v2830 = vadd.f32 0.0, %v2829
        %v2831 = vpop.f32.mrf.mxu0
        %v2832 = vpop.f32.mrf.mxu0
        %v2833 = vadd.f32 0.0, %v2832
        %v2834 = vpop.f32.mrf.mxu0
        %2835 = vmatprep.mubr.bf16.mxu0 0
        %2836 = vmatmul.mubr.bf16.gmra.mxu0 %v1108
        %v2837 = vpop.f32.mrf.mxu0
        %v2838 = vadd.f32 0.0, %v2837
        %v2839 = vpop.f32.mrf.mxu0
        %v2840 = vpop.f32.mrf.mxu0
        %v2841 = vadd.f32 0.0, %v2840
        %v2842 = vpop.f32.mrf.mxu0
        %2843 = vmatprep.mubr.bf16.mxu0 0
        %2844 = vmatmul.mubr.bf16.gmra.mxu0 %v1111
        %v2845 = vpop.f32.mrf.mxu0
        %v2846 = vadd.f32 0.0, %v2845
        %v2847 = vpop.f32.mrf.mxu0
        %v2848 = vpop.f32.mrf.mxu0
        %v2849 = vadd.f32 0.0, %v2848
        %v2850 = vpop.f32.mrf.mxu0
        %2851 = vmatprep.mubr.bf16.mxu0 0
        %2852 = vmatmul.mubr.bf16.gmra.mxu0 %v1114
        %v2853 = vpop.f32.mrf.mxu0
        %v2854 = vadd.f32 0.0, %v2853
        %v2855 = vpop.f32.mrf.mxu0
        %v2856 = vpop.f32.mrf.mxu0
        %v2857 = vadd.f32 0.0, %v2856
        %v2858 = vpop.f32.mrf.mxu0
        %2859 = vmatprep.mubr.bf16.mxu0 0
        %2860 = vmatmul.mubr.bf16.gmra.mxu0 %v1117
        %v2861 = vpop.f32.mrf.mxu0
        %v2862 = vadd.f32 0.0, %v2861
        %v2863 = vpop.f32.mrf.mxu0
        %v2864 = vpop.f32.mrf.mxu0
        %v2865 = vadd.f32 0.0, %v2864
        %v2866 = vpop.f32.mrf.mxu0
        %2867 = vmatprep.mubr.bf16.mxu0 0
        %2868 = vmatmul.mubr.bf16.gmra.mxu0 %v1120
        %v2869 = vpop.f32.mrf.mxu0
        %v2870 = vadd.f32 0.0, %v2869
        %v2871 = vpop.f32.mrf.mxu0
        %v2872 = vpop.f32.mrf.mxu0
        %v2873 = vadd.f32 0.0, %v2872
        %v2874 = vpop.f32.mrf.mxu0
        %2875 = vmatprep.mubr.bf16.mxu0 0
        %2876 = vmatmul.mubr.bf16.gmra.mxu0 %v1123
        %v2877 = vpop.f32.mrf.mxu0
        %v2878 = vadd.f32 0.0, %v2877
        %v2879 = vpop.f32.mrf.mxu0
        %v2880 = vpop.f32.mrf.mxu0
        %v2881 = vadd.f32 0.0, %v2880
        %v2882 = vpop.f32.mrf.mxu0
        %2883 = vmatprep.mubr.bf16.mxu0 0
        %2884 = vmatmul.mubr.bf16.gmra.mxu0 %v1126
        %v2885 = vpop.f32.mrf.mxu0
        %v2886 = vadd.f32 0.0, %v2885
        %v2887 = vpop.f32.mrf.mxu0
        %v2888 = vpop.f32.mrf.mxu0
        %v2889 = vadd.f32 0.0, %v2888
        %v2890 = vpop.f32.mrf.mxu0
        %2891 = vmatprep.mubr.bf16.mxu0 0
        %2892 = vmatmul.mubr.bf16.gmra.mxu0 %v1129
        %v2893 = vpop.f32.mrf.mxu0
        %v2894 = vadd.f32 0.0, %v2893
        %v2895 = vpop.f32.mrf.mxu0
        %v2896 = vpop.f32.mrf.mxu0
        %v2897 = vadd.f32 0.0, %v2896
        %v2898 = vpop.f32.mrf.mxu0
        %2899 = vmatprep.mubr.bf16.mxu0 0
        %2900 = vmatmul.mubr.bf16.gmra.mxu0 %v1132
        %v2901 = vpop.f32.mrf.mxu0
        %v2902 = vadd.f32 0.0, %v2901
        %v2903 = vpop.f32.mrf.mxu0
        %v2904 = vpop.f32.mrf.mxu0
        %v2905 = vadd.f32 0.0, %v2904
        %v2906 = vpop.f32.mrf.mxu0
        %2907 = vmatprep.mubr.bf16.mxu0 0
        %2908 = vmatmul.mubr.bf16.gmra.mxu0 %v1135
        %v2909 = vpop.f32.mrf.mxu0
        %v2910 = vadd.f32 0.0, %v2909
        %v2911 = vpop.f32.mrf.mxu0
        %v2912 = vpop.f32.mrf.mxu0
        %v2913 = vadd.f32 0.0, %v2912
        %v2914 = vpop.f32.mrf.mxu0
        %2915 = vmatprep.mubr.bf16.mxu0 0
        %2916 = vmatmul.mubr.bf16.gmra.mxu0 %v1138
        %v2917 = vpop.f32.mrf.mxu0
        %v2918 = vadd.f32 0.0, %v2917
        %v2919 = vpop.f32.mrf.mxu0
        %v2920 = vpop.f32.mrf.mxu0
        %v2921 = vadd.f32 0.0, %v2920
        %v2922 = vpop.f32.mrf.mxu0
        %2923 = vmatprep.mubr.bf16.mxu0 0
        %2924 = vmatmul.mubr.bf16.gmra.mxu0 %v1141
        %v2925 = vpop.f32.mrf.mxu0
        %v2926 = vadd.f32 0.0, %v2925
        %v2927 = vpop.f32.mrf.mxu0
        %v2928 = vpop.f32.mrf.mxu0
        %v2929 = vadd.f32 0.0, %v2928
        %v2930 = vpop.f32.mrf.mxu0
        %2931 = vmatprep.mubr.bf16.mxu0 0
        %2932 = vmatmul.mubr.bf16.gmra.mxu0 %v1144
        %v2933 = vpop.f32.mrf.mxu0
        %v2934 = vadd.f32 0.0, %v2933
        %v2935 = vpop.f32.mrf.mxu0
        %v2936 = vpop.f32.mrf.mxu0
        %v2937 = vadd.f32 0.0, %v2936
        %v2938 = vpop.f32.mrf.mxu0
        %2939 = vmatprep.mubr.bf16.mxu0 0
        %2940 = vmatmul.mubr.bf16.gmra.mxu0 %v1147
        %v2941 = vpop.f32.mrf.mxu0
        %v2942 = vadd.f32 0.0, %v2941
        %v2943 = vpop.f32.mrf.mxu0
        %v2944 = vpop.f32.mrf.mxu0
        %v2945 = vadd.f32 0.0, %v2944
        %v2946 = vpop.f32.mrf.mxu0
        %2947 = vmatprep.mubr.bf16.mxu0 0
        %2948 = vmatmul.mubr.bf16.gmra.mxu0 %v1150
        %v2949 = vpop.f32.mrf.mxu0
        %v2950 = vadd.f32 0.0, %v2949
        %v2951 = vpop.f32.mrf.mxu0
        %v2952 = vpop.f32.mrf.mxu0
        %v2953 = vadd.f32 0.0, %v2952
        %v2954 = vpop.f32.mrf.mxu0
        %2955 = vmatprep.mubr.bf16.mxu0 0
        %2956 = vmatmul.mubr.bf16.gmra.mxu0 %v1153
        %v2957 = vpop.f32.mrf.mxu0
        %v2958 = vadd.f32 0.0, %v2957
        %v2959 = vpop.f32.mrf.mxu0
        %v2960 = vpop.f32.mrf.mxu0
        %v2961 = vadd.f32 0.0, %v2960
        %v2962 = vpop.f32.mrf.mxu0
        %2963 = vmatprep.mubr.bf16.mxu0 0
        %2964 = vmatmul.mubr.bf16.gmra.mxu0 %v1156
        %v2965 = vpop.f32.mrf.mxu0
        %v2966 = vadd.f32 0.0, %v2965
        %v2967 = vpop.f32.mrf.mxu0
        %v2968 = vpop.f32.mrf.mxu0
        %v2969 = vadd.f32 0.0, %v2968
        %v2970 = vpop.f32.mrf.mxu0
        %2971 = vmatprep.mubr.bf16.mxu0 0
        %2972 = vmatmul.mubr.bf16.gmra.mxu0 %v1159
        %v2973 = vpop.f32.mrf.mxu0
        %v2974 = vadd.f32 0.0, %v2973
        %v2975 = vpop.f32.mrf.mxu0
        %v2976 = vpop.f32.mrf.mxu0
        %v2977 = vadd.f32 0.0, %v2976
        %v2978 = vpop.f32.mrf.mxu0
        %2979 = vmatprep.mubr.bf16.mxu0 0
        %2980 = vmatmul.mubr.bf16.gmra.mxu0 %v1162
        %v2981 = vpop.f32.mrf.mxu0
        %v2982 = vadd.f32 0.0, %v2981
        %v2983 = vpop.f32.mrf.mxu0
        %v2984 = vpop.f32.mrf.mxu0
        %v2985 = vadd.f32 0.0, %v2984
        %v2986 = vpop.f32.mrf.mxu0
        %2987 = vmatprep.mubr.bf16.mxu0 0
        %2988 = vmatmul.mubr.bf16.gmra.mxu0 %v2720
        %v2989 = vpop.f32.mrf.mxu0
        %v2990 = vadd.f32 0.0, %v2989
        %v2991 = vpop.f32.mrf.mxu0
        %v2992 = vpop.f32.mrf.mxu0
        %v2993 = vadd.f32 0.0, %v2992
        %v2994 = vpop.f32.mrf.mxu0
        %2995 = vmatprep.mubr.bf16.mxu0 0
        %2996 = vmatmul.mubr.bf16.gmra.mxu0 %v2723
        %v2997 = vpop.f32.mrf.mxu0
        %v2998 = vadd.f32 0.0, %v2997
        %v2999 = vpop.f32.mrf.mxu0
        %v3000 = vpop.f32.mrf.mxu0
        %v3001 = vadd.f32 0.0, %v3000
        %v3002 = vpop.f32.mrf.mxu0
        %3003 = vmatprep.mubr.bf16.mxu0 0
        %3004 = vmatmul.mubr.bf16.gmra.mxu0 %v2726
        %v3005 = vpop.f32.mrf.mxu0
        %v3006 = vadd.f32 0.0, %v3005
        %v3007 = vpop.f32.mrf.mxu0
        %v3008 = vpop.f32.mrf.mxu0
        %v3009 = vadd.f32 0.0, %v3008
        %v3010 = vpop.f32.mrf.mxu0
        %3011 = vmatprep.mubr.bf16.mxu0 0
        %3012 = vmatmul.mubr.bf16.gmra.mxu0 %v2729
        %v3013 = vpop.f32.mrf.mxu0
        %v3014 = vadd.f32 0.0, %v3013
        %v3015 = vpop.f32.mrf.mxu0
        %v3016 = vpop.f32.mrf.mxu0
        %v3017 = vadd.f32 0.0, %v3016
        %v3018 = vpop.f32.mrf.mxu0
        %3019 = vdwg.mxu0
        %v3020 = vadd.f32 %v2618, %v2766
        %v3021 = vadd.f32 %v2619, %v2769
        %v3022 = vadd.f32 %v2620, %v2774
        %v3023 = vadd.f32 %v2621, %v2777
        %v3024 = vadd.f32 %v2622, %v2782
        %v3025 = vadd.f32 %v2623, %v2785
        %v3026 = vadd.f32 %v2624, %v2790
        %v3027 = vadd.f32 %v2625, %v2793
        %v3028 = vadd.f32 %v2626, %v2798
        %v3029 = vadd.f32 %v2627, %v2801
        %v3030 = vadd.f32 %v2628, %v2806
        %v3031 = vadd.f32 %v2629, %v2809
        %v3032 = vadd.f32 %v2630, %v2814
        %v3033 = vadd.f32 %v2631, %v2817
        %v3034 = vadd.f32 %v2632, %v2822
        %v3035 = vadd.f32 %v2633, %v2825
        %v3036 = vadd.f32 %v2634, %v2830
        %v3037 = vadd.f32 %v2635, %v2833
        %v3038 = vadd.f32 %v2636, %v2838
        %v3039 = vadd.f32 %v2637, %v2841
        %v3040 = vadd.f32 %v2638, %v2846
        %v3041 = vadd.f32 %v2639, %v2849
        %v3042 = vadd.f32 %v2640, %v2854
        %v3043 = vadd.f32 %v2641, %v2857
        %v3044 = vadd.f32 %v2642, %v2862
        %v3045 = vadd.f32 %v2643, %v2865
        %v3046 = vadd.f32 %v2644, %v2870
        %v3047 = vadd.f32 %v2645, %v2873
        %v3048 = vadd.f32 %v2646, %v2878
        %v3049 = vadd.f32 %v2647, %v2881
        %v3050 = vadd.f32 %v2648, %v2886
        %v3051 = vadd.f32 %v2649, %v2889
        %v3052 = vadd.f32 %v2650, %v2894
        %v3053 = vadd.f32 %v2651, %v2897
        %v3054 = vadd.f32 %v2652, %v2902
        %v3055 = vadd.f32 %v2653, %v2905
        %v3056 = vadd.f32 %v2654, %v2910
        %v3057 = vadd.f32 %v2655, %v2913
        %v3058 = vadd.f32 %v2656, %v2918
        %v3059 = vadd.f32 %v2657, %v2921
        %v3060 = vadd.f32 %v2658, %v2926
        %v3061 = vadd.f32 %v2659, %v2929
        %v3062 = vadd.f32 %v2660, %v2934
        %v3063 = vadd.f32 %v2661, %v2937
        %v3064 = vadd.f32 %v2662, %v2942
        %v3065 = vadd.f32 %v2663, %v2945
        %v3066 = vadd.f32 %v2664, %v2950
        %v3067 = vadd.f32 %v2665, %v2953
        %v3068 = vadd.f32 %v2666, %v2958
        %v3069 = vadd.f32 %v2667, %v2961
        %v3070 = vadd.f32 %v2668, %v2966
        %v3071 = vadd.f32 %v2669, %v2969
        %v3072 = vadd.f32 %v2670, %v2974
        %v3073 = vadd.f32 %v2671, %v2977
        %v3074 = vadd.f32 %v2672, %v2982
        %v3075 = vadd.f32 %v2673, %v2985
        %v3076 = vadd.f32 %v2674, %v2990
        %v3077 = vadd.f32 %v2675, %v2993
        %v3078 = vadd.f32 %v2676, %v2998
        %v3079 = vadd.f32 %v2677, %v3001
        %v3080 = vadd.f32 %v2678, %v3006
        %v3081 = vadd.f32 %v2679, %v3009
        %v3082 = vadd.f32 %v2680, %v3014
        %v3083 = vadd.f32 %v2681, %v3017
        %v3084 = vpack.c.bf16 %v950, %v949
        %s3085 = scalar_lea.vmem [#allocation6], 160
        %v3086 = vld [vmem:[%s3085] sm:$0xf]
        %v3087 = vld [vmem:[%s3085 + $0x4] sm:$0xf]
        %v3088 = vld [vmem:[%s3085 + $0x8] sm:$0xf]
        %v3089 = vld [vmem:[%s3085 + $0xc] sm:$0xf]
        %v3090 = vld [vmem:[%s3085 + $0x10] sm:$0xf]
        %v3091 = vld [vmem:[%s3085 + $0x14] sm:$0xf]
        %v3092 = vld [vmem:[%s3085 + $0x18] sm:$0xf]
        %v3093 = vld [vmem:[%s3085 + $0x1c] sm:$0xf]
        %v3102 = vunpack.c.l.b16 %v3086
        %v3103 = vunpack.c.l.b16 %v3087
        %v3104 = vunpack.c.l.b16 %v3088
        %v3105 = vunpack.c.l.b16 %v3089
        %v3106 = vunpack.c.l.b16 %v3090
        %v3107 = vunpack.c.l.b16 %v3091
        %v3108 = vunpack.c.l.b16 %v3092
        %v3109 = vunpack.c.l.b16 %v3093
        %v3110 = vpack.c.b16 %v3103, %v3102
        %v3111 = vpack.c.b16 %v3105, %v3104
        %v3112 = vpack.c.b16 %v3107, %v3106
        %v3113 = vpack.c.b16 %v3109, %v3108
        %v3119 = vsel %vm1067, %v3084, 0
        %3121 = vmatprep.subr.bf16.mxu0 0
        %3122 = vmatpush1.bf16.msra.mxu0 0
        %3123 = vmatprep.subr.bf16.mxu0 0
        %3124 = vmatpush1.bf16.msra.mxu0 0
        %3125 = vmatprep.subr.bf16.mxu0 0
        %3126 = vmatpush1.bf16.msra.mxu0 0
        %3127 = vmatprep.subr.bf16.mxu0 0
        %3128 = vmatpush1.bf16.msra.mxu0 0
        %3129 = vmatprep.subr.bf16.mxu0 0
        %3130 = vmatpush1.bf16.msra.mxu0 %v3113
        %3131 = vmatprep.subr.bf16.mxu0 0
        %3132 = vmatpush1.bf16.msra.mxu0 %v3112
        %3133 = vmatprep.subr.bf16.mxu0 0
        %3134 = vmatpush1.bf16.msra.mxu0 %v3111
        %3135 = vmatprep.subr.bf16.mxu0 0
        %3136 = vmatpush1.bf16.msra.mxu0 %v3110
        %3137 = vmatprep.subr.bf16.mxu0 0
        %3138 = vmatpush2.bf16.msra.mxu0 0
        %3139 = vmatprep.subr.bf16.mxu0 0
        %3140 = vmatpush2.bf16.msra.mxu0 0
        %3141 = vmatprep.subr.bf16.mxu0 0
        %3142 = vmatpush2.bf16.msra.mxu0 0
        %3143 = vmatprep.subr.bf16.mxu0 0
        %3144 = vmatpush2.bf16.msra.mxu0 0
        %3145 = vmatprep.subr.bf16.mxu0 0
        %3146 = vmatpush2.bf16.msra.mxu0 0
        %3147 = vmatprep.subr.bf16.mxu0 0
        %3148 = vmatpush2.bf16.msra.mxu0 0
        %3149 = vmatprep.subr.bf16.mxu0 0
        %3150 = vmatpush2.bf16.msra.mxu0 0
        %3151 = vmatprep.subr.bf16.mxu0 0
        %3152 = vmatpush2.bf16.msra.mxu0 0
        %3153 = vmatprep.mubr.bf16.mxu0 0
        %3154 = vmatmul.mubr.bf16.gmra.mxu0 %v1493
        %v3155 = vpop.f32.mrf.mxu0
        %v3156 = vadd.f32 0.0, %v3155
        %v3157 = vpop.f32.mrf.mxu0
        %v3158 = vpop.f32.mrf.mxu0
        %v3159 = vadd.f32 0.0, %v3158
        %v3160 = vpop.f32.mrf.mxu0
        %3161 = vmatprep.mubr.bf16.mxu0 0
        %3162 = vmatmul.mubr.bf16.gmra.mxu0 %v1496
        %v3163 = vpop.f32.mrf.mxu0
        %v3164 = vadd.f32 0.0, %v3163
        %v3165 = vpop.f32.mrf.mxu0
        %v3166 = vpop.f32.mrf.mxu0
        %v3167 = vadd.f32 0.0, %v3166
        %v3168 = vpop.f32.mrf.mxu0
        %3169 = vmatprep.mubr.bf16.mxu0 0
        %3170 = vmatmul.mubr.bf16.gmra.mxu0 %v1499
        %v3171 = vpop.f32.mrf.mxu0
        %v3172 = vadd.f32 0.0, %v3171
        %v3173 = vpop.f32.mrf.mxu0
        %v3174 = vpop.f32.mrf.mxu0
        %v3175 = vadd.f32 0.0, %v3174
        %v3176 = vpop.f32.mrf.mxu0
        %3177 = vmatprep.mubr.bf16.mxu0 0
        %3178 = vmatmul.mubr.bf16.gmra.mxu0 %v1907
        %v3179 = vpop.f32.mrf.mxu0
        %v3180 = vadd.f32 0.0, %v3179
        %v3181 = vpop.f32.mrf.mxu0
        %v3182 = vpop.f32.mrf.mxu0
        %v3183 = vadd.f32 0.0, %v3182
        %v3184 = vpop.f32.mrf.mxu0
        %3185 = vmatprep.mubr.bf16.mxu0 0
        %3186 = vmatmul.mubr.bf16.gmra.mxu0 %v1505
        %v3187 = vpop.f32.mrf.mxu0
        %v3188 = vadd.f32 0.0, %v3187
        %v3189 = vpop.f32.mrf.mxu0
        %v3190 = vpop.f32.mrf.mxu0
        %v3191 = vadd.f32 0.0, %v3190
        %v3192 = vpop.f32.mrf.mxu0
        %3193 = vmatprep.mubr.bf16.mxu0 0
        %3194 = vmatmul.mubr.bf16.gmra.mxu0 %v1508
        %v3195 = vpop.f32.mrf.mxu0
        %v3196 = vadd.f32 0.0, %v3195
        %v3197 = vpop.f32.mrf.mxu0
        %v3198 = vpop.f32.mrf.mxu0
        %v3199 = vadd.f32 0.0, %v3198
        %v3200 = vpop.f32.mrf.mxu0
        %3201 = vmatprep.mubr.bf16.mxu0 0
        %3202 = vmatmul.mubr.bf16.gmra.mxu0 %v1511
        %v3203 = vpop.f32.mrf.mxu0
        %v3204 = vadd.f32 0.0, %v3203
        %v3205 = vpop.f32.mrf.mxu0
        %v3206 = vpop.f32.mrf.mxu0
        %v3207 = vadd.f32 0.0, %v3206
        %v3208 = vpop.f32.mrf.mxu0
        %3209 = vmatprep.mubr.bf16.mxu0 0
        %3210 = vmatmul.mubr.bf16.gmra.mxu0 %v1910
        %v3211 = vpop.f32.mrf.mxu0
        %v3212 = vadd.f32 0.0, %v3211
        %v3213 = vpop.f32.mrf.mxu0
        %v3214 = vpop.f32.mrf.mxu0
        %v3215 = vadd.f32 0.0, %v3214
        %v3216 = vpop.f32.mrf.mxu0
        %3217 = vmatprep.mubr.bf16.mxu0 0
        %3218 = vmatmul.mubr.bf16.gmra.mxu0 %v1517
        %v3219 = vpop.f32.mrf.mxu0
        %v3220 = vadd.f32 0.0, %v3219
        %v3221 = vpop.f32.mrf.mxu0
        %v3222 = vpop.f32.mrf.mxu0
        %v3223 = vadd.f32 0.0, %v3222
        %v3224 = vpop.f32.mrf.mxu0
        %3225 = vmatprep.mubr.bf16.mxu0 0
        %3226 = vmatmul.mubr.bf16.gmra.mxu0 %v1520
        %v3227 = vpop.f32.mrf.mxu0
        %v3228 = vadd.f32 0.0, %v3227
        %v3229 = vpop.f32.mrf.mxu0
        %v3230 = vpop.f32.mrf.mxu0
        %v3231 = vadd.f32 0.0, %v3230
        %v3232 = vpop.f32.mrf.mxu0
        %3233 = vmatprep.mubr.bf16.mxu0 0
        %3234 = vmatmul.mubr.bf16.gmra.mxu0 %v1523
        %v3235 = vpop.f32.mrf.mxu0
        %v3236 = vadd.f32 0.0, %v3235
        %v3237 = vpop.f32.mrf.mxu0
        %v3238 = vpop.f32.mrf.mxu0
        %v3239 = vadd.f32 0.0, %v3238
        %v3240 = vpop.f32.mrf.mxu0
        %3241 = vmatprep.mubr.bf16.mxu0 0
        %3242 = vmatmul.mubr.bf16.gmra.mxu0 %v1913
        %v3243 = vpop.f32.mrf.mxu0
        %v3244 = vadd.f32 0.0, %v3243
        %v3245 = vpop.f32.mrf.mxu0
        %v3246 = vpop.f32.mrf.mxu0
        %v3247 = vadd.f32 0.0, %v3246
        %v3248 = vpop.f32.mrf.mxu0
        %3249 = vmatprep.mubr.bf16.mxu0 0
        %3250 = vmatmul.mubr.bf16.gmra.mxu0 %v1529
        %v3251 = vpop.f32.mrf.mxu0
        %v3252 = vadd.f32 0.0, %v3251
        %v3253 = vpop.f32.mrf.mxu0
        %v3254 = vpop.f32.mrf.mxu0
        %v3255 = vadd.f32 0.0, %v3254
        %v3256 = vpop.f32.mrf.mxu0
        %3257 = vmatprep.mubr.bf16.mxu0 0
        %3258 = vmatmul.mubr.bf16.gmra.mxu0 %v1532
        %v3259 = vpop.f32.mrf.mxu0
        %v3260 = vadd.f32 0.0, %v3259
        %v3261 = vpop.f32.mrf.mxu0
        %v3262 = vpop.f32.mrf.mxu0
        %v3263 = vadd.f32 0.0, %v3262
        %v3264 = vpop.f32.mrf.mxu0
        %3265 = vmatprep.mubr.bf16.mxu0 0
        %3266 = vmatmul.mubr.bf16.gmra.mxu0 %v1535
        %v3267 = vpop.f32.mrf.mxu0
        %v3268 = vadd.f32 0.0, %v3267
        %v3269 = vpop.f32.mrf.mxu0
        %v3270 = vpop.f32.mrf.mxu0
        %v3271 = vadd.f32 0.0, %v3270
        %v3272 = vpop.f32.mrf.mxu0
        %3273 = vmatprep.mubr.bf16.mxu0 0
        %3274 = vmatmul.mubr.bf16.gmra.mxu0 %v1916
        %v3275 = vpop.f32.mrf.mxu0
        %v3276 = vadd.f32 0.0, %v3275
        %v3277 = vpop.f32.mrf.mxu0
        %v3278 = vpop.f32.mrf.mxu0
        %v3279 = vadd.f32 0.0, %v3278
        %v3280 = vpop.f32.mrf.mxu0
        %3281 = vmatprep.mubr.bf16.mxu0 0
        %3282 = vmatmul.mubr.bf16.gmra.mxu0 %v1541
        %v3283 = vpop.f32.mrf.mxu0
        %v3284 = vadd.f32 0.0, %v3283
        %v3285 = vpop.f32.mrf.mxu0
        %v3286 = vpop.f32.mrf.mxu0
        %v3287 = vadd.f32 0.0, %v3286
        %v3288 = vpop.f32.mrf.mxu0
        %3289 = vmatprep.mubr.bf16.mxu0 0
        %3290 = vmatmul.mubr.bf16.gmra.mxu0 %v1544
        %v3291 = vpop.f32.mrf.mxu0
        %v3292 = vadd.f32 0.0, %v3291
        %v3293 = vpop.f32.mrf.mxu0
        %v3294 = vpop.f32.mrf.mxu0
        %v3295 = vadd.f32 0.0, %v3294
        %v3296 = vpop.f32.mrf.mxu0
        %3297 = vmatprep.mubr.bf16.mxu0 0
        %3298 = vmatmul.mubr.bf16.gmra.mxu0 %v1547
        %v3299 = vpop.f32.mrf.mxu0
        %v3300 = vadd.f32 0.0, %v3299
        %v3301 = vpop.f32.mrf.mxu0
        %v3302 = vpop.f32.mrf.mxu0
        %v3303 = vadd.f32 0.0, %v3302
        %v3304 = vpop.f32.mrf.mxu0
        %3305 = vmatprep.mubr.bf16.mxu0 0
        %3306 = vmatmul.mubr.bf16.gmra.mxu0 %v1919
        %v3307 = vpop.f32.mrf.mxu0
        %v3308 = vadd.f32 0.0, %v3307
        %v3309 = vpop.f32.mrf.mxu0
        %v3310 = vpop.f32.mrf.mxu0
        %v3311 = vadd.f32 0.0, %v3310
        %v3312 = vpop.f32.mrf.mxu0
        %3313 = vmatprep.mubr.bf16.mxu0 0
        %3314 = vmatmul.mubr.bf16.gmra.mxu0 %v1553
        %v3315 = vpop.f32.mrf.mxu0
        %v3316 = vadd.f32 0.0, %v3315
        %v3317 = vpop.f32.mrf.mxu0
        %v3318 = vpop.f32.mrf.mxu0
        %v3319 = vadd.f32 0.0, %v3318
        %v3320 = vpop.f32.mrf.mxu0
        %3321 = vmatprep.mubr.bf16.mxu0 0
        %3322 = vmatmul.mubr.bf16.gmra.mxu0 %v1556
        %v3323 = vpop.f32.mrf.mxu0
        %v3324 = vadd.f32 0.0, %v3323
        %v3325 = vpop.f32.mrf.mxu0
        %v3326 = vpop.f32.mrf.mxu0
        %v3327 = vadd.f32 0.0, %v3326
        %v3328 = vpop.f32.mrf.mxu0
        %3329 = vmatprep.mubr.bf16.mxu0 0
        %3330 = vmatmul.mubr.bf16.gmra.mxu0 %v1559
        %v3331 = vpop.f32.mrf.mxu0
        %v3332 = vadd.f32 0.0, %v3331
        %v3333 = vpop.f32.mrf.mxu0
        %v3334 = vpop.f32.mrf.mxu0
        %v3335 = vadd.f32 0.0, %v3334
        %v3336 = vpop.f32.mrf.mxu0
        %3337 = vmatprep.mubr.bf16.mxu0 0
        %3338 = vmatmul.mubr.bf16.gmra.mxu0 %v1922
        %v3339 = vpop.f32.mrf.mxu0
        %v3340 = vadd.f32 0.0, %v3339
        %v3341 = vpop.f32.mrf.mxu0
        %v3342 = vpop.f32.mrf.mxu0
        %v3343 = vadd.f32 0.0, %v3342
        %v3344 = vpop.f32.mrf.mxu0
        %3345 = vmatprep.mubr.bf16.mxu0 0
        %3346 = vmatmul.mubr.bf16.gmra.mxu0 %v1565
        %v3347 = vpop.f32.mrf.mxu0
        %v3348 = vadd.f32 0.0, %v3347
        %v3349 = vpop.f32.mrf.mxu0
        %v3350 = vpop.f32.mrf.mxu0
        %v3351 = vadd.f32 0.0, %v3350
        %v3352 = vpop.f32.mrf.mxu0
        %3353 = vmatprep.mubr.bf16.mxu0 0
        %3354 = vmatmul.mubr.bf16.gmra.mxu0 %v1568
        %v3355 = vpop.f32.mrf.mxu0
        %v3356 = vadd.f32 0.0, %v3355
        %v3357 = vpop.f32.mrf.mxu0
        %v3358 = vpop.f32.mrf.mxu0
        %v3359 = vadd.f32 0.0, %v3358
        %v3360 = vpop.f32.mrf.mxu0
        %3361 = vmatprep.mubr.bf16.mxu0 0
        %3362 = vmatmul.mubr.bf16.gmra.mxu0 %v1571
        %v3363 = vpop.f32.mrf.mxu0
        %v3364 = vadd.f32 0.0, %v3363
        %v3365 = vpop.f32.mrf.mxu0
        %v3366 = vpop.f32.mrf.mxu0
        %v3367 = vadd.f32 0.0, %v3366
        %v3368 = vpop.f32.mrf.mxu0
        %3369 = vmatprep.mubr.bf16.mxu0 0
        %3370 = vmatmul.mubr.bf16.gmra.mxu0 %v1925
        %v3371 = vpop.f32.mrf.mxu0
        %v3372 = vadd.f32 0.0, %v3371
        %v3373 = vpop.f32.mrf.mxu0
        %v3374 = vpop.f32.mrf.mxu0
        %v3375 = vadd.f32 0.0, %v3374
        %v3376 = vpop.f32.mrf.mxu0
        %3377 = vmatprep.mubr.bf16.mxu0 0
        %3378 = vmatmul.mubr.bf16.gmra.mxu0 %v2321
        %v3379 = vpop.f32.mrf.mxu0
        %v3380 = vadd.f32 0.0, %v3379
        %v3381 = vpop.f32.mrf.mxu0
        %v3382 = vpop.f32.mrf.mxu0
        %v3383 = vadd.f32 0.0, %v3382
        %v3384 = vpop.f32.mrf.mxu0
        %3385 = vmatprep.mubr.bf16.mxu0 0
        %3386 = vmatmul.mubr.bf16.gmra.mxu0 %v2324
        %v3387 = vpop.f32.mrf.mxu0
        %v3388 = vadd.f32 0.0, %v3387
        %v3389 = vpop.f32.mrf.mxu0
        %v3390 = vpop.f32.mrf.mxu0
        %v3391 = vadd.f32 0.0, %v3390
        %v3392 = vpop.f32.mrf.mxu0
        %3393 = vmatprep.mubr.bf16.mxu0 0
        %3394 = vmatmul.mubr.bf16.gmra.mxu0 %v2327
        %v3395 = vpop.f32.mrf.mxu0
        %v3396 = vadd.f32 0.0, %v3395
        %v3397 = vpop.f32.mrf.mxu0
        %v3398 = vpop.f32.mrf.mxu0
        %v3399 = vadd.f32 0.0, %v3398
        %v3400 = vpop.f32.mrf.mxu0
        %3401 = vmatprep.mubr.bf16.mxu0 0
        %3402 = vmatmul.mubr.bf16.gmra.mxu0 %v3119
        %v3403 = vpop.f32.mrf.mxu0
        %v3404 = vadd.f32 0.0, %v3403
        %v3405 = vpop.f32.mrf.mxu0
        %v3406 = vpop.f32.mrf.mxu0
        %v3407 = vadd.f32 0.0, %v3406
        %v3408 = vpop.f32.mrf.mxu0
        %3409 = vdwg.mxu0
        %v3410 = vadd.f32 %v3020, %v3156
        %v3411 = vadd.f32 %v3021, %v3159
        %v3412 = vadd.f32 %v3022, %v3164
        %v3413 = vadd.f32 %v3023, %v3167
        %v3414 = vadd.f32 %v3024, %v3172
        %v3415 = vadd.f32 %v3025, %v3175
        %v3416 = vadd.f32 %v3026, %v3180
        %v3417 = vadd.f32 %v3027, %v3183
        %v3418 = vadd.f32 %v3028, %v3188
        %v3419 = vadd.f32 %v3029, %v3191
        %v3420 = vadd.f32 %v3030, %v3196
        %v3421 = vadd.f32 %v3031, %v3199
        %v3422 = vadd.f32 %v3032, %v3204
        %v3423 = vadd.f32 %v3033, %v3207
        %v3424 = vadd.f32 %v3034, %v3212
        %v3425 = vadd.f32 %v3035, %v3215
        %v3426 = vadd.f32 %v3036, %v3220
        %v3427 = vadd.f32 %v3037, %v3223
        %v3428 = vadd.f32 %v3038, %v3228
        %v3429 = vadd.f32 %v3039, %v3231
        %v3430 = vadd.f32 %v3040, %v3236
        %v3431 = vadd.f32 %v3041, %v3239
        %v3432 = vadd.f32 %v3042, %v3244
        %v3433 = vadd.f32 %v3043, %v3247
        %v3434 = vadd.f32 %v3044, %v3252
        %v3435 = vadd.f32 %v3045, %v3255
        %v3436 = vadd.f32 %v3046, %v3260
        %v3437 = vadd.f32 %v3047, %v3263
        %v3438 = vadd.f32 %v3048, %v3268
        %v3439 = vadd.f32 %v3049, %v3271
        %v3440 = vadd.f32 %v3050, %v3276
        %v3441 = vadd.f32 %v3051, %v3279
        %v3442 = vadd.f32 %v3052, %v3284
        %v3443 = vadd.f32 %v3053, %v3287
        %v3444 = vadd.f32 %v3054, %v3292
        %v3445 = vadd.f32 %v3055, %v3295
        %v3446 = vadd.f32 %v3056, %v3300
        %v3447 = vadd.f32 %v3057, %v3303
        %v3448 = vadd.f32 %v3058, %v3308
        %v3449 = vadd.f32 %v3059, %v3311
        %v3450 = vadd.f32 %v3060, %v3316
        %v3451 = vadd.f32 %v3061, %v3319
        %v3452 = vadd.f32 %v3062, %v3324
        %v3453 = vadd.f32 %v3063, %v3327
        %v3454 = vadd.f32 %v3064, %v3332
        %v3455 = vadd.f32 %v3065, %v3335
        %v3456 = vadd.f32 %v3066, %v3340
        %v3457 = vadd.f32 %v3067, %v3343
        %v3458 = vadd.f32 %v3068, %v3348
        %v3459 = vadd.f32 %v3069, %v3351
        %v3460 = vadd.f32 %v3070, %v3356
        %v3461 = vadd.f32 %v3071, %v3359
        %v3462 = vadd.f32 %v3072, %v3364
        %v3463 = vadd.f32 %v3073, %v3367
        %v3464 = vadd.f32 %v3074, %v3372
        %v3465 = vadd.f32 %v3075, %v3375
        %v3466 = vadd.f32 %v3076, %v3380
        %v3467 = vadd.f32 %v3077, %v3383
        %v3468 = vadd.f32 %v3078, %v3388
        %v3469 = vadd.f32 %v3079, %v3391
        %v3470 = vadd.f32 %v3080, %v3396
        %v3471 = vadd.f32 %v3081, %v3399
        %v3472 = vadd.f32 %v3082, %v3404
        %v3473 = vadd.f32 %v3083, %v3407
        %v3474 = vpack.c.bf16 %v952, %v951
        %v3475 = vpack.c.bf16 %v954, %v953
        %v3476 = vpack.c.bf16 %v956, %v955
        %v3477 = vpack.c.bf16 %v958, %v957
        %s3478 = scalar_lea.vmem [#allocation6], 192
        %v3479 = vld [vmem:[%s3478] sm:$0xf]
        %v3480 = vld [vmem:[%s3478 + $0x4] sm:$0xf]
        %v3481 = vld [vmem:[%s3478 + $0x8] sm:$0xf]
        %v3482 = vld [vmem:[%s3478 + $0xc] sm:$0xf]
        %v3483 = vld [vmem:[%s3478 + $0x10] sm:$0xf]
        %v3484 = vld [vmem:[%s3478 + $0x14] sm:$0xf]
        %v3485 = vld [vmem:[%s3478 + $0x18] sm:$0xf]
        %v3486 = vld [vmem:[%s3478 + $0x1c] sm:$0xf]
        %v3495 = vunpack.c.l.b16 %v3479
        %v3496 = vunpack.c.l.b16 %v3480
        %v3497 = vunpack.c.l.b16 %v3481
        %v3498 = vunpack.c.l.b16 %v3482
        %v3499 = vunpack.c.l.b16 %v3483
        %v3500 = vunpack.c.l.b16 %v3484
        %v3501 = vunpack.c.l.b16 %v3485
        %v3502 = vunpack.c.l.b16 %v3486
        %v3503 = vpack.c.b16 %v3496, %v3495
        %v3504 = vpack.c.b16 %v3498, %v3497
        %v3505 = vpack.c.b16 %v3500, %v3499
        %v3506 = vpack.c.b16 %v3502, %v3501
        %v3512 = vsel %vm1067, %v3474, 0
        %v3515 = vsel %vm1067, %v3475, 0
        %v3518 = vsel %vm1067, %v3476, 0
        %v3521 = vsel %vm1067, %v3477, 0
        %3523 = vmatprep.subr.bf16.mxu0 0
        %3524 = vmatpush1.bf16.msra.mxu0 0
        %3525 = vmatprep.subr.bf16.mxu0 0
        %3526 = vmatpush1.bf16.msra.mxu0 0
        %3527 = vmatprep.subr.bf16.mxu0 0
        %3528 = vmatpush1.bf16.msra.mxu0 0
        %3529 = vmatprep.subr.bf16.mxu0 0
        %3530 = vmatpush1.bf16.msra.mxu0 0
        %3531 = vmatprep.subr.bf16.mxu0 0
        %3532 = vmatpush1.bf16.msra.mxu0 %v3506
        %3533 = vmatprep.subr.bf16.mxu0 0
        %3534 = vmatpush1.bf16.msra.mxu0 %v3505
        %3535 = vmatprep.subr.bf16.mxu0 0
        %3536 = vmatpush1.bf16.msra.mxu0 %v3504
        %3537 = vmatprep.subr.bf16.mxu0 0
        %3538 = vmatpush1.bf16.msra.mxu0 %v3503
        %3539 = vmatprep.subr.bf16.mxu0 0
        %3540 = vmatpush2.bf16.msra.mxu0 0
        %3541 = vmatprep.subr.bf16.mxu0 0
        %3542 = vmatpush2.bf16.msra.mxu0 0
        %3543 = vmatprep.subr.bf16.mxu0 0
        %3544 = vmatpush2.bf16.msra.mxu0 0
        %3545 = vmatprep.subr.bf16.mxu0 0
        %3546 = vmatpush2.bf16.msra.mxu0 0
        %3547 = vmatprep.subr.bf16.mxu0 0
        %3548 = vmatpush2.bf16.msra.mxu0 0
        %3549 = vmatprep.subr.bf16.mxu0 0
        %3550 = vmatpush2.bf16.msra.mxu0 0
        %3551 = vmatprep.subr.bf16.mxu0 0
        %3552 = vmatpush2.bf16.msra.mxu0 0
        %3553 = vmatprep.subr.bf16.mxu0 0
        %3554 = vmatpush2.bf16.msra.mxu0 0
        %3555 = vmatprep.mubr.bf16.mxu0 0
        %3556 = vmatmul.mubr.bf16.gmra.mxu0 %v1502
        %v3557 = vpop.f32.mrf.mxu0
        %v3558 = vadd.f32 0.0, %v3557
        %v3559 = vpop.f32.mrf.mxu0
        %v3560 = vpop.f32.mrf.mxu0
        %v3561 = vadd.f32 0.0, %v3560
        %v3562 = vpop.f32.mrf.mxu0
        %3563 = vmatprep.mubr.bf16.mxu0 0
        %3564 = vmatmul.mubr.bf16.gmra.mxu0 %v1505
        %v3565 = vpop.f32.mrf.mxu0
        %v3566 = vadd.f32 0.0, %v3565
        %v3567 = vpop.f32.mrf.mxu0
        %v3568 = vpop.f32.mrf.mxu0
        %v3569 = vadd.f32 0.0, %v3568
        %v3570 = vpop.f32.mrf.mxu0
        %3571 = vmatprep.mubr.bf16.mxu0 0
        %3572 = vmatmul.mubr.bf16.gmra.mxu0 %v1508
        %v3573 = vpop.f32.mrf.mxu0
        %v3574 = vadd.f32 0.0, %v3573
        %v3575 = vpop.f32.mrf.mxu0
        %v3576 = vpop.f32.mrf.mxu0
        %v3577 = vadd.f32 0.0, %v3576
        %v3578 = vpop.f32.mrf.mxu0
        %3579 = vmatprep.mubr.bf16.mxu0 0
        %3580 = vmatmul.mubr.bf16.gmra.mxu0 %v1511
        %v3581 = vpop.f32.mrf.mxu0
        %v3582 = vadd.f32 0.0, %v3581
        %v3583 = vpop.f32.mrf.mxu0
        %v3584 = vpop.f32.mrf.mxu0
        %v3585 = vadd.f32 0.0, %v3584
        %v3586 = vpop.f32.mrf.mxu0
        %3587 = vmatprep.mubr.bf16.mxu0 0
        %3588 = vmatmul.mubr.bf16.gmra.mxu0 %v1514
        %v3589 = vpop.f32.mrf.mxu0
        %v3590 = vadd.f32 0.0, %v3589
        %v3591 = vpop.f32.mrf.mxu0
        %v3592 = vpop.f32.mrf.mxu0
        %v3593 = vadd.f32 0.0, %v3592
        %v3594 = vpop.f32.mrf.mxu0
        %3595 = vmatprep.mubr.bf16.mxu0 0
        %3596 = vmatmul.mubr.bf16.gmra.mxu0 %v1517
        %v3597 = vpop.f32.mrf.mxu0
        %v3598 = vadd.f32 0.0, %v3597
        %v3599 = vpop.f32.mrf.mxu0
        %v3600 = vpop.f32.mrf.mxu0
        %v3601 = vadd.f32 0.0, %v3600
        %v3602 = vpop.f32.mrf.mxu0
        %3603 = vmatprep.mubr.bf16.mxu0 0
        %3604 = vmatmul.mubr.bf16.gmra.mxu0 %v1520
        %v3605 = vpop.f32.mrf.mxu0
        %v3606 = vadd.f32 0.0, %v3605
        %v3607 = vpop.f32.mrf.mxu0
        %v3608 = vpop.f32.mrf.mxu0
        %v3609 = vadd.f32 0.0, %v3608
        %v3610 = vpop.f32.mrf.mxu0
        %3611 = vmatprep.mubr.bf16.mxu0 0
        %3612 = vmatmul.mubr.bf16.gmra.mxu0 %v1523
        %v3613 = vpop.f32.mrf.mxu0
        %v3614 = vadd.f32 0.0, %v3613
        %v3615 = vpop.f32.mrf.mxu0
        %v3616 = vpop.f32.mrf.mxu0
        %v3617 = vadd.f32 0.0, %v3616
        %v3618 = vpop.f32.mrf.mxu0
        %3619 = vmatprep.mubr.bf16.mxu0 0
        %3620 = vmatmul.mubr.bf16.gmra.mxu0 %v1526
        %v3621 = vpop.f32.mrf.mxu0
        %v3622 = vadd.f32 0.0, %v3621
        %v3623 = vpop.f32.mrf.mxu0
        %v3624 = vpop.f32.mrf.mxu0
        %v3625 = vadd.f32 0.0, %v3624
        %v3626 = vpop.f32.mrf.mxu0
        %3627 = vmatprep.mubr.bf16.mxu0 0
        %3628 = vmatmul.mubr.bf16.gmra.mxu0 %v1529
        %v3629 = vpop.f32.mrf.mxu0
        %v3630 = vadd.f32 0.0, %v3629
        %v3631 = vpop.f32.mrf.mxu0
        %v3632 = vpop.f32.mrf.mxu0
        %v3633 = vadd.f32 0.0, %v3632
        %v3634 = vpop.f32.mrf.mxu0
        %3635 = vmatprep.mubr.bf16.mxu0 0
        %3636 = vmatmul.mubr.bf16.gmra.mxu0 %v1532
        %v3637 = vpop.f32.mrf.mxu0
        %v3638 = vadd.f32 0.0, %v3637
        %v3639 = vpop.f32.mrf.mxu0
        %v3640 = vpop.f32.mrf.mxu0
        %v3641 = vadd.f32 0.0, %v3640
        %v3642 = vpop.f32.mrf.mxu0
        %3643 = vmatprep.mubr.bf16.mxu0 0
        %3644 = vmatmul.mubr.bf16.gmra.mxu0 %v1535
        %v3645 = vpop.f32.mrf.mxu0
        %v3646 = vadd.f32 0.0, %v3645
        %v3647 = vpop.f32.mrf.mxu0
        %v3648 = vpop.f32.mrf.mxu0
        %v3649 = vadd.f32 0.0, %v3648
        %v3650 = vpop.f32.mrf.mxu0
        %3651 = vmatprep.mubr.bf16.mxu0 0
        %3652 = vmatmul.mubr.bf16.gmra.mxu0 %v1538
        %v3653 = vpop.f32.mrf.mxu0
        %v3654 = vadd.f32 0.0, %v3653
        %v3655 = vpop.f32.mrf.mxu0
        %v3656 = vpop.f32.mrf.mxu0
        %v3657 = vadd.f32 0.0, %v3656
        %v3658 = vpop.f32.mrf.mxu0
        %3659 = vmatprep.mubr.bf16.mxu0 0
        %3660 = vmatmul.mubr.bf16.gmra.mxu0 %v1541
        %v3661 = vpop.f32.mrf.mxu0
        %v3662 = vadd.f32 0.0, %v3661
        %v3663 = vpop.f32.mrf.mxu0
        %v3664 = vpop.f32.mrf.mxu0
        %v3665 = vadd.f32 0.0, %v3664
        %v3666 = vpop.f32.mrf.mxu0
        %3667 = vmatprep.mubr.bf16.mxu0 0
        %3668 = vmatmul.mubr.bf16.gmra.mxu0 %v1544
        %v3669 = vpop.f32.mrf.mxu0
        %v3670 = vadd.f32 0.0, %v3669
        %v3671 = vpop.f32.mrf.mxu0
        %v3672 = vpop.f32.mrf.mxu0
        %v3673 = vadd.f32 0.0, %v3672
        %v3674 = vpop.f32.mrf.mxu0
        %3675 = vmatprep.mubr.bf16.mxu0 0
        %3676 = vmatmul.mubr.bf16.gmra.mxu0 %v1547
        %v3677 = vpop.f32.mrf.mxu0
        %v3678 = vadd.f32 0.0, %v3677
        %v3679 = vpop.f32.mrf.mxu0
        %v3680 = vpop.f32.mrf.mxu0
        %v3681 = vadd.f32 0.0, %v3680
        %v3682 = vpop.f32.mrf.mxu0
        %3683 = vmatprep.mubr.bf16.mxu0 0
        %3684 = vmatmul.mubr.bf16.gmra.mxu0 %v1550
        %v3685 = vpop.f32.mrf.mxu0
        %v3686 = vadd.f32 0.0, %v3685
        %v3687 = vpop.f32.mrf.mxu0
        %v3688 = vpop.f32.mrf.mxu0
        %v3689 = vadd.f32 0.0, %v3688
        %v3690 = vpop.f32.mrf.mxu0
        %3691 = vmatprep.mubr.bf16.mxu0 0
        %3692 = vmatmul.mubr.bf16.gmra.mxu0 %v1553
        %v3693 = vpop.f32.mrf.mxu0
        %v3694 = vadd.f32 0.0, %v3693
        %v3695 = vpop.f32.mrf.mxu0
        %v3696 = vpop.f32.mrf.mxu0
        %v3697 = vadd.f32 0.0, %v3696
        %v3698 = vpop.f32.mrf.mxu0
        %3699 = vmatprep.mubr.bf16.mxu0 0
        %3700 = vmatmul.mubr.bf16.gmra.mxu0 %v1556
        %v3701 = vpop.f32.mrf.mxu0
        %v3702 = vadd.f32 0.0, %v3701
        %v3703 = vpop.f32.mrf.mxu0
        %v3704 = vpop.f32.mrf.mxu0
        %v3705 = vadd.f32 0.0, %v3704
        %v3706 = vpop.f32.mrf.mxu0
        %3707 = vmatprep.mubr.bf16.mxu0 0
        %3708 = vmatmul.mubr.bf16.gmra.mxu0 %v1559
        %v3709 = vpop.f32.mrf.mxu0
        %v3710 = vadd.f32 0.0, %v3709
        %v3711 = vpop.f32.mrf.mxu0
        %v3712 = vpop.f32.mrf.mxu0
        %v3713 = vadd.f32 0.0, %v3712
        %v3714 = vpop.f32.mrf.mxu0
        %3715 = vmatprep.mubr.bf16.mxu0 0
        %3716 = vmatmul.mubr.bf16.gmra.mxu0 %v1562
        %v3717 = vpop.f32.mrf.mxu0
        %v3718 = vadd.f32 0.0, %v3717
        %v3719 = vpop.f32.mrf.mxu0
        %v3720 = vpop.f32.mrf.mxu0
        %v3721 = vadd.f32 0.0, %v3720
        %v3722 = vpop.f32.mrf.mxu0
        %3723 = vmatprep.mubr.bf16.mxu0 0
        %3724 = vmatmul.mubr.bf16.gmra.mxu0 %v1565
        %v3725 = vpop.f32.mrf.mxu0
        %v3726 = vadd.f32 0.0, %v3725
        %v3727 = vpop.f32.mrf.mxu0
        %v3728 = vpop.f32.mrf.mxu0
        %v3729 = vadd.f32 0.0, %v3728
        %v3730 = vpop.f32.mrf.mxu0
        %3731 = vmatprep.mubr.bf16.mxu0 0
        %3732 = vmatmul.mubr.bf16.gmra.mxu0 %v1568
        %v3733 = vpop.f32.mrf.mxu0
        %v3734 = vadd.f32 0.0, %v3733
        %v3735 = vpop.f32.mrf.mxu0
        %v3736 = vpop.f32.mrf.mxu0
        %v3737 = vadd.f32 0.0, %v3736
        %v3738 = vpop.f32.mrf.mxu0
        %3739 = vmatprep.mubr.bf16.mxu0 0
        %3740 = vmatmul.mubr.bf16.gmra.mxu0 %v1571
        %v3741 = vpop.f32.mrf.mxu0
        %v3742 = vadd.f32 0.0, %v3741
        %v3743 = vpop.f32.mrf.mxu0
        %v3744 = vpop.f32.mrf.mxu0
        %v3745 = vadd.f32 0.0, %v3744
        %v3746 = vpop.f32.mrf.mxu0
        %3747 = vmatprep.mubr.bf16.mxu0 0
        %3748 = vmatmul.mubr.bf16.gmra.mxu0 %v2318
        %v3749 = vpop.f32.mrf.mxu0
        %v3750 = vadd.f32 0.0, %v3749
        %v3751 = vpop.f32.mrf.mxu0
        %v3752 = vpop.f32.mrf.mxu0
        %v3753 = vadd.f32 0.0, %v3752
        %v3754 = vpop.f32.mrf.mxu0
        %3755 = vmatprep.mubr.bf16.mxu0 0
        %3756 = vmatmul.mubr.bf16.gmra.mxu0 %v2321
        %v3757 = vpop.f32.mrf.mxu0
        %v3758 = vadd.f32 0.0, %v3757
        %v3759 = vpop.f32.mrf.mxu0
        %v3760 = vpop.f32.mrf.mxu0
        %v3761 = vadd.f32 0.0, %v3760
        %v3762 = vpop.f32.mrf.mxu0
        %3763 = vmatprep.mubr.bf16.mxu0 0
        %3764 = vmatmul.mubr.bf16.gmra.mxu0 %v2324
        %v3765 = vpop.f32.mrf.mxu0
        %v3766 = vadd.f32 0.0, %v3765
        %v3767 = vpop.f32.mrf.mxu0
        %v3768 = vpop.f32.mrf.mxu0
        %v3769 = vadd.f32 0.0, %v3768
        %v3770 = vpop.f32.mrf.mxu0
        %3771 = vmatprep.mubr.bf16.mxu0 0
        %3772 = vmatmul.mubr.bf16.gmra.mxu0 %v2327
        %v3773 = vpop.f32.mrf.mxu0
        %v3774 = vadd.f32 0.0, %v3773
        %v3775 = vpop.f32.mrf.mxu0
        %v3776 = vpop.f32.mrf.mxu0
        %v3777 = vadd.f32 0.0, %v3776
        %v3778 = vpop.f32.mrf.mxu0
        %3779 = vmatprep.mubr.bf16.mxu0 0
        %3780 = vmatmul.mubr.bf16.gmra.mxu0 %v3512
        %v3781 = vpop.f32.mrf.mxu0
        %v3782 = vadd.f32 0.0, %v3781
        %v3783 = vpop.f32.mrf.mxu0
        %v3784 = vpop.f32.mrf.mxu0
        %v3785 = vadd.f32 0.0, %v3784
        %v3786 = vpop.f32.mrf.mxu0
        %3787 = vmatprep.mubr.bf16.mxu0 0
        %3788 = vmatmul.mubr.bf16.gmra.mxu0 %v3515
        %v3789 = vpop.f32.mrf.mxu0
        %v3790 = vadd.f32 0.0, %v3789
        %v3791 = vpop.f32.mrf.mxu0
        %v3792 = vpop.f32.mrf.mxu0
        %v3793 = vadd.f32 0.0, %v3792
        %v3794 = vpop.f32.mrf.mxu0
        %3795 = vmatprep.mubr.bf16.mxu0 0
        %3796 = vmatmul.mubr.bf16.gmra.mxu0 %v3518
        %v3797 = vpop.f32.mrf.mxu0
        %v3798 = vadd.f32 0.0, %v3797
        %v3799 = vpop.f32.mrf.mxu0
        %v3800 = vpop.f32.mrf.mxu0
        %v3801 = vadd.f32 0.0, %v3800
        %v3802 = vpop.f32.mrf.mxu0
        %3803 = vmatprep.mubr.bf16.mxu0 0
        %3804 = vmatmul.mubr.bf16.gmra.mxu0 %v3521
        %v3805 = vpop.f32.mrf.mxu0
        %v3806 = vadd.f32 0.0, %v3805
        %v3807 = vpop.f32.mrf.mxu0
        %v3808 = vpop.f32.mrf.mxu0
        %v3809 = vadd.f32 0.0, %v3808
        %v3810 = vpop.f32.mrf.mxu0
        %3811 = vdwg.mxu0
        %v3812 = vadd.f32 %v3410, %v3558
        %v3813 = vadd.f32 %v3411, %v3561
        %v3814 = vadd.f32 %v3412, %v3566
        %v3815 = vadd.f32 %v3413, %v3569
        %v3816 = vadd.f32 %v3414, %v3574
        %v3817 = vadd.f32 %v3415, %v3577
        %v3818 = vadd.f32 %v3416, %v3582
        %v3819 = vadd.f32 %v3417, %v3585
        %v3820 = vadd.f32 %v3418, %v3590
        %v3821 = vadd.f32 %v3419, %v3593
        %v3822 = vadd.f32 %v3420, %v3598
        %v3823 = vadd.f32 %v3421, %v3601
        %v3824 = vadd.f32 %v3422, %v3606
        %v3825 = vadd.f32 %v3423, %v3609
        %v3826 = vadd.f32 %v3424, %v3614
        %v3827 = vadd.f32 %v3425, %v3617
        %v3828 = vadd.f32 %v3426, %v3622
        %v3829 = vadd.f32 %v3427, %v3625
        %v3830 = vadd.f32 %v3428, %v3630
        %v3831 = vadd.f32 %v3429, %v3633
        %v3832 = vadd.f32 %v3430, %v3638
        %v3833 = vadd.f32 %v3431, %v3641
        %v3834 = vadd.f32 %v3432, %v3646
        %v3835 = vadd.f32 %v3433, %v3649
        %v3836 = vadd.f32 %v3434, %v3654
        %v3837 = vadd.f32 %v3435, %v3657
        %v3838 = vadd.f32 %v3436, %v3662
        %v3839 = vadd.f32 %v3437, %v3665
        %v3840 = vadd.f32 %v3438, %v3670
        %v3841 = vadd.f32 %v3439, %v3673
        %v3842 = vadd.f32 %v3440, %v3678
        %v3843 = vadd.f32 %v3441, %v3681
        %v3844 = vadd.f32 %v3442, %v3686
        %v3845 = vadd.f32 %v3443, %v3689
        %v3846 = vadd.f32 %v3444, %v3694
        %v3847 = vadd.f32 %v3445, %v3697
        %v3848 = vadd.f32 %v3446, %v3702
        %v3849 = vadd.f32 %v3447, %v3705
        %v3850 = vadd.f32 %v3448, %v3710
        %v3851 = vadd.f32 %v3449, %v3713
        %v3852 = vadd.f32 %v3450, %v3718
        %v3853 = vadd.f32 %v3451, %v3721
        %v3854 = vadd.f32 %v3452, %v3726
        %v3855 = vadd.f32 %v3453, %v3729
        %v3856 = vadd.f32 %v3454, %v3734
        %v3857 = vadd.f32 %v3455, %v3737
        %v3858 = vadd.f32 %v3456, %v3742
        %v3859 = vadd.f32 %v3457, %v3745
        %v3860 = vadd.f32 %v3458, %v3750
        %v3861 = vadd.f32 %v3459, %v3753
        %v3862 = vadd.f32 %v3460, %v3758
        %v3863 = vadd.f32 %v3461, %v3761
        %v3864 = vadd.f32 %v3462, %v3766
        %v3865 = vadd.f32 %v3463, %v3769
        %v3866 = vadd.f32 %v3464, %v3774
        %v3867 = vadd.f32 %v3465, %v3777
        %v3868 = vadd.f32 %v3466, %v3782
        %v3869 = vadd.f32 %v3467, %v3785
        %v3870 = vadd.f32 %v3468, %v3790
        %v3871 = vadd.f32 %v3469, %v3793
        %v3872 = vadd.f32 %v3470, %v3798
        %v3873 = vadd.f32 %v3471, %v3801
        %v3874 = vadd.f32 %v3472, %v3806
        %v3875 = vadd.f32 %v3473, %v3809
        %v3876 = vpack.c.bf16 %v953, %v952
        %v3877 = vpack.c.bf16 %v955, %v954
        %v3878 = vpack.c.bf16 %v957, %v956
        %v3879 = vpack.c.bf16 %v959, %v958
        %s3880 = scalar_lea.vmem [#allocation6], 224
        %v3881 = vld [vmem:[%s3880] sm:$0xf]
        %v3882 = vld [vmem:[%s3880 + $0x4] sm:$0xf]
        %v3883 = vld [vmem:[%s3880 + $0x8] sm:$0xf]
        %v3884 = vld [vmem:[%s3880 + $0xc] sm:$0xf]
        %v3885 = vld [vmem:[%s3880 + $0x10] sm:$0xf]
        %v3886 = vld [vmem:[%s3880 + $0x14] sm:$0xf]
        %v3887 = vld [vmem:[%s3880 + $0x18] sm:$0xf]
        %v3888 = vld [vmem:[%s3880 + $0x1c] sm:$0xf]
        %v3897 = vunpack.c.l.b16 %v3881
        %v3898 = vunpack.c.l.b16 %v3882
        %v3899 = vunpack.c.l.b16 %v3883
        %v3900 = vunpack.c.l.b16 %v3884
        %v3901 = vunpack.c.l.b16 %v3885
        %v3902 = vunpack.c.l.b16 %v3886
        %v3903 = vunpack.c.l.b16 %v3887
        %v3904 = vunpack.c.l.b16 %v3888
        %v3905 = vpack.c.b16 %v3898, %v3897
        %v3906 = vpack.c.b16 %v3900, %v3899
        %v3907 = vpack.c.b16 %v3902, %v3901
        %v3908 = vpack.c.b16 %v3904, %v3903
        %v3914 = vsel %vm1067, %v3876, 0
        %v3917 = vsel %vm1067, %v3877, 0
        %v3920 = vsel %vm1067, %v3878, 0
        %v3923 = vsel %vm1067, %v3879, 0
        %3925 = vmatprep.subr.bf16.mxu0 0
        %3926 = vmatpush1.bf16.msra.mxu0 0
        %3927 = vmatprep.subr.bf16.mxu0 0
        %3928 = vmatpush1.bf16.msra.mxu0 0
        %3929 = vmatprep.subr.bf16.mxu0 0
        %3930 = vmatpush1.bf16.msra.mxu0 0
        %3931 = vmatprep.subr.bf16.mxu0 0
        %3932 = vmatpush1.bf16.msra.mxu0 0
        %3933 = vmatprep.subr.bf16.mxu0 0
        %3934 = vmatpush1.bf16.msra.mxu0 %v3908
        %3935 = vmatprep.subr.bf16.mxu0 0
        %3936 = vmatpush1.bf16.msra.mxu0 %v3907
        %3937 = vmatprep.subr.bf16.mxu0 0
        %3938 = vmatpush1.bf16.msra.mxu0 %v3906
        %3939 = vmatprep.subr.bf16.mxu0 0
        %3940 = vmatpush1.bf16.msra.mxu0 %v3905
        %3941 = vmatprep.subr.bf16.mxu0 0
        %3942 = vmatpush2.bf16.msra.mxu0 0
        %3943 = vmatprep.subr.bf16.mxu0 0
        %3944 = vmatpush2.bf16.msra.mxu0 0
        %3945 = vmatprep.subr.bf16.mxu0 0
        %3946 = vmatpush2.bf16.msra.mxu0 0
        %3947 = vmatprep.subr.bf16.mxu0 0
        %3948 = vmatpush2.bf16.msra.mxu0 0
        %3949 = vmatprep.subr.bf16.mxu0 0
        %3950 = vmatpush2.bf16.msra.mxu0 0
        %3951 = vmatprep.subr.bf16.mxu0 0
        %3952 = vmatpush2.bf16.msra.mxu0 0
        %3953 = vmatprep.subr.bf16.mxu0 0
        %3954 = vmatpush2.bf16.msra.mxu0 0
        %3955 = vmatprep.subr.bf16.mxu0 0
        %3956 = vmatpush2.bf16.msra.mxu0 0
        %3957 = vmatprep.mubr.bf16.mxu0 0
        %3958 = vmatmul.mubr.bf16.gmra.mxu0 %v1093
        %v3959 = vpop.f32.mrf.mxu0
        %v3960 = vadd.f32 0.0, %v3959
        %v3961 = vpop.f32.mrf.mxu0
        %v3962 = vpop.f32.mrf.mxu0
        %v3963 = vadd.f32 0.0, %v3962
        %v3964 = vpop.f32.mrf.mxu0
        %3965 = vmatprep.mubr.bf16.mxu0 0
        %3966 = vmatmul.mubr.bf16.gmra.mxu0 %v1096
        %v3967 = vpop.f32.mrf.mxu0
        %v3968 = vadd.f32 0.0, %v3967
        %v3969 = vpop.f32.mrf.mxu0
        %v3970 = vpop.f32.mrf.mxu0
        %v3971 = vadd.f32 0.0, %v3970
        %v3972 = vpop.f32.mrf.mxu0
        %3973 = vmatprep.mubr.bf16.mxu0 0
        %3974 = vmatmul.mubr.bf16.gmra.mxu0 %v1099
        %v3975 = vpop.f32.mrf.mxu0
        %v3976 = vadd.f32 0.0, %v3975
        %v3977 = vpop.f32.mrf.mxu0
        %v3978 = vpop.f32.mrf.mxu0
        %v3979 = vadd.f32 0.0, %v3978
        %v3980 = vpop.f32.mrf.mxu0
        %3981 = vmatprep.mubr.bf16.mxu0 0
        %3982 = vmatmul.mubr.bf16.gmra.mxu0 %v1102
        %v3983 = vpop.f32.mrf.mxu0
        %v3984 = vadd.f32 0.0, %v3983
        %v3985 = vpop.f32.mrf.mxu0
        %v3986 = vpop.f32.mrf.mxu0
        %v3987 = vadd.f32 0.0, %v3986
        %v3988 = vpop.f32.mrf.mxu0
        %3989 = vmatprep.mubr.bf16.mxu0 0
        %3990 = vmatmul.mubr.bf16.gmra.mxu0 %v1105
        %v3991 = vpop.f32.mrf.mxu0
        %v3992 = vadd.f32 0.0, %v3991
        %v3993 = vpop.f32.mrf.mxu0
        %v3994 = vpop.f32.mrf.mxu0
        %v3995 = vadd.f32 0.0, %v3994
        %v3996 = vpop.f32.mrf.mxu0
        %3997 = vmatprep.mubr.bf16.mxu0 0
        %3998 = vmatmul.mubr.bf16.gmra.mxu0 %v1108
        %v3999 = vpop.f32.mrf.mxu0
        %v4000 = vadd.f32 0.0, %v3999
        %v4001 = vpop.f32.mrf.mxu0
        %v4002 = vpop.f32.mrf.mxu0
        %v4003 = vadd.f32 0.0, %v4002
        %v4004 = vpop.f32.mrf.mxu0
        %4005 = vmatprep.mubr.bf16.mxu0 0
        %4006 = vmatmul.mubr.bf16.gmra.mxu0 %v1111
        %v4007 = vpop.f32.mrf.mxu0
        %v4008 = vadd.f32 0.0, %v4007
        %v4009 = vpop.f32.mrf.mxu0
        %v4010 = vpop.f32.mrf.mxu0
        %v4011 = vadd.f32 0.0, %v4010
        %v4012 = vpop.f32.mrf.mxu0
        %4013 = vmatprep.mubr.bf16.mxu0 0
        %4014 = vmatmul.mubr.bf16.gmra.mxu0 %v1114
        %v4015 = vpop.f32.mrf.mxu0
        %v4016 = vadd.f32 0.0, %v4015
        %v4017 = vpop.f32.mrf.mxu0
        %v4018 = vpop.f32.mrf.mxu0
        %v4019 = vadd.f32 0.0, %v4018
        %v4020 = vpop.f32.mrf.mxu0
        %4021 = vmatprep.mubr.bf16.mxu0 0
        %4022 = vmatmul.mubr.bf16.gmra.mxu0 %v1117
        %v4023 = vpop.f32.mrf.mxu0
        %v4024 = vadd.f32 0.0, %v4023
        %v4025 = vpop.f32.mrf.mxu0
        %v4026 = vpop.f32.mrf.mxu0
        %v4027 = vadd.f32 0.0, %v4026
        %v4028 = vpop.f32.mrf.mxu0
        %4029 = vmatprep.mubr.bf16.mxu0 0
        %4030 = vmatmul.mubr.bf16.gmra.mxu0 %v1120
        %v4031 = vpop.f32.mrf.mxu0
        %v4032 = vadd.f32 0.0, %v4031
        %v4033 = vpop.f32.mrf.mxu0
        %v4034 = vpop.f32.mrf.mxu0
        %v4035 = vadd.f32 0.0, %v4034
        %v4036 = vpop.f32.mrf.mxu0
        %4037 = vmatprep.mubr.bf16.mxu0 0
        %4038 = vmatmul.mubr.bf16.gmra.mxu0 %v1123
        %v4039 = vpop.f32.mrf.mxu0
        %v4040 = vadd.f32 0.0, %v4039
        %v4041 = vpop.f32.mrf.mxu0
        %v4042 = vpop.f32.mrf.mxu0
        %v4043 = vadd.f32 0.0, %v4042
        %v4044 = vpop.f32.mrf.mxu0
        %4045 = vmatprep.mubr.bf16.mxu0 0
        %4046 = vmatmul.mubr.bf16.gmra.mxu0 %v1126
        %v4047 = vpop.f32.mrf.mxu0
        %v4048 = vadd.f32 0.0, %v4047
        %v4049 = vpop.f32.mrf.mxu0
        %v4050 = vpop.f32.mrf.mxu0
        %v4051 = vadd.f32 0.0, %v4050
        %v4052 = vpop.f32.mrf.mxu0
        %4053 = vmatprep.mubr.bf16.mxu0 0
        %4054 = vmatmul.mubr.bf16.gmra.mxu0 %v1129
        %v4055 = vpop.f32.mrf.mxu0
        %v4056 = vadd.f32 0.0, %v4055
        %v4057 = vpop.f32.mrf.mxu0
        %v4058 = vpop.f32.mrf.mxu0
        %v4059 = vadd.f32 0.0, %v4058
        %v4060 = vpop.f32.mrf.mxu0
        %4061 = vmatprep.mubr.bf16.mxu0 0
        %4062 = vmatmul.mubr.bf16.gmra.mxu0 %v1132
        %v4063 = vpop.f32.mrf.mxu0
        %v4064 = vadd.f32 0.0, %v4063
        %v4065 = vpop.f32.mrf.mxu0
        %v4066 = vpop.f32.mrf.mxu0
        %v4067 = vadd.f32 0.0, %v4066
        %v4068 = vpop.f32.mrf.mxu0
        %4069 = vmatprep.mubr.bf16.mxu0 0
        %4070 = vmatmul.mubr.bf16.gmra.mxu0 %v1135
        %v4071 = vpop.f32.mrf.mxu0
        %v4072 = vadd.f32 0.0, %v4071
        %v4073 = vpop.f32.mrf.mxu0
        %v4074 = vpop.f32.mrf.mxu0
        %v4075 = vadd.f32 0.0, %v4074
        %v4076 = vpop.f32.mrf.mxu0
        %4077 = vmatprep.mubr.bf16.mxu0 0
        %4078 = vmatmul.mubr.bf16.gmra.mxu0 %v1138
        %v4079 = vpop.f32.mrf.mxu0
        %v4080 = vadd.f32 0.0, %v4079
        %v4081 = vpop.f32.mrf.mxu0
        %v4082 = vpop.f32.mrf.mxu0
        %v4083 = vadd.f32 0.0, %v4082
        %v4084 = vpop.f32.mrf.mxu0
        %4085 = vmatprep.mubr.bf16.mxu0 0
        %4086 = vmatmul.mubr.bf16.gmra.mxu0 %v1141
        %v4087 = vpop.f32.mrf.mxu0
        %v4088 = vadd.f32 0.0, %v4087
        %v4089 = vpop.f32.mrf.mxu0
        %v4090 = vpop.f32.mrf.mxu0
        %v4091 = vadd.f32 0.0, %v4090
        %v4092 = vpop.f32.mrf.mxu0
        %4093 = vmatprep.mubr.bf16.mxu0 0
        %4094 = vmatmul.mubr.bf16.gmra.mxu0 %v1144
        %v4095 = vpop.f32.mrf.mxu0
        %v4096 = vadd.f32 0.0, %v4095
        %v4097 = vpop.f32.mrf.mxu0
        %v4098 = vpop.f32.mrf.mxu0
        %v4099 = vadd.f32 0.0, %v4098
        %v4100 = vpop.f32.mrf.mxu0
        %4101 = vmatprep.mubr.bf16.mxu0 0
        %4102 = vmatmul.mubr.bf16.gmra.mxu0 %v1147
        %v4103 = vpop.f32.mrf.mxu0
        %v4104 = vadd.f32 0.0, %v4103
        %v4105 = vpop.f32.mrf.mxu0
        %v4106 = vpop.f32.mrf.mxu0
        %v4107 = vadd.f32 0.0, %v4106
        %v4108 = vpop.f32.mrf.mxu0
        %4109 = vmatprep.mubr.bf16.mxu0 0
        %4110 = vmatmul.mubr.bf16.gmra.mxu0 %v1150
        %v4111 = vpop.f32.mrf.mxu0
        %v4112 = vadd.f32 0.0, %v4111
        %v4113 = vpop.f32.mrf.mxu0
        %v4114 = vpop.f32.mrf.mxu0
        %v4115 = vadd.f32 0.0, %v4114
        %v4116 = vpop.f32.mrf.mxu0
        %4117 = vmatprep.mubr.bf16.mxu0 0
        %4118 = vmatmul.mubr.bf16.gmra.mxu0 %v1153
        %v4119 = vpop.f32.mrf.mxu0
        %v4120 = vadd.f32 0.0, %v4119
        %v4121 = vpop.f32.mrf.mxu0
        %v4122 = vpop.f32.mrf.mxu0
        %v4123 = vadd.f32 0.0, %v4122
        %v4124 = vpop.f32.mrf.mxu0
        %4125 = vmatprep.mubr.bf16.mxu0 0
        %4126 = vmatmul.mubr.bf16.gmra.mxu0 %v1156
        %v4127 = vpop.f32.mrf.mxu0
        %v4128 = vadd.f32 0.0, %v4127
        %v4129 = vpop.f32.mrf.mxu0
        %v4130 = vpop.f32.mrf.mxu0
        %v4131 = vadd.f32 0.0, %v4130
        %v4132 = vpop.f32.mrf.mxu0
        %4133 = vmatprep.mubr.bf16.mxu0 0
        %4134 = vmatmul.mubr.bf16.gmra.mxu0 %v1159
        %v4135 = vpop.f32.mrf.mxu0
        %v4136 = vadd.f32 0.0, %v4135
        %v4137 = vpop.f32.mrf.mxu0
        %v4138 = vpop.f32.mrf.mxu0
        %v4139 = vadd.f32 0.0, %v4138
        %v4140 = vpop.f32.mrf.mxu0
        %4141 = vmatprep.mubr.bf16.mxu0 0
        %4142 = vmatmul.mubr.bf16.gmra.mxu0 %v1162
        %v4143 = vpop.f32.mrf.mxu0
        %v4144 = vadd.f32 0.0, %v4143
        %v4145 = vpop.f32.mrf.mxu0
        %v4146 = vpop.f32.mrf.mxu0
        %v4147 = vadd.f32 0.0, %v4146
        %v4148 = vpop.f32.mrf.mxu0
        %4149 = vmatprep.mubr.bf16.mxu0 0
        %4150 = vmatmul.mubr.bf16.gmra.mxu0 %v2720
        %v4151 = vpop.f32.mrf.mxu0
        %v4152 = vadd.f32 0.0, %v4151
        %v4153 = vpop.f32.mrf.mxu0
        %v4154 = vpop.f32.mrf.mxu0
        %v4155 = vadd.f32 0.0, %v4154
        %v4156 = vpop.f32.mrf.mxu0
        %4157 = vmatprep.mubr.bf16.mxu0 0
        %4158 = vmatmul.mubr.bf16.gmra.mxu0 %v2723
        %v4159 = vpop.f32.mrf.mxu0
        %v4160 = vadd.f32 0.0, %v4159
        %v4161 = vpop.f32.mrf.mxu0
        %v4162 = vpop.f32.mrf.mxu0
        %v4163 = vadd.f32 0.0, %v4162
        %v4164 = vpop.f32.mrf.mxu0
        %4165 = vmatprep.mubr.bf16.mxu0 0
        %4166 = vmatmul.mubr.bf16.gmra.mxu0 %v2726
        %v4167 = vpop.f32.mrf.mxu0
        %v4168 = vadd.f32 0.0, %v4167
        %v4169 = vpop.f32.mrf.mxu0
        %v4170 = vpop.f32.mrf.mxu0
        %v4171 = vadd.f32 0.0, %v4170
        %v4172 = vpop.f32.mrf.mxu0
        %4173 = vmatprep.mubr.bf16.mxu0 0
        %4174 = vmatmul.mubr.bf16.gmra.mxu0 %v2729
        %v4175 = vpop.f32.mrf.mxu0
        %v4176 = vadd.f32 0.0, %v4175
        %v4177 = vpop.f32.mrf.mxu0
        %v4178 = vpop.f32.mrf.mxu0
        %v4179 = vadd.f32 0.0, %v4178
        %v4180 = vpop.f32.mrf.mxu0
        %4181 = vmatprep.mubr.bf16.mxu0 0
        %4182 = vmatmul.mubr.bf16.gmra.mxu0 %v3914
        %v4183 = vpop.f32.mrf.mxu0
        %v4184 = vadd.f32 0.0, %v4183
        %v4185 = vpop.f32.mrf.mxu0
        %v4186 = vpop.f32.mrf.mxu0
        %v4187 = vadd.f32 0.0, %v4186
        %v4188 = vpop.f32.mrf.mxu0
        %4189 = vmatprep.mubr.bf16.mxu0 0
        %4190 = vmatmul.mubr.bf16.gmra.mxu0 %v3917
        %v4191 = vpop.f32.mrf.mxu0
        %v4192 = vadd.f32 0.0, %v4191
        %v4193 = vpop.f32.mrf.mxu0
        %v4194 = vpop.f32.mrf.mxu0
        %v4195 = vadd.f32 0.0, %v4194
        %v4196 = vpop.f32.mrf.mxu0
        %4197 = vmatprep.mubr.bf16.mxu0 0
        %4198 = vmatmul.mubr.bf16.gmra.mxu0 %v3920
        %v4199 = vpop.f32.mrf.mxu0
        %v4200 = vadd.f32 0.0, %v4199
        %v4201 = vpop.f32.mrf.mxu0
        %v4202 = vpop.f32.mrf.mxu0
        %v4203 = vadd.f32 0.0, %v4202
        %v4204 = vpop.f32.mrf.mxu0
        %4205 = vmatprep.mubr.bf16.mxu0 0
        %4206 = vmatmul.mubr.bf16.gmra.mxu0 %v3923
        %v4207 = vpop.f32.mrf.mxu0
        %v4208 = vadd.f32 0.0, %v4207
        %v4209 = vpop.f32.mrf.mxu0
        %v4210 = vpop.f32.mrf.mxu0
        %v4211 = vadd.f32 0.0, %v4210
        %v4212 = vpop.f32.mrf.mxu0
        %4213 = vdwg.mxu0
        %v4214 = vadd.f32 %v3812, %v3960
        %v4215 = vadd.f32 %v3813, %v3963
        %v4216 = vadd.f32 %v3814, %v3968
        %v4217 = vadd.f32 %v3815, %v3971
        %v4218 = vadd.f32 %v3816, %v3976
        %v4219 = vadd.f32 %v3817, %v3979
        %v4220 = vadd.f32 %v3818, %v3984
        %v4221 = vadd.f32 %v3819, %v3987
        %v4222 = vadd.f32 %v3820, %v3992
        %v4223 = vadd.f32 %v3821, %v3995
        %v4224 = vadd.f32 %v3822, %v4000
        %v4225 = vadd.f32 %v3823, %v4003
        %v4226 = vadd.f32 %v3824, %v4008
        %v4227 = vadd.f32 %v3825, %v4011
        %v4228 = vadd.f32 %v3826, %v4016
        %v4229 = vadd.f32 %v3827, %v4019
        %v4230 = vadd.f32 %v3828, %v4024
        %v4231 = vadd.f32 %v3829, %v4027
        %v4232 = vadd.f32 %v3830, %v4032
        %v4233 = vadd.f32 %v3831, %v4035
        %v4234 = vadd.f32 %v3832, %v4040
        %v4235 = vadd.f32 %v3833, %v4043
        %v4236 = vadd.f32 %v3834, %v4048
        %v4237 = vadd.f32 %v3835, %v4051
        %v4238 = vadd.f32 %v3836, %v4056
        %v4239 = vadd.f32 %v3837, %v4059
        %v4240 = vadd.f32 %v3838, %v4064
        %v4241 = vadd.f32 %v3839, %v4067
        %v4242 = vadd.f32 %v3840, %v4072
        %v4243 = vadd.f32 %v3841, %v4075
        %v4244 = vadd.f32 %v3842, %v4080
        %v4245 = vadd.f32 %v3843, %v4083
        %v4246 = vadd.f32 %v3844, %v4088
        %v4247 = vadd.f32 %v3845, %v4091
        %v4248 = vadd.f32 %v3846, %v4096
        %v4249 = vadd.f32 %v3847, %v4099
        %v4250 = vadd.f32 %v3848, %v4104
        %v4251 = vadd.f32 %v3849, %v4107
        %v4252 = vadd.f32 %v3850, %v4112
        %v4253 = vadd.f32 %v3851, %v4115
        %v4254 = vadd.f32 %v3852, %v4120
        %v4255 = vadd.f32 %v3853, %v4123
        %v4256 = vadd.f32 %v3854, %v4128
        %v4257 = vadd.f32 %v3855, %v4131
        %v4258 = vadd.f32 %v3856, %v4136
        %v4259 = vadd.f32 %v3857, %v4139
        %v4260 = vadd.f32 %v3858, %v4144
        %v4261 = vadd.f32 %v3859, %v4147
        %v4262 = vadd.f32 %v3860, %v4152
        %v4263 = vadd.f32 %v3861, %v4155
        %v4264 = vadd.f32 %v3862, %v4160
        %v4265 = vadd.f32 %v3863, %v4163
        %v4266 = vadd.f32 %v3864, %v4168
        %v4267 = vadd.f32 %v3865, %v4171
        %v4268 = vadd.f32 %v3866, %v4176
        %v4269 = vadd.f32 %v3867, %v4179
        %v4270 = vadd.f32 %v3868, %v4184
        %v4271 = vadd.f32 %v3869, %v4187
        %v4272 = vadd.f32 %v3870, %v4192
        %v4273 = vadd.f32 %v3871, %v4195
        %v4274 = vadd.f32 %v3872, %v4200
        %v4275 = vadd.f32 %v3873, %v4203
        %v4276 = vadd.f32 %v3874, %v4208
        %v4277 = vadd.f32 %v3875, %v4211
        %v4278 = vpack.c.bf16 %v960, %v959
        %s4279 = scalar_lea.vmem [#allocation6], 256
        %v4280 = vld [vmem:[%s4279] sm:$0xf]
        %v4281 = vld [vmem:[%s4279 + $0x4] sm:$0xf]
        %v4282 = vld [vmem:[%s4279 + $0x8] sm:$0xf]
        %v4283 = vld [vmem:[%s4279 + $0xc] sm:$0xf]
        %v4284 = vld [vmem:[%s4279 + $0x10] sm:$0xf]
        %v4285 = vld [vmem:[%s4279 + $0x14] sm:$0xf]
        %v4286 = vld [vmem:[%s4279 + $0x18] sm:$0xf]
        %v4287 = vld [vmem:[%s4279 + $0x1c] sm:$0xf]
        %v4296 = vunpack.c.l.b16 %v4280
        %v4297 = vunpack.c.l.b16 %v4281
        %v4298 = vunpack.c.l.b16 %v4282
        %v4299 = vunpack.c.l.b16 %v4283
        %v4300 = vunpack.c.l.b16 %v4284
        %v4301 = vunpack.c.l.b16 %v4285
        %v4302 = vunpack.c.l.b16 %v4286
        %v4303 = vunpack.c.l.b16 %v4287
        %v4304 = vpack.c.b16 %v4297, %v4296
        %v4305 = vpack.c.b16 %v4299, %v4298
        %v4306 = vpack.c.b16 %v4301, %v4300
        %v4307 = vpack.c.b16 %v4303, %v4302
        %v4313 = vsel %vm1067, %v4278, 0
        %4315 = vmatprep.subr.bf16.mxu0 0
        %4316 = vmatpush1.bf16.msra.mxu0 0
        %4317 = vmatprep.subr.bf16.mxu0 0
        %4318 = vmatpush1.bf16.msra.mxu0 0
        %4319 = vmatprep.subr.bf16.mxu0 0
        %4320 = vmatpush1.bf16.msra.mxu0 0
        %4321 = vmatprep.subr.bf16.mxu0 0
        %4322 = vmatpush1.bf16.msra.mxu0 0
        %4323 = vmatprep.subr.bf16.mxu0 0
        %4324 = vmatpush1.bf16.msra.mxu0 %v4307
        %4325 = vmatprep.subr.bf16.mxu0 0
        %4326 = vmatpush1.bf16.msra.mxu0 %v4306
        %4327 = vmatprep.subr.bf16.mxu0 0
        %4328 = vmatpush1.bf16.msra.mxu0 %v4305
        %4329 = vmatprep.subr.bf16.mxu0 0
        %4330 = vmatpush1.bf16.msra.mxu0 %v4304
        %4331 = vmatprep.subr.bf16.mxu0 0
        %4332 = vmatpush2.bf16.msra.mxu0 0
        %4333 = vmatprep.subr.bf16.mxu0 0
        %4334 = vmatpush2.bf16.msra.mxu0 0
        %4335 = vmatprep.subr.bf16.mxu0 0
        %4336 = vmatpush2.bf16.msra.mxu0 0
        %4337 = vmatprep.subr.bf16.mxu0 0
        %4338 = vmatpush2.bf16.msra.mxu0 0
        %4339 = vmatprep.subr.bf16.mxu0 0
        %4340 = vmatpush2.bf16.msra.mxu0 0
        %4341 = vmatprep.subr.bf16.mxu0 0
        %4342 = vmatpush2.bf16.msra.mxu0 0
        %4343 = vmatprep.subr.bf16.mxu0 0
        %4344 = vmatpush2.bf16.msra.mxu0 0
        %4345 = vmatprep.subr.bf16.mxu0 0
        %4346 = vmatpush2.bf16.msra.mxu0 0
        %4347 = vmatprep.mubr.bf16.mxu0 0
        %4348 = vmatmul.mubr.bf16.gmra.mxu0 %v1505
        %v4349 = vpop.f32.mrf.mxu0
        %v4350 = vadd.f32 0.0, %v4349
        %v4351 = vpop.f32.mrf.mxu0
        %v4352 = vpop.f32.mrf.mxu0
        %v4353 = vadd.f32 0.0, %v4352
        %v4354 = vpop.f32.mrf.mxu0
        %4355 = vmatprep.mubr.bf16.mxu0 0
        %4356 = vmatmul.mubr.bf16.gmra.mxu0 %v1508
        %v4357 = vpop.f32.mrf.mxu0
        %v4358 = vadd.f32 0.0, %v4357
        %v4359 = vpop.f32.mrf.mxu0
        %v4360 = vpop.f32.mrf.mxu0
        %v4361 = vadd.f32 0.0, %v4360
        %v4362 = vpop.f32.mrf.mxu0
        %4363 = vmatprep.mubr.bf16.mxu0 0
        %4364 = vmatmul.mubr.bf16.gmra.mxu0 %v1511
        %v4365 = vpop.f32.mrf.mxu0
        %v4366 = vadd.f32 0.0, %v4365
        %v4367 = vpop.f32.mrf.mxu0
        %v4368 = vpop.f32.mrf.mxu0
        %v4369 = vadd.f32 0.0, %v4368
        %v4370 = vpop.f32.mrf.mxu0
        %4371 = vmatprep.mubr.bf16.mxu0 0
        %4372 = vmatmul.mubr.bf16.gmra.mxu0 %v1910
        %v4373 = vpop.f32.mrf.mxu0
        %v4374 = vadd.f32 0.0, %v4373
        %v4375 = vpop.f32.mrf.mxu0
        %v4376 = vpop.f32.mrf.mxu0
        %v4377 = vadd.f32 0.0, %v4376
        %v4378 = vpop.f32.mrf.mxu0
        %4379 = vmatprep.mubr.bf16.mxu0 0
        %4380 = vmatmul.mubr.bf16.gmra.mxu0 %v1517
        %v4381 = vpop.f32.mrf.mxu0
        %v4382 = vadd.f32 0.0, %v4381
        %v4383 = vpop.f32.mrf.mxu0
        %v4384 = vpop.f32.mrf.mxu0
        %v4385 = vadd.f32 0.0, %v4384
        %v4386 = vpop.f32.mrf.mxu0
        %4387 = vmatprep.mubr.bf16.mxu0 0
        %4388 = vmatmul.mubr.bf16.gmra.mxu0 %v1520
        %v4389 = vpop.f32.mrf.mxu0
        %v4390 = vadd.f32 0.0, %v4389
        %v4391 = vpop.f32.mrf.mxu0
        %v4392 = vpop.f32.mrf.mxu0
        %v4393 = vadd.f32 0.0, %v4392
        %v4394 = vpop.f32.mrf.mxu0
        %4395 = vmatprep.mubr.bf16.mxu0 0
        %4396 = vmatmul.mubr.bf16.gmra.mxu0 %v1523
        %v4397 = vpop.f32.mrf.mxu0
        %v4398 = vadd.f32 0.0, %v4397
        %v4399 = vpop.f32.mrf.mxu0
        %v4400 = vpop.f32.mrf.mxu0
        %v4401 = vadd.f32 0.0, %v4400
        %v4402 = vpop.f32.mrf.mxu0
        %4403 = vmatprep.mubr.bf16.mxu0 0
        %4404 = vmatmul.mubr.bf16.gmra.mxu0 %v1913
        %v4405 = vpop.f32.mrf.mxu0
        %v4406 = vadd.f32 0.0, %v4405
        %v4407 = vpop.f32.mrf.mxu0
        %v4408 = vpop.f32.mrf.mxu0
        %v4409 = vadd.f32 0.0, %v4408
        %v4410 = vpop.f32.mrf.mxu0
        %4411 = vmatprep.mubr.bf16.mxu0 0
        %4412 = vmatmul.mubr.bf16.gmra.mxu0 %v1529
        %v4413 = vpop.f32.mrf.mxu0
        %v4414 = vadd.f32 0.0, %v4413
        %v4415 = vpop.f32.mrf.mxu0
        %v4416 = vpop.f32.mrf.mxu0
        %v4417 = vadd.f32 0.0, %v4416
        %v4418 = vpop.f32.mrf.mxu0
        %4419 = vmatprep.mubr.bf16.mxu0 0
        %4420 = vmatmul.mubr.bf16.gmra.mxu0 %v1532
        %v4421 = vpop.f32.mrf.mxu0
        %v4422 = vadd.f32 0.0, %v4421
        %v4423 = vpop.f32.mrf.mxu0
        %v4424 = vpop.f32.mrf.mxu0
        %v4425 = vadd.f32 0.0, %v4424
        %v4426 = vpop.f32.mrf.mxu0
        %4427 = vmatprep.mubr.bf16.mxu0 0
        %4428 = vmatmul.mubr.bf16.gmra.mxu0 %v1535
        %v4429 = vpop.f32.mrf.mxu0
        %v4430 = vadd.f32 0.0, %v4429
        %v4431 = vpop.f32.mrf.mxu0
        %v4432 = vpop.f32.mrf.mxu0
        %v4433 = vadd.f32 0.0, %v4432
        %v4434 = vpop.f32.mrf.mxu0
        %4435 = vmatprep.mubr.bf16.mxu0 0
        %4436 = vmatmul.mubr.bf16.gmra.mxu0 %v1916
        %v4437 = vpop.f32.mrf.mxu0
        %v4438 = vadd.f32 0.0, %v4437
        %v4439 = vpop.f32.mrf.mxu0
        %v4440 = vpop.f32.mrf.mxu0
        %v4441 = vadd.f32 0.0, %v4440
        %v4442 = vpop.f32.mrf.mxu0
        %4443 = vmatprep.mubr.bf16.mxu0 0
        %4444 = vmatmul.mubr.bf16.gmra.mxu0 %v1541
        %v4445 = vpop.f32.mrf.mxu0
        %v4446 = vadd.f32 0.0, %v4445
        %v4447 = vpop.f32.mrf.mxu0
        %v4448 = vpop.f32.mrf.mxu0
        %v4449 = vadd.f32 0.0, %v4448
        %v4450 = vpop.f32.mrf.mxu0
        %4451 = vmatprep.mubr.bf16.mxu0 0
        %4452 = vmatmul.mubr.bf16.gmra.mxu0 %v1544
        %v4453 = vpop.f32.mrf.mxu0
        %v4454 = vadd.f32 0.0, %v4453
        %v4455 = vpop.f32.mrf.mxu0
        %v4456 = vpop.f32.mrf.mxu0
        %v4457 = vadd.f32 0.0, %v4456
        %v4458 = vpop.f32.mrf.mxu0
        %4459 = vmatprep.mubr.bf16.mxu0 0
        %4460 = vmatmul.mubr.bf16.gmra.mxu0 %v1547
        %v4461 = vpop.f32.mrf.mxu0
        %v4462 = vadd.f32 0.0, %v4461
        %v4463 = vpop.f32.mrf.mxu0
        %v4464 = vpop.f32.mrf.mxu0
        %v4465 = vadd.f32 0.0, %v4464
        %v4466 = vpop.f32.mrf.mxu0
        %4467 = vmatprep.mubr.bf16.mxu0 0
        %4468 = vmatmul.mubr.bf16.gmra.mxu0 %v1919
        %v4469 = vpop.f32.mrf.mxu0
        %v4470 = vadd.f32 0.0, %v4469
        %v4471 = vpop.f32.mrf.mxu0
        %v4472 = vpop.f32.mrf.mxu0
        %v4473 = vadd.f32 0.0, %v4472
        %v4474 = vpop.f32.mrf.mxu0
        %4475 = vmatprep.mubr.bf16.mxu0 0
        %4476 = vmatmul.mubr.bf16.gmra.mxu0 %v1553
        %v4477 = vpop.f32.mrf.mxu0
        %v4478 = vadd.f32 0.0, %v4477
        %v4479 = vpop.f32.mrf.mxu0
        %v4480 = vpop.f32.mrf.mxu0
        %v4481 = vadd.f32 0.0, %v4480
        %v4482 = vpop.f32.mrf.mxu0
        %4483 = vmatprep.mubr.bf16.mxu0 0
        %4484 = vmatmul.mubr.bf16.gmra.mxu0 %v1556
        %v4485 = vpop.f32.mrf.mxu0
        %v4486 = vadd.f32 0.0, %v4485
        %v4487 = vpop.f32.mrf.mxu0
        %v4488 = vpop.f32.mrf.mxu0
        %v4489 = vadd.f32 0.0, %v4488
        %v4490 = vpop.f32.mrf.mxu0
        %4491 = vmatprep.mubr.bf16.mxu0 0
        %4492 = vmatmul.mubr.bf16.gmra.mxu0 %v1559
        %v4493 = vpop.f32.mrf.mxu0
        %v4494 = vadd.f32 0.0, %v4493
        %v4495 = vpop.f32.mrf.mxu0
        %v4496 = vpop.f32.mrf.mxu0
        %v4497 = vadd.f32 0.0, %v4496
        %v4498 = vpop.f32.mrf.mxu0
        %4499 = vmatprep.mubr.bf16.mxu0 0
        %4500 = vmatmul.mubr.bf16.gmra.mxu0 %v1922
        %v4501 = vpop.f32.mrf.mxu0
        %v4502 = vadd.f32 0.0, %v4501
        %v4503 = vpop.f32.mrf.mxu0
        %v4504 = vpop.f32.mrf.mxu0
        %v4505 = vadd.f32 0.0, %v4504
        %v4506 = vpop.f32.mrf.mxu0
        %4507 = vmatprep.mubr.bf16.mxu0 0
        %4508 = vmatmul.mubr.bf16.gmra.mxu0 %v1565
        %v4509 = vpop.f32.mrf.mxu0
        %v4510 = vadd.f32 0.0, %v4509
        %v4511 = vpop.f32.mrf.mxu0
        %v4512 = vpop.f32.mrf.mxu0
        %v4513 = vadd.f32 0.0, %v4512
        %v4514 = vpop.f32.mrf.mxu0
        %4515 = vmatprep.mubr.bf16.mxu0 0
        %4516 = vmatmul.mubr.bf16.gmra.mxu0 %v1568
        %v4517 = vpop.f32.mrf.mxu0
        %v4518 = vadd.f32 0.0, %v4517
        %v4519 = vpop.f32.mrf.mxu0
        %v4520 = vpop.f32.mrf.mxu0
        %v4521 = vadd.f32 0.0, %v4520
        %v4522 = vpop.f32.mrf.mxu0
        %4523 = vmatprep.mubr.bf16.mxu0 0
        %4524 = vmatmul.mubr.bf16.gmra.mxu0 %v1571
        %v4525 = vpop.f32.mrf.mxu0
        %v4526 = vadd.f32 0.0, %v4525
        %v4527 = vpop.f32.mrf.mxu0
        %v4528 = vpop.f32.mrf.mxu0
        %v4529 = vadd.f32 0.0, %v4528
        %v4530 = vpop.f32.mrf.mxu0
        %4531 = vmatprep.mubr.bf16.mxu0 0
        %4532 = vmatmul.mubr.bf16.gmra.mxu0 %v1925
        %v4533 = vpop.f32.mrf.mxu0
        %v4534 = vadd.f32 0.0, %v4533
        %v4535 = vpop.f32.mrf.mxu0
        %v4536 = vpop.f32.mrf.mxu0
        %v4537 = vadd.f32 0.0, %v4536
        %v4538 = vpop.f32.mrf.mxu0
        %4539 = vmatprep.mubr.bf16.mxu0 0
        %4540 = vmatmul.mubr.bf16.gmra.mxu0 %v2321
        %v4541 = vpop.f32.mrf.mxu0
        %v4542 = vadd.f32 0.0, %v4541
        %v4543 = vpop.f32.mrf.mxu0
        %v4544 = vpop.f32.mrf.mxu0
        %v4545 = vadd.f32 0.0, %v4544
        %v4546 = vpop.f32.mrf.mxu0
        %4547 = vmatprep.mubr.bf16.mxu0 0
        %4548 = vmatmul.mubr.bf16.gmra.mxu0 %v2324
        %v4549 = vpop.f32.mrf.mxu0
        %v4550 = vadd.f32 0.0, %v4549
        %v4551 = vpop.f32.mrf.mxu0
        %v4552 = vpop.f32.mrf.mxu0
        %v4553 = vadd.f32 0.0, %v4552
        %v4554 = vpop.f32.mrf.mxu0
        %4555 = vmatprep.mubr.bf16.mxu0 0
        %4556 = vmatmul.mubr.bf16.gmra.mxu0 %v2327
        %v4557 = vpop.f32.mrf.mxu0
        %v4558 = vadd.f32 0.0, %v4557
        %v4559 = vpop.f32.mrf.mxu0
        %v4560 = vpop.f32.mrf.mxu0
        %v4561 = vadd.f32 0.0, %v4560
        %v4562 = vpop.f32.mrf.mxu0
        %4563 = vmatprep.mubr.bf16.mxu0 0
        %4564 = vmatmul.mubr.bf16.gmra.mxu0 %v3119
        %v4565 = vpop.f32.mrf.mxu0
        %v4566 = vadd.f32 0.0, %v4565
        %v4567 = vpop.f32.mrf.mxu0
        %v4568 = vpop.f32.mrf.mxu0
        %v4569 = vadd.f32 0.0, %v4568
        %v4570 = vpop.f32.mrf.mxu0
        %4571 = vmatprep.mubr.bf16.mxu0 0
        %4572 = vmatmul.mubr.bf16.gmra.mxu0 %v3515
        %v4573 = vpop.f32.mrf.mxu0
        %v4574 = vadd.f32 0.0, %v4573
        %v4575 = vpop.f32.mrf.mxu0
        %v4576 = vpop.f32.mrf.mxu0
        %v4577 = vadd.f32 0.0, %v4576
        %v4578 = vpop.f32.mrf.mxu0
        %4579 = vmatprep.mubr.bf16.mxu0 0
        %4580 = vmatmul.mubr.bf16.gmra.mxu0 %v3518
        %v4581 = vpop.f32.mrf.mxu0
        %v4582 = vadd.f32 0.0, %v4581
        %v4583 = vpop.f32.mrf.mxu0
        %v4584 = vpop.f32.mrf.mxu0
        %v4585 = vadd.f32 0.0, %v4584
        %v4586 = vpop.f32.mrf.mxu0
        %4587 = vmatprep.mubr.bf16.mxu0 0
        %4588 = vmatmul.mubr.bf16.gmra.mxu0 %v3521
        %v4589 = vpop.f32.mrf.mxu0
        %v4590 = vadd.f32 0.0, %v4589
        %v4591 = vpop.f32.mrf.mxu0
        %v4592 = vpop.f32.mrf.mxu0
        %v4593 = vadd.f32 0.0, %v4592
        %v4594 = vpop.f32.mrf.mxu0
        %4595 = vmatprep.mubr.bf16.mxu0 0
        %4596 = vmatmul.mubr.bf16.gmra.mxu0 %v4313
        %v4597 = vpop.f32.mrf.mxu0
        %v4598 = vadd.f32 0.0, %v4597
        %v4599 = vpop.f32.mrf.mxu0
        %v4600 = vpop.f32.mrf.mxu0
        %v4601 = vadd.f32 0.0, %v4600
        %v4602 = vpop.f32.mrf.mxu0
        %4603 = vdwg.mxu0
        %v4604 = vadd.f32 %v4214, %v4350
        %v4605 = vadd.f32 %v4215, %v4353
        %v4606 = vadd.f32 %v4216, %v4358
        %v4607 = vadd.f32 %v4217, %v4361
        %v4608 = vadd.f32 %v4218, %v4366
        %v4609 = vadd.f32 %v4219, %v4369
        %v4610 = vadd.f32 %v4220, %v4374
        %v4611 = vadd.f32 %v4221, %v4377
        %v4612 = vadd.f32 %v4222, %v4382
        %v4613 = vadd.f32 %v4223, %v4385
        %v4614 = vadd.f32 %v4224, %v4390
        %v4615 = vadd.f32 %v4225, %v4393
        %v4616 = vadd.f32 %v4226, %v4398
        %v4617 = vadd.f32 %v4227, %v4401
        %v4618 = vadd.f32 %v4228, %v4406
        %v4619 = vadd.f32 %v4229, %v4409
        %v4620 = vadd.f32 %v4230, %v4414
        %v4621 = vadd.f32 %v4231, %v4417
        %v4622 = vadd.f32 %v4232, %v4422
        %v4623 = vadd.f32 %v4233, %v4425
        %v4624 = vadd.f32 %v4234, %v4430
        %v4625 = vadd.f32 %v4235, %v4433
        %v4626 = vadd.f32 %v4236, %v4438
        %v4627 = vadd.f32 %v4237, %v4441
        %v4628 = vadd.f32 %v4238, %v4446
        %v4629 = vadd.f32 %v4239, %v4449
        %v4630 = vadd.f32 %v4240, %v4454
        %v4631 = vadd.f32 %v4241, %v4457
        %v4632 = vadd.f32 %v4242, %v4462
        %v4633 = vadd.f32 %v4243, %v4465
        %v4634 = vadd.f32 %v4244, %v4470
        %v4635 = vadd.f32 %v4245, %v4473
        %v4636 = vadd.f32 %v4246, %v4478
        %v4637 = vadd.f32 %v4247, %v4481
        %v4638 = vadd.f32 %v4248, %v4486
        %v4639 = vadd.f32 %v4249, %v4489
        %v4640 = vadd.f32 %v4250, %v4494
        %v4641 = vadd.f32 %v4251, %v4497
        %v4642 = vadd.f32 %v4252, %v4502
        %v4643 = vadd.f32 %v4253, %v4505
        %v4644 = vadd.f32 %v4254, %v4510
        %v4645 = vadd.f32 %v4255, %v4513
        %v4646 = vadd.f32 %v4256, %v4518
        %v4647 = vadd.f32 %v4257, %v4521
        %v4648 = vadd.f32 %v4258, %v4526
        %v4649 = vadd.f32 %v4259, %v4529
        %v4650 = vadd.f32 %v4260, %v4534
        %v4651 = vadd.f32 %v4261, %v4537
        %v4652 = vadd.f32 %v4262, %v4542
        %v4653 = vadd.f32 %v4263, %v4545
        %v4654 = vadd.f32 %v4264, %v4550
        %v4655 = vadd.f32 %v4265, %v4553
        %v4656 = vadd.f32 %v4266, %v4558
        %v4657 = vadd.f32 %v4267, %v4561
        %v4658 = vadd.f32 %v4268, %v4566
        %v4659 = vadd.f32 %v4269, %v4569
        %v4660 = vadd.f32 %v4270, %v4574
        %v4661 = vadd.f32 %v4271, %v4577
        %v4662 = vadd.f32 %v4272, %v4582
        %v4663 = vadd.f32 %v4273, %v4585
        %v4664 = vadd.f32 %v4274, %v4590
        %v4665 = vadd.f32 %v4275, %v4593
        %v4666 = vadd.f32 %v4276, %v4598
        %v4667 = vadd.f32 %v4277, %v4601
        %v4668 = vlaneseq
        %v4669 = vshrl.u32 %v4668, 7
        %v4670 = vsub.s32 0, %v4669
        %v4671 = vrot.slane %v961, %v4670
        %v4672 = vmul.f32 %v4604, %v4671
        %v4673 = vmul.f32 %v4605, %v4671
        %v4674 = vmul.f32 %v4606, %v4671
        %v4675 = vmul.f32 %v4607, %v4671
        %v4676 = vmul.f32 %v4608, %v4671
        %v4677 = vmul.f32 %v4609, %v4671
        %v4678 = vmul.f32 %v4610, %v4671
        %v4679 = vmul.f32 %v4611, %v4671
        %v4680 = vmul.f32 %v4612, %v4671
        %v4681 = vmul.f32 %v4613, %v4671
        %v4682 = vmul.f32 %v4614, %v4671
        %v4683 = vmul.f32 %v4615, %v4671
        %v4684 = vmul.f32 %v4616, %v4671
        %v4685 = vmul.f32 %v4617, %v4671
        %v4686 = vmul.f32 %v4618, %v4671
        %v4687 = vmul.f32 %v4619, %v4671
        %v4688 = vmul.f32 %v4620, %v4671
        %v4689 = vmul.f32 %v4621, %v4671
        %v4690 = vmul.f32 %v4622, %v4671
        %v4691 = vmul.f32 %v4623, %v4671
        %v4692 = vmul.f32 %v4624, %v4671
        %v4693 = vmul.f32 %v4625, %v4671
        %v4694 = vmul.f32 %v4626, %v4671
        %v4695 = vmul.f32 %v4627, %v4671
        %v4696 = vmul.f32 %v4628, %v4671
        %v4697 = vmul.f32 %v4629, %v4671
        %v4698 = vmul.f32 %v4630, %v4671
        %v4699 = vmul.f32 %v4631, %v4671
        %v4700 = vmul.f32 %v4632, %v4671
        %v4701 = vmul.f32 %v4633, %v4671
        %v4702 = vmul.f32 %v4634, %v4671
        %v4703 = vmul.f32 %v4635, %v4671
        %v4704 = vmul.f32 %v4636, %v4671
        %v4705 = vmul.f32 %v4637, %v4671
        %v4706 = vmul.f32 %v4638, %v4671
        %v4707 = vmul.f32 %v4639, %v4671
        %v4708 = vmul.f32 %v4640, %v4671
        %v4709 = vmul.f32 %v4641, %v4671
        %v4710 = vmul.f32 %v4642, %v4671
        %v4711 = vmul.f32 %v4643, %v4671
        %v4712 = vmul.f32 %v4644, %v4671
        %v4713 = vmul.f32 %v4645, %v4671
        %v4714 = vmul.f32 %v4646, %v4671
        %v4715 = vmul.f32 %v4647, %v4671
        %v4716 = vmul.f32 %v4648, %v4671
        %v4717 = vmul.f32 %v4649, %v4671
        %v4718 = vmul.f32 %v4650, %v4671
        %v4719 = vmul.f32 %v4651, %v4671
        %v4720 = vmul.f32 %v4652, %v4671
        %v4721 = vmul.f32 %v4653, %v4671
        %v4722 = vmul.f32 %v4654, %v4671
        %v4723 = vmul.f32 %v4655, %v4671
        %v4724 = vmul.f32 %v4656, %v4671
        %v4725 = vmul.f32 %v4657, %v4671
        %v4726 = vmul.f32 %v4658, %v4671
        %v4727 = vmul.f32 %v4659, %v4671
        %v4728 = vmul.f32 %v4660, %v4671
        %v4729 = vmul.f32 %v4661, %v4671
        %v4730 = vmul.f32 %v4662, %v4671
        %v4731 = vmul.f32 %v4663, %v4671
        %v4732 = vmul.f32 %v4664, %v4671
        %v4733 = vmul.f32 %v4665, %v4671
        %v4734 = vmul.f32 %v4666, %v4671
        %v4735 = vmul.f32 %v4667, %v4671
        %v4736 = vlaneseq
        %v4737 = vshrl.u32 %v4736, 7
        %v4738 = vsub.s32 1, %v4737
        %v4739 = vrot.slane %v961, %v4738
        %v4740 = vadd.f32 %v4672, %v4739
        %v4741 = vadd.f32 %v4673, %v4739
        %v4742 = vadd.f32 %v4674, %v4739
        %v4743 = vadd.f32 %v4675, %v4739
        %v4744 = vadd.f32 %v4676, %v4739
        %v4745 = vadd.f32 %v4677, %v4739
        %v4746 = vadd.f32 %v4678, %v4739
        %v4747 = vadd.f32 %v4679, %v4739
        %v4748 = vadd.f32 %v4680, %v4739
        %v4749 = vadd.f32 %v4681, %v4739
        %v4750 = vadd.f32 %v4682, %v4739
        %v4751 = vadd.f32 %v4683, %v4739
        %v4752 = vadd.f32 %v4684, %v4739
        %v4753 = vadd.f32 %v4685, %v4739
        %v4754 = vadd.f32 %v4686, %v4739
        %v4755 = vadd.f32 %v4687, %v4739
        %v4756 = vadd.f32 %v4688, %v4739
        %v4757 = vadd.f32 %v4689, %v4739
        %v4758 = vadd.f32 %v4690, %v4739
        %v4759 = vadd.f32 %v4691, %v4739
        %v4760 = vadd.f32 %v4692, %v4739
        %v4761 = vadd.f32 %v4693, %v4739
        %v4762 = vadd.f32 %v4694, %v4739
        %v4763 = vadd.f32 %v4695, %v4739
        %v4764 = vadd.f32 %v4696, %v4739
        %v4765 = vadd.f32 %v4697, %v4739
        %v4766 = vadd.f32 %v4698, %v4739
        %v4767 = vadd.f32 %v4699, %v4739
        %v4768 = vadd.f32 %v4700, %v4739
        %v4769 = vadd.f32 %v4701, %v4739
        %v4770 = vadd.f32 %v4702, %v4739
        %v4771 = vadd.f32 %v4703, %v4739
        %v4772 = vadd.f32 %v4704, %v4739
        %v4773 = vadd.f32 %v4705, %v4739
        %v4774 = vadd.f32 %v4706, %v4739
        %v4775 = vadd.f32 %v4707, %v4739
        %v4776 = vadd.f32 %v4708, %v4739
        %v4777 = vadd.f32 %v4709, %v4739
        %v4778 = vadd.f32 %v4710, %v4739
        %v4779 = vadd.f32 %v4711, %v4739
        %v4780 = vadd.f32 %v4712, %v4739
        %v4781 = vadd.f32 %v4713, %v4739
        %v4782 = vadd.f32 %v4714, %v4739
        %v4783 = vadd.f32 %v4715, %v4739
        %v4784 = vadd.f32 %v4716, %v4739
        %v4785 = vadd.f32 %v4717, %v4739
        %v4786 = vadd.f32 %v4718, %v4739
        %v4787 = vadd.f32 %v4719, %v4739
        %v4788 = vadd.f32 %v4720, %v4739
        %v4789 = vadd.f32 %v4721, %v4739
        %v4790 = vadd.f32 %v4722, %v4739
        %v4791 = vadd.f32 %v4723, %v4739
        %v4792 = vadd.f32 %v4724, %v4739
        %v4793 = vadd.f32 %v4725, %v4739
        %v4794 = vadd.f32 %v4726, %v4739
        %v4795 = vadd.f32 %v4727, %v4739
        %v4796 = vadd.f32 %v4728, %v4739
        %v4797 = vadd.f32 %v4729, %v4739
        %v4798 = vadd.f32 %v4730, %v4739
        %v4799 = vadd.f32 %v4731, %v4739
        %v4800 = vadd.f32 %v4732, %v4739
        %v4801 = vadd.f32 %v4733, %v4739
        %v4802 = vadd.f32 %v4734, %v4739
        %v4803 = vadd.f32 %v4735, %v4739
        %v4804 = vmax.f32 %v4740, 0.0
        %v4805 = vmax.f32 %v4741, 0.0
        %v4806 = vmax.f32 %v4742, 0.0
        %v4807 = vmax.f32 %v4743, 0.0
        %v4808 = vmax.f32 %v4744, 0.0
        %v4809 = vmax.f32 %v4745, 0.0
        %v4810 = vmax.f32 %v4746, 0.0
        %v4811 = vmax.f32 %v4747, 0.0
        %v4812 = vmax.f32 %v4748, 0.0
        %v4813 = vmax.f32 %v4749, 0.0
        %v4814 = vmax.f32 %v4750, 0.0
        %v4815 = vmax.f32 %v4751, 0.0
        %v4816 = vmax.f32 %v4752, 0.0
        %v4817 = vmax.f32 %v4753, 0.0
        %v4818 = vmax.f32 %v4754, 0.0
        %v4819 = vmax.f32 %v4755, 0.0
        %v4820 = vmax.f32 %v4756, 0.0
        %v4821 = vmax.f32 %v4757, 0.0
        %v4822 = vmax.f32 %v4758, 0.0
        %v4823 = vmax.f32 %v4759, 0.0
        %v4824 = vmax.f32 %v4760, 0.0
        %v4825 = vmax.f32 %v4761, 0.0
        %v4826 = vmax.f32 %v4762, 0.0
        %v4827 = vmax.f32 %v4763, 0.0
        %v4828 = vmax.f32 %v4764, 0.0
        %v4829 = vmax.f32 %v4765, 0.0
        %v4830 = vmax.f32 %v4766, 0.0
        %v4831 = vmax.f32 %v4767, 0.0
        %v4832 = vmax.f32 %v4768, 0.0
        %v4833 = vmax.f32 %v4769, 0.0
        %v4834 = vmax.f32 %v4770, 0.0
        %v4835 = vmax.f32 %v4771, 0.0
        %v4836 = vmax.f32 %v4772, 0.0
        %v4837 = vmax.f32 %v4773, 0.0
        %v4838 = vmax.f32 %v4774, 0.0
        %v4839 = vmax.f32 %v4775, 0.0
        %v4840 = vmax.f32 %v4776, 0.0
        %v4841 = vmax.f32 %v4777, 0.0
        %v4842 = vmax.f32 %v4778, 0.0
        %v4843 = vmax.f32 %v4779, 0.0
        %v4844 = vmax.f32 %v4780, 0.0
        %v4845 = vmax.f32 %v4781, 0.0
        %v4846 = vmax.f32 %v4782, 0.0
        %v4847 = vmax.f32 %v4783, 0.0
        %v4848 = vmax.f32 %v4784, 0.0
        %v4849 = vmax.f32 %v4785, 0.0
        %v4850 = vmax.f32 %v4786, 0.0
        %v4851 = vmax.f32 %v4787, 0.0
        %v4852 = vmax.f32 %v4788, 0.0
        %v4853 = vmax.f32 %v4789, 0.0
        %v4854 = vmax.f32 %v4790, 0.0
        %v4855 = vmax.f32 %v4791, 0.0
        %v4856 = vmax.f32 %v4792, 0.0
        %v4857 = vmax.f32 %v4793, 0.0
        %v4858 = vmax.f32 %v4794, 0.0
        %v4859 = vmax.f32 %v4795, 0.0
        %v4860 = vmax.f32 %v4796, 0.0
        %v4861 = vmax.f32 %v4797, 0.0
        %v4862 = vmax.f32 %v4798, 0.0
        %v4863 = vmax.f32 %v4799, 0.0
        %v4864 = vmax.f32 %v4800, 0.0
        %v4865 = vmax.f32 %v4801, 0.0
        %v4866 = vmax.f32 %v4802, 0.0
        %v4867 = vmax.f32 %v4803, 0.0
        %4868 = vst [vmem:[#allocation2] sm:$0xff] 0.0
        %4869 = vst [vmem:[#allocation2 + $0x8] sm:$0xff] 0.0
        %4870 = vst [vmem:[#allocation2 + $0x10] sm:$0xff] 0.0
        %4871 = vst [vmem:[#allocation2 + $0x18] sm:$0xff] 0.0
        %4872 = vst [vmem:[#allocation2 + $0x20] sm:$0xff] 0.0
        %4873 = vst [vmem:[#allocation2 + $0x28] sm:$0xff] 0.0
        %4874 = vst [vmem:[#allocation2 + $0x30] sm:$0xff] 0.0
        %4875 = vst [vmem:[#allocation2 + $0x38] sm:$0xff] 0.0
        %4876 = vst [vmem:[#allocation2 + $0x40] sm:$0xff] 0.0
        %4877 = vst [vmem:[#allocation2 + $0x48] sm:$0xff] 0.0
        %s4878 = scalar_lea.vmem [#allocation2], 720
        %4879 = vst [vmem:[%s4878] sm:$0xff] 0.0
        %4880 = vst [vmem:[%s4878 + $0x8] sm:$0xff] 0.0
        %4881 = vst [vmem:[%s4878 + $0x10] sm:$0xff] 0.0
        %4882 = vst [vmem:[%s4878 + $0x18] sm:$0xff] 0.0
        %4883 = vst [vmem:[%s4878 + $0x20] sm:$0xff] 0.0
        %4884 = vst [vmem:[%s4878 + $0x28] sm:$0xff] 0.0
        %4885 = vst [vmem:[%s4878 + $0x30] sm:$0xff] 0.0
        %4886 = vst [vmem:[%s4878 + $0x38] sm:$0xff] 0.0
        %4887 = vst [vmem:[%s4878 + $0x40] sm:$0xff] 0.0
        %4888 = vst [vmem:[%s4878 + $0x48] sm:$0xff] 0.0
        %s4889 = scalar_lea.vmem [#allocation2], 80
        %4890 = vst [vmem:[%s4889] sm:$0xff] 0.0
        %4891 = vst [vmem:[%s4889 + $0x50] sm:$0xff] 0.0
        %4892 = vst [vmem:[%s4889 + $0xa0] sm:$0xff] 0.0
        %4893 = vst [vmem:[%s4889 + $0xf0] sm:$0xff] 0.0
        %4894 = vst [vmem:[%s4889 + $0x140] sm:$0xff] 0.0
        %4895 = vst [vmem:[%s4889 + $0x190] sm:$0xff] 0.0
        %4896 = vst [vmem:[%s4889 + $0x1e0] sm:$0xff] 0.0
        %4897 = vst [vmem:[%s4889 + $0x230] sm:$0xff] 0.0
        %s4898 = scalar_lea.vmem [#allocation2], 152
        %4899 = vst [vmem:[%s4898] sm:$0xff] 0.0
        %4900 = vst [vmem:[%s4898 + $0x50] sm:$0xff] 0.0
        %4901 = vst [vmem:[%s4898 + $0xa0] sm:$0xff] 0.0
        %4902 = vst [vmem:[%s4898 + $0xf0] sm:$0xff] 0.0
        %4903 = vst [vmem:[%s4898 + $0x140] sm:$0xff] 0.0
        %4904 = vst [vmem:[%s4898 + $0x190] sm:$0xff] 0.0
        %4905 = vst [vmem:[%s4898 + $0x1e0] sm:$0xff] 0.0
        %4906 = vst [vmem:[%s4898 + $0x230] sm:$0xff] 0.0
        %s4907 = scalar_lea.vmem [#allocation2], 88
        %4908 = vst [vmem:[%s4907] sm:$0xff] %v4804
        %4909 = vst [vmem:[%s4907 + $0x8] sm:$0xff] %v4805
        %4910 = vst [vmem:[%s4907 + $0x10] sm:$0xff] %v4806
        %4911 = vst [vmem:[%s4907 + $0x18] sm:$0xff] %v4807
        %4912 = vst [vmem:[%s4907 + $0x20] sm:$0xff] %v4808
        %4913 = vst [vmem:[%s4907 + $0x28] sm:$0xff] %v4809
        %4914 = vst [vmem:[%s4907 + $0x30] sm:$0xff] %v4810
        %4915 = vst [vmem:[%s4907 + $0x38] sm:$0xff] %v4811
        %4916 = vst [vmem:[%s4907 + $0x50] sm:$0xff] %v4812
        %4917 = vst [vmem:[%s4907 + $0x58] sm:$0xff] %v4813
        %4918 = vst [vmem:[%s4907 + $0x60] sm:$0xff] %v4814
        %4919 = vst [vmem:[%s4907 + $0x68] sm:$0xff] %v4815
        %4920 = vst [vmem:[%s4907 + $0x70] sm:$0xff] %v4816
        %4921 = vst [vmem:[%s4907 + $0x78] sm:$0xff] %v4817
        %4922 = vst [vmem:[%s4907 + $0x80] sm:$0xff] %v4818
        %4923 = vst [vmem:[%s4907 + $0x88] sm:$0xff] %v4819
        %4924 = vst [vmem:[%s4907 + $0xa0] sm:$0xff] %v4820
        %4925 = vst [vmem:[%s4907 + $0xa8] sm:$0xff] %v4821
        %4926 = vst [vmem:[%s4907 + $0xb0] sm:$0xff] %v4822
        %4927 = vst [vmem:[%s4907 + $0xb8] sm:$0xff] %v4823
        %4928 = vst [vmem:[%s4907 + $0xc0] sm:$0xff] %v4824
        %4929 = vst [vmem:[%s4907 + $0xc8] sm:$0xff] %v4825
        %4930 = vst [vmem:[%s4907 + $0xd0] sm:$0xff] %v4826
        %4931 = vst [vmem:[%s4907 + $0xd8] sm:$0xff] %v4827
        %4932 = vst [vmem:[%s4907 + $0xf0] sm:$0xff] %v4828
        %4933 = vst [vmem:[%s4907 + $0xf8] sm:$0xff] %v4829
        %4934 = vst [vmem:[%s4907 + $0x100] sm:$0xff] %v4830
        %4935 = vst [vmem:[%s4907 + $0x108] sm:$0xff] %v4831
        %4936 = vst [vmem:[%s4907 + $0x110] sm:$0xff] %v4832
        %4937 = vst [vmem:[%s4907 + $0x118] sm:$0xff] %v4833
        %4938 = vst [vmem:[%s4907 + $0x120] sm:$0xff] %v4834
        %4939 = vst [vmem:[%s4907 + $0x128] sm:$0xff] %v4835
        %4940 = vst [vmem:[%s4907 + $0x140] sm:$0xff] %v4836
        %4941 = vst [vmem:[%s4907 + $0x148] sm:$0xff] %v4837
        %4942 = vst [vmem:[%s4907 + $0x150] sm:$0xff] %v4838
        %4943 = vst [vmem:[%s4907 + $0x158] sm:$0xff] %v4839
        %4944 = vst [vmem:[%s4907 + $0x160] sm:$0xff] %v4840
        %4945 = vst [vmem:[%s4907 + $0x168] sm:$0xff] %v4841
        %4946 = vst [vmem:[%s4907 + $0x170] sm:$0xff] %v4842
        %4947 = vst [vmem:[%s4907 + $0x178] sm:$0xff] %v4843
        %4948 = vst [vmem:[%s4907 + $0x190] sm:$0xff] %v4844
        %4949 = vst [vmem:[%s4907 + $0x198] sm:$0xff] %v4845
        %4950 = vst [vmem:[%s4907 + $0x1a0] sm:$0xff] %v4846
        %4951 = vst [vmem:[%s4907 + $0x1a8] sm:$0xff] %v4847
        %4952 = vst [vmem:[%s4907 + $0x1b0] sm:$0xff] %v4848
        %4953 = vst [vmem:[%s4907 + $0x1b8] sm:$0xff] %v4849
        %4954 = vst [vmem:[%s4907 + $0x1c0] sm:$0xff] %v4850
        %4955 = vst [vmem:[%s4907 + $0x1c8] sm:$0xff] %v4851
        %4956 = vst [vmem:[%s4907 + $0x1e0] sm:$0xff] %v4852
        %4957 = vst [vmem:[%s4907 + $0x1e8] sm:$0xff] %v4853
        %4958 = vst [vmem:[%s4907 + $0x1f0] sm:$0xff] %v4854
        %4959 = vst [vmem:[%s4907 + $0x1f8] sm:$0xff] %v4855
        %4960 = vst [vmem:[%s4907 + $0x200] sm:$0xff] %v4856
        %4961 = vst [vmem:[%s4907 + $0x208] sm:$0xff] %v4857
        %4962 = vst [vmem:[%s4907 + $0x210] sm:$0xff] %v4858
        %4963 = vst [vmem:[%s4907 + $0x218] sm:$0xff] %v4859
        %4964 = vst [vmem:[%s4907 + $0x230] sm:$0xff] %v4860
        %4965 = vst [vmem:[%s4907 + $0x238] sm:$0xff] %v4861
        %4966 = vst [vmem:[%s4907 + $0x240] sm:$0xff] %v4862
        %4967 = vst [vmem:[%s4907 + $0x248] sm:$0xff] %v4863
        %4968 = vst [vmem:[%s4907 + $0x250] sm:$0xff] %v4864
        %4969 = vst [vmem:[%s4907 + $0x258] sm:$0xff] %v4865
        %4970 = vst [vmem:[%s4907 + $0x260] sm:$0xff] %v4866
        %4971 = vst [vmem:[%s4907 + $0x268] sm:$0xff] %v4867
        %v4972 = vld [vmem:[#allocation2] sm:$0xff]
        %v4973 = vld [vmem:[#allocation2 + $0x8] sm:$0xff]
        %v4974 = vld [vmem:[#allocation2 + $0x10] sm:$0xff]
        %v4975 = vld [vmem:[#allocation2 + $0x18] sm:$0xff]
        %v4976 = vld [vmem:[#allocation2 + $0x20] sm:$0xff]
        %v4977 = vld [vmem:[#allocation2 + $0x28] sm:$0xff]
        %v4978 = vld [vmem:[#allocation2 + $0x30] sm:$0xff]
        %v4979 = vld [vmem:[#allocation2 + $0x38] sm:$0xff]
        %v4980 = vld [vmem:[#allocation2 + $0x50] sm:$0xff]
        %v4981 = vld [vmem:[#allocation2 + $0x58] sm:$0xff]
        %v4982 = vld [vmem:[#allocation2 + $0x60] sm:$0xff]
        %v4983 = vld [vmem:[#allocation2 + $0x68] sm:$0xff]
        %v4984 = vld [vmem:[#allocation2 + $0x70] sm:$0xff]
        %v4985 = vld [vmem:[#allocation2 + $0x78] sm:$0xff]
        %v4986 = vld [vmem:[#allocation2 + $0x80] sm:$0xff]
        %v4987 = vld [vmem:[#allocation2 + $0x88] sm:$0xff]
        %v4988 = vld [vmem:[#allocation2 + $0xa0] sm:$0xff]
        %v4989 = vld [vmem:[#allocation2 + $0xa8] sm:$0xff]
        %v4990 = vld [vmem:[#allocation2 + $0xb0] sm:$0xff]
        %v4991 = vld [vmem:[#allocation2 + $0xb8] sm:$0xff]
        %v4992 = vld [vmem:[#allocation2 + $0xc0] sm:$0xff]
        %v4993 = vld [vmem:[#allocation2 + $0xc8] sm:$0xff]
        %v4994 = vld [vmem:[#allocation2 + $0xd0] sm:$0xff]
        %v4995 = vld [vmem:[#allocation2 + $0xd8] sm:$0xff]
        %v4996 = vld [vmem:[#allocation2 + $0xf0] sm:$0xff]
        %v4997 = vld [vmem:[#allocation2 + $0xf8] sm:$0xff]
        %v4998 = vld [vmem:[#allocation2 + $0x100] sm:$0xff]
        %v4999 = vld [vmem:[#allocation2 + $0x108] sm:$0xff]
        %v5000 = vld [vmem:[#allocation2 + $0x110] sm:$0xff]
        %v5001 = vld [vmem:[#allocation2 + $0x118] sm:$0xff]
        %v5002 = vld [vmem:[#allocation2 + $0x120] sm:$0xff]
        %v5003 = vld [vmem:[#allocation2 + $0x128] sm:$0xff]
        %v5004 = vld [vmem:[#allocation2 + $0x140] sm:$0xff]
        %v5005 = vld [vmem:[#allocation2 + $0x148] sm:$0xff]
        %v5006 = vld [vmem:[#allocation2 + $0x150] sm:$0xff]
        %v5007 = vld [vmem:[#allocation2 + $0x158] sm:$0xff]
        %v5008 = vld [vmem:[#allocation2 + $0x160] sm:$0xff]
        %v5009 = vld [vmem:[#allocation2 + $0x168] sm:$0xff]
        %v5010 = vld [vmem:[#allocation2 + $0x170] sm:$0xff]
        %v5011 = vld [vmem:[#allocation2 + $0x178] sm:$0xff]
        %v5012 = vld [vmem:[#allocation2 + $0x190] sm:$0xff]
        %v5013 = vld [vmem:[#allocation2 + $0x198] sm:$0xff]
        %v5014 = vld [vmem:[#allocation2 + $0x1a0] sm:$0xff]
        %v5015 = vld [vmem:[#allocation2 + $0x1a8] sm:$0xff]
        %v5016 = vld [vmem:[#allocation2 + $0x1b0] sm:$0xff]
        %v5017 = vld [vmem:[#allocation2 + $0x1b8] sm:$0xff]
        %v5018 = vld [vmem:[#allocation2 + $0x1c0] sm:$0xff]
        %v5019 = vld [vmem:[#allocation2 + $0x1c8] sm:$0xff]
        %v5020 = vld [vmem:[#allocation2 + $0x1e0] sm:$0xff]
        %v5021 = vld [vmem:[#allocation2 + $0x1e8] sm:$0xff]
        %v5022 = vld [vmem:[#allocation2 + $0x1f0] sm:$0xff]
        %v5023 = vld [vmem:[#allocation2 + $0x1f8] sm:$0xff]
        %v5024 = vld [vmem:[#allocation2 + $0x200] sm:$0xff]
        %v5025 = vld [vmem:[#allocation2 + $0x208] sm:$0xff]
        %v5026 = vld [vmem:[#allocation2 + $0x210] sm:$0xff]
        %v5027 = vld [vmem:[#allocation2 + $0x218] sm:$0xff]
        %v5028 = vld [vmem:[#allocation2 + $0x230] sm:$0xff]
        %v5029 = vld [vmem:[#allocation2 + $0x238] sm:$0xff]
        %v5030 = vld [vmem:[#allocation2 + $0x240] sm:$0xff]
        %v5031 = vld [vmem:[#allocation2 + $0x248] sm:$0xff]
        %v5032 = vld [vmem:[#allocation2 + $0x250] sm:$0xff]
        %v5033 = vld [vmem:[#allocation2 + $0x258] sm:$0xff]
        %v5034 = vld [vmem:[#allocation2 + $0x260] sm:$0xff]
        %v5035 = vld [vmem:[#allocation2 + $0x268] sm:$0xff]
        %v5036 = vpack.c.bf16 %v4973, %v4972
        %v5037 = vpack.c.bf16 %v4975, %v4974
        %v5038 = vpack.c.bf16 %v4977, %v4976
        %v5039 = vpack.c.bf16 %v4979, %v4978
        %v5040 = vpack.c.bf16 %v4981, %v4980
        %v5041 = vpack.c.bf16 %v4983, %v4982
        %v5042 = vpack.c.bf16 %v4985, %v4984
        %v5043 = vpack.c.bf16 %v4987, %v4986
        %v5044 = vpack.c.bf16 %v4989, %v4988
        %v5045 = vpack.c.bf16 %v4991, %v4990
        %v5046 = vpack.c.bf16 %v4993, %v4992
        %v5047 = vpack.c.bf16 %v4995, %v4994
        %v5048 = vpack.c.bf16 %v4997, %v4996
        %v5049 = vpack.c.bf16 %v4999, %v4998
        %v5050 = vpack.c.bf16 %v5001, %v5000
        %v5051 = vpack.c.bf16 %v5003, %v5002
        %v5052 = vpack.c.bf16 %v5005, %v5004
        %v5053 = vpack.c.bf16 %v5007, %v5006
        %v5054 = vpack.c.bf16 %v5009, %v5008
        %v5055 = vpack.c.bf16 %v5011, %v5010
        %v5056 = vpack.c.bf16 %v5013, %v5012
        %v5057 = vpack.c.bf16 %v5015, %v5014
        %v5058 = vpack.c.bf16 %v5017, %v5016
        %v5059 = vpack.c.bf16 %v5019, %v5018
        %v5060 = vpack.c.bf16 %v5021, %v5020
        %v5061 = vpack.c.bf16 %v5023, %v5022
        %v5062 = vpack.c.bf16 %v5025, %v5024
        %v5063 = vpack.c.bf16 %v5027, %v5026
        %v5064 = vpack.c.bf16 %v5029, %v5028
        %v5065 = vpack.c.bf16 %v5031, %v5030
        %v5066 = vpack.c.bf16 %v5033, %v5032
        %v5067 = vpack.c.bf16 %v5035, %v5034
        %v5068 = vld [vmem:[#allocation8] sm:$0xf]
        %v5069 = vld [vmem:[#allocation8 + $0x4] sm:$0xf]
        %v5070 = vld [vmem:[#allocation8 + $0x8] sm:$0xf]
        %v5071 = vld [vmem:[#allocation8 + $0xc] sm:$0xf]
        %v5072 = vld [vmem:[#allocation8 + $0x10] sm:$0xf]
        %v5073 = vld [vmem:[#allocation8 + $0x14] sm:$0xf]
        %v5074 = vld [vmem:[#allocation8 + $0x18] sm:$0xf]
        %v5075 = vld [vmem:[#allocation8 + $0x1c] sm:$0xf]
        %v5076 = vld [vmem:[#allocation8 + $0x20] sm:$0xf]
        %v5077 = vld [vmem:[#allocation8 + $0x24] sm:$0xf]
        %v5078 = vld [vmem:[#allocation8 + $0x28] sm:$0xf]
        %v5079 = vld [vmem:[#allocation8 + $0x2c] sm:$0xf]
        %v5080 = vld [vmem:[#allocation8 + $0x30] sm:$0xf]
        %v5081 = vld [vmem:[#allocation8 + $0x34] sm:$0xf]
        %v5082 = vld [vmem:[#allocation8 + $0x38] sm:$0xf]
        %v5083 = vld [vmem:[#allocation8 + $0x3c] sm:$0xf]
        %s5084 = scalar_lea.vmem [#allocation2], 8
        %v5085 = vld [vmem:[%s5084] sm:$0xff]
        %v5086 = vld [vmem:[%s5084 + $0x8] sm:$0xff]
        %v5087 = vld [vmem:[%s5084 + $0x10] sm:$0xff]
        %v5088 = vld [vmem:[%s5084 + $0x18] sm:$0xff]
        %v5089 = vld [vmem:[%s5084 + $0x20] sm:$0xff]
        %v5090 = vld [vmem:[%s5084 + $0x28] sm:$0xff]
        %v5091 = vld [vmem:[%s5084 + $0x30] sm:$0xff]
        %v5092 = vld [vmem:[%s5084 + $0x38] sm:$0xff]
        %v5093 = vld [vmem:[%s5084 + $0x50] sm:$0xff]
        %v5094 = vld [vmem:[%s5084 + $0x58] sm:$0xff]
        %v5095 = vld [vmem:[%s5084 + $0x60] sm:$0xff]
        %v5096 = vld [vmem:[%s5084 + $0x68] sm:$0xff]
        %v5097 = vld [vmem:[%s5084 + $0x70] sm:$0xff]
        %v5098 = vld [vmem:[%s5084 + $0x78] sm:$0xff]
        %v5099 = vld [vmem:[%s5084 + $0x80] sm:$0xff]
        %v5100 = vld [vmem:[%s5084 + $0x88] sm:$0xff]
        %v5101 = vld [vmem:[%s5084 + $0xa0] sm:$0xff]
        %v5102 = vld [vmem:[%s5084 + $0xa8] sm:$0xff]
        %v5103 = vld [vmem:[%s5084 + $0xb0] sm:$0xff]
        %v5104 = vld [vmem:[%s5084 + $0xb8] sm:$0xff]
        %v5105 = vld [vmem:[%s5084 + $0xc0] sm:$0xff]
        %v5106 = vld [vmem:[%s5084 + $0xc8] sm:$0xff]
        %v5107 = vld [vmem:[%s5084 + $0xd0] sm:$0xff]
        %v5108 = vld [vmem:[%s5084 + $0xd8] sm:$0xff]
        %v5109 = vld [vmem:[%s5084 + $0xf0] sm:$0xff]
        %v5110 = vld [vmem:[%s5084 + $0xf8] sm:$0xff]
        %v5111 = vld [vmem:[%s5084 + $0x100] sm:$0xff]
        %v5112 = vld [vmem:[%s5084 + $0x108] sm:$0xff]
        %v5113 = vld [vmem:[%s5084 + $0x110] sm:$0xff]
        %v5114 = vld [vmem:[%s5084 + $0x118] sm:$0xff]
        %v5115 = vld [vmem:[%s5084 + $0x120] sm:$0xff]
        %v5116 = vld [vmem:[%s5084 + $0x128] sm:$0xff]
        %v5117 = vld [vmem:[%s5084 + $0x140] sm:$0xff]
        %v5118 = vld [vmem:[%s5084 + $0x148] sm:$0xff]
        %v5119 = vld [vmem:[%s5084 + $0x150] sm:$0xff]
        %v5120 = vld [vmem:[%s5084 + $0x158] sm:$0xff]
        %v5121 = vld [vmem:[%s5084 + $0x160] sm:$0xff]
        %v5122 = vld [vmem:[%s5084 + $0x168] sm:$0xff]
        %v5123 = vld [vmem:[%s5084 + $0x170] sm:$0xff]
        %v5124 = vld [vmem:[%s5084 + $0x178] sm:$0xff]
        %v5125 = vld [vmem:[%s5084 + $0x190] sm:$0xff]
        %v5126 = vld [vmem:[%s5084 + $0x198] sm:$0xff]
        %v5127 = vld [vmem:[%s5084 + $0x1a0] sm:$0xff]
        %v5128 = vld [vmem:[%s5084 + $0x1a8] sm:$0xff]
        %v5129 = vld [vmem:[%s5084 + $0x1b0] sm:$0xff]
        %v5130 = vld [vmem:[%s5084 + $0x1b8] sm:$0xff]
        %v5131 = vld [vmem:[%s5084 + $0x1c0] sm:$0xff]
        %v5132 = vld [vmem:[%s5084 + $0x1c8] sm:$0xff]
        %v5133 = vld [vmem:[%s5084 + $0x1e0] sm:$0xff]
        %v5134 = vld [vmem:[%s5084 + $0x1e8] sm:$0xff]
        %v5135 = vld [vmem:[%s5084 + $0x1f0] sm:$0xff]
        %v5136 = vld [vmem:[%s5084 + $0x1f8] sm:$0xff]
        %v5137 = vld [vmem:[%s5084 + $0x200] sm:$0xff]
        %v5138 = vld [vmem:[%s5084 + $0x208] sm:$0xff]
        %v5139 = vld [vmem:[%s5084 + $0x210] sm:$0xff]
        %v5140 = vld [vmem:[%s5084 + $0x218] sm:$0xff]
        %v5141 = vld [vmem:[%s5084 + $0x230] sm:$0xff]
        %v5142 = vld [vmem:[%s5084 + $0x238] sm:$0xff]
        %v5143 = vld [vmem:[%s5084 + $0x240] sm:$0xff]
        %v5144 = vld [vmem:[%s5084 + $0x248] sm:$0xff]
        %v5145 = vld [vmem:[%s5084 + $0x250] sm:$0xff]
        %v5146 = vld [vmem:[%s5084 + $0x258] sm:$0xff]
        %v5147 = vld [vmem:[%s5084 + $0x260] sm:$0xff]
        %v5148 = vld [vmem:[%s5084 + $0x268] sm:$0xff]
        %v5149 = vpack.c.bf16 %v5086, %v5085
        %v5150 = vpack.c.bf16 %v5088, %v5087
        %v5151 = vpack.c.bf16 %v5090, %v5089
        %v5152 = vpack.c.bf16 %v5092, %v5091
        %v5153 = vpack.c.bf16 %v5094, %v5093
        %v5154 = vpack.c.bf16 %v5096, %v5095
        %v5155 = vpack.c.bf16 %v5098, %v5097
        %v5156 = vpack.c.bf16 %v5100, %v5099
        %v5157 = vpack.c.bf16 %v5102, %v5101
        %v5158 = vpack.c.bf16 %v5104, %v5103
        %v5159 = vpack.c.bf16 %v5106, %v5105
        %v5160 = vpack.c.bf16 %v5108, %v5107
        %v5161 = vpack.c.bf16 %v5110, %v5109
        %v5162 = vpack.c.bf16 %v5112, %v5111
        %v5163 = vpack.c.bf16 %v5114, %v5113
        %v5164 = vpack.c.bf16 %v5116, %v5115
        %v5165 = vpack.c.bf16 %v5118, %v5117
        %v5166 = vpack.c.bf16 %v5120, %v5119
        %v5167 = vpack.c.bf16 %v5122, %v5121
        %v5168 = vpack.c.bf16 %v5124, %v5123
        %v5169 = vpack.c.bf16 %v5126, %v5125
        %v5170 = vpack.c.bf16 %v5128, %v5127
        %v5171 = vpack.c.bf16 %v5130, %v5129
        %v5172 = vpack.c.bf16 %v5132, %v5131
        %v5173 = vpack.c.bf16 %v5134, %v5133
        %v5174 = vpack.c.bf16 %v5136, %v5135
        %v5175 = vpack.c.bf16 %v5138, %v5137
        %v5176 = vpack.c.bf16 %v5140, %v5139
        %v5177 = vpack.c.bf16 %v5142, %v5141
        %v5178 = vpack.c.bf16 %v5144, %v5143
        %v5179 = vpack.c.bf16 %v5146, %v5145
        %v5180 = vpack.c.bf16 %v5148, %v5147
        %s5181 = scalar_lea.vmem [#allocation8], 64
        %v5182 = vld [vmem:[%s5181] sm:$0xf]
        %v5183 = vld [vmem:[%s5181 + $0x4] sm:$0xf]
        %v5184 = vld [vmem:[%s5181 + $0x8] sm:$0xf]
        %v5185 = vld [vmem:[%s5181 + $0xc] sm:$0xf]
        %v5186 = vld [vmem:[%s5181 + $0x10] sm:$0xf]
        %v5187 = vld [vmem:[%s5181 + $0x14] sm:$0xf]
        %v5188 = vld [vmem:[%s5181 + $0x18] sm:$0xf]
        %v5189 = vld [vmem:[%s5181 + $0x1c] sm:$0xf]
        %v5190 = vld [vmem:[%s5181 + $0x20] sm:$0xf]
        %v5191 = vld [vmem:[%s5181 + $0x24] sm:$0xf]
        %v5192 = vld [vmem:[%s5181 + $0x28] sm:$0xf]
        %v5193 = vld [vmem:[%s5181 + $0x2c] sm:$0xf]
        %v5194 = vld [vmem:[%s5181 + $0x30] sm:$0xf]
        %v5195 = vld [vmem:[%s5181 + $0x34] sm:$0xf]
        %v5196 = vld [vmem:[%s5181 + $0x38] sm:$0xf]
        %v5197 = vld [vmem:[%s5181 + $0x3c] sm:$0xf]
        %v5214 = vunpack.c.l.b16 %v5182
        %v5215 = vunpack.c.l.b16 %v5183
        %v5216 = vunpack.c.l.b16 %v5184
        %v5217 = vunpack.c.l.b16 %v5185
        %v5218 = vunpack.c.l.b16 %v5186
        %v5219 = vunpack.c.l.b16 %v5187
        %v5220 = vunpack.c.l.b16 %v5188
        %v5221 = vunpack.c.l.b16 %v5189
        %v5222 = vunpack.c.l.b16 %v5190
        %v5223 = vunpack.c.l.b16 %v5191
        %v5224 = vunpack.c.l.b16 %v5192
        %v5225 = vunpack.c.l.b16 %v5193
        %v5226 = vunpack.c.l.b16 %v5194
        %v5227 = vunpack.c.l.b16 %v5195
        %v5228 = vunpack.c.l.b16 %v5196
        %v5229 = vunpack.c.l.b16 %v5197
        %v5230 = vpack.c.b16 %v5215, %v5214
        %v5231 = vpack.c.b16 %v5217, %v5216
        %v5232 = vpack.c.b16 %v5219, %v5218
        %v5233 = vpack.c.b16 %v5221, %v5220
        %v5234 = vpack.c.b16 %v5223, %v5222
        %v5235 = vpack.c.b16 %v5225, %v5224
        %v5236 = vpack.c.b16 %v5227, %v5226
        %v5237 = vpack.c.b16 %v5229, %v5228
        %5246 = vmatprep.subr.bf16.mxu0 0
        %5247 = vmatpush1.bf16.msra.mxu0 %v5237
        %5248 = vmatprep.subr.bf16.mxu0 0
        %5249 = vmatpush1.bf16.msra.mxu0 %v5236
        %5250 = vmatprep.subr.bf16.mxu0 0
        %5251 = vmatpush1.bf16.msra.mxu0 %v5235
        %5252 = vmatprep.subr.bf16.mxu0 0
        %5253 = vmatpush1.bf16.msra.mxu0 %v5234
        %5254 = vmatprep.subr.bf16.mxu0 0
        %5255 = vmatpush1.bf16.msra.mxu0 %v5233
        %5256 = vmatprep.subr.bf16.mxu0 0
        %5257 = vmatpush1.bf16.msra.mxu0 %v5232
        %5258 = vmatprep.subr.bf16.mxu0 0
        %5259 = vmatpush1.bf16.msra.mxu0 %v5231
        %5260 = vmatprep.subr.bf16.mxu0 0
        %5261 = vmatpush1.bf16.msra.mxu0 %v5230
        %5262 = vmatprep.subr.bf16.mxu0 0
        %5263 = vmatpush2.bf16.msra.mxu0 0
        %5264 = vmatprep.subr.bf16.mxu0 0
        %5265 = vmatpush2.bf16.msra.mxu0 0
        %5266 = vmatprep.subr.bf16.mxu0 0
        %5267 = vmatpush2.bf16.msra.mxu0 0
        %5268 = vmatprep.subr.bf16.mxu0 0
        %5269 = vmatpush2.bf16.msra.mxu0 0
        %5270 = vmatprep.subr.bf16.mxu0 0
        %5271 = vmatpush2.bf16.msra.mxu0 0
        %5272 = vmatprep.subr.bf16.mxu0 0
        %5273 = vmatpush2.bf16.msra.mxu0 0
        %5274 = vmatprep.subr.bf16.mxu0 0
        %5275 = vmatpush2.bf16.msra.mxu0 0
        %5276 = vmatprep.subr.bf16.mxu0 0
        %5277 = vmatpush2.bf16.msra.mxu0 0
        %5278 = vmatprep.mubr.bf16.mxu0 0
        %5279 = vmatmul.mubr.bf16.gmra.mxu0 %v5149
        %v5280 = vpop.f32.mrf.mxu0
        %v5281 = vadd.f32 0.0, %v5280
        %v5282 = vpop.f32.mrf.mxu0
        %v5283 = vpop.f32.mrf.mxu0
        %v5284 = vadd.f32 0.0, %v5283
        %v5285 = vpop.f32.mrf.mxu0
        %5286 = vmatprep.mubr.bf16.mxu0 0
        %5287 = vmatmul.mubr.bf16.gmra.mxu0 %v5150
        %v5288 = vpop.f32.mrf.mxu0
        %v5289 = vadd.f32 0.0, %v5288
        %v5290 = vpop.f32.mrf.mxu0
        %v5291 = vpop.f32.mrf.mxu0
        %v5292 = vadd.f32 0.0, %v5291
        %v5293 = vpop.f32.mrf.mxu0
        %5294 = vmatprep.mubr.bf16.mxu0 0
        %5295 = vmatmul.mubr.bf16.gmra.mxu0 %v5151
        %v5296 = vpop.f32.mrf.mxu0
        %v5297 = vadd.f32 0.0, %v5296
        %v5298 = vpop.f32.mrf.mxu0
        %v5299 = vpop.f32.mrf.mxu0
        %v5300 = vadd.f32 0.0, %v5299
        %v5301 = vpop.f32.mrf.mxu0
        %5302 = vmatprep.mubr.bf16.mxu0 0
        %5303 = vmatmul.mubr.bf16.gmra.mxu0 %v5152
        %v5304 = vpop.f32.mrf.mxu0
        %v5305 = vadd.f32 0.0, %v5304
        %v5306 = vpop.f32.mrf.mxu0
        %v5307 = vpop.f32.mrf.mxu0
        %v5308 = vadd.f32 0.0, %v5307
        %v5309 = vpop.f32.mrf.mxu0
        %5310 = vmatprep.mubr.bf16.mxu0 0
        %5311 = vmatmul.mubr.bf16.gmra.mxu0 %v5153
        %v5312 = vpop.f32.mrf.mxu0
        %v5313 = vadd.f32 0.0, %v5312
        %v5314 = vpop.f32.mrf.mxu0
        %v5315 = vpop.f32.mrf.mxu0
        %v5316 = vadd.f32 0.0, %v5315
        %v5317 = vpop.f32.mrf.mxu0
        %5318 = vmatprep.mubr.bf16.mxu0 0
        %5319 = vmatmul.mubr.bf16.gmra.mxu0 %v5154
        %v5320 = vpop.f32.mrf.mxu0
        %v5321 = vadd.f32 0.0, %v5320
        %v5322 = vpop.f32.mrf.mxu0
        %v5323 = vpop.f32.mrf.mxu0
        %v5324 = vadd.f32 0.0, %v5323
        %v5325 = vpop.f32.mrf.mxu0
        %5326 = vmatprep.mubr.bf16.mxu0 0
        %5327 = vmatmul.mubr.bf16.gmra.mxu0 %v5155
        %v5328 = vpop.f32.mrf.mxu0
        %v5329 = vadd.f32 0.0, %v5328
        %v5330 = vpop.f32.mrf.mxu0
        %v5331 = vpop.f32.mrf.mxu0
        %v5332 = vadd.f32 0.0, %v5331
        %v5333 = vpop.f32.mrf.mxu0
        %5334 = vmatprep.mubr.bf16.mxu0 0
        %5335 = vmatmul.mubr.bf16.gmra.mxu0 %v5156
        %v5336 = vpop.f32.mrf.mxu0
        %v5337 = vadd.f32 0.0, %v5336
        %v5338 = vpop.f32.mrf.mxu0
        %v5339 = vpop.f32.mrf.mxu0
        %v5340 = vadd.f32 0.0, %v5339
        %v5341 = vpop.f32.mrf.mxu0
        %5342 = vmatprep.mubr.bf16.mxu0 0
        %5343 = vmatmul.mubr.bf16.gmra.mxu0 %v5157
        %v5344 = vpop.f32.mrf.mxu0
        %v5345 = vadd.f32 0.0, %v5344
        %v5346 = vpop.f32.mrf.mxu0
        %v5347 = vpop.f32.mrf.mxu0
        %v5348 = vadd.f32 0.0, %v5347
        %v5349 = vpop.f32.mrf.mxu0
        %5350 = vmatprep.mubr.bf16.mxu0 0
        %5351 = vmatmul.mubr.bf16.gmra.mxu0 %v5158
        %v5352 = vpop.f32.mrf.mxu0
        %v5353 = vadd.f32 0.0, %v5352
        %v5354 = vpop.f32.mrf.mxu0
        %v5355 = vpop.f32.mrf.mxu0
        %v5356 = vadd.f32 0.0, %v5355
        %v5357 = vpop.f32.mrf.mxu0
        %5358 = vmatprep.mubr.bf16.mxu0 0
        %5359 = vmatmul.mubr.bf16.gmra.mxu0 %v5159
        %v5360 = vpop.f32.mrf.mxu0
        %v5361 = vadd.f32 0.0, %v5360
        %v5362 = vpop.f32.mrf.mxu0
        %v5363 = vpop.f32.mrf.mxu0
        %v5364 = vadd.f32 0.0, %v5363
        %v5365 = vpop.f32.mrf.mxu0
        %5366 = vmatprep.mubr.bf16.mxu0 0
        %5367 = vmatmul.mubr.bf16.gmra.mxu0 %v5160
        %v5368 = vpop.f32.mrf.mxu0
        %v5369 = vadd.f32 0.0, %v5368
        %v5370 = vpop.f32.mrf.mxu0
        %v5371 = vpop.f32.mrf.mxu0
        %v5372 = vadd.f32 0.0, %v5371
        %v5373 = vpop.f32.mrf.mxu0
        %5374 = vmatprep.mubr.bf16.mxu0 0
        %5375 = vmatmul.mubr.bf16.gmra.mxu0 %v5161
        %v5376 = vpop.f32.mrf.mxu0
        %v5377 = vadd.f32 0.0, %v5376
        %v5378 = vpop.f32.mrf.mxu0
        %v5379 = vpop.f32.mrf.mxu0
        %v5380 = vadd.f32 0.0, %v5379
        %v5381 = vpop.f32.mrf.mxu0
        %5382 = vmatprep.mubr.bf16.mxu0 0
        %5383 = vmatmul.mubr.bf16.gmra.mxu0 %v5162
        %v5384 = vpop.f32.mrf.mxu0
        %v5385 = vadd.f32 0.0, %v5384
        %v5386 = vpop.f32.mrf.mxu0
        %v5387 = vpop.f32.mrf.mxu0
        %v5388 = vadd.f32 0.0, %v5387
        %v5389 = vpop.f32.mrf.mxu0
        %5390 = vmatprep.mubr.bf16.mxu0 0
        %5391 = vmatmul.mubr.bf16.gmra.mxu0 %v5163
        %v5392 = vpop.f32.mrf.mxu0
        %v5393 = vadd.f32 0.0, %v5392
        %v5394 = vpop.f32.mrf.mxu0
        %v5395 = vpop.f32.mrf.mxu0
        %v5396 = vadd.f32 0.0, %v5395
        %v5397 = vpop.f32.mrf.mxu0
        %5398 = vmatprep.mubr.bf16.mxu0 0
        %5399 = vmatmul.mubr.bf16.gmra.mxu0 %v5164
        %v5400 = vpop.f32.mrf.mxu0
        %v5401 = vadd.f32 0.0, %v5400
        %v5402 = vpop.f32.mrf.mxu0
        %v5403 = vpop.f32.mrf.mxu0
        %v5404 = vadd.f32 0.0, %v5403
        %v5405 = vpop.f32.mrf.mxu0
        %5406 = vmatprep.mubr.bf16.mxu0 0
        %5407 = vmatmul.mubr.bf16.gmra.mxu0 %v5165
        %v5408 = vpop.f32.mrf.mxu0
        %v5409 = vadd.f32 0.0, %v5408
        %v5410 = vpop.f32.mrf.mxu0
        %v5411 = vpop.f32.mrf.mxu0
        %v5412 = vadd.f32 0.0, %v5411
        %v5413 = vpop.f32.mrf.mxu0
        %5414 = vmatprep.mubr.bf16.mxu0 0
        %5415 = vmatmul.mubr.bf16.gmra.mxu0 %v5166
        %v5416 = vpop.f32.mrf.mxu0
        %v5417 = vadd.f32 0.0, %v5416
        %v5418 = vpop.f32.mrf.mxu0
        %v5419 = vpop.f32.mrf.mxu0
        %v5420 = vadd.f32 0.0, %v5419
        %v5421 = vpop.f32.mrf.mxu0
        %5422 = vmatprep.mubr.bf16.mxu0 0
        %5423 = vmatmul.mubr.bf16.gmra.mxu0 %v5167
        %v5424 = vpop.f32.mrf.mxu0
        %v5425 = vadd.f32 0.0, %v5424
        %v5426 = vpop.f32.mrf.mxu0
        %v5427 = vpop.f32.mrf.mxu0
        %v5428 = vadd.f32 0.0, %v5427
        %v5429 = vpop.f32.mrf.mxu0
        %5430 = vmatprep.mubr.bf16.mxu0 0
        %5431 = vmatmul.mubr.bf16.gmra.mxu0 %v5168
        %v5432 = vpop.f32.mrf.mxu0
        %v5433 = vadd.f32 0.0, %v5432
        %v5434 = vpop.f32.mrf.mxu0
        %v5435 = vpop.f32.mrf.mxu0
        %v5436 = vadd.f32 0.0, %v5435
        %v5437 = vpop.f32.mrf.mxu0
        %5438 = vmatprep.mubr.bf16.mxu0 0
        %5439 = vmatmul.mubr.bf16.gmra.mxu0 %v5169
        %v5440 = vpop.f32.mrf.mxu0
        %v5441 = vadd.f32 0.0, %v5440
        %v5442 = vpop.f32.mrf.mxu0
        %v5443 = vpop.f32.mrf.mxu0
        %v5444 = vadd.f32 0.0, %v5443
        %v5445 = vpop.f32.mrf.mxu0
        %5446 = vmatprep.mubr.bf16.mxu0 0
        %5447 = vmatmul.mubr.bf16.gmra.mxu0 %v5170
        %v5448 = vpop.f32.mrf.mxu0
        %v5449 = vadd.f32 0.0, %v5448
        %v5450 = vpop.f32.mrf.mxu0
        %v5451 = vpop.f32.mrf.mxu0
        %v5452 = vadd.f32 0.0, %v5451
        %v5453 = vpop.f32.mrf.mxu0
        %5454 = vmatprep.mubr.bf16.mxu0 0
        %5455 = vmatmul.mubr.bf16.gmra.mxu0 %v5171
        %v5456 = vpop.f32.mrf.mxu0
        %v5457 = vadd.f32 0.0, %v5456
        %v5458 = vpop.f32.mrf.mxu0
        %v5459 = vpop.f32.mrf.mxu0
        %v5460 = vadd.f32 0.0, %v5459
        %v5461 = vpop.f32.mrf.mxu0
        %5462 = vmatprep.mubr.bf16.mxu0 0
        %5463 = vmatmul.mubr.bf16.gmra.mxu0 %v5172
        %v5464 = vpop.f32.mrf.mxu0
        %v5465 = vadd.f32 0.0, %v5464
        %v5466 = vpop.f32.mrf.mxu0
        %v5467 = vpop.f32.mrf.mxu0
        %v5468 = vadd.f32 0.0, %v5467
        %v5469 = vpop.f32.mrf.mxu0
        %5470 = vmatprep.mubr.bf16.mxu0 0
        %5471 = vmatmul.mubr.bf16.gmra.mxu0 %v5173
        %v5472 = vpop.f32.mrf.mxu0
        %v5473 = vadd.f32 0.0, %v5472
        %v5474 = vpop.f32.mrf.mxu0
        %v5475 = vpop.f32.mrf.mxu0
        %v5476 = vadd.f32 0.0, %v5475
        %v5477 = vpop.f32.mrf.mxu0
        %5478 = vmatprep.mubr.bf16.mxu0 0
        %5479 = vmatmul.mubr.bf16.gmra.mxu0 %v5174
        %v5480 = vpop.f32.mrf.mxu0
        %v5481 = vadd.f32 0.0, %v5480
        %v5482 = vpop.f32.mrf.mxu0
        %v5483 = vpop.f32.mrf.mxu0
        %v5484 = vadd.f32 0.0, %v5483
        %v5485 = vpop.f32.mrf.mxu0
        %5486 = vmatprep.mubr.bf16.mxu0 0
        %5487 = vmatmul.mubr.bf16.gmra.mxu0 %v5175
        %v5488 = vpop.f32.mrf.mxu0
        %v5489 = vadd.f32 0.0, %v5488
        %v5490 = vpop.f32.mrf.mxu0
        %v5491 = vpop.f32.mrf.mxu0
        %v5492 = vadd.f32 0.0, %v5491
        %v5493 = vpop.f32.mrf.mxu0
        %5494 = vmatprep.mubr.bf16.mxu0 0
        %5495 = vmatmul.mubr.bf16.gmra.mxu0 %v5176
        %v5496 = vpop.f32.mrf.mxu0
        %v5497 = vadd.f32 0.0, %v5496
        %v5498 = vpop.f32.mrf.mxu0
        %v5499 = vpop.f32.mrf.mxu0
        %v5500 = vadd.f32 0.0, %v5499
        %v5501 = vpop.f32.mrf.mxu0
        %5502 = vmatprep.mubr.bf16.mxu0 0
        %5503 = vmatmul.mubr.bf16.gmra.mxu0 %v5177
        %v5504 = vpop.f32.mrf.mxu0
        %v5505 = vadd.f32 0.0, %v5504
        %v5506 = vpop.f32.mrf.mxu0
        %v5507 = vpop.f32.mrf.mxu0
        %v5508 = vadd.f32 0.0, %v5507
        %v5509 = vpop.f32.mrf.mxu0
        %5510 = vmatprep.mubr.bf16.mxu0 0
        %5511 = vmatmul.mubr.bf16.gmra.mxu0 %v5178
        %v5512 = vpop.f32.mrf.mxu0
        %v5513 = vadd.f32 0.0, %v5512
        %v5514 = vpop.f32.mrf.mxu0
        %v5515 = vpop.f32.mrf.mxu0
        %v5516 = vadd.f32 0.0, %v5515
        %v5517 = vpop.f32.mrf.mxu0
        %5518 = vmatprep.mubr.bf16.mxu0 0
        %5519 = vmatmul.mubr.bf16.gmra.mxu0 %v5179
        %v5520 = vpop.f32.mrf.mxu0
        %v5521 = vadd.f32 0.0, %v5520
        %v5522 = vpop.f32.mrf.mxu0
        %v5523 = vpop.f32.mrf.mxu0
        %v5524 = vadd.f32 0.0, %v5523
        %v5525 = vpop.f32.mrf.mxu0
        %5526 = vmatprep.mubr.bf16.mxu0 0
        %5527 = vmatmul.mubr.bf16.gmra.mxu0 %v5180
        %v5528 = vpop.f32.mrf.mxu0
        %v5529 = vadd.f32 0.0, %v5528
        %v5530 = vpop.f32.mrf.mxu0
        %v5531 = vpop.f32.mrf.mxu0
        %v5532 = vadd.f32 0.0, %v5531
        %v5533 = vpop.f32.mrf.mxu0
        %5534 = vdwg.mxu0
        %v5551 = vunpack.c.l.b16 %v5068
        %v5552 = vunpack.c.l.b16 %v5069
        %v5553 = vunpack.c.l.b16 %v5070
        %v5554 = vunpack.c.l.b16 %v5071
        %v5555 = vunpack.c.l.b16 %v5072
        %v5556 = vunpack.c.l.b16 %v5073
        %v5557 = vunpack.c.l.b16 %v5074
        %v5558 = vunpack.c.l.b16 %v5075
        %v5559 = vunpack.c.l.b16 %v5076
        %v5560 = vunpack.c.l.b16 %v5077
        %v5561 = vunpack.c.l.b16 %v5078
        %v5562 = vunpack.c.l.b16 %v5079
        %v5563 = vunpack.c.l.b16 %v5080
        %v5564 = vunpack.c.l.b16 %v5081
        %v5565 = vunpack.c.l.b16 %v5082
        %v5566 = vunpack.c.l.b16 %v5083
        %v5567 = vpack.c.b16 %v5552, %v5551
        %v5568 = vpack.c.b16 %v5554, %v5553
        %v5569 = vpack.c.b16 %v5556, %v5555
        %v5570 = vpack.c.b16 %v5558, %v5557
        %v5571 = vpack.c.b16 %v5560, %v5559
        %v5572 = vpack.c.b16 %v5562, %v5561
        %v5573 = vpack.c.b16 %v5564, %v5563
        %v5574 = vpack.c.b16 %v5566, %v5565
        %5583 = vmatprep.subr.bf16.mxu0 0
        %5584 = vmatpush1.bf16.msra.mxu0 %v5574
        %5585 = vmatprep.subr.bf16.mxu0 0
        %5586 = vmatpush1.bf16.msra.mxu0 %v5573
        %5587 = vmatprep.subr.bf16.mxu0 0
        %5588 = vmatpush1.bf16.msra.mxu0 %v5572
        %5589 = vmatprep.subr.bf16.mxu0 0
        %5590 = vmatpush1.bf16.msra.mxu0 %v5571
        %5591 = vmatprep.subr.bf16.mxu0 0
        %5592 = vmatpush1.bf16.msra.mxu0 %v5570
        %5593 = vmatprep.subr.bf16.mxu0 0
        %5594 = vmatpush1.bf16.msra.mxu0 %v5569
        %5595 = vmatprep.subr.bf16.mxu0 0
        %5596 = vmatpush1.bf16.msra.mxu0 %v5568
        %5597 = vmatprep.subr.bf16.mxu0 0
        %5598 = vmatpush1.bf16.msra.mxu0 %v5567
        %5599 = vmatprep.subr.bf16.mxu0 0
        %5600 = vmatpush2.bf16.msra.mxu0 0
        %5601 = vmatprep.subr.bf16.mxu0 0
        %5602 = vmatpush2.bf16.msra.mxu0 0
        %5603 = vmatprep.subr.bf16.mxu0 0
        %5604 = vmatpush2.bf16.msra.mxu0 0
        %5605 = vmatprep.subr.bf16.mxu0 0
        %5606 = vmatpush2.bf16.msra.mxu0 0
        %5607 = vmatprep.subr.bf16.mxu0 0
        %5608 = vmatpush2.bf16.msra.mxu0 0
        %5609 = vmatprep.subr.bf16.mxu0 0
        %5610 = vmatpush2.bf16.msra.mxu0 0
        %5611 = vmatprep.subr.bf16.mxu0 0
        %5612 = vmatpush2.bf16.msra.mxu0 0
        %5613 = vmatprep.subr.bf16.mxu0 0
        %5614 = vmatpush2.bf16.msra.mxu0 0
        %5615 = vmatprep.mubr.bf16.mxu0 0
        %5616 = vmatmul.mubr.bf16.gmra.mxu0 %v5036
        %v5617 = vpop.f32.mrf.mxu0
        %v5618 = vadd.f32 %v5281, %v5617
        %v5619 = vpop.f32.mrf.mxu0
        %v5620 = vpop.f32.mrf.mxu0
        %v5621 = vadd.f32 %v5284, %v5620
        %v5622 = vpop.f32.mrf.mxu0
        %5623 = vmatprep.mubr.bf16.mxu0 0
        %5624 = vmatmul.mubr.bf16.gmra.mxu0 %v5037
        %v5625 = vpop.f32.mrf.mxu0
        %v5626 = vadd.f32 %v5289, %v5625
        %v5627 = vpop.f32.mrf.mxu0
        %v5628 = vpop.f32.mrf.mxu0
        %v5629 = vadd.f32 %v5292, %v5628
        %v5630 = vpop.f32.mrf.mxu0
        %5631 = vmatprep.mubr.bf16.mxu0 0
        %5632 = vmatmul.mubr.bf16.gmra.mxu0 %v5038
        %v5633 = vpop.f32.mrf.mxu0
        %v5634 = vadd.f32 %v5297, %v5633
        %v5635 = vpop.f32.mrf.mxu0
        %v5636 = vpop.f32.mrf.mxu0
        %v5637 = vadd.f32 %v5300, %v5636
        %v5638 = vpop.f32.mrf.mxu0
        %5639 = vmatprep.mubr.bf16.mxu0 0
        %5640 = vmatmul.mubr.bf16.gmra.mxu0 %v5039
        %v5641 = vpop.f32.mrf.mxu0
        %v5642 = vadd.f32 %v5305, %v5641
        %v5643 = vpop.f32.mrf.mxu0
        %v5644 = vpop.f32.mrf.mxu0
        %v5645 = vadd.f32 %v5308, %v5644
        %v5646 = vpop.f32.mrf.mxu0
        %5647 = vmatprep.mubr.bf16.mxu0 0
        %5648 = vmatmul.mubr.bf16.gmra.mxu0 %v5040
        %v5649 = vpop.f32.mrf.mxu0
        %v5650 = vadd.f32 %v5313, %v5649
        %v5651 = vpop.f32.mrf.mxu0
        %v5652 = vpop.f32.mrf.mxu0
        %v5653 = vadd.f32 %v5316, %v5652
        %v5654 = vpop.f32.mrf.mxu0
        %5655 = vmatprep.mubr.bf16.mxu0 0
        %5656 = vmatmul.mubr.bf16.gmra.mxu0 %v5041
        %v5657 = vpop.f32.mrf.mxu0
        %v5658 = vadd.f32 %v5321, %v5657
        %v5659 = vpop.f32.mrf.mxu0
        %v5660 = vpop.f32.mrf.mxu0
        %v5661 = vadd.f32 %v5324, %v5660
        %v5662 = vpop.f32.mrf.mxu0
        %5663 = vmatprep.mubr.bf16.mxu0 0
        %5664 = vmatmul.mubr.bf16.gmra.mxu0 %v5042
        %v5665 = vpop.f32.mrf.mxu0
        %v5666 = vadd.f32 %v5329, %v5665
        %v5667 = vpop.f32.mrf.mxu0
        %v5668 = vpop.f32.mrf.mxu0
        %v5669 = vadd.f32 %v5332, %v5668
        %v5670 = vpop.f32.mrf.mxu0
        %5671 = vmatprep.mubr.bf16.mxu0 0
        %5672 = vmatmul.mubr.bf16.gmra.mxu0 %v5043
        %v5673 = vpop.f32.mrf.mxu0
        %v5674 = vadd.f32 %v5337, %v5673
        %v5675 = vpop.f32.mrf.mxu0
        %v5676 = vpop.f32.mrf.mxu0
        %v5677 = vadd.f32 %v5340, %v5676
        %v5678 = vpop.f32.mrf.mxu0
        %5679 = vmatprep.mubr.bf16.mxu0 0
        %5680 = vmatmul.mubr.bf16.gmra.mxu0 %v5044
        %v5681 = vpop.f32.mrf.mxu0
        %v5682 = vadd.f32 %v5345, %v5681
        %v5683 = vpop.f32.mrf.mxu0
        %v5684 = vpop.f32.mrf.mxu0
        %v5685 = vadd.f32 %v5348, %v5684
        %v5686 = vpop.f32.mrf.mxu0
        %5687 = vmatprep.mubr.bf16.mxu0 0
        %5688 = vmatmul.mubr.bf16.gmra.mxu0 %v5045
        %v5689 = vpop.f32.mrf.mxu0
        %v5690 = vadd.f32 %v5353, %v5689
        %v5691 = vpop.f32.mrf.mxu0
        %v5692 = vpop.f32.mrf.mxu0
        %v5693 = vadd.f32 %v5356, %v5692
        %v5694 = vpop.f32.mrf.mxu0
        %5695 = vmatprep.mubr.bf16.mxu0 0
        %5696 = vmatmul.mubr.bf16.gmra.mxu0 %v5046
        %v5697 = vpop.f32.mrf.mxu0
        %v5698 = vadd.f32 %v5361, %v5697
        %v5699 = vpop.f32.mrf.mxu0
        %v5700 = vpop.f32.mrf.mxu0
        %v5701 = vadd.f32 %v5364, %v5700
        %v5702 = vpop.f32.mrf.mxu0
        %5703 = vmatprep.mubr.bf16.mxu0 0
        %5704 = vmatmul.mubr.bf16.gmra.mxu0 %v5047
        %v5705 = vpop.f32.mrf.mxu0
        %v5706 = vadd.f32 %v5369, %v5705
        %v5707 = vpop.f32.mrf.mxu0
        %v5708 = vpop.f32.mrf.mxu0
        %v5709 = vadd.f32 %v5372, %v5708
        %v5710 = vpop.f32.mrf.mxu0
        %5711 = vmatprep.mubr.bf16.mxu0 0
        %5712 = vmatmul.mubr.bf16.gmra.mxu0 %v5048
        %v5713 = vpop.f32.mrf.mxu0
        %v5714 = vadd.f32 %v5377, %v5713
        %v5715 = vpop.f32.mrf.mxu0
        %v5716 = vpop.f32.mrf.mxu0
        %v5717 = vadd.f32 %v5380, %v5716
        %v5718 = vpop.f32.mrf.mxu0
        %5719 = vmatprep.mubr.bf16.mxu0 0
        %5720 = vmatmul.mubr.bf16.gmra.mxu0 %v5049
        %v5721 = vpop.f32.mrf.mxu0
        %v5722 = vadd.f32 %v5385, %v5721
        %v5723 = vpop.f32.mrf.mxu0
        %v5724 = vpop.f32.mrf.mxu0
        %v5725 = vadd.f32 %v5388, %v5724
        %v5726 = vpop.f32.mrf.mxu0
        %5727 = vmatprep.mubr.bf16.mxu0 0
        %5728 = vmatmul.mubr.bf16.gmra.mxu0 %v5050
        %v5729 = vpop.f32.mrf.mxu0
        %v5730 = vadd.f32 %v5393, %v5729
        %v5731 = vpop.f32.mrf.mxu0
        %v5732 = vpop.f32.mrf.mxu0
        %v5733 = vadd.f32 %v5396, %v5732
        %v5734 = vpop.f32.mrf.mxu0
        %5735 = vmatprep.mubr.bf16.mxu0 0
        %5736 = vmatmul.mubr.bf16.gmra.mxu0 %v5051
        %v5737 = vpop.f32.mrf.mxu0
        %v5738 = vadd.f32 %v5401, %v5737
        %v5739 = vpop.f32.mrf.mxu0
        %v5740 = vpop.f32.mrf.mxu0
        %v5741 = vadd.f32 %v5404, %v5740
        %v5742 = vpop.f32.mrf.mxu0
        %5743 = vmatprep.mubr.bf16.mxu0 0
        %5744 = vmatmul.mubr.bf16.gmra.mxu0 %v5052
        %v5745 = vpop.f32.mrf.mxu0
        %v5746 = vadd.f32 %v5409, %v5745
        %v5747 = vpop.f32.mrf.mxu0
        %v5748 = vpop.f32.mrf.mxu0
        %v5749 = vadd.f32 %v5412, %v5748
        %v5750 = vpop.f32.mrf.mxu0
        %5751 = vmatprep.mubr.bf16.mxu0 0
        %5752 = vmatmul.mubr.bf16.gmra.mxu0 %v5053
        %v5753 = vpop.f32.mrf.mxu0
        %v5754 = vadd.f32 %v5417, %v5753
        %v5755 = vpop.f32.mrf.mxu0
        %v5756 = vpop.f32.mrf.mxu0
        %v5757 = vadd.f32 %v5420, %v5756
        %v5758 = vpop.f32.mrf.mxu0
        %5759 = vmatprep.mubr.bf16.mxu0 0
        %5760 = vmatmul.mubr.bf16.gmra.mxu0 %v5054
        %v5761 = vpop.f32.mrf.mxu0
        %v5762 = vadd.f32 %v5425, %v5761
        %v5763 = vpop.f32.mrf.mxu0
        %v5764 = vpop.f32.mrf.mxu0
        %v5765 = vadd.f32 %v5428, %v5764
        %v5766 = vpop.f32.mrf.mxu0
        %5767 = vmatprep.mubr.bf16.mxu0 0
        %5768 = vmatmul.mubr.bf16.gmra.mxu0 %v5055
        %v5769 = vpop.f32.mrf.mxu0
        %v5770 = vadd.f32 %v5433, %v5769
        %v5771 = vpop.f32.mrf.mxu0
        %v5772 = vpop.f32.mrf.mxu0
        %v5773 = vadd.f32 %v5436, %v5772
        %v5774 = vpop.f32.mrf.mxu0
        %5775 = vmatprep.mubr.bf16.mxu0 0
        %5776 = vmatmul.mubr.bf16.gmra.mxu0 %v5056
        %v5777 = vpop.f32.mrf.mxu0
        %v5778 = vadd.f32 %v5441, %v5777
        %v5779 = vpop.f32.mrf.mxu0
        %v5780 = vpop.f32.mrf.mxu0
        %v5781 = vadd.f32 %v5444, %v5780
        %v5782 = vpop.f32.mrf.mxu0
        %5783 = vmatprep.mubr.bf16.mxu0 0
        %5784 = vmatmul.mubr.bf16.gmra.mxu0 %v5057
        %v5785 = vpop.f32.mrf.mxu0
        %v5786 = vadd.f32 %v5449, %v5785
        %v5787 = vpop.f32.mrf.mxu0
        %v5788 = vpop.f32.mrf.mxu0
        %v5789 = vadd.f32 %v5452, %v5788
        %v5790 = vpop.f32.mrf.mxu0
        %5791 = vmatprep.mubr.bf16.mxu0 0
        %5792 = vmatmul.mubr.bf16.gmra.mxu0 %v5058
        %v5793 = vpop.f32.mrf.mxu0
        %v5794 = vadd.f32 %v5457, %v5793
        %v5795 = vpop.f32.mrf.mxu0
        %v5796 = vpop.f32.mrf.mxu0
        %v5797 = vadd.f32 %v5460, %v5796
        %v5798 = vpop.f32.mrf.mxu0
        %5799 = vmatprep.mubr.bf16.mxu0 0
        %5800 = vmatmul.mubr.bf16.gmra.mxu0 %v5059
        %v5801 = vpop.f32.mrf.mxu0
        %v5802 = vadd.f32 %v5465, %v5801
        %v5803 = vpop.f32.mrf.mxu0
        %v5804 = vpop.f32.mrf.mxu0
        %v5805 = vadd.f32 %v5468, %v5804
        %v5806 = vpop.f32.mrf.mxu0
        %5807 = vmatprep.mubr.bf16.mxu0 0
        %5808 = vmatmul.mubr.bf16.gmra.mxu0 %v5060
        %v5809 = vpop.f32.mrf.mxu0
        %v5810 = vadd.f32 %v5473, %v5809
        %v5811 = vpop.f32.mrf.mxu0
        %v5812 = vpop.f32.mrf.mxu0
        %v5813 = vadd.f32 %v5476, %v5812
        %v5814 = vpop.f32.mrf.mxu0
        %5815 = vmatprep.mubr.bf16.mxu0 0
        %5816 = vmatmul.mubr.bf16.gmra.mxu0 %v5061
        %v5817 = vpop.f32.mrf.mxu0
        %v5818 = vadd.f32 %v5481, %v5817
        %v5819 = vpop.f32.mrf.mxu0
        %v5820 = vpop.f32.mrf.mxu0
        %v5821 = vadd.f32 %v5484, %v5820
        %v5822 = vpop.f32.mrf.mxu0
        %5823 = vmatprep.mubr.bf16.mxu0 0
        %5824 = vmatmul.mubr.bf16.gmra.mxu0 %v5062
        %v5825 = vpop.f32.mrf.mxu0
        %v5826 = vadd.f32 %v5489, %v5825
        %v5827 = vpop.f32.mrf.mxu0
        %v5828 = vpop.f32.mrf.mxu0
        %v5829 = vadd.f32 %v5492, %v5828
        %v5830 = vpop.f32.mrf.mxu0
        %5831 = vmatprep.mubr.bf16.mxu0 0
        %5832 = vmatmul.mubr.bf16.gmra.mxu0 %v5063
        %v5833 = vpop.f32.mrf.mxu0
        %v5834 = vadd.f32 %v5497, %v5833
        %v5835 = vpop.f32.mrf.mxu0
        %v5836 = vpop.f32.mrf.mxu0
        %v5837 = vadd.f32 %v5500, %v5836
        %v5838 = vpop.f32.mrf.mxu0
        %5839 = vmatprep.mubr.bf16.mxu0 0
        %5840 = vmatmul.mubr.bf16.gmra.mxu0 %v5064
        %v5841 = vpop.f32.mrf.mxu0
        %v5842 = vadd.f32 %v5505, %v5841
        %v5843 = vpop.f32.mrf.mxu0
        %v5844 = vpop.f32.mrf.mxu0
        %v5845 = vadd.f32 %v5508, %v5844
        %v5846 = vpop.f32.mrf.mxu0
        %5847 = vmatprep.mubr.bf16.mxu0 0
        %5848 = vmatmul.mubr.bf16.gmra.mxu0 %v5065
        %v5849 = vpop.f32.mrf.mxu0
        %v5850 = vadd.f32 %v5513, %v5849
        %v5851 = vpop.f32.mrf.mxu0
        %v5852 = vpop.f32.mrf.mxu0
        %v5853 = vadd.f32 %v5516, %v5852
        %v5854 = vpop.f32.mrf.mxu0
        %5855 = vmatprep.mubr.bf16.mxu0 0
        %5856 = vmatmul.mubr.bf16.gmra.mxu0 %v5066
        %v5857 = vpop.f32.mrf.mxu0
        %v5858 = vadd.f32 %v5521, %v5857
        %v5859 = vpop.f32.mrf.mxu0
        %v5860 = vpop.f32.mrf.mxu0
        %v5861 = vadd.f32 %v5524, %v5860
        %v5862 = vpop.f32.mrf.mxu0
        %5863 = vmatprep.mubr.bf16.mxu0 0
        %5864 = vmatmul.mubr.bf16.gmra.mxu0 %v5067
        %v5865 = vpop.f32.mrf.mxu0
        %v5866 = vadd.f32 %v5529, %v5865
        %v5867 = vpop.f32.mrf.mxu0
        %v5868 = vpop.f32.mrf.mxu0
        %v5869 = vadd.f32 %v5532, %v5868
        %v5870 = vpop.f32.mrf.mxu0
        %5871 = vdwg.mxu0
        %s5872 = scalar_lea.vmem [#allocation2], 16
        %v5873 = vld [vmem:[%s5872] sm:$0xff]
        %v5874 = vld [vmem:[%s5872 + $0x8] sm:$0xff]
        %v5875 = vld [vmem:[%s5872 + $0x10] sm:$0xff]
        %v5876 = vld [vmem:[%s5872 + $0x18] sm:$0xff]
        %v5877 = vld [vmem:[%s5872 + $0x20] sm:$0xff]
        %v5878 = vld [vmem:[%s5872 + $0x28] sm:$0xff]
        %v5879 = vld [vmem:[%s5872 + $0x30] sm:$0xff]
        %v5880 = vld [vmem:[%s5872 + $0x38] sm:$0xff]
        %v5881 = vld [vmem:[%s5872 + $0x50] sm:$0xff]
        %v5882 = vld [vmem:[%s5872 + $0x58] sm:$0xff]
        %v5883 = vld [vmem:[%s5872 + $0x60] sm:$0xff]
        %v5884 = vld [vmem:[%s5872 + $0x68] sm:$0xff]
        %v5885 = vld [vmem:[%s5872 + $0x70] sm:$0xff]
        %v5886 = vld [vmem:[%s5872 + $0x78] sm:$0xff]
        %v5887 = vld [vmem:[%s5872 + $0x80] sm:$0xff]
        %v5888 = vld [vmem:[%s5872 + $0x88] sm:$0xff]
        %v5889 = vld [vmem:[%s5872 + $0xa0] sm:$0xff]
        %v5890 = vld [vmem:[%s5872 + $0xa8] sm:$0xff]
        %v5891 = vld [vmem:[%s5872 + $0xb0] sm:$0xff]
        %v5892 = vld [vmem:[%s5872 + $0xb8] sm:$0xff]
        %v5893 = vld [vmem:[%s5872 + $0xc0] sm:$0xff]
        %v5894 = vld [vmem:[%s5872 + $0xc8] sm:$0xff]
        %v5895 = vld [vmem:[%s5872 + $0xd0] sm:$0xff]
        %v5896 = vld [vmem:[%s5872 + $0xd8] sm:$0xff]
        %v5897 = vld [vmem:[%s5872 + $0xf0] sm:$0xff]
        %v5898 = vld [vmem:[%s5872 + $0xf8] sm:$0xff]
        %v5899 = vld [vmem:[%s5872 + $0x100] sm:$0xff]
        %v5900 = vld [vmem:[%s5872 + $0x108] sm:$0xff]
        %v5901 = vld [vmem:[%s5872 + $0x110] sm:$0xff]
        %v5902 = vld [vmem:[%s5872 + $0x118] sm:$0xff]
        %v5903 = vld [vmem:[%s5872 + $0x120] sm:$0xff]
        %v5904 = vld [vmem:[%s5872 + $0x128] sm:$0xff]
        %v5905 = vld [vmem:[%s5872 + $0x140] sm:$0xff]
        %v5906 = vld [vmem:[%s5872 + $0x148] sm:$0xff]
        %v5907 = vld [vmem:[%s5872 + $0x150] sm:$0xff]
        %v5908 = vld [vmem:[%s5872 + $0x158] sm:$0xff]
        %v5909 = vld [vmem:[%s5872 + $0x160] sm:$0xff]
        %v5910 = vld [vmem:[%s5872 + $0x168] sm:$0xff]
        %v5911 = vld [vmem:[%s5872 + $0x170] sm:$0xff]
        %v5912 = vld [vmem:[%s5872 + $0x178] sm:$0xff]
        %v5913 = vld [vmem:[%s5872 + $0x190] sm:$0xff]
        %v5914 = vld [vmem:[%s5872 + $0x198] sm:$0xff]
        %v5915 = vld [vmem:[%s5872 + $0x1a0] sm:$0xff]
        %v5916 = vld [vmem:[%s5872 + $0x1a8] sm:$0xff]
        %v5917 = vld [vmem:[%s5872 + $0x1b0] sm:$0xff]
        %v5918 = vld [vmem:[%s5872 + $0x1b8] sm:$0xff]
        %v5919 = vld [vmem:[%s5872 + $0x1c0] sm:$0xff]
        %v5920 = vld [vmem:[%s5872 + $0x1c8] sm:$0xff]
        %v5921 = vld [vmem:[%s5872 + $0x1e0] sm:$0xff]
        %v5922 = vld [vmem:[%s5872 + $0x1e8] sm:$0xff]
        %v5923 = vld [vmem:[%s5872 + $0x1f0] sm:$0xff]
        %v5924 = vld [vmem:[%s5872 + $0x1f8] sm:$0xff]
        %v5925 = vld [vmem:[%s5872 + $0x200] sm:$0xff]
        %v5926 = vld [vmem:[%s5872 + $0x208] sm:$0xff]
        %v5927 = vld [vmem:[%s5872 + $0x210] sm:$0xff]
        %v5928 = vld [vmem:[%s5872 + $0x218] sm:$0xff]
        %v5929 = vld [vmem:[%s5872 + $0x230] sm:$0xff]
        %v5930 = vld [vmem:[%s5872 + $0x238] sm:$0xff]
        %v5931 = vld [vmem:[%s5872 + $0x240] sm:$0xff]
        %v5932 = vld [vmem:[%s5872 + $0x248] sm:$0xff]
        %v5933 = vld [vmem:[%s5872 + $0x250] sm:$0xff]
        %v5934 = vld [vmem:[%s5872 + $0x258] sm:$0xff]
        %v5935 = vld [vmem:[%s5872 + $0x260] sm:$0xff]
        %v5936 = vld [vmem:[%s5872 + $0x268] sm:$0xff]
        %v5937 = vpack.c.bf16 %v5874, %v5873
        %v5938 = vpack.c.bf16 %v5876, %v5875
        %v5939 = vpack.c.bf16 %v5878, %v5877
        %v5940 = vpack.c.bf16 %v5880, %v5879
        %v5941 = vpack.c.bf16 %v5882, %v5881
        %v5942 = vpack.c.bf16 %v5884, %v5883
        %v5943 = vpack.c.bf16 %v5886, %v5885
        %v5944 = vpack.c.bf16 %v5888, %v5887
        %v5945 = vpack.c.bf16 %v5890, %v5889
        %v5946 = vpack.c.bf16 %v5892, %v5891
        %v5947 = vpack.c.bf16 %v5894, %v5893
        %v5948 = vpack.c.bf16 %v5896, %v5895
        %v5949 = vpack.c.bf16 %v5898, %v5897
        %v5950 = vpack.c.bf16 %v5900, %v5899
        %v5951 = vpack.c.bf16 %v5902, %v5901
        %v5952 = vpack.c.bf16 %v5904, %v5903
        %v5953 = vpack.c.bf16 %v5906, %v5905
        %v5954 = vpack.c.bf16 %v5908, %v5907
        %v5955 = vpack.c.bf16 %v5910, %v5909
        %v5956 = vpack.c.bf16 %v5912, %v5911
        %v5957 = vpack.c.bf16 %v5914, %v5913
        %v5958 = vpack.c.bf16 %v5916, %v5915
        %v5959 = vpack.c.bf16 %v5918, %v5917
        %v5960 = vpack.c.bf16 %v5920, %v5919
        %v5961 = vpack.c.bf16 %v5922, %v5921
        %v5962 = vpack.c.bf16 %v5924, %v5923
        %v5963 = vpack.c.bf16 %v5926, %v5925
        %v5964 = vpack.c.bf16 %v5928, %v5927
        %v5965 = vpack.c.bf16 %v5930, %v5929
        %v5966 = vpack.c.bf16 %v5932, %v5931
        %v5967 = vpack.c.bf16 %v5934, %v5933
        %v5968 = vpack.c.bf16 %v5936, %v5935
        %s5969 = scalar_lea.vmem [#allocation8], 128
        %v5970 = vld [vmem:[%s5969] sm:$0xf]
        %v5971 = vld [vmem:[%s5969 + $0x4] sm:$0xf]
        %v5972 = vld [vmem:[%s5969 + $0x8] sm:$0xf]
        %v5973 = vld [vmem:[%s5969 + $0xc] sm:$0xf]
        %v5974 = vld [vmem:[%s5969 + $0x10] sm:$0xf]
        %v5975 = vld [vmem:[%s5969 + $0x14] sm:$0xf]
        %v5976 = vld [vmem:[%s5969 + $0x18] sm:$0xf]
        %v5977 = vld [vmem:[%s5969 + $0x1c] sm:$0xf]
        %v5978 = vld [vmem:[%s5969 + $0x20] sm:$0xf]
        %v5979 = vld [vmem:[%s5969 + $0x24] sm:$0xf]
        %v5980 = vld [vmem:[%s5969 + $0x28] sm:$0xf]
        %v5981 = vld [vmem:[%s5969 + $0x2c] sm:$0xf]
        %v5982 = vld [vmem:[%s5969 + $0x30] sm:$0xf]
        %v5983 = vld [vmem:[%s5969 + $0x34] sm:$0xf]
        %v5984 = vld [vmem:[%s5969 + $0x38] sm:$0xf]
        %v5985 = vld [vmem:[%s5969 + $0x3c] sm:$0xf]
        %v6002 = vunpack.c.l.b16 %v5970
        %v6003 = vunpack.c.l.b16 %v5971
        %v6004 = vunpack.c.l.b16 %v5972
        %v6005 = vunpack.c.l.b16 %v5973
        %v6006 = vunpack.c.l.b16 %v5974
        %v6007 = vunpack.c.l.b16 %v5975
        %v6008 = vunpack.c.l.b16 %v5976
        %v6009 = vunpack.c.l.b16 %v5977
        %v6010 = vunpack.c.l.b16 %v5978
        %v6011 = vunpack.c.l.b16 %v5979
        %v6012 = vunpack.c.l.b16 %v5980
        %v6013 = vunpack.c.l.b16 %v5981
        %v6014 = vunpack.c.l.b16 %v5982
        %v6015 = vunpack.c.l.b16 %v5983
        %v6016 = vunpack.c.l.b16 %v5984
        %v6017 = vunpack.c.l.b16 %v5985
        %v6018 = vpack.c.b16 %v6003, %v6002
        %v6019 = vpack.c.b16 %v6005, %v6004
        %v6020 = vpack.c.b16 %v6007, %v6006
        %v6021 = vpack.c.b16 %v6009, %v6008
        %v6022 = vpack.c.b16 %v6011, %v6010
        %v6023 = vpack.c.b16 %v6013, %v6012
        %v6024 = vpack.c.b16 %v6015, %v6014
        %v6025 = vpack.c.b16 %v6017, %v6016
        %6034 = vmatprep.subr.bf16.mxu0 0
        %6035 = vmatpush1.bf16.msra.mxu0 %v6025
        %6036 = vmatprep.subr.bf16.mxu0 0
        %6037 = vmatpush1.bf16.msra.mxu0 %v6024
        %6038 = vmatprep.subr.bf16.mxu0 0
        %6039 = vmatpush1.bf16.msra.mxu0 %v6023
        %6040 = vmatprep.subr.bf16.mxu0 0
        %6041 = vmatpush1.bf16.msra.mxu0 %v6022
        %6042 = vmatprep.subr.bf16.mxu0 0
        %6043 = vmatpush1.bf16.msra.mxu0 %v6021
        %6044 = vmatprep.subr.bf16.mxu0 0
        %6045 = vmatpush1.bf16.msra.mxu0 %v6020
        %6046 = vmatprep.subr.bf16.mxu0 0
        %6047 = vmatpush1.bf16.msra.mxu0 %v6019
        %6048 = vmatprep.subr.bf16.mxu0 0
        %6049 = vmatpush1.bf16.msra.mxu0 %v6018
        %6050 = vmatprep.subr.bf16.mxu0 0
        %6051 = vmatpush2.bf16.msra.mxu0 0
        %6052 = vmatprep.subr.bf16.mxu0 0
        %6053 = vmatpush2.bf16.msra.mxu0 0
        %6054 = vmatprep.subr.bf16.mxu0 0
        %6055 = vmatpush2.bf16.msra.mxu0 0
        %6056 = vmatprep.subr.bf16.mxu0 0
        %6057 = vmatpush2.bf16.msra.mxu0 0
        %6058 = vmatprep.subr.bf16.mxu0 0
        %6059 = vmatpush2.bf16.msra.mxu0 0
        %6060 = vmatprep.subr.bf16.mxu0 0
        %6061 = vmatpush2.bf16.msra.mxu0 0
        %6062 = vmatprep.subr.bf16.mxu0 0
        %6063 = vmatpush2.bf16.msra.mxu0 0
        %6064 = vmatprep.subr.bf16.mxu0 0
        %6065 = vmatpush2.bf16.msra.mxu0 0
        %6066 = vmatprep.mubr.bf16.mxu0 0
        %6067 = vmatmul.mubr.bf16.gmra.mxu0 %v5937
        %v6068 = vpop.f32.mrf.mxu0
        %v6069 = vadd.f32 0.0, %v6068
        %v6070 = vpop.f32.mrf.mxu0
        %v6071 = vpop.f32.mrf.mxu0
        %v6072 = vadd.f32 0.0, %v6071
        %v6073 = vpop.f32.mrf.mxu0
        %6074 = vmatprep.mubr.bf16.mxu0 0
        %6075 = vmatmul.mubr.bf16.gmra.mxu0 %v5938
        %v6076 = vpop.f32.mrf.mxu0
        %v6077 = vadd.f32 0.0, %v6076
        %v6078 = vpop.f32.mrf.mxu0
        %v6079 = vpop.f32.mrf.mxu0
        %v6080 = vadd.f32 0.0, %v6079
        %v6081 = vpop.f32.mrf.mxu0
        %6082 = vmatprep.mubr.bf16.mxu0 0
        %6083 = vmatmul.mubr.bf16.gmra.mxu0 %v5939
        %v6084 = vpop.f32.mrf.mxu0
        %v6085 = vadd.f32 0.0, %v6084
        %v6086 = vpop.f32.mrf.mxu0
        %v6087 = vpop.f32.mrf.mxu0
        %v6088 = vadd.f32 0.0, %v6087
        %v6089 = vpop.f32.mrf.mxu0
        %6090 = vmatprep.mubr.bf16.mxu0 0
        %6091 = vmatmul.mubr.bf16.gmra.mxu0 %v5940
        %v6092 = vpop.f32.mrf.mxu0
        %v6093 = vadd.f32 0.0, %v6092
        %v6094 = vpop.f32.mrf.mxu0
        %v6095 = vpop.f32.mrf.mxu0
        %v6096 = vadd.f32 0.0, %v6095
        %v6097 = vpop.f32.mrf.mxu0
        %6098 = vmatprep.mubr.bf16.mxu0 0
        %6099 = vmatmul.mubr.bf16.gmra.mxu0 %v5941
        %v6100 = vpop.f32.mrf.mxu0
        %v6101 = vadd.f32 0.0, %v6100
        %v6102 = vpop.f32.mrf.mxu0
        %v6103 = vpop.f32.mrf.mxu0
        %v6104 = vadd.f32 0.0, %v6103
        %v6105 = vpop.f32.mrf.mxu0
        %6106 = vmatprep.mubr.bf16.mxu0 0
        %6107 = vmatmul.mubr.bf16.gmra.mxu0 %v5942
        %v6108 = vpop.f32.mrf.mxu0
        %v6109 = vadd.f32 0.0, %v6108
        %v6110 = vpop.f32.mrf.mxu0
        %v6111 = vpop.f32.mrf.mxu0
        %v6112 = vadd.f32 0.0, %v6111
        %v6113 = vpop.f32.mrf.mxu0
        %6114 = vmatprep.mubr.bf16.mxu0 0
        %6115 = vmatmul.mubr.bf16.gmra.mxu0 %v5943
        %v6116 = vpop.f32.mrf.mxu0
        %v6117 = vadd.f32 0.0, %v6116
        %v6118 = vpop.f32.mrf.mxu0
        %v6119 = vpop.f32.mrf.mxu0
        %v6120 = vadd.f32 0.0, %v6119
        %v6121 = vpop.f32.mrf.mxu0
        %6122 = vmatprep.mubr.bf16.mxu0 0
        %6123 = vmatmul.mubr.bf16.gmra.mxu0 %v5944
        %v6124 = vpop.f32.mrf.mxu0
        %v6125 = vadd.f32 0.0, %v6124
        %v6126 = vpop.f32.mrf.mxu0
        %v6127 = vpop.f32.mrf.mxu0
        %v6128 = vadd.f32 0.0, %v6127
        %v6129 = vpop.f32.mrf.mxu0
        %6130 = vmatprep.mubr.bf16.mxu0 0
        %6131 = vmatmul.mubr.bf16.gmra.mxu0 %v5945
        %v6132 = vpop.f32.mrf.mxu0
        %v6133 = vadd.f32 0.0, %v6132
        %v6134 = vpop.f32.mrf.mxu0
        %v6135 = vpop.f32.mrf.mxu0
        %v6136 = vadd.f32 0.0, %v6135
        %v6137 = vpop.f32.mrf.mxu0
        %6138 = vmatprep.mubr.bf16.mxu0 0
        %6139 = vmatmul.mubr.bf16.gmra.mxu0 %v5946
        %v6140 = vpop.f32.mrf.mxu0
        %v6141 = vadd.f32 0.0, %v6140
        %v6142 = vpop.f32.mrf.mxu0
        %v6143 = vpop.f32.mrf.mxu0
        %v6144 = vadd.f32 0.0, %v6143
        %v6145 = vpop.f32.mrf.mxu0
        %6146 = vmatprep.mubr.bf16.mxu0 0
        %6147 = vmatmul.mubr.bf16.gmra.mxu0 %v5947
        %v6148 = vpop.f32.mrf.mxu0
        %v6149 = vadd.f32 0.0, %v6148
        %v6150 = vpop.f32.mrf.mxu0
        %v6151 = vpop.f32.mrf.mxu0
        %v6152 = vadd.f32 0.0, %v6151
        %v6153 = vpop.f32.mrf.mxu0
        %6154 = vmatprep.mubr.bf16.mxu0 0
        %6155 = vmatmul.mubr.bf16.gmra.mxu0 %v5948
        %v6156 = vpop.f32.mrf.mxu0
        %v6157 = vadd.f32 0.0, %v6156
        %v6158 = vpop.f32.mrf.mxu0
        %v6159 = vpop.f32.mrf.mxu0
        %v6160 = vadd.f32 0.0, %v6159
        %v6161 = vpop.f32.mrf.mxu0
        %6162 = vmatprep.mubr.bf16.mxu0 0
        %6163 = vmatmul.mubr.bf16.gmra.mxu0 %v5949
        %v6164 = vpop.f32.mrf.mxu0
        %v6165 = vadd.f32 0.0, %v6164
        %v6166 = vpop.f32.mrf.mxu0
        %v6167 = vpop.f32.mrf.mxu0
        %v6168 = vadd.f32 0.0, %v6167
        %v6169 = vpop.f32.mrf.mxu0
        %6170 = vmatprep.mubr.bf16.mxu0 0
        %6171 = vmatmul.mubr.bf16.gmra.mxu0 %v5950
        %v6172 = vpop.f32.mrf.mxu0
        %v6173 = vadd.f32 0.0, %v6172
        %v6174 = vpop.f32.mrf.mxu0
        %v6175 = vpop.f32.mrf.mxu0
        %v6176 = vadd.f32 0.0, %v6175
        %v6177 = vpop.f32.mrf.mxu0
        %6178 = vmatprep.mubr.bf16.mxu0 0
        %6179 = vmatmul.mubr.bf16.gmra.mxu0 %v5951
        %v6180 = vpop.f32.mrf.mxu0
        %v6181 = vadd.f32 0.0, %v6180
        %v6182 = vpop.f32.mrf.mxu0
        %v6183 = vpop.f32.mrf.mxu0
        %v6184 = vadd.f32 0.0, %v6183
        %v6185 = vpop.f32.mrf.mxu0
        %6186 = vmatprep.mubr.bf16.mxu0 0
        %6187 = vmatmul.mubr.bf16.gmra.mxu0 %v5952
        %v6188 = vpop.f32.mrf.mxu0
        %v6189 = vadd.f32 0.0, %v6188
        %v6190 = vpop.f32.mrf.mxu0
        %v6191 = vpop.f32.mrf.mxu0
        %v6192 = vadd.f32 0.0, %v6191
        %v6193 = vpop.f32.mrf.mxu0
        %6194 = vmatprep.mubr.bf16.mxu0 0
        %6195 = vmatmul.mubr.bf16.gmra.mxu0 %v5953
        %v6196 = vpop.f32.mrf.mxu0
        %v6197 = vadd.f32 0.0, %v6196
        %v6198 = vpop.f32.mrf.mxu0
        %v6199 = vpop.f32.mrf.mxu0
        %v6200 = vadd.f32 0.0, %v6199
        %v6201 = vpop.f32.mrf.mxu0
        %6202 = vmatprep.mubr.bf16.mxu0 0
        %6203 = vmatmul.mubr.bf16.gmra.mxu0 %v5954
        %v6204 = vpop.f32.mrf.mxu0
        %v6205 = vadd.f32 0.0, %v6204
        %v6206 = vpop.f32.mrf.mxu0
        %v6207 = vpop.f32.mrf.mxu0
        %v6208 = vadd.f32 0.0, %v6207
        %v6209 = vpop.f32.mrf.mxu0
        %6210 = vmatprep.mubr.bf16.mxu0 0
        %6211 = vmatmul.mubr.bf16.gmra.mxu0 %v5955
        %v6212 = vpop.f32.mrf.mxu0
        %v6213 = vadd.f32 0.0, %v6212
        %v6214 = vpop.f32.mrf.mxu0
        %v6215 = vpop.f32.mrf.mxu0
        %v6216 = vadd.f32 0.0, %v6215
        %v6217 = vpop.f32.mrf.mxu0
        %6218 = vmatprep.mubr.bf16.mxu0 0
        %6219 = vmatmul.mubr.bf16.gmra.mxu0 %v5956
        %v6220 = vpop.f32.mrf.mxu0
        %v6221 = vadd.f32 0.0, %v6220
        %v6222 = vpop.f32.mrf.mxu0
        %v6223 = vpop.f32.mrf.mxu0
        %v6224 = vadd.f32 0.0, %v6223
        %v6225 = vpop.f32.mrf.mxu0
        %6226 = vmatprep.mubr.bf16.mxu0 0
        %6227 = vmatmul.mubr.bf16.gmra.mxu0 %v5957
        %v6228 = vpop.f32.mrf.mxu0
        %v6229 = vadd.f32 0.0, %v6228
        %v6230 = vpop.f32.mrf.mxu0
        %v6231 = vpop.f32.mrf.mxu0
        %v6232 = vadd.f32 0.0, %v6231
        %v6233 = vpop.f32.mrf.mxu0
        %6234 = vmatprep.mubr.bf16.mxu0 0
        %6235 = vmatmul.mubr.bf16.gmra.mxu0 %v5958
        %v6236 = vpop.f32.mrf.mxu0
        %v6237 = vadd.f32 0.0, %v6236
        %v6238 = vpop.f32.mrf.mxu0
        %v6239 = vpop.f32.mrf.mxu0
        %v6240 = vadd.f32 0.0, %v6239
        %v6241 = vpop.f32.mrf.mxu0
        %6242 = vmatprep.mubr.bf16.mxu0 0
        %6243 = vmatmul.mubr.bf16.gmra.mxu0 %v5959
        %v6244 = vpop.f32.mrf.mxu0
        %v6245 = vadd.f32 0.0, %v6244
        %v6246 = vpop.f32.mrf.mxu0
        %v6247 = vpop.f32.mrf.mxu0
        %v6248 = vadd.f32 0.0, %v6247
        %v6249 = vpop.f32.mrf.mxu0
        %6250 = vmatprep.mubr.bf16.mxu0 0
        %6251 = vmatmul.mubr.bf16.gmra.mxu0 %v5960
        %v6252 = vpop.f32.mrf.mxu0
        %v6253 = vadd.f32 0.0, %v6252
        %v6254 = vpop.f32.mrf.mxu0
        %v6255 = vpop.f32.mrf.mxu0
        %v6256 = vadd.f32 0.0, %v6255
        %v6257 = vpop.f32.mrf.mxu0
        %6258 = vmatprep.mubr.bf16.mxu0 0
        %6259 = vmatmul.mubr.bf16.gmra.mxu0 %v5961
        %v6260 = vpop.f32.mrf.mxu0
        %v6261 = vadd.f32 0.0, %v6260
        %v6262 = vpop.f32.mrf.mxu0
        %v6263 = vpop.f32.mrf.mxu0
        %v6264 = vadd.f32 0.0, %v6263
        %v6265 = vpop.f32.mrf.mxu0
        %6266 = vmatprep.mubr.bf16.mxu0 0
        %6267 = vmatmul.mubr.bf16.gmra.mxu0 %v5962
        %v6268 = vpop.f32.mrf.mxu0
        %v6269 = vadd.f32 0.0, %v6268
        %v6270 = vpop.f32.mrf.mxu0
        %v6271 = vpop.f32.mrf.mxu0
        %v6272 = vadd.f32 0.0, %v6271
        %v6273 = vpop.f32.mrf.mxu0
        %6274 = vmatprep.mubr.bf16.mxu0 0
        %6275 = vmatmul.mubr.bf16.gmra.mxu0 %v5963
        %v6276 = vpop.f32.mrf.mxu0
        %v6277 = vadd.f32 0.0, %v6276
        %v6278 = vpop.f32.mrf.mxu0
        %v6279 = vpop.f32.mrf.mxu0
        %v6280 = vadd.f32 0.0, %v6279
        %v6281 = vpop.f32.mrf.mxu0
        %6282 = vmatprep.mubr.bf16.mxu0 0
        %6283 = vmatmul.mubr.bf16.gmra.mxu0 %v5964
        %v6284 = vpop.f32.mrf.mxu0
        %v6285 = vadd.f32 0.0, %v6284
        %v6286 = vpop.f32.mrf.mxu0
        %v6287 = vpop.f32.mrf.mxu0
        %v6288 = vadd.f32 0.0, %v6287
        %v6289 = vpop.f32.mrf.mxu0
        %6290 = vmatprep.mubr.bf16.mxu0 0
        %6291 = vmatmul.mubr.bf16.gmra.mxu0 %v5965
        %v6292 = vpop.f32.mrf.mxu0
        %v6293 = vadd.f32 0.0, %v6292
        %v6294 = vpop.f32.mrf.mxu0
        %v6295 = vpop.f32.mrf.mxu0
        %v6296 = vadd.f32 0.0, %v6295
        %v6297 = vpop.f32.mrf.mxu0
        %6298 = vmatprep.mubr.bf16.mxu0 0
        %6299 = vmatmul.mubr.bf16.gmra.mxu0 %v5966
        %v6300 = vpop.f32.mrf.mxu0
        %v6301 = vadd.f32 0.0, %v6300
        %v6302 = vpop.f32.mrf.mxu0
        %v6303 = vpop.f32.mrf.mxu0
        %v6304 = vadd.f32 0.0, %v6303
        %v6305 = vpop.f32.mrf.mxu0
        %6306 = vmatprep.mubr.bf16.mxu0 0
        %6307 = vmatmul.mubr.bf16.gmra.mxu0 %v5967
        %v6308 = vpop.f32.mrf.mxu0
        %v6309 = vadd.f32 0.0, %v6308
        %v6310 = vpop.f32.mrf.mxu0
        %v6311 = vpop.f32.mrf.mxu0
        %v6312 = vadd.f32 0.0, %v6311
        %v6313 = vpop.f32.mrf.mxu0
        %6314 = vmatprep.mubr.bf16.mxu0 0
        %6315 = vmatmul.mubr.bf16.gmra.mxu0 %v5968
        %v6316 = vpop.f32.mrf.mxu0
        %v6317 = vadd.f32 0.0, %v6316
        %v6318 = vpop.f32.mrf.mxu0
        %v6319 = vpop.f32.mrf.mxu0
        %v6320 = vadd.f32 0.0, %v6319
        %v6321 = vpop.f32.mrf.mxu0
        %6322 = vdwg.mxu0
        %v6323 = vadd.f32 %v5618, %v6069
        %v6324 = vadd.f32 %v5621, %v6072
        %v6325 = vadd.f32 %v5626, %v6077
        %v6326 = vadd.f32 %v5629, %v6080
        %v6327 = vadd.f32 %v5634, %v6085
        %v6328 = vadd.f32 %v5637, %v6088
        %v6329 = vadd.f32 %v5642, %v6093
        %v6330 = vadd.f32 %v5645, %v6096
        %v6331 = vadd.f32 %v5650, %v6101
        %v6332 = vadd.f32 %v5653, %v6104
        %v6333 = vadd.f32 %v5658, %v6109
        %v6334 = vadd.f32 %v5661, %v6112
        %v6335 = vadd.f32 %v5666, %v6117
        %v6336 = vadd.f32 %v5669, %v6120
        %v6337 = vadd.f32 %v5674, %v6125
        %v6338 = vadd.f32 %v5677, %v6128
        %v6339 = vadd.f32 %v5682, %v6133
        %v6340 = vadd.f32 %v5685, %v6136
        %v6341 = vadd.f32 %v5690, %v6141
        %v6342 = vadd.f32 %v5693, %v6144
        %v6343 = vadd.f32 %v5698, %v6149
        %v6344 = vadd.f32 %v5701, %v6152
        %v6345 = vadd.f32 %v5706, %v6157
        %v6346 = vadd.f32 %v5709, %v6160
        %v6347 = vadd.f32 %v5714, %v6165
        %v6348 = vadd.f32 %v5717, %v6168
        %v6349 = vadd.f32 %v5722, %v6173
        %v6350 = vadd.f32 %v5725, %v6176
        %v6351 = vadd.f32 %v5730, %v6181
        %v6352 = vadd.f32 %v5733, %v6184
        %v6353 = vadd.f32 %v5738, %v6189
        %v6354 = vadd.f32 %v5741, %v6192
        %v6355 = vadd.f32 %v5746, %v6197
        %v6356 = vadd.f32 %v5749, %v6200
        %v6357 = vadd.f32 %v5754, %v6205
        %v6358 = vadd.f32 %v5757, %v6208
        %v6359 = vadd.f32 %v5762, %v6213
        %v6360 = vadd.f32 %v5765, %v6216
        %v6361 = vadd.f32 %v5770, %v6221
        %v6362 = vadd.f32 %v5773, %v6224
        %v6363 = vadd.f32 %v5778, %v6229
        %v6364 = vadd.f32 %v5781, %v6232
        %v6365 = vadd.f32 %v5786, %v6237
        %v6366 = vadd.f32 %v5789, %v6240
        %v6367 = vadd.f32 %v5794, %v6245
        %v6368 = vadd.f32 %v5797, %v6248
        %v6369 = vadd.f32 %v5802, %v6253
        %v6370 = vadd.f32 %v5805, %v6256
        %v6371 = vadd.f32 %v5810, %v6261
        %v6372 = vadd.f32 %v5813, %v6264
        %v6373 = vadd.f32 %v5818, %v6269
        %v6374 = vadd.f32 %v5821, %v6272
        %v6375 = vadd.f32 %v5826, %v6277
        %v6376 = vadd.f32 %v5829, %v6280
        %v6377 = vadd.f32 %v5834, %v6285
        %v6378 = vadd.f32 %v5837, %v6288
        %v6379 = vadd.f32 %v5842, %v6293
        %v6380 = vadd.f32 %v5845, %v6296
        %v6381 = vadd.f32 %v5850, %v6301
        %v6382 = vadd.f32 %v5853, %v6304
        %v6383 = vadd.f32 %v5858, %v6309
        %v6384 = vadd.f32 %v5861, %v6312
        %v6385 = vadd.f32 %v5866, %v6317
        %v6386 = vadd.f32 %v5869, %v6320
        %v6387 = vld [vmem:[%s4889] sm:$0xff]
        %v6388 = vld [vmem:[%s4889 + $0x8] sm:$0xff]
        %v6389 = vld [vmem:[%s4889 + $0x10] sm:$0xff]
        %v6390 = vld [vmem:[%s4889 + $0x18] sm:$0xff]
        %v6391 = vld [vmem:[%s4889 + $0x20] sm:$0xff]
        %v6392 = vld [vmem:[%s4889 + $0x28] sm:$0xff]
        %v6393 = vld [vmem:[%s4889 + $0x30] sm:$0xff]
        %v6394 = vld [vmem:[%s4889 + $0x38] sm:$0xff]
        %v6395 = vld [vmem:[%s4889 + $0x50] sm:$0xff]
        %v6396 = vld [vmem:[%s4889 + $0x58] sm:$0xff]
        %v6397 = vld [vmem:[%s4889 + $0x60] sm:$0xff]
        %v6398 = vld [vmem:[%s4889 + $0x68] sm:$0xff]
        %v6399 = vld [vmem:[%s4889 + $0x70] sm:$0xff]
        %v6400 = vld [vmem:[%s4889 + $0x78] sm:$0xff]
        %v6401 = vld [vmem:[%s4889 + $0x80] sm:$0xff]
        %v6402 = vld [vmem:[%s4889 + $0x88] sm:$0xff]
        %v6403 = vld [vmem:[%s4889 + $0xa0] sm:$0xff]
        %v6404 = vld [vmem:[%s4889 + $0xa8] sm:$0xff]
        %v6405 = vld [vmem:[%s4889 + $0xb0] sm:$0xff]
        %v6406 = vld [vmem:[%s4889 + $0xb8] sm:$0xff]
        %v6407 = vld [vmem:[%s4889 + $0xc0] sm:$0xff]
        %v6408 = vld [vmem:[%s4889 + $0xc8] sm:$0xff]
        %v6409 = vld [vmem:[%s4889 + $0xd0] sm:$0xff]
        %v6410 = vld [vmem:[%s4889 + $0xd8] sm:$0xff]
        %v6411 = vld [vmem:[%s4889 + $0xf0] sm:$0xff]
        %v6412 = vld [vmem:[%s4889 + $0xf8] sm:$0xff]
        %v6413 = vld [vmem:[%s4889 + $0x100] sm:$0xff]
        %v6414 = vld [vmem:[%s4889 + $0x108] sm:$0xff]
        %v6415 = vld [vmem:[%s4889 + $0x110] sm:$0xff]
        %v6416 = vld [vmem:[%s4889 + $0x118] sm:$0xff]
        %v6417 = vld [vmem:[%s4889 + $0x120] sm:$0xff]
        %v6418 = vld [vmem:[%s4889 + $0x128] sm:$0xff]
        %v6419 = vld [vmem:[%s4889 + $0x140] sm:$0xff]
        %v6420 = vld [vmem:[%s4889 + $0x148] sm:$0xff]
        %v6421 = vld [vmem:[%s4889 + $0x150] sm:$0xff]
        %v6422 = vld [vmem:[%s4889 + $0x158] sm:$0xff]
        %v6423 = vld [vmem:[%s4889 + $0x160] sm:$0xff]
        %v6424 = vld [vmem:[%s4889 + $0x168] sm:$0xff]
        %v6425 = vld [vmem:[%s4889 + $0x170] sm:$0xff]
        %v6426 = vld [vmem:[%s4889 + $0x178] sm:$0xff]
        %v6427 = vld [vmem:[%s4889 + $0x190] sm:$0xff]
        %v6428 = vld [vmem:[%s4889 + $0x198] sm:$0xff]
        %v6429 = vld [vmem:[%s4889 + $0x1a0] sm:$0xff]
        %v6430 = vld [vmem:[%s4889 + $0x1a8] sm:$0xff]
        %v6431 = vld [vmem:[%s4889 + $0x1b0] sm:$0xff]
        %v6432 = vld [vmem:[%s4889 + $0x1b8] sm:$0xff]
        %v6433 = vld [vmem:[%s4889 + $0x1c0] sm:$0xff]
        %v6434 = vld [vmem:[%s4889 + $0x1c8] sm:$0xff]
        %v6435 = vld [vmem:[%s4889 + $0x1e0] sm:$0xff]
        %v6436 = vld [vmem:[%s4889 + $0x1e8] sm:$0xff]
        %v6437 = vld [vmem:[%s4889 + $0x1f0] sm:$0xff]
        %v6438 = vld [vmem:[%s4889 + $0x1f8] sm:$0xff]
        %v6439 = vld [vmem:[%s4889 + $0x200] sm:$0xff]
        %v6440 = vld [vmem:[%s4889 + $0x208] sm:$0xff]
        %v6441 = vld [vmem:[%s4889 + $0x210] sm:$0xff]
        %v6442 = vld [vmem:[%s4889 + $0x218] sm:$0xff]
        %v6443 = vld [vmem:[%s4889 + $0x230] sm:$0xff]
        %v6444 = vld [vmem:[%s4889 + $0x238] sm:$0xff]
        %v6445 = vld [vmem:[%s4889 + $0x240] sm:$0xff]
        %v6446 = vld [vmem:[%s4889 + $0x248] sm:$0xff]
        %v6447 = vld [vmem:[%s4889 + $0x250] sm:$0xff]
        %v6448 = vld [vmem:[%s4889 + $0x258] sm:$0xff]
        %v6449 = vld [vmem:[%s4889 + $0x260] sm:$0xff]
        %v6450 = vld [vmem:[%s4889 + $0x268] sm:$0xff]
        %v6451 = vpack.c.bf16 %v6388, %v6387
        %v6452 = vpack.c.bf16 %v6390, %v6389
        %v6453 = vpack.c.bf16 %v6392, %v6391
        %v6454 = vpack.c.bf16 %v6394, %v6393
        %v6455 = vpack.c.bf16 %v6396, %v6395
        %v6456 = vpack.c.bf16 %v6398, %v6397
        %v6457 = vpack.c.bf16 %v6400, %v6399
        %v6458 = vpack.c.bf16 %v6402, %v6401
        %v6459 = vpack.c.bf16 %v6404, %v6403
        %v6460 = vpack.c.bf16 %v6406, %v6405
        %v6461 = vpack.c.bf16 %v6408, %v6407
        %v6462 = vpack.c.bf16 %v6410, %v6409
        %v6463 = vpack.c.bf16 %v6412, %v6411
        %v6464 = vpack.c.bf16 %v6414, %v6413
        %v6465 = vpack.c.bf16 %v6416, %v6415
        %v6466 = vpack.c.bf16 %v6418, %v6417
        %v6467 = vpack.c.bf16 %v6420, %v6419
        %v6468 = vpack.c.bf16 %v6422, %v6421
        %v6469 = vpack.c.bf16 %v6424, %v6423
        %v6470 = vpack.c.bf16 %v6426, %v6425
        %v6471 = vpack.c.bf16 %v6428, %v6427
        %v6472 = vpack.c.bf16 %v6430, %v6429
        %v6473 = vpack.c.bf16 %v6432, %v6431
        %v6474 = vpack.c.bf16 %v6434, %v6433
        %v6475 = vpack.c.bf16 %v6436, %v6435
        %v6476 = vpack.c.bf16 %v6438, %v6437
        %v6477 = vpack.c.bf16 %v6440, %v6439
        %v6478 = vpack.c.bf16 %v6442, %v6441
        %v6479 = vpack.c.bf16 %v6444, %v6443
        %v6480 = vpack.c.bf16 %v6446, %v6445
        %v6481 = vpack.c.bf16 %v6448, %v6447
        %v6482 = vpack.c.bf16 %v6450, %v6449
        %s6483 = scalar_lea.vmem [#allocation8], 192
        %v6484 = vld [vmem:[%s6483] sm:$0xf]
        %v6485 = vld [vmem:[%s6483 + $0x4] sm:$0xf]
        %v6486 = vld [vmem:[%s6483 + $0x8] sm:$0xf]
        %v6487 = vld [vmem:[%s6483 + $0xc] sm:$0xf]
        %v6488 = vld [vmem:[%s6483 + $0x10] sm:$0xf]
        %v6489 = vld [vmem:[%s6483 + $0x14] sm:$0xf]
        %v6490 = vld [vmem:[%s6483 + $0x18] sm:$0xf]
        %v6491 = vld [vmem:[%s6483 + $0x1c] sm:$0xf]
        %v6492 = vld [vmem:[%s6483 + $0x20] sm:$0xf]
        %v6493 = vld [vmem:[%s6483 + $0x24] sm:$0xf]
        %v6494 = vld [vmem:[%s6483 + $0x28] sm:$0xf]
        %v6495 = vld [vmem:[%s6483 + $0x2c] sm:$0xf]
        %v6496 = vld [vmem:[%s6483 + $0x30] sm:$0xf]
        %v6497 = vld [vmem:[%s6483 + $0x34] sm:$0xf]
        %v6498 = vld [vmem:[%s6483 + $0x38] sm:$0xf]
        %v6499 = vld [vmem:[%s6483 + $0x3c] sm:$0xf]
        %v6516 = vunpack.c.l.b16 %v6484
        %v6517 = vunpack.c.l.b16 %v6485
        %v6518 = vunpack.c.l.b16 %v6486
        %v6519 = vunpack.c.l.b16 %v6487
        %v6520 = vunpack.c.l.b16 %v6488
        %v6521 = vunpack.c.l.b16 %v6489
        %v6522 = vunpack.c.l.b16 %v6490
        %v6523 = vunpack.c.l.b16 %v6491
        %v6524 = vunpack.c.l.b16 %v6492
        %v6525 = vunpack.c.l.b16 %v6493
        %v6526 = vunpack.c.l.b16 %v6494
        %v6527 = vunpack.c.l.b16 %v6495
        %v6528 = vunpack.c.l.b16 %v6496
        %v6529 = vunpack.c.l.b16 %v6497
        %v6530 = vunpack.c.l.b16 %v6498
        %v6531 = vunpack.c.l.b16 %v6499
        %v6532 = vpack.c.b16 %v6517, %v6516
        %v6533 = vpack.c.b16 %v6519, %v6518
        %v6534 = vpack.c.b16 %v6521, %v6520
        %v6535 = vpack.c.b16 %v6523, %v6522
        %v6536 = vpack.c.b16 %v6525, %v6524
        %v6537 = vpack.c.b16 %v6527, %v6526
        %v6538 = vpack.c.b16 %v6529, %v6528
        %v6539 = vpack.c.b16 %v6531, %v6530
        %6548 = vmatprep.subr.bf16.mxu0 0
        %6549 = vmatpush1.bf16.msra.mxu0 %v6539
        %6550 = vmatprep.subr.bf16.mxu0 0
        %6551 = vmatpush1.bf16.msra.mxu0 %v6538
        %6552 = vmatprep.subr.bf16.mxu0 0
        %6553 = vmatpush1.bf16.msra.mxu0 %v6537
        %6554 = vmatprep.subr.bf16.mxu0 0
        %6555 = vmatpush1.bf16.msra.mxu0 %v6536
        %6556 = vmatprep.subr.bf16.mxu0 0
        %6557 = vmatpush1.bf16.msra.mxu0 %v6535
        %6558 = vmatprep.subr.bf16.mxu0 0
        %6559 = vmatpush1.bf16.msra.mxu0 %v6534
        %6560 = vmatprep.subr.bf16.mxu0 0
        %6561 = vmatpush1.bf16.msra.mxu0 %v6533
        %6562 = vmatprep.subr.bf16.mxu0 0
        %6563 = vmatpush1.bf16.msra.mxu0 %v6532
        %6564 = vmatprep.subr.bf16.mxu0 0
        %6565 = vmatpush2.bf16.msra.mxu0 0
        %6566 = vmatprep.subr.bf16.mxu0 0
        %6567 = vmatpush2.bf16.msra.mxu0 0
        %6568 = vmatprep.subr.bf16.mxu0 0
        %6569 = vmatpush2.bf16.msra.mxu0 0
        %6570 = vmatprep.subr.bf16.mxu0 0
        %6571 = vmatpush2.bf16.msra.mxu0 0
        %6572 = vmatprep.subr.bf16.mxu0 0
        %6573 = vmatpush2.bf16.msra.mxu0 0
        %6574 = vmatprep.subr.bf16.mxu0 0
        %6575 = vmatpush2.bf16.msra.mxu0 0
        %6576 = vmatprep.subr.bf16.mxu0 0
        %6577 = vmatpush2.bf16.msra.mxu0 0
        %6578 = vmatprep.subr.bf16.mxu0 0
        %6579 = vmatpush2.bf16.msra.mxu0 0
        %6580 = vmatprep.mubr.bf16.mxu0 0
        %6581 = vmatmul.mubr.bf16.gmra.mxu0 %v6451
        %v6582 = vpop.f32.mrf.mxu0
        %v6583 = vadd.f32 0.0, %v6582
        %v6584 = vpop.f32.mrf.mxu0
        %v6585 = vpop.f32.mrf.mxu0
        %v6586 = vadd.f32 0.0, %v6585
        %v6587 = vpop.f32.mrf.mxu0
        %6588 = vmatprep.mubr.bf16.mxu0 0
        %6589 = vmatmul.mubr.bf16.gmra.mxu0 %v6452
        %v6590 = vpop.f32.mrf.mxu0
        %v6591 = vadd.f32 0.0, %v6590
        %v6592 = vpop.f32.mrf.mxu0
        %v6593 = vpop.f32.mrf.mxu0
        %v6594 = vadd.f32 0.0, %v6593
        %v6595 = vpop.f32.mrf.mxu0
        %6596 = vmatprep.mubr.bf16.mxu0 0
        %6597 = vmatmul.mubr.bf16.gmra.mxu0 %v6453
        %v6598 = vpop.f32.mrf.mxu0
        %v6599 = vadd.f32 0.0, %v6598
        %v6600 = vpop.f32.mrf.mxu0
        %v6601 = vpop.f32.mrf.mxu0
        %v6602 = vadd.f32 0.0, %v6601
        %v6603 = vpop.f32.mrf.mxu0
        %6604 = vmatprep.mubr.bf16.mxu0 0
        %6605 = vmatmul.mubr.bf16.gmra.mxu0 %v6454
        %v6606 = vpop.f32.mrf.mxu0
        %v6607 = vadd.f32 0.0, %v6606
        %v6608 = vpop.f32.mrf.mxu0
        %v6609 = vpop.f32.mrf.mxu0
        %v6610 = vadd.f32 0.0, %v6609
        %v6611 = vpop.f32.mrf.mxu0
        %6612 = vmatprep.mubr.bf16.mxu0 0
        %6613 = vmatmul.mubr.bf16.gmra.mxu0 %v6455
        %v6614 = vpop.f32.mrf.mxu0
        %v6615 = vadd.f32 0.0, %v6614
        %v6616 = vpop.f32.mrf.mxu0
        %v6617 = vpop.f32.mrf.mxu0
        %v6618 = vadd.f32 0.0, %v6617
        %v6619 = vpop.f32.mrf.mxu0
        %6620 = vmatprep.mubr.bf16.mxu0 0
        %6621 = vmatmul.mubr.bf16.gmra.mxu0 %v6456
        %v6622 = vpop.f32.mrf.mxu0
        %v6623 = vadd.f32 0.0, %v6622
        %v6624 = vpop.f32.mrf.mxu0
        %v6625 = vpop.f32.mrf.mxu0
        %v6626 = vadd.f32 0.0, %v6625
        %v6627 = vpop.f32.mrf.mxu0
        %6628 = vmatprep.mubr.bf16.mxu0 0
        %6629 = vmatmul.mubr.bf16.gmra.mxu0 %v6457
        %v6630 = vpop.f32.mrf.mxu0
        %v6631 = vadd.f32 0.0, %v6630
        %v6632 = vpop.f32.mrf.mxu0
        %v6633 = vpop.f32.mrf.mxu0
        %v6634 = vadd.f32 0.0, %v6633
        %v6635 = vpop.f32.mrf.mxu0
        %6636 = vmatprep.mubr.bf16.mxu0 0
        %6637 = vmatmul.mubr.bf16.gmra.mxu0 %v6458
        %v6638 = vpop.f32.mrf.mxu0
        %v6639 = vadd.f32 0.0, %v6638
        %v6640 = vpop.f32.mrf.mxu0
        %v6641 = vpop.f32.mrf.mxu0
        %v6642 = vadd.f32 0.0, %v6641
        %v6643 = vpop.f32.mrf.mxu0
        %6644 = vmatprep.mubr.bf16.mxu0 0
        %6645 = vmatmul.mubr.bf16.gmra.mxu0 %v6459
        %v6646 = vpop.f32.mrf.mxu0
        %v6647 = vadd.f32 0.0, %v6646
        %v6648 = vpop.f32.mrf.mxu0
        %v6649 = vpop.f32.mrf.mxu0
        %v6650 = vadd.f32 0.0, %v6649
        %v6651 = vpop.f32.mrf.mxu0
        %6652 = vmatprep.mubr.bf16.mxu0 0
        %6653 = vmatmul.mubr.bf16.gmra.mxu0 %v6460
        %v6654 = vpop.f32.mrf.mxu0
        %v6655 = vadd.f32 0.0, %v6654
        %v6656 = vpop.f32.mrf.mxu0
        %v6657 = vpop.f32.mrf.mxu0
        %v6658 = vadd.f32 0.0, %v6657
        %v6659 = vpop.f32.mrf.mxu0
        %6660 = vmatprep.mubr.bf16.mxu0 0
        %6661 = vmatmul.mubr.bf16.gmra.mxu0 %v6461
        %v6662 = vpop.f32.mrf.mxu0
        %v6663 = vadd.f32 0.0, %v6662
        %v6664 = vpop.f32.mrf.mxu0
        %v6665 = vpop.f32.mrf.mxu0
        %v6666 = vadd.f32 0.0, %v6665
        %v6667 = vpop.f32.mrf.mxu0
        %6668 = vmatprep.mubr.bf16.mxu0 0
        %6669 = vmatmul.mubr.bf16.gmra.mxu0 %v6462
        %v6670 = vpop.f32.mrf.mxu0
        %v6671 = vadd.f32 0.0, %v6670
        %v6672 = vpop.f32.mrf.mxu0
        %v6673 = vpop.f32.mrf.mxu0
        %v6674 = vadd.f32 0.0, %v6673
        %v6675 = vpop.f32.mrf.mxu0
        %6676 = vmatprep.mubr.bf16.mxu0 0
        %6677 = vmatmul.mubr.bf16.gmra.mxu0 %v6463
        %v6678 = vpop.f32.mrf.mxu0
        %v6679 = vadd.f32 0.0, %v6678
        %v6680 = vpop.f32.mrf.mxu0
        %v6681 = vpop.f32.mrf.mxu0
        %v6682 = vadd.f32 0.0, %v6681
        %v6683 = vpop.f32.mrf.mxu0
        %6684 = vmatprep.mubr.bf16.mxu0 0
        %6685 = vmatmul.mubr.bf16.gmra.mxu0 %v6464
        %v6686 = vpop.f32.mrf.mxu0
        %v6687 = vadd.f32 0.0, %v6686
        %v6688 = vpop.f32.mrf.mxu0
        %v6689 = vpop.f32.mrf.mxu0
        %v6690 = vadd.f32 0.0, %v6689
        %v6691 = vpop.f32.mrf.mxu0
        %6692 = vmatprep.mubr.bf16.mxu0 0
        %6693 = vmatmul.mubr.bf16.gmra.mxu0 %v6465
        %v6694 = vpop.f32.mrf.mxu0
        %v6695 = vadd.f32 0.0, %v6694
        %v6696 = vpop.f32.mrf.mxu0
        %v6697 = vpop.f32.mrf.mxu0
        %v6698 = vadd.f32 0.0, %v6697
        %v6699 = vpop.f32.mrf.mxu0
        %6700 = vmatprep.mubr.bf16.mxu0 0
        %6701 = vmatmul.mubr.bf16.gmra.mxu0 %v6466
        %v6702 = vpop.f32.mrf.mxu0
        %v6703 = vadd.f32 0.0, %v6702
        %v6704 = vpop.f32.mrf.mxu0
        %v6705 = vpop.f32.mrf.mxu0
        %v6706 = vadd.f32 0.0, %v6705
        %v6707 = vpop.f32.mrf.mxu0
        %6708 = vmatprep.mubr.bf16.mxu0 0
        %6709 = vmatmul.mubr.bf16.gmra.mxu0 %v6467
        %v6710 = vpop.f32.mrf.mxu0
        %v6711 = vadd.f32 0.0, %v6710
        %v6712 = vpop.f32.mrf.mxu0
        %v6713 = vpop.f32.mrf.mxu0
        %v6714 = vadd.f32 0.0, %v6713
        %v6715 = vpop.f32.mrf.mxu0
        %6716 = vmatprep.mubr.bf16.mxu0 0
        %6717 = vmatmul.mubr.bf16.gmra.mxu0 %v6468
        %v6718 = vpop.f32.mrf.mxu0
        %v6719 = vadd.f32 0.0, %v6718
        %v6720 = vpop.f32.mrf.mxu0
        %v6721 = vpop.f32.mrf.mxu0
        %v6722 = vadd.f32 0.0, %v6721
        %v6723 = vpop.f32.mrf.mxu0
        %6724 = vmatprep.mubr.bf16.mxu0 0
        %6725 = vmatmul.mubr.bf16.gmra.mxu0 %v6469
        %v6726 = vpop.f32.mrf.mxu0
        %v6727 = vadd.f32 0.0, %v6726
        %v6728 = vpop.f32.mrf.mxu0
        %v6729 = vpop.f32.mrf.mxu0
        %v6730 = vadd.f32 0.0, %v6729
        %v6731 = vpop.f32.mrf.mxu0
        %6732 = vmatprep.mubr.bf16.mxu0 0
        %6733 = vmatmul.mubr.bf16.gmra.mxu0 %v6470
        %v6734 = vpop.f32.mrf.mxu0
        %v6735 = vadd.f32 0.0, %v6734
        %v6736 = vpop.f32.mrf.mxu0
        %v6737 = vpop.f32.mrf.mxu0
        %v6738 = vadd.f32 0.0, %v6737
        %v6739 = vpop.f32.mrf.mxu0
        %6740 = vmatprep.mubr.bf16.mxu0 0
        %6741 = vmatmul.mubr.bf16.gmra.mxu0 %v6471
        %v6742 = vpop.f32.mrf.mxu0
        %v6743 = vadd.f32 0.0, %v6742
        %v6744 = vpop.f32.mrf.mxu0
        %v6745 = vpop.f32.mrf.mxu0
        %v6746 = vadd.f32 0.0, %v6745
        %v6747 = vpop.f32.mrf.mxu0
        %6748 = vmatprep.mubr.bf16.mxu0 0
        %6749 = vmatmul.mubr.bf16.gmra.mxu0 %v6472
        %v6750 = vpop.f32.mrf.mxu0
        %v6751 = vadd.f32 0.0, %v6750
        %v6752 = vpop.f32.mrf.mxu0
        %v6753 = vpop.f32.mrf.mxu0
        %v6754 = vadd.f32 0.0, %v6753
        %v6755 = vpop.f32.mrf.mxu0
        %6756 = vmatprep.mubr.bf16.mxu0 0
        %6757 = vmatmul.mubr.bf16.gmra.mxu0 %v6473
        %v6758 = vpop.f32.mrf.mxu0
        %v6759 = vadd.f32 0.0, %v6758
        %v6760 = vpop.f32.mrf.mxu0
        %v6761 = vpop.f32.mrf.mxu0
        %v6762 = vadd.f32 0.0, %v6761
        %v6763 = vpop.f32.mrf.mxu0
        %6764 = vmatprep.mubr.bf16.mxu0 0
        %6765 = vmatmul.mubr.bf16.gmra.mxu0 %v6474
        %v6766 = vpop.f32.mrf.mxu0
        %v6767 = vadd.f32 0.0, %v6766
        %v6768 = vpop.f32.mrf.mxu0
        %v6769 = vpop.f32.mrf.mxu0
        %v6770 = vadd.f32 0.0, %v6769
        %v6771 = vpop.f32.mrf.mxu0
        %6772 = vmatprep.mubr.bf16.mxu0 0
        %6773 = vmatmul.mubr.bf16.gmra.mxu0 %v6475
        %v6774 = vpop.f32.mrf.mxu0
        %v6775 = vadd.f32 0.0, %v6774
        %v6776 = vpop.f32.mrf.mxu0
        %v6777 = vpop.f32.mrf.mxu0
        %v6778 = vadd.f32 0.0, %v6777
        %v6779 = vpop.f32.mrf.mxu0
        %6780 = vmatprep.mubr.bf16.mxu0 0
        %6781 = vmatmul.mubr.bf16.gmra.mxu0 %v6476
        %v6782 = vpop.f32.mrf.mxu0
        %v6783 = vadd.f32 0.0, %v6782
        %v6784 = vpop.f32.mrf.mxu0
        %v6785 = vpop.f32.mrf.mxu0
        %v6786 = vadd.f32 0.0, %v6785
        %v6787 = vpop.f32.mrf.mxu0
        %6788 = vmatprep.mubr.bf16.mxu0 0
        %6789 = vmatmul.mubr.bf16.gmra.mxu0 %v6477
        %v6790 = vpop.f32.mrf.mxu0
        %v6791 = vadd.f32 0.0, %v6790
        %v6792 = vpop.f32.mrf.mxu0
        %v6793 = vpop.f32.mrf.mxu0
        %v6794 = vadd.f32 0.0, %v6793
        %v6795 = vpop.f32.mrf.mxu0
        %6796 = vmatprep.mubr.bf16.mxu0 0
        %6797 = vmatmul.mubr.bf16.gmra.mxu0 %v6478
        %v6798 = vpop.f32.mrf.mxu0
        %v6799 = vadd.f32 0.0, %v6798
        %v6800 = vpop.f32.mrf.mxu0
        %v6801 = vpop.f32.mrf.mxu0
        %v6802 = vadd.f32 0.0, %v6801
        %v6803 = vpop.f32.mrf.mxu0
        %6804 = vmatprep.mubr.bf16.mxu0 0
        %6805 = vmatmul.mubr.bf16.gmra.mxu0 %v6479
        %v6806 = vpop.f32.mrf.mxu0
        %v6807 = vadd.f32 0.0, %v6806
        %v6808 = vpop.f32.mrf.mxu0
        %v6809 = vpop.f32.mrf.mxu0
        %v6810 = vadd.f32 0.0, %v6809
        %v6811 = vpop.f32.mrf.mxu0
        %6812 = vmatprep.mubr.bf16.mxu0 0
        %6813 = vmatmul.mubr.bf16.gmra.mxu0 %v6480
        %v6814 = vpop.f32.mrf.mxu0
        %v6815 = vadd.f32 0.0, %v6814
        %v6816 = vpop.f32.mrf.mxu0
        %v6817 = vpop.f32.mrf.mxu0
        %v6818 = vadd.f32 0.0, %v6817
        %v6819 = vpop.f32.mrf.mxu0
        %6820 = vmatprep.mubr.bf16.mxu0 0
        %6821 = vmatmul.mubr.bf16.gmra.mxu0 %v6481
        %v6822 = vpop.f32.mrf.mxu0
        %v6823 = vadd.f32 0.0, %v6822
        %v6824 = vpop.f32.mrf.mxu0
        %v6825 = vpop.f32.mrf.mxu0
        %v6826 = vadd.f32 0.0, %v6825
        %v6827 = vpop.f32.mrf.mxu0
        %6828 = vmatprep.mubr.bf16.mxu0 0
        %6829 = vmatmul.mubr.bf16.gmra.mxu0 %v6482
        %v6830 = vpop.f32.mrf.mxu0
        %v6831 = vadd.f32 0.0, %v6830
        %v6832 = vpop.f32.mrf.mxu0
        %v6833 = vpop.f32.mrf.mxu0
        %v6834 = vadd.f32 0.0, %v6833
        %v6835 = vpop.f32.mrf.mxu0
        %6836 = vdwg.mxu0
        %v6837 = vadd.f32 %v6323, %v6583
        %v6838 = vadd.f32 %v6324, %v6586
        %v6839 = vadd.f32 %v6325, %v6591
        %v6840 = vadd.f32 %v6326, %v6594
        %v6841 = vadd.f32 %v6327, %v6599
        %v6842 = vadd.f32 %v6328, %v6602
        %v6843 = vadd.f32 %v6329, %v6607
        %v6844 = vadd.f32 %v6330, %v6610
        %v6845 = vadd.f32 %v6331, %v6615
        %v6846 = vadd.f32 %v6332, %v6618
        %v6847 = vadd.f32 %v6333, %v6623
        %v6848 = vadd.f32 %v6334, %v6626
        %v6849 = vadd.f32 %v6335, %v6631
        %v6850 = vadd.f32 %v6336, %v6634
        %v6851 = vadd.f32 %v6337, %v6639
        %v6852 = vadd.f32 %v6338, %v6642
        %v6853 = vadd.f32 %v6339, %v6647
        %v6854 = vadd.f32 %v6340, %v6650
        %v6855 = vadd.f32 %v6341, %v6655
        %v6856 = vadd.f32 %v6342, %v6658
        %v6857 = vadd.f32 %v6343, %v6663
        %v6858 = vadd.f32 %v6344, %v6666
        %v6859 = vadd.f32 %v6345, %v6671
        %v6860 = vadd.f32 %v6346, %v6674
        %v6861 = vadd.f32 %v6347, %v6679
        %v6862 = vadd.f32 %v6348, %v6682
        %v6863 = vadd.f32 %v6349, %v6687
        %v6864 = vadd.f32 %v6350, %v6690
        %v6865 = vadd.f32 %v6351, %v6695
        %v6866 = vadd.f32 %v6352, %v6698
        %v6867 = vadd.f32 %v6353, %v6703
        %v6868 = vadd.f32 %v6354, %v6706
        %v6869 = vadd.f32 %v6355, %v6711
        %v6870 = vadd.f32 %v6356, %v6714
        %v6871 = vadd.f32 %v6357, %v6719
        %v6872 = vadd.f32 %v6358, %v6722
        %v6873 = vadd.f32 %v6359, %v6727
        %v6874 = vadd.f32 %v6360, %v6730
        %v6875 = vadd.f32 %v6361, %v6735
        %v6876 = vadd.f32 %v6362, %v6738
        %v6877 = vadd.f32 %v6363, %v6743
        %v6878 = vadd.f32 %v6364, %v6746
        %v6879 = vadd.f32 %v6365, %v6751
        %v6880 = vadd.f32 %v6366, %v6754
        %v6881 = vadd.f32 %v6367, %v6759
        %v6882 = vadd.f32 %v6368, %v6762
        %v6883 = vadd.f32 %v6369, %v6767
        %v6884 = vadd.f32 %v6370, %v6770
        %v6885 = vadd.f32 %v6371, %v6775
        %v6886 = vadd.f32 %v6372, %v6778
        %v6887 = vadd.f32 %v6373, %v6783
        %v6888 = vadd.f32 %v6374, %v6786
        %v6889 = vadd.f32 %v6375, %v6791
        %v6890 = vadd.f32 %v6376, %v6794
        %v6891 = vadd.f32 %v6377, %v6799
        %v6892 = vadd.f32 %v6378, %v6802
        %v6893 = vadd.f32 %v6379, %v6807
        %v6894 = vadd.f32 %v6380, %v6810
        %v6895 = vadd.f32 %v6381, %v6815
        %v6896 = vadd.f32 %v6382, %v6818
        %v6897 = vadd.f32 %v6383, %v6823
        %v6898 = vadd.f32 %v6384, %v6826
        %v6899 = vadd.f32 %v6385, %v6831
        %v6900 = vadd.f32 %v6386, %v6834
        %v6901 = vld [vmem:[%s4907] sm:$0xff]
        %v6902 = vld [vmem:[%s4907 + $0x8] sm:$0xff]
        %v6903 = vld [vmem:[%s4907 + $0x10] sm:$0xff]
        %v6904 = vld [vmem:[%s4907 + $0x18] sm:$0xff]
        %v6905 = vld [vmem:[%s4907 + $0x20] sm:$0xff]
        %v6906 = vld [vmem:[%s4907 + $0x28] sm:$0xff]
        %v6907 = vld [vmem:[%s4907 + $0x30] sm:$0xff]
        %v6908 = vld [vmem:[%s4907 + $0x38] sm:$0xff]
        %v6909 = vld [vmem:[%s4907 + $0x50] sm:$0xff]
        %v6910 = vld [vmem:[%s4907 + $0x58] sm:$0xff]
        %v6911 = vld [vmem:[%s4907 + $0x60] sm:$0xff]
        %v6912 = vld [vmem:[%s4907 + $0x68] sm:$0xff]
        %v6913 = vld [vmem:[%s4907 + $0x70] sm:$0xff]
        %v6914 = vld [vmem:[%s4907 + $0x78] sm:$0xff]
        %v6915 = vld [vmem:[%s4907 + $0x80] sm:$0xff]
        %v6916 = vld [vmem:[%s4907 + $0x88] sm:$0xff]
        %v6917 = vld [vmem:[%s4907 + $0xa0] sm:$0xff]
        %v6918 = vld [vmem:[%s4907 + $0xa8] sm:$0xff]
        %v6919 = vld [vmem:[%s4907 + $0xb0] sm:$0xff]
        %v6920 = vld [vmem:[%s4907 + $0xb8] sm:$0xff]
        %v6921 = vld [vmem:[%s4907 + $0xc0] sm:$0xff]
        %v6922 = vld [vmem:[%s4907 + $0xc8] sm:$0xff]
        %v6923 = vld [vmem:[%s4907 + $0xd0] sm:$0xff]
        %v6924 = vld [vmem:[%s4907 + $0xd8] sm:$0xff]
        %v6925 = vld [vmem:[%s4907 + $0xf0] sm:$0xff]
        %v6926 = vld [vmem:[%s4907 + $0xf8] sm:$0xff]
        %v6927 = vld [vmem:[%s4907 + $0x100] sm:$0xff]
        %v6928 = vld [vmem:[%s4907 + $0x108] sm:$0xff]
        %v6929 = vld [vmem:[%s4907 + $0x110] sm:$0xff]
        %v6930 = vld [vmem:[%s4907 + $0x118] sm:$0xff]
        %v6931 = vld [vmem:[%s4907 + $0x120] sm:$0xff]
        %v6932 = vld [vmem:[%s4907 + $0x128] sm:$0xff]
        %v6933 = vld [vmem:[%s4907 + $0x140] sm:$0xff]
        %v6934 = vld [vmem:[%s4907 + $0x148] sm:$0xff]
        %v6935 = vld [vmem:[%s4907 + $0x150] sm:$0xff]
        %v6936 = vld [vmem:[%s4907 + $0x158] sm:$0xff]
        %v6937 = vld [vmem:[%s4907 + $0x160] sm:$0xff]
        %v6938 = vld [vmem:[%s4907 + $0x168] sm:$0xff]
        %v6939 = vld [vmem:[%s4907 + $0x170] sm:$0xff]
        %v6940 = vld [vmem:[%s4907 + $0x178] sm:$0xff]
        %v6941 = vld [vmem:[%s4907 + $0x190] sm:$0xff]
        %v6942 = vld [vmem:[%s4907 + $0x198] sm:$0xff]
        %v6943 = vld [vmem:[%s4907 + $0x1a0] sm:$0xff]
        %v6944 = vld [vmem:[%s4907 + $0x1a8] sm:$0xff]
        %v6945 = vld [vmem:[%s4907 + $0x1b0] sm:$0xff]
        %v6946 = vld [vmem:[%s4907 + $0x1b8] sm:$0xff]
        %v6947 = vld [vmem:[%s4907 + $0x1c0] sm:$0xff]
        %v6948 = vld [vmem:[%s4907 + $0x1c8] sm:$0xff]
        %v6949 = vld [vmem:[%s4907 + $0x1e0] sm:$0xff]
        %v6950 = vld [vmem:[%s4907 + $0x1e8] sm:$0xff]
        %v6951 = vld [vmem:[%s4907 + $0x1f0] sm:$0xff]
        %v6952 = vld [vmem:[%s4907 + $0x1f8] sm:$0xff]
        %v6953 = vld [vmem:[%s4907 + $0x200] sm:$0xff]
        %v6954 = vld [vmem:[%s4907 + $0x208] sm:$0xff]
        %v6955 = vld [vmem:[%s4907 + $0x210] sm:$0xff]
        %v6956 = vld [vmem:[%s4907 + $0x218] sm:$0xff]
        %v6957 = vld [vmem:[%s4907 + $0x230] sm:$0xff]
        %v6958 = vld [vmem:[%s4907 + $0x238] sm:$0xff]
        %v6959 = vld [vmem:[%s4907 + $0x240] sm:$0xff]
        %v6960 = vld [vmem:[%s4907 + $0x248] sm:$0xff]
        %v6961 = vld [vmem:[%s4907 + $0x250] sm:$0xff]
        %v6962 = vld [vmem:[%s4907 + $0x258] sm:$0xff]
        %v6963 = vld [vmem:[%s4907 + $0x260] sm:$0xff]
        %v6964 = vld [vmem:[%s4907 + $0x268] sm:$0xff]
        %v6965 = vpack.c.bf16 %v6902, %v6901
        %v6966 = vpack.c.bf16 %v6904, %v6903
        %v6967 = vpack.c.bf16 %v6906, %v6905
        %v6968 = vpack.c.bf16 %v6908, %v6907
        %v6969 = vpack.c.bf16 %v6910, %v6909
        %v6970 = vpack.c.bf16 %v6912, %v6911
        %v6971 = vpack.c.bf16 %v6914, %v6913
        %v6972 = vpack.c.bf16 %v6916, %v6915
        %v6973 = vpack.c.bf16 %v6918, %v6917
        %v6974 = vpack.c.bf16 %v6920, %v6919
        %v6975 = vpack.c.bf16 %v6922, %v6921
        %v6976 = vpack.c.bf16 %v6924, %v6923
        %v6977 = vpack.c.bf16 %v6926, %v6925
        %v6978 = vpack.c.bf16 %v6928, %v6927
        %v6979 = vpack.c.bf16 %v6930, %v6929
        %v6980 = vpack.c.bf16 %v6932, %v6931
        %v6981 = vpack.c.bf16 %v6934, %v6933
        %v6982 = vpack.c.bf16 %v6936, %v6935
        %v6983 = vpack.c.bf16 %v6938, %v6937
        %v6984 = vpack.c.bf16 %v6940, %v6939
        %v6985 = vpack.c.bf16 %v6942, %v6941
        %v6986 = vpack.c.bf16 %v6944, %v6943
        %v6987 = vpack.c.bf16 %v6946, %v6945
        %v6988 = vpack.c.bf16 %v6948, %v6947
        %v6989 = vpack.c.bf16 %v6950, %v6949
        %v6990 = vpack.c.bf16 %v6952, %v6951
        %v6991 = vpack.c.bf16 %v6954, %v6953
        %v6992 = vpack.c.bf16 %v6956, %v6955
        %v6993 = vpack.c.bf16 %v6958, %v6957
        %v6994 = vpack.c.bf16 %v6960, %v6959
        %v6995 = vpack.c.bf16 %v6962, %v6961
        %v6996 = vpack.c.bf16 %v6964, %v6963
        %s6997 = scalar_lea.vmem [#allocation8], 256
        %v6998 = vld [vmem:[%s6997] sm:$0xf]
        %v6999 = vld [vmem:[%s6997 + $0x4] sm:$0xf]
        %v7000 = vld [vmem:[%s6997 + $0x8] sm:$0xf]
        %v7001 = vld [vmem:[%s6997 + $0xc] sm:$0xf]
        %v7002 = vld [vmem:[%s6997 + $0x10] sm:$0xf]
        %v7003 = vld [vmem:[%s6997 + $0x14] sm:$0xf]
        %v7004 = vld [vmem:[%s6997 + $0x18] sm:$0xf]
        %v7005 = vld [vmem:[%s6997 + $0x1c] sm:$0xf]
        %v7006 = vld [vmem:[%s6997 + $0x20] sm:$0xf]
        %v7007 = vld [vmem:[%s6997 + $0x24] sm:$0xf]
        %v7008 = vld [vmem:[%s6997 + $0x28] sm:$0xf]
        %v7009 = vld [vmem:[%s6997 + $0x2c] sm:$0xf]
        %v7010 = vld [vmem:[%s6997 + $0x30] sm:$0xf]
        %v7011 = vld [vmem:[%s6997 + $0x34] sm:$0xf]
        %v7012 = vld [vmem:[%s6997 + $0x38] sm:$0xf]
        %v7013 = vld [vmem:[%s6997 + $0x3c] sm:$0xf]
        %v7030 = vunpack.c.l.b16 %v6998
        %v7031 = vunpack.c.l.b16 %v6999
        %v7032 = vunpack.c.l.b16 %v7000
        %v7033 = vunpack.c.l.b16 %v7001
        %v7034 = vunpack.c.l.b16 %v7002
        %v7035 = vunpack.c.l.b16 %v7003
        %v7036 = vunpack.c.l.b16 %v7004
        %v7037 = vunpack.c.l.b16 %v7005
        %v7038 = vunpack.c.l.b16 %v7006
        %v7039 = vunpack.c.l.b16 %v7007
        %v7040 = vunpack.c.l.b16 %v7008
        %v7041 = vunpack.c.l.b16 %v7009
        %v7042 = vunpack.c.l.b16 %v7010
        %v7043 = vunpack.c.l.b16 %v7011
        %v7044 = vunpack.c.l.b16 %v7012
        %v7045 = vunpack.c.l.b16 %v7013
        %v7046 = vpack.c.b16 %v7031, %v7030
        %v7047 = vpack.c.b16 %v7033, %v7032
        %v7048 = vpack.c.b16 %v7035, %v7034
        %v7049 = vpack.c.b16 %v7037, %v7036
        %v7050 = vpack.c.b16 %v7039, %v7038
        %v7051 = vpack.c.b16 %v7041, %v7040
        %v7052 = vpack.c.b16 %v7043, %v7042
        %v7053 = vpack.c.b16 %v7045, %v7044
        %7062 = vmatprep.subr.bf16.mxu0 0
        %7063 = vmatpush1.bf16.msra.mxu0 %v7053
        %7064 = vmatprep.subr.bf16.mxu0 0
        %7065 = vmatpush1.bf16.msra.mxu0 %v7052
        %7066 = vmatprep.subr.bf16.mxu0 0
        %7067 = vmatpush1.bf16.msra.mxu0 %v7051
        %7068 = vmatprep.subr.bf16.mxu0 0
        %7069 = vmatpush1.bf16.msra.mxu0 %v7050
        %7070 = vmatprep.subr.bf16.mxu0 0
        %7071 = vmatpush1.bf16.msra.mxu0 %v7049
        %7072 = vmatprep.subr.bf16.mxu0 0
        %7073 = vmatpush1.bf16.msra.mxu0 %v7048
        %7074 = vmatprep.subr.bf16.mxu0 0
        %7075 = vmatpush1.bf16.msra.mxu0 %v7047
        %7076 = vmatprep.subr.bf16.mxu0 0
        %7077 = vmatpush1.bf16.msra.mxu0 %v7046
        %7078 = vmatprep.subr.bf16.mxu0 0
        %7079 = vmatpush2.bf16.msra.mxu0 0
        %7080 = vmatprep.subr.bf16.mxu0 0
        %7081 = vmatpush2.bf16.msra.mxu0 0
        %7082 = vmatprep.subr.bf16.mxu0 0
        %7083 = vmatpush2.bf16.msra.mxu0 0
        %7084 = vmatprep.subr.bf16.mxu0 0
        %7085 = vmatpush2.bf16.msra.mxu0 0
        %7086 = vmatprep.subr.bf16.mxu0 0
        %7087 = vmatpush2.bf16.msra.mxu0 0
        %7088 = vmatprep.subr.bf16.mxu0 0
        %7089 = vmatpush2.bf16.msra.mxu0 0
        %7090 = vmatprep.subr.bf16.mxu0 0
        %7091 = vmatpush2.bf16.msra.mxu0 0
        %7092 = vmatprep.subr.bf16.mxu0 0
        %7093 = vmatpush2.bf16.msra.mxu0 0
        %7094 = vmatprep.mubr.bf16.mxu0 0
        %7095 = vmatmul.mubr.bf16.gmra.mxu0 %v6965
        %v7096 = vpop.f32.mrf.mxu0
        %v7097 = vadd.f32 0.0, %v7096
        %v7098 = vpop.f32.mrf.mxu0
        %v7099 = vpop.f32.mrf.mxu0
        %v7100 = vadd.f32 0.0, %v7099
        %v7101 = vpop.f32.mrf.mxu0
        %7102 = vmatprep.mubr.bf16.mxu0 0
        %7103 = vmatmul.mubr.bf16.gmra.mxu0 %v6966
        %v7104 = vpop.f32.mrf.mxu0
        %v7105 = vadd.f32 0.0, %v7104
        %v7106 = vpop.f32.mrf.mxu0
        %v7107 = vpop.f32.mrf.mxu0
        %v7108 = vadd.f32 0.0, %v7107
        %v7109 = vpop.f32.mrf.mxu0
        %7110 = vmatprep.mubr.bf16.mxu0 0
        %7111 = vmatmul.mubr.bf16.gmra.mxu0 %v6967
        %v7112 = vpop.f32.mrf.mxu0
        %v7113 = vadd.f32 0.0, %v7112
        %v7114 = vpop.f32.mrf.mxu0
        %v7115 = vpop.f32.mrf.mxu0
        %v7116 = vadd.f32 0.0, %v7115
        %v7117 = vpop.f32.mrf.mxu0
        %7118 = vmatprep.mubr.bf16.mxu0 0
        %7119 = vmatmul.mubr.bf16.gmra.mxu0 %v6968
        %v7120 = vpop.f32.mrf.mxu0
        %v7121 = vadd.f32 0.0, %v7120
        %v7122 = vpop.f32.mrf.mxu0
        %v7123 = vpop.f32.mrf.mxu0
        %v7124 = vadd.f32 0.0, %v7123
        %v7125 = vpop.f32.mrf.mxu0
        %7126 = vmatprep.mubr.bf16.mxu0 0
        %7127 = vmatmul.mubr.bf16.gmra.mxu0 %v6969
        %v7128 = vpop.f32.mrf.mxu0
        %v7129 = vadd.f32 0.0, %v7128
        %v7130 = vpop.f32.mrf.mxu0
        %v7131 = vpop.f32.mrf.mxu0
        %v7132 = vadd.f32 0.0, %v7131
        %v7133 = vpop.f32.mrf.mxu0
        %7134 = vmatprep.mubr.bf16.mxu0 0
        %7135 = vmatmul.mubr.bf16.gmra.mxu0 %v6970
        %v7136 = vpop.f32.mrf.mxu0
        %v7137 = vadd.f32 0.0, %v7136
        %v7138 = vpop.f32.mrf.mxu0
        %v7139 = vpop.f32.mrf.mxu0
        %v7140 = vadd.f32 0.0, %v7139
        %v7141 = vpop.f32.mrf.mxu0
        %7142 = vmatprep.mubr.bf16.mxu0 0
        %7143 = vmatmul.mubr.bf16.gmra.mxu0 %v6971
        %v7144 = vpop.f32.mrf.mxu0
        %v7145 = vadd.f32 0.0, %v7144
        %v7146 = vpop.f32.mrf.mxu0
        %v7147 = vpop.f32.mrf.mxu0
        %v7148 = vadd.f32 0.0, %v7147
        %v7149 = vpop.f32.mrf.mxu0
        %7150 = vmatprep.mubr.bf16.mxu0 0
        %7151 = vmatmul.mubr.bf16.gmra.mxu0 %v6972
        %v7152 = vpop.f32.mrf.mxu0
        %v7153 = vadd.f32 0.0, %v7152
        %v7154 = vpop.f32.mrf.mxu0
        %v7155 = vpop.f32.mrf.mxu0
        %v7156 = vadd.f32 0.0, %v7155
        %v7157 = vpop.f32.mrf.mxu0
        %7158 = vmatprep.mubr.bf16.mxu0 0
        %7159 = vmatmul.mubr.bf16.gmra.mxu0 %v6973
        %v7160 = vpop.f32.mrf.mxu0
        %v7161 = vadd.f32 0.0, %v7160
        %v7162 = vpop.f32.mrf.mxu0
        %v7163 = vpop.f32.mrf.mxu0
        %v7164 = vadd.f32 0.0, %v7163
        %v7165 = vpop.f32.mrf.mxu0
        %7166 = vmatprep.mubr.bf16.mxu0 0
        %7167 = vmatmul.mubr.bf16.gmra.mxu0 %v6974
        %v7168 = vpop.f32.mrf.mxu0
        %v7169 = vadd.f32 0.0, %v7168
        %v7170 = vpop.f32.mrf.mxu0
        %v7171 = vpop.f32.mrf.mxu0
        %v7172 = vadd.f32 0.0, %v7171
        %v7173 = vpop.f32.mrf.mxu0
        %7174 = vmatprep.mubr.bf16.mxu0 0
        %7175 = vmatmul.mubr.bf16.gmra.mxu0 %v6975
        %v7176 = vpop.f32.mrf.mxu0
        %v7177 = vadd.f32 0.0, %v7176
        %v7178 = vpop.f32.mrf.mxu0
        %v7179 = vpop.f32.mrf.mxu0
        %v7180 = vadd.f32 0.0, %v7179
        %v7181 = vpop.f32.mrf.mxu0
        %7182 = vmatprep.mubr.bf16.mxu0 0
        %7183 = vmatmul.mubr.bf16.gmra.mxu0 %v6976
        %v7184 = vpop.f32.mrf.mxu0
        %v7185 = vadd.f32 0.0, %v7184
        %v7186 = vpop.f32.mrf.mxu0
        %v7187 = vpop.f32.mrf.mxu0
        %v7188 = vadd.f32 0.0, %v7187
        %v7189 = vpop.f32.mrf.mxu0
        %7190 = vmatprep.mubr.bf16.mxu0 0
        %7191 = vmatmul.mubr.bf16.gmra.mxu0 %v6977
        %v7192 = vpop.f32.mrf.mxu0
        %v7193 = vadd.f32 0.0, %v7192
        %v7194 = vpop.f32.mrf.mxu0
        %v7195 = vpop.f32.mrf.mxu0
        %v7196 = vadd.f32 0.0, %v7195
        %v7197 = vpop.f32.mrf.mxu0
        %7198 = vmatprep.mubr.bf16.mxu0 0
        %7199 = vmatmul.mubr.bf16.gmra.mxu0 %v6978
        %v7200 = vpop.f32.mrf.mxu0
        %v7201 = vadd.f32 0.0, %v7200
        %v7202 = vpop.f32.mrf.mxu0
        %v7203 = vpop.f32.mrf.mxu0
        %v7204 = vadd.f32 0.0, %v7203
        %v7205 = vpop.f32.mrf.mxu0
        %7206 = vmatprep.mubr.bf16.mxu0 0
        %7207 = vmatmul.mubr.bf16.gmra.mxu0 %v6979
        %v7208 = vpop.f32.mrf.mxu0
        %v7209 = vadd.f32 0.0, %v7208
        %v7210 = vpop.f32.mrf.mxu0
        %v7211 = vpop.f32.mrf.mxu0
        %v7212 = vadd.f32 0.0, %v7211
        %v7213 = vpop.f32.mrf.mxu0
        %7214 = vmatprep.mubr.bf16.mxu0 0
        %7215 = vmatmul.mubr.bf16.gmra.mxu0 %v6980
        %v7216 = vpop.f32.mrf.mxu0
        %v7217 = vadd.f32 0.0, %v7216
        %v7218 = vpop.f32.mrf.mxu0
        %v7219 = vpop.f32.mrf.mxu0
        %v7220 = vadd.f32 0.0, %v7219
        %v7221 = vpop.f32.mrf.mxu0
        %7222 = vmatprep.mubr.bf16.mxu0 0
        %7223 = vmatmul.mubr.bf16.gmra.mxu0 %v6981
        %v7224 = vpop.f32.mrf.mxu0
        %v7225 = vadd.f32 0.0, %v7224
        %v7226 = vpop.f32.mrf.mxu0
        %v7227 = vpop.f32.mrf.mxu0
        %v7228 = vadd.f32 0.0, %v7227
        %v7229 = vpop.f32.mrf.mxu0
        %7230 = vmatprep.mubr.bf16.mxu0 0
        %7231 = vmatmul.mubr.bf16.gmra.mxu0 %v6982
        %v7232 = vpop.f32.mrf.mxu0
        %v7233 = vadd.f32 0.0, %v7232
        %v7234 = vpop.f32.mrf.mxu0
        %v7235 = vpop.f32.mrf.mxu0
        %v7236 = vadd.f32 0.0, %v7235
        %v7237 = vpop.f32.mrf.mxu0
        %7238 = vmatprep.mubr.bf16.mxu0 0
        %7239 = vmatmul.mubr.bf16.gmra.mxu0 %v6983
        %v7240 = vpop.f32.mrf.mxu0
        %v7241 = vadd.f32 0.0, %v7240
        %v7242 = vpop.f32.mrf.mxu0
        %v7243 = vpop.f32.mrf.mxu0
        %v7244 = vadd.f32 0.0, %v7243
        %v7245 = vpop.f32.mrf.mxu0
        %7246 = vmatprep.mubr.bf16.mxu0 0
        %7247 = vmatmul.mubr.bf16.gmra.mxu0 %v6984
        %v7248 = vpop.f32.mrf.mxu0
        %v7249 = vadd.f32 0.0, %v7248
        %v7250 = vpop.f32.mrf.mxu0
        %v7251 = vpop.f32.mrf.mxu0
        %v7252 = vadd.f32 0.0, %v7251
        %v7253 = vpop.f32.mrf.mxu0
        %7254 = vmatprep.mubr.bf16.mxu0 0
        %7255 = vmatmul.mubr.bf16.gmra.mxu0 %v6985
        %v7256 = vpop.f32.mrf.mxu0
        %v7257 = vadd.f32 0.0, %v7256
        %v7258 = vpop.f32.mrf.mxu0
        %v7259 = vpop.f32.mrf.mxu0
        %v7260 = vadd.f32 0.0, %v7259
        %v7261 = vpop.f32.mrf.mxu0
        %7262 = vmatprep.mubr.bf16.mxu0 0
        %7263 = vmatmul.mubr.bf16.gmra.mxu0 %v6986
        %v7264 = vpop.f32.mrf.mxu0
        %v7265 = vadd.f32 0.0, %v7264
        %v7266 = vpop.f32.mrf.mxu0
        %v7267 = vpop.f32.mrf.mxu0
        %v7268 = vadd.f32 0.0, %v7267
        %v7269 = vpop.f32.mrf.mxu0
        %7270 = vmatprep.mubr.bf16.mxu0 0
        %7271 = vmatmul.mubr.bf16.gmra.mxu0 %v6987
        %v7272 = vpop.f32.mrf.mxu0
        %v7273 = vadd.f32 0.0, %v7272
        %v7274 = vpop.f32.mrf.mxu0
        %v7275 = vpop.f32.mrf.mxu0
        %v7276 = vadd.f32 0.0, %v7275
        %v7277 = vpop.f32.mrf.mxu0
        %7278 = vmatprep.mubr.bf16.mxu0 0
        %7279 = vmatmul.mubr.bf16.gmra.mxu0 %v6988
        %v7280 = vpop.f32.mrf.mxu0
        %v7281 = vadd.f32 0.0, %v7280
        %v7282 = vpop.f32.mrf.mxu0
        %v7283 = vpop.f32.mrf.mxu0
        %v7284 = vadd.f32 0.0, %v7283
        %v7285 = vpop.f32.mrf.mxu0
        %7286 = vmatprep.mubr.bf16.mxu0 0
        %7287 = vmatmul.mubr.bf16.gmra.mxu0 %v6989
        %v7288 = vpop.f32.mrf.mxu0
        %v7289 = vadd.f32 0.0, %v7288
        %v7290 = vpop.f32.mrf.mxu0
        %v7291 = vpop.f32.mrf.mxu0
        %v7292 = vadd.f32 0.0, %v7291
        %v7293 = vpop.f32.mrf.mxu0
        %7294 = vmatprep.mubr.bf16.mxu0 0
        %7295 = vmatmul.mubr.bf16.gmra.mxu0 %v6990
        %v7296 = vpop.f32.mrf.mxu0
        %v7297 = vadd.f32 0.0, %v7296
        %v7298 = vpop.f32.mrf.mxu0
        %v7299 = vpop.f32.mrf.mxu0
        %v7300 = vadd.f32 0.0, %v7299
        %v7301 = vpop.f32.mrf.mxu0
        %7302 = vmatprep.mubr.bf16.mxu0 0
        %7303 = vmatmul.mubr.bf16.gmra.mxu0 %v6991
        %v7304 = vpop.f32.mrf.mxu0
        %v7305 = vadd.f32 0.0, %v7304
        %v7306 = vpop.f32.mrf.mxu0
        %v7307 = vpop.f32.mrf.mxu0
        %v7308 = vadd.f32 0.0, %v7307
        %v7309 = vpop.f32.mrf.mxu0
        %7310 = vmatprep.mubr.bf16.mxu0 0
        %7311 = vmatmul.mubr.bf16.gmra.mxu0 %v6992
        %v7312 = vpop.f32.mrf.mxu0
        %v7313 = vadd.f32 0.0, %v7312
        %v7314 = vpop.f32.mrf.mxu0
        %v7315 = vpop.f32.mrf.mxu0
        %v7316 = vadd.f32 0.0, %v7315
        %v7317 = vpop.f32.mrf.mxu0
        %7318 = vmatprep.mubr.bf16.mxu0 0
        %7319 = vmatmul.mubr.bf16.gmra.mxu0 %v6993
        %v7320 = vpop.f32.mrf.mxu0
        %v7321 = vadd.f32 0.0, %v7320
        %v7322 = vpop.f32.mrf.mxu0
        %v7323 = vpop.f32.mrf.mxu0
        %v7324 = vadd.f32 0.0, %v7323
        %v7325 = vpop.f32.mrf.mxu0
        %7326 = vmatprep.mubr.bf16.mxu0 0
        %7327 = vmatmul.mubr.bf16.gmra.mxu0 %v6994
        %v7328 = vpop.f32.mrf.mxu0
        %v7329 = vadd.f32 0.0, %v7328
        %v7330 = vpop.f32.mrf.mxu0
        %v7331 = vpop.f32.mrf.mxu0
        %v7332 = vadd.f32 0.0, %v7331
        %v7333 = vpop.f32.mrf.mxu0
        %7334 = vmatprep.mubr.bf16.mxu0 0
        %7335 = vmatmul.mubr.bf16.gmra.mxu0 %v6995
        %v7336 = vpop.f32.mrf.mxu0
        %v7337 = vadd.f32 0.0, %v7336
        %v7338 = vpop.f32.mrf.mxu0
        %v7339 = vpop.f32.mrf.mxu0
        %v7340 = vadd.f32 0.0, %v7339
        %v7341 = vpop.f32.mrf.mxu0
        %7342 = vmatprep.mubr.bf16.mxu0 0
        %7343 = vmatmul.mubr.bf16.gmra.mxu0 %v6996
        %v7344 = vpop.f32.mrf.mxu0
        %v7345 = vadd.f32 0.0, %v7344
        %v7346 = vpop.f32.mrf.mxu0
        %v7347 = vpop.f32.mrf.mxu0
        %v7348 = vadd.f32 0.0, %v7347
        %v7349 = vpop.f32.mrf.mxu0
        %7350 = vdwg.mxu0
        %v7351 = vadd.f32 %v6837, %v7097
        %v7352 = vadd.f32 %v6838, %v7100
        %v7353 = vadd.f32 %v6839, %v7105
        %v7354 = vadd.f32 %v6840, %v7108
        %v7355 = vadd.f32 %v6841, %v7113
        %v7356 = vadd.f32 %v6842, %v7116
        %v7357 = vadd.f32 %v6843, %v7121
        %v7358 = vadd.f32 %v6844, %v7124
        %v7359 = vadd.f32 %v6845, %v7129
        %v7360 = vadd.f32 %v6846, %v7132
        %v7361 = vadd.f32 %v6847, %v7137
        %v7362 = vadd.f32 %v6848, %v7140
        %v7363 = vadd.f32 %v6849, %v7145
        %v7364 = vadd.f32 %v6850, %v7148
        %v7365 = vadd.f32 %v6851, %v7153
        %v7366 = vadd.f32 %v6852, %v7156
        %v7367 = vadd.f32 %v6853, %v7161
        %v7368 = vadd.f32 %v6854, %v7164
        %v7369 = vadd.f32 %v6855, %v7169
        %v7370 = vadd.f32 %v6856, %v7172
        %v7371 = vadd.f32 %v6857, %v7177
        %v7372 = vadd.f32 %v6858, %v7180
        %v7373 = vadd.f32 %v6859, %v7185
        %v7374 = vadd.f32 %v6860, %v7188
        %v7375 = vadd.f32 %v6861, %v7193
        %v7376 = vadd.f32 %v6862, %v7196
        %v7377 = vadd.f32 %v6863, %v7201
        %v7378 = vadd.f32 %v6864, %v7204
        %v7379 = vadd.f32 %v6865, %v7209
        %v7380 = vadd.f32 %v6866, %v7212
        %v7381 = vadd.f32 %v6867, %v7217
        %v7382 = vadd.f32 %v6868, %v7220
        %v7383 = vadd.f32 %v6869, %v7225
        %v7384 = vadd.f32 %v6870, %v7228
        %v7385 = vadd.f32 %v6871, %v7233
        %v7386 = vadd.f32 %v6872, %v7236
        %v7387 = vadd.f32 %v6873, %v7241
        %v7388 = vadd.f32 %v6874, %v7244
        %v7389 = vadd.f32 %v6875, %v7249
        %v7390 = vadd.f32 %v6876, %v7252
        %v7391 = vadd.f32 %v6877, %v7257
        %v7392 = vadd.f32 %v6878, %v7260
        %v7393 = vadd.f32 %v6879, %v7265
        %v7394 = vadd.f32 %v6880, %v7268
        %v7395 = vadd.f32 %v6881, %v7273
        %v7396 = vadd.f32 %v6882, %v7276
        %v7397 = vadd.f32 %v6883, %v7281
        %v7398 = vadd.f32 %v6884, %v7284
        %v7399 = vadd.f32 %v6885, %v7289
        %v7400 = vadd.f32 %v6886, %v7292
        %v7401 = vadd.f32 %v6887, %v7297
        %v7402 = vadd.f32 %v6888, %v7300
        %v7403 = vadd.f32 %v6889, %v7305
        %v7404 = vadd.f32 %v6890, %v7308
        %v7405 = vadd.f32 %v6891, %v7313
        %v7406 = vadd.f32 %v6892, %v7316
        %v7407 = vadd.f32 %v6893, %v7321
        %v7408 = vadd.f32 %v6894, %v7324
        %v7409 = vadd.f32 %v6895, %v7329
        %v7410 = vadd.f32 %v6896, %v7332
        %v7411 = vadd.f32 %v6897, %v7337
        %v7412 = vadd.f32 %v6898, %v7340
        %v7413 = vadd.f32 %v6899, %v7345
        %v7414 = vadd.f32 %v6900, %v7348
        %s7415 = scalar_lea.vmem [#allocation2], 96
        %v7416 = vld [vmem:[%s7415] sm:$0xff]
        %v7417 = vld [vmem:[%s7415 + $0x8] sm:$0xff]
        %v7418 = vld [vmem:[%s7415 + $0x10] sm:$0xff]
        %v7419 = vld [vmem:[%s7415 + $0x18] sm:$0xff]
        %v7420 = vld [vmem:[%s7415 + $0x20] sm:$0xff]
        %v7421 = vld [vmem:[%s7415 + $0x28] sm:$0xff]
        %v7422 = vld [vmem:[%s7415 + $0x30] sm:$0xff]
        %v7423 = vld [vmem:[%s7415 + $0x38] sm:$0xff]
        %v7424 = vld [vmem:[%s7415 + $0x50] sm:$0xff]
        %v7425 = vld [vmem:[%s7415 + $0x58] sm:$0xff]
        %v7426 = vld [vmem:[%s7415 + $0x60] sm:$0xff]
        %v7427 = vld [vmem:[%s7415 + $0x68] sm:$0xff]
        %v7428 = vld [vmem:[%s7415 + $0x70] sm:$0xff]
        %v7429 = vld [vmem:[%s7415 + $0x78] sm:$0xff]
        %v7430 = vld [vmem:[%s7415 + $0x80] sm:$0xff]
        %v7431 = vld [vmem:[%s7415 + $0x88] sm:$0xff]
        %v7432 = vld [vmem:[%s7415 + $0xa0] sm:$0xff]
        %v7433 = vld [vmem:[%s7415 + $0xa8] sm:$0xff]
        %v7434 = vld [vmem:[%s7415 + $0xb0] sm:$0xff]
        %v7435 = vld [vmem:[%s7415 + $0xb8] sm:$0xff]
        %v7436 = vld [vmem:[%s7415 + $0xc0] sm:$0xff]
        %v7437 = vld [vmem:[%s7415 + $0xc8] sm:$0xff]
        %v7438 = vld [vmem:[%s7415 + $0xd0] sm:$0xff]
        %v7439 = vld [vmem:[%s7415 + $0xd8] sm:$0xff]
        %v7440 = vld [vmem:[%s7415 + $0xf0] sm:$0xff]
        %v7441 = vld [vmem:[%s7415 + $0xf8] sm:$0xff]
        %v7442 = vld [vmem:[%s7415 + $0x100] sm:$0xff]
        %v7443 = vld [vmem:[%s7415 + $0x108] sm:$0xff]
        %v7444 = vld [vmem:[%s7415 + $0x110] sm:$0xff]
        %v7445 = vld [vmem:[%s7415 + $0x118] sm:$0xff]
        %v7446 = vld [vmem:[%s7415 + $0x120] sm:$0xff]
        %v7447 = vld [vmem:[%s7415 + $0x128] sm:$0xff]
        %v7448 = vld [vmem:[%s7415 + $0x140] sm:$0xff]
        %v7449 = vld [vmem:[%s7415 + $0x148] sm:$0xff]
        %v7450 = vld [vmem:[%s7415 + $0x150] sm:$0xff]
        %v7451 = vld [vmem:[%s7415 + $0x158] sm:$0xff]
        %v7452 = vld [vmem:[%s7415 + $0x160] sm:$0xff]
        %v7453 = vld [vmem:[%s7415 + $0x168] sm:$0xff]
        %v7454 = vld [vmem:[%s7415 + $0x170] sm:$0xff]
        %v7455 = vld [vmem:[%s7415 + $0x178] sm:$0xff]
        %v7456 = vld [vmem:[%s7415 + $0x190] sm:$0xff]
        %v7457 = vld [vmem:[%s7415 + $0x198] sm:$0xff]
        %v7458 = vld [vmem:[%s7415 + $0x1a0] sm:$0xff]
        %v7459 = vld [vmem:[%s7415 + $0x1a8] sm:$0xff]
        %v7460 = vld [vmem:[%s7415 + $0x1b0] sm:$0xff]
        %v7461 = vld [vmem:[%s7415 + $0x1b8] sm:$0xff]
        %v7462 = vld [vmem:[%s7415 + $0x1c0] sm:$0xff]
        %v7463 = vld [vmem:[%s7415 + $0x1c8] sm:$0xff]
        %v7464 = vld [vmem:[%s7415 + $0x1e0] sm:$0xff]
        %v7465 = vld [vmem:[%s7415 + $0x1e8] sm:$0xff]
        %v7466 = vld [vmem:[%s7415 + $0x1f0] sm:$0xff]
        %v7467 = vld [vmem:[%s7415 + $0x1f8] sm:$0xff]
        %v7468 = vld [vmem:[%s7415 + $0x200] sm:$0xff]
        %v7469 = vld [vmem:[%s7415 + $0x208] sm:$0xff]
        %v7470 = vld [vmem:[%s7415 + $0x210] sm:$0xff]
        %v7471 = vld [vmem:[%s7415 + $0x218] sm:$0xff]
        %v7472 = vld [vmem:[%s7415 + $0x230] sm:$0xff]
        %v7473 = vld [vmem:[%s7415 + $0x238] sm:$0xff]
        %v7474 = vld [vmem:[%s7415 + $0x240] sm:$0xff]
        %v7475 = vld [vmem:[%s7415 + $0x248] sm:$0xff]
        %v7476 = vld [vmem:[%s7415 + $0x250] sm:$0xff]
        %v7477 = vld [vmem:[%s7415 + $0x258] sm:$0xff]
        %v7478 = vld [vmem:[%s7415 + $0x260] sm:$0xff]
        %v7479 = vld [vmem:[%s7415 + $0x268] sm:$0xff]
        %v7480 = vpack.c.bf16 %v7417, %v7416
        %v7481 = vpack.c.bf16 %v7419, %v7418
        %v7482 = vpack.c.bf16 %v7421, %v7420
        %v7483 = vpack.c.bf16 %v7423, %v7422
        %v7484 = vpack.c.bf16 %v7425, %v7424
        %v7485 = vpack.c.bf16 %v7427, %v7426
        %v7486 = vpack.c.bf16 %v7429, %v7428
        %v7487 = vpack.c.bf16 %v7431, %v7430
        %v7488 = vpack.c.bf16 %v7433, %v7432
        %v7489 = vpack.c.bf16 %v7435, %v7434
        %v7490 = vpack.c.bf16 %v7437, %v7436
        %v7491 = vpack.c.bf16 %v7439, %v7438
        %v7492 = vpack.c.bf16 %v7441, %v7440
        %v7493 = vpack.c.bf16 %v7443, %v7442
        %v7494 = vpack.c.bf16 %v7445, %v7444
        %v7495 = vpack.c.bf16 %v7447, %v7446
        %v7496 = vpack.c.bf16 %v7449, %v7448
        %v7497 = vpack.c.bf16 %v7451, %v7450
        %v7498 = vpack.c.bf16 %v7453, %v7452
        %v7499 = vpack.c.bf16 %v7455, %v7454
        %v7500 = vpack.c.bf16 %v7457, %v7456
        %v7501 = vpack.c.bf16 %v7459, %v7458
        %v7502 = vpack.c.bf16 %v7461, %v7460
        %v7503 = vpack.c.bf16 %v7463, %v7462
        %v7504 = vpack.c.bf16 %v7465, %v7464
        %v7505 = vpack.c.bf16 %v7467, %v7466
        %v7506 = vpack.c.bf16 %v7469, %v7468
        %v7507 = vpack.c.bf16 %v7471, %v7470
        %v7508 = vpack.c.bf16 %v7473, %v7472
        %v7509 = vpack.c.bf16 %v7475, %v7474
        %v7510 = vpack.c.bf16 %v7477, %v7476
        %v7511 = vpack.c.bf16 %v7479, %v7478
        %s7512 = scalar_lea.vmem [#allocation8], 320
        %v7513 = vld [vmem:[%s7512] sm:$0xf]
        %v7514 = vld [vmem:[%s7512 + $0x4] sm:$0xf]
        %v7515 = vld [vmem:[%s7512 + $0x8] sm:$0xf]
        %v7516 = vld [vmem:[%s7512 + $0xc] sm:$0xf]
        %v7517 = vld [vmem:[%s7512 + $0x10] sm:$0xf]
        %v7518 = vld [vmem:[%s7512 + $0x14] sm:$0xf]
        %v7519 = vld [vmem:[%s7512 + $0x18] sm:$0xf]
        %v7520 = vld [vmem:[%s7512 + $0x1c] sm:$0xf]
        %v7521 = vld [vmem:[%s7512 + $0x20] sm:$0xf]
        %v7522 = vld [vmem:[%s7512 + $0x24] sm:$0xf]
        %v7523 = vld [vmem:[%s7512 + $0x28] sm:$0xf]
        %v7524 = vld [vmem:[%s7512 + $0x2c] sm:$0xf]
        %v7525 = vld [vmem:[%s7512 + $0x30] sm:$0xf]
        %v7526 = vld [vmem:[%s7512 + $0x34] sm:$0xf]
        %v7527 = vld [vmem:[%s7512 + $0x38] sm:$0xf]
        %v7528 = vld [vmem:[%s7512 + $0x3c] sm:$0xf]
        %v7545 = vunpack.c.l.b16 %v7513
        %v7546 = vunpack.c.l.b16 %v7514
        %v7547 = vunpack.c.l.b16 %v7515
        %v7548 = vunpack.c.l.b16 %v7516
        %v7549 = vunpack.c.l.b16 %v7517
        %v7550 = vunpack.c.l.b16 %v7518
        %v7551 = vunpack.c.l.b16 %v7519
        %v7552 = vunpack.c.l.b16 %v7520
        %v7553 = vunpack.c.l.b16 %v7521
        %v7554 = vunpack.c.l.b16 %v7522
        %v7555 = vunpack.c.l.b16 %v7523
        %v7556 = vunpack.c.l.b16 %v7524
        %v7557 = vunpack.c.l.b16 %v7525
        %v7558 = vunpack.c.l.b16 %v7526
        %v7559 = vunpack.c.l.b16 %v7527
        %v7560 = vunpack.c.l.b16 %v7528
        %v7561 = vpack.c.b16 %v7546, %v7545
        %v7562 = vpack.c.b16 %v7548, %v7547
        %v7563 = vpack.c.b16 %v7550, %v7549
        %v7564 = vpack.c.b16 %v7552, %v7551
        %v7565 = vpack.c.b16 %v7554, %v7553
        %v7566 = vpack.c.b16 %v7556, %v7555
        %v7567 = vpack.c.b16 %v7558, %v7557
        %v7568 = vpack.c.b16 %v7560, %v7559
        %7577 = vmatprep.subr.bf16.mxu0 0
        %7578 = vmatpush1.bf16.msra.mxu0 %v7568
        %7579 = vmatprep.subr.bf16.mxu0 0
        %7580 = vmatpush1.bf16.msra.mxu0 %v7567
        %7581 = vmatprep.subr.bf16.mxu0 0
        %7582 = vmatpush1.bf16.msra.mxu0 %v7566
        %7583 = vmatprep.subr.bf16.mxu0 0
        %7584 = vmatpush1.bf16.msra.mxu0 %v7565
        %7585 = vmatprep.subr.bf16.mxu0 0
        %7586 = vmatpush1.bf16.msra.mxu0 %v7564
        %7587 = vmatprep.subr.bf16.mxu0 0
        %7588 = vmatpush1.bf16.msra.mxu0 %v7563
        %7589 = vmatprep.subr.bf16.mxu0 0
        %7590 = vmatpush1.bf16.msra.mxu0 %v7562
        %7591 = vmatprep.subr.bf16.mxu0 0
        %7592 = vmatpush1.bf16.msra.mxu0 %v7561
        %7593 = vmatprep.subr.bf16.mxu0 0
        %7594 = vmatpush2.bf16.msra.mxu0 0
        %7595 = vmatprep.subr.bf16.mxu0 0
        %7596 = vmatpush2.bf16.msra.mxu0 0
        %7597 = vmatprep.subr.bf16.mxu0 0
        %7598 = vmatpush2.bf16.msra.mxu0 0
        %7599 = vmatprep.subr.bf16.mxu0 0
        %7600 = vmatpush2.bf16.msra.mxu0 0
        %7601 = vmatprep.subr.bf16.mxu0 0
        %7602 = vmatpush2.bf16.msra.mxu0 0
        %7603 = vmatprep.subr.bf16.mxu0 0
        %7604 = vmatpush2.bf16.msra.mxu0 0
        %7605 = vmatprep.subr.bf16.mxu0 0
        %7606 = vmatpush2.bf16.msra.mxu0 0
        %7607 = vmatprep.subr.bf16.mxu0 0
        %7608 = vmatpush2.bf16.msra.mxu0 0
        %7609 = vmatprep.mubr.bf16.mxu0 0
        %7610 = vmatmul.mubr.bf16.gmra.mxu0 %v7480
        %v7611 = vpop.f32.mrf.mxu0
        %v7612 = vadd.f32 0.0, %v7611
        %v7613 = vpop.f32.mrf.mxu0
        %v7614 = vpop.f32.mrf.mxu0
        %v7615 = vadd.f32 0.0, %v7614
        %v7616 = vpop.f32.mrf.mxu0
        %7617 = vmatprep.mubr.bf16.mxu0 0
        %7618 = vmatmul.mubr.bf16.gmra.mxu0 %v7481
        %v7619 = vpop.f32.mrf.mxu0
        %v7620 = vadd.f32 0.0, %v7619
        %v7621 = vpop.f32.mrf.mxu0
        %v7622 = vpop.f32.mrf.mxu0
        %v7623 = vadd.f32 0.0, %v7622
        %v7624 = vpop.f32.mrf.mxu0
        %7625 = vmatprep.mubr.bf16.mxu0 0
        %7626 = vmatmul.mubr.bf16.gmra.mxu0 %v7482
        %v7627 = vpop.f32.mrf.mxu0
        %v7628 = vadd.f32 0.0, %v7627
        %v7629 = vpop.f32.mrf.mxu0
        %v7630 = vpop.f32.mrf.mxu0
        %v7631 = vadd.f32 0.0, %v7630
        %v7632 = vpop.f32.mrf.mxu0
        %7633 = vmatprep.mubr.bf16.mxu0 0
        %7634 = vmatmul.mubr.bf16.gmra.mxu0 %v7483
        %v7635 = vpop.f32.mrf.mxu0
        %v7636 = vadd.f32 0.0, %v7635
        %v7637 = vpop.f32.mrf.mxu0
        %v7638 = vpop.f32.mrf.mxu0
        %v7639 = vadd.f32 0.0, %v7638
        %v7640 = vpop.f32.mrf.mxu0
        %7641 = vmatprep.mubr.bf16.mxu0 0
        %7642 = vmatmul.mubr.bf16.gmra.mxu0 %v7484
        %v7643 = vpop.f32.mrf.mxu0
        %v7644 = vadd.f32 0.0, %v7643
        %v7645 = vpop.f32.mrf.mxu0
        %v7646 = vpop.f32.mrf.mxu0
        %v7647 = vadd.f32 0.0, %v7646
        %v7648 = vpop.f32.mrf.mxu0
        %7649 = vmatprep.mubr.bf16.mxu0 0
        %7650 = vmatmul.mubr.bf16.gmra.mxu0 %v7485
        %v7651 = vpop.f32.mrf.mxu0
        %v7652 = vadd.f32 0.0, %v7651
        %v7653 = vpop.f32.mrf.mxu0
        %v7654 = vpop.f32.mrf.mxu0
        %v7655 = vadd.f32 0.0, %v7654
        %v7656 = vpop.f32.mrf.mxu0
        %7657 = vmatprep.mubr.bf16.mxu0 0
        %7658 = vmatmul.mubr.bf16.gmra.mxu0 %v7486
        %v7659 = vpop.f32.mrf.mxu0
        %v7660 = vadd.f32 0.0, %v7659
        %v7661 = vpop.f32.mrf.mxu0
        %v7662 = vpop.f32.mrf.mxu0
        %v7663 = vadd.f32 0.0, %v7662
        %v7664 = vpop.f32.mrf.mxu0
        %7665 = vmatprep.mubr.bf16.mxu0 0
        %7666 = vmatmul.mubr.bf16.gmra.mxu0 %v7487
        %v7667 = vpop.f32.mrf.mxu0
        %v7668 = vadd.f32 0.0, %v7667
        %v7669 = vpop.f32.mrf.mxu0
        %v7670 = vpop.f32.mrf.mxu0
        %v7671 = vadd.f32 0.0, %v7670
        %v7672 = vpop.f32.mrf.mxu0
        %7673 = vmatprep.mubr.bf16.mxu0 0
        %7674 = vmatmul.mubr.bf16.gmra.mxu0 %v7488
        %v7675 = vpop.f32.mrf.mxu0
        %v7676 = vadd.f32 0.0, %v7675
        %v7677 = vpop.f32.mrf.mxu0
        %v7678 = vpop.f32.mrf.mxu0
        %v7679 = vadd.f32 0.0, %v7678
        %v7680 = vpop.f32.mrf.mxu0
        %7681 = vmatprep.mubr.bf16.mxu0 0
        %7682 = vmatmul.mubr.bf16.gmra.mxu0 %v7489
        %v7683 = vpop.f32.mrf.mxu0
        %v7684 = vadd.f32 0.0, %v7683
        %v7685 = vpop.f32.mrf.mxu0
        %v7686 = vpop.f32.mrf.mxu0
        %v7687 = vadd.f32 0.0, %v7686
        %v7688 = vpop.f32.mrf.mxu0
        %7689 = vmatprep.mubr.bf16.mxu0 0
        %7690 = vmatmul.mubr.bf16.gmra.mxu0 %v7490
        %v7691 = vpop.f32.mrf.mxu0
        %v7692 = vadd.f32 0.0, %v7691
        %v7693 = vpop.f32.mrf.mxu0
        %v7694 = vpop.f32.mrf.mxu0
        %v7695 = vadd.f32 0.0, %v7694
        %v7696 = vpop.f32.mrf.mxu0
        %7697 = vmatprep.mubr.bf16.mxu0 0
        %7698 = vmatmul.mubr.bf16.gmra.mxu0 %v7491
        %v7699 = vpop.f32.mrf.mxu0
        %v7700 = vadd.f32 0.0, %v7699
        %v7701 = vpop.f32.mrf.mxu0
        %v7702 = vpop.f32.mrf.mxu0
        %v7703 = vadd.f32 0.0, %v7702
        %v7704 = vpop.f32.mrf.mxu0
        %7705 = vmatprep.mubr.bf16.mxu0 0
        %7706 = vmatmul.mubr.bf16.gmra.mxu0 %v7492
        %v7707 = vpop.f32.mrf.mxu0
        %v7708 = vadd.f32 0.0, %v7707
        %v7709 = vpop.f32.mrf.mxu0
        %v7710 = vpop.f32.mrf.mxu0
        %v7711 = vadd.f32 0.0, %v7710
        %v7712 = vpop.f32.mrf.mxu0
        %7713 = vmatprep.mubr.bf16.mxu0 0
        %7714 = vmatmul.mubr.bf16.gmra.mxu0 %v7493
        %v7715 = vpop.f32.mrf.mxu0
        %v7716 = vadd.f32 0.0, %v7715
        %v7717 = vpop.f32.mrf.mxu0
        %v7718 = vpop.f32.mrf.mxu0
        %v7719 = vadd.f32 0.0, %v7718
        %v7720 = vpop.f32.mrf.mxu0
        %7721 = vmatprep.mubr.bf16.mxu0 0
        %7722 = vmatmul.mubr.bf16.gmra.mxu0 %v7494
        %v7723 = vpop.f32.mrf.mxu0
        %v7724 = vadd.f32 0.0, %v7723
        %v7725 = vpop.f32.mrf.mxu0
        %v7726 = vpop.f32.mrf.mxu0
        %v7727 = vadd.f32 0.0, %v7726
        %v7728 = vpop.f32.mrf.mxu0
        %7729 = vmatprep.mubr.bf16.mxu0 0
        %7730 = vmatmul.mubr.bf16.gmra.mxu0 %v7495
        %v7731 = vpop.f32.mrf.mxu0
        %v7732 = vadd.f32 0.0, %v7731
        %v7733 = vpop.f32.mrf.mxu0
        %v7734 = vpop.f32.mrf.mxu0
        %v7735 = vadd.f32 0.0, %v7734
        %v7736 = vpop.f32.mrf.mxu0
        %7737 = vmatprep.mubr.bf16.mxu0 0
        %7738 = vmatmul.mubr.bf16.gmra.mxu0 %v7496
        %v7739 = vpop.f32.mrf.mxu0
        %v7740 = vadd.f32 0.0, %v7739
        %v7741 = vpop.f32.mrf.mxu0
        %v7742 = vpop.f32.mrf.mxu0
        %v7743 = vadd.f32 0.0, %v7742
        %v7744 = vpop.f32.mrf.mxu0
        %7745 = vmatprep.mubr.bf16.mxu0 0
        %7746 = vmatmul.mubr.bf16.gmra.mxu0 %v7497
        %v7747 = vpop.f32.mrf.mxu0
        %v7748 = vadd.f32 0.0, %v7747
        %v7749 = vpop.f32.mrf.mxu0
        %v7750 = vpop.f32.mrf.mxu0
        %v7751 = vadd.f32 0.0, %v7750
        %v7752 = vpop.f32.mrf.mxu0
        %7753 = vmatprep.mubr.bf16.mxu0 0
        %7754 = vmatmul.mubr.bf16.gmra.mxu0 %v7498
        %v7755 = vpop.f32.mrf.mxu0
        %v7756 = vadd.f32 0.0, %v7755
        %v7757 = vpop.f32.mrf.mxu0
        %v7758 = vpop.f32.mrf.mxu0
        %v7759 = vadd.f32 0.0, %v7758
        %v7760 = vpop.f32.mrf.mxu0
        %7761 = vmatprep.mubr.bf16.mxu0 0
        %7762 = vmatmul.mubr.bf16.gmra.mxu0 %v7499
        %v7763 = vpop.f32.mrf.mxu0
        %v7764 = vadd.f32 0.0, %v7763
        %v7765 = vpop.f32.mrf.mxu0
        %v7766 = vpop.f32.mrf.mxu0
        %v7767 = vadd.f32 0.0, %v7766
        %v7768 = vpop.f32.mrf.mxu0
        %7769 = vmatprep.mubr.bf16.mxu0 0
        %7770 = vmatmul.mubr.bf16.gmra.mxu0 %v7500
        %v7771 = vpop.f32.mrf.mxu0
        %v7772 = vadd.f32 0.0, %v7771
        %v7773 = vpop.f32.mrf.mxu0
        %v7774 = vpop.f32.mrf.mxu0
        %v7775 = vadd.f32 0.0, %v7774
        %v7776 = vpop.f32.mrf.mxu0
        %7777 = vmatprep.mubr.bf16.mxu0 0
        %7778 = vmatmul.mubr.bf16.gmra.mxu0 %v7501
        %v7779 = vpop.f32.mrf.mxu0
        %v7780 = vadd.f32 0.0, %v7779
        %v7781 = vpop.f32.mrf.mxu0
        %v7782 = vpop.f32.mrf.mxu0
        %v7783 = vadd.f32 0.0, %v7782
        %v7784 = vpop.f32.mrf.mxu0
        %7785 = vmatprep.mubr.bf16.mxu0 0
        %7786 = vmatmul.mubr.bf16.gmra.mxu0 %v7502
        %v7787 = vpop.f32.mrf.mxu0
        %v7788 = vadd.f32 0.0, %v7787
        %v7789 = vpop.f32.mrf.mxu0
        %v7790 = vpop.f32.mrf.mxu0
        %v7791 = vadd.f32 0.0, %v7790
        %v7792 = vpop.f32.mrf.mxu0
        %7793 = vmatprep.mubr.bf16.mxu0 0
        %7794 = vmatmul.mubr.bf16.gmra.mxu0 %v7503
        %v7795 = vpop.f32.mrf.mxu0
        %v7796 = vadd.f32 0.0, %v7795
        %v7797 = vpop.f32.mrf.mxu0
        %v7798 = vpop.f32.mrf.mxu0
        %v7799 = vadd.f32 0.0, %v7798
        %v7800 = vpop.f32.mrf.mxu0
        %7801 = vmatprep.mubr.bf16.mxu0 0
        %7802 = vmatmul.mubr.bf16.gmra.mxu0 %v7504
        %v7803 = vpop.f32.mrf.mxu0
        %v7804 = vadd.f32 0.0, %v7803
        %v7805 = vpop.f32.mrf.mxu0
        %v7806 = vpop.f32.mrf.mxu0
        %v7807 = vadd.f32 0.0, %v7806
        %v7808 = vpop.f32.mrf.mxu0
        %7809 = vmatprep.mubr.bf16.mxu0 0
        %7810 = vmatmul.mubr.bf16.gmra.mxu0 %v7505
        %v7811 = vpop.f32.mrf.mxu0
        %v7812 = vadd.f32 0.0, %v7811
        %v7813 = vpop.f32.mrf.mxu0
        %v7814 = vpop.f32.mrf.mxu0
        %v7815 = vadd.f32 0.0, %v7814
        %v7816 = vpop.f32.mrf.mxu0
        %7817 = vmatprep.mubr.bf16.mxu0 0
        %7818 = vmatmul.mubr.bf16.gmra.mxu0 %v7506
        %v7819 = vpop.f32.mrf.mxu0
        %v7820 = vadd.f32 0.0, %v7819
        %v7821 = vpop.f32.mrf.mxu0
        %v7822 = vpop.f32.mrf.mxu0
        %v7823 = vadd.f32 0.0, %v7822
        %v7824 = vpop.f32.mrf.mxu0
        %7825 = vmatprep.mubr.bf16.mxu0 0
        %7826 = vmatmul.mubr.bf16.gmra.mxu0 %v7507
        %v7827 = vpop.f32.mrf.mxu0
        %v7828 = vadd.f32 0.0, %v7827
        %v7829 = vpop.f32.mrf.mxu0
        %v7830 = vpop.f32.mrf.mxu0
        %v7831 = vadd.f32 0.0, %v7830
        %v7832 = vpop.f32.mrf.mxu0
        %7833 = vmatprep.mubr.bf16.mxu0 0
        %7834 = vmatmul.mubr.bf16.gmra.mxu0 %v7508
        %v7835 = vpop.f32.mrf.mxu0
        %v7836 = vadd.f32 0.0, %v7835
        %v7837 = vpop.f32.mrf.mxu0
        %v7838 = vpop.f32.mrf.mxu0
        %v7839 = vadd.f32 0.0, %v7838
        %v7840 = vpop.f32.mrf.mxu0
        %7841 = vmatprep.mubr.bf16.mxu0 0
        %7842 = vmatmul.mubr.bf16.gmra.mxu0 %v7509
        %v7843 = vpop.f32.mrf.mxu0
        %v7844 = vadd.f32 0.0, %v7843
        %v7845 = vpop.f32.mrf.mxu0
        %v7846 = vpop.f32.mrf.mxu0
        %v7847 = vadd.f32 0.0, %v7846
        %v7848 = vpop.f32.mrf.mxu0
        %7849 = vmatprep.mubr.bf16.mxu0 0
        %7850 = vmatmul.mubr.bf16.gmra.mxu0 %v7510
        %v7851 = vpop.f32.mrf.mxu0
        %v7852 = vadd.f32 0.0, %v7851
        %v7853 = vpop.f32.mrf.mxu0
        %v7854 = vpop.f32.mrf.mxu0
        %v7855 = vadd.f32 0.0, %v7854
        %v7856 = vpop.f32.mrf.mxu0
        %7857 = vmatprep.mubr.bf16.mxu0 0
        %7858 = vmatmul.mubr.bf16.gmra.mxu0 %v7511
        %v7859 = vpop.f32.mrf.mxu0
        %v7860 = vadd.f32 0.0, %v7859
        %v7861 = vpop.f32.mrf.mxu0
        %v7862 = vpop.f32.mrf.mxu0
        %v7863 = vadd.f32 0.0, %v7862
        %v7864 = vpop.f32.mrf.mxu0
        %7865 = vdwg.mxu0
        %v7866 = vadd.f32 %v7351, %v7612
        %v7867 = vadd.f32 %v7352, %v7615
        %v7868 = vadd.f32 %v7353, %v7620
        %v7869 = vadd.f32 %v7354, %v7623
        %v7870 = vadd.f32 %v7355, %v7628
        %v7871 = vadd.f32 %v7356, %v7631
        %v7872 = vadd.f32 %v7357, %v7636
        %v7873 = vadd.f32 %v7358, %v7639
        %v7874 = vadd.f32 %v7359, %v7644
        %v7875 = vadd.f32 %v7360, %v7647
        %v7876 = vadd.f32 %v7361, %v7652
        %v7877 = vadd.f32 %v7362, %v7655
        %v7878 = vadd.f32 %v7363, %v7660
        %v7879 = vadd.f32 %v7364, %v7663
        %v7880 = vadd.f32 %v7365, %v7668
        %v7881 = vadd.f32 %v7366, %v7671
        %v7882 = vadd.f32 %v7367, %v7676
        %v7883 = vadd.f32 %v7368, %v7679
        %v7884 = vadd.f32 %v7369, %v7684
        %v7885 = vadd.f32 %v7370, %v7687
        %v7886 = vadd.f32 %v7371, %v7692
        %v7887 = vadd.f32 %v7372, %v7695
        %v7888 = vadd.f32 %v7373, %v7700
        %v7889 = vadd.f32 %v7374, %v7703
        %v7890 = vadd.f32 %v7375, %v7708
        %v7891 = vadd.f32 %v7376, %v7711
        %v7892 = vadd.f32 %v7377, %v7716
        %v7893 = vadd.f32 %v7378, %v7719
        %v7894 = vadd.f32 %v7379, %v7724
        %v7895 = vadd.f32 %v7380, %v7727
        %v7896 = vadd.f32 %v7381, %v7732
        %v7897 = vadd.f32 %v7382, %v7735
        %v7898 = vadd.f32 %v7383, %v7740
        %v7899 = vadd.f32 %v7384, %v7743
        %v7900 = vadd.f32 %v7385, %v7748
        %v7901 = vadd.f32 %v7386, %v7751
        %v7902 = vadd.f32 %v7387, %v7756
        %v7903 = vadd.f32 %v7388, %v7759
        %v7904 = vadd.f32 %v7389, %v7764
        %v7905 = vadd.f32 %v7390, %v7767
        %v7906 = vadd.f32 %v7391, %v7772
        %v7907 = vadd.f32 %v7392, %v7775
        %v7908 = vadd.f32 %v7393, %v7780
        %v7909 = vadd.f32 %v7394, %v7783
        %v7910 = vadd.f32 %v7395, %v7788
        %v7911 = vadd.f32 %v7396, %v7791
        %v7912 = vadd.f32 %v7397, %v7796
        %v7913 = vadd.f32 %v7398, %v7799
        %v7914 = vadd.f32 %v7399, %v7804
        %v7915 = vadd.f32 %v7400, %v7807
        %v7916 = vadd.f32 %v7401, %v7812
        %v7917 = vadd.f32 %v7402, %v7815
        %v7918 = vadd.f32 %v7403, %v7820
        %v7919 = vadd.f32 %v7404, %v7823
        %v7920 = vadd.f32 %v7405, %v7828
        %v7921 = vadd.f32 %v7406, %v7831
        %v7922 = vadd.f32 %v7407, %v7836
        %v7923 = vadd.f32 %v7408, %v7839
        %v7924 = vadd.f32 %v7409, %v7844
        %v7925 = vadd.f32 %v7410, %v7847
        %v7926 = vadd.f32 %v7411, %v7852
        %v7927 = vadd.f32 %v7412, %v7855
        %v7928 = vadd.f32 %v7413, %v7860
        %v7929 = vadd.f32 %v7414, %v7863
        %s7930 = scalar_lea.vmem [#allocation2], 160
        %v7931 = vld [vmem:[%s7930] sm:$0xff]
        %v7932 = vld [vmem:[%s7930 + $0x8] sm:$0xff]
        %v7933 = vld [vmem:[%s7930 + $0x10] sm:$0xff]
        %v7934 = vld [vmem:[%s7930 + $0x18] sm:$0xff]
        %v7935 = vld [vmem:[%s7930 + $0x20] sm:$0xff]
        %v7936 = vld [vmem:[%s7930 + $0x28] sm:$0xff]
        %v7937 = vld [vmem:[%s7930 + $0x30] sm:$0xff]
        %v7938 = vld [vmem:[%s7930 + $0x38] sm:$0xff]
        %v7939 = vld [vmem:[%s7930 + $0x50] sm:$0xff]
        %v7940 = vld [vmem:[%s7930 + $0x58] sm:$0xff]
        %v7941 = vld [vmem:[%s7930 + $0x60] sm:$0xff]
        %v7942 = vld [vmem:[%s7930 + $0x68] sm:$0xff]
        %v7943 = vld [vmem:[%s7930 + $0x70] sm:$0xff]
        %v7944 = vld [vmem:[%s7930 + $0x78] sm:$0xff]
        %v7945 = vld [vmem:[%s7930 + $0x80] sm:$0xff]
        %v7946 = vld [vmem:[%s7930 + $0x88] sm:$0xff]
        %v7947 = vld [vmem:[%s7930 + $0xa0] sm:$0xff]
        %v7948 = vld [vmem:[%s7930 + $0xa8] sm:$0xff]
        %v7949 = vld [vmem:[%s7930 + $0xb0] sm:$0xff]
        %v7950 = vld [vmem:[%s7930 + $0xb8] sm:$0xff]
        %v7951 = vld [vmem:[%s7930 + $0xc0] sm:$0xff]
        %v7952 = vld [vmem:[%s7930 + $0xc8] sm:$0xff]
        %v7953 = vld [vmem:[%s7930 + $0xd0] sm:$0xff]
        %v7954 = vld [vmem:[%s7930 + $0xd8] sm:$0xff]
        %v7955 = vld [vmem:[%s7930 + $0xf0] sm:$0xff]
        %v7956 = vld [vmem:[%s7930 + $0xf8] sm:$0xff]
        %v7957 = vld [vmem:[%s7930 + $0x100] sm:$0xff]
        %v7958 = vld [vmem:[%s7930 + $0x108] sm:$0xff]
        %v7959 = vld [vmem:[%s7930 + $0x110] sm:$0xff]
        %v7960 = vld [vmem:[%s7930 + $0x118] sm:$0xff]
        %v7961 = vld [vmem:[%s7930 + $0x120] sm:$0xff]
        %v7962 = vld [vmem:[%s7930 + $0x128] sm:$0xff]
        %v7963 = vld [vmem:[%s7930 + $0x140] sm:$0xff]
        %v7964 = vld [vmem:[%s7930 + $0x148] sm:$0xff]
        %v7965 = vld [vmem:[%s7930 + $0x150] sm:$0xff]
        %v7966 = vld [vmem:[%s7930 + $0x158] sm:$0xff]
        %v7967 = vld [vmem:[%s7930 + $0x160] sm:$0xff]
        %v7968 = vld [vmem:[%s7930 + $0x168] sm:$0xff]
        %v7969 = vld [vmem:[%s7930 + $0x170] sm:$0xff]
        %v7970 = vld [vmem:[%s7930 + $0x178] sm:$0xff]
        %v7971 = vld [vmem:[%s7930 + $0x190] sm:$0xff]
        %v7972 = vld [vmem:[%s7930 + $0x198] sm:$0xff]
        %v7973 = vld [vmem:[%s7930 + $0x1a0] sm:$0xff]
        %v7974 = vld [vmem:[%s7930 + $0x1a8] sm:$0xff]
        %v7975 = vld [vmem:[%s7930 + $0x1b0] sm:$0xff]
        %v7976 = vld [vmem:[%s7930 + $0x1b8] sm:$0xff]
        %v7977 = vld [vmem:[%s7930 + $0x1c0] sm:$0xff]
        %v7978 = vld [vmem:[%s7930 + $0x1c8] sm:$0xff]
        %v7979 = vld [vmem:[%s7930 + $0x1e0] sm:$0xff]
        %v7980 = vld [vmem:[%s7930 + $0x1e8] sm:$0xff]
        %v7981 = vld [vmem:[%s7930 + $0x1f0] sm:$0xff]
        %v7982 = vld [vmem:[%s7930 + $0x1f8] sm:$0xff]
        %v7983 = vld [vmem:[%s7930 + $0x200] sm:$0xff]
        %v7984 = vld [vmem:[%s7930 + $0x208] sm:$0xff]
        %v7985 = vld [vmem:[%s7930 + $0x210] sm:$0xff]
        %v7986 = vld [vmem:[%s7930 + $0x218] sm:$0xff]
        %v7987 = vld [vmem:[%s7930 + $0x230] sm:$0xff]
        %v7988 = vld [vmem:[%s7930 + $0x238] sm:$0xff]
        %v7989 = vld [vmem:[%s7930 + $0x240] sm:$0xff]
        %v7990 = vld [vmem:[%s7930 + $0x248] sm:$0xff]
        %v7991 = vld [vmem:[%s7930 + $0x250] sm:$0xff]
        %v7992 = vld [vmem:[%s7930 + $0x258] sm:$0xff]
        %v7993 = vld [vmem:[%s7930 + $0x260] sm:$0xff]
        %v7994 = vld [vmem:[%s7930 + $0x268] sm:$0xff]
        %v7995 = vpack.c.bf16 %v7932, %v7931
        %v7996 = vpack.c.bf16 %v7934, %v7933
        %v7997 = vpack.c.bf16 %v7936, %v7935
        %v7998 = vpack.c.bf16 %v7938, %v7937
        %v7999 = vpack.c.bf16 %v7940, %v7939
        %v8000 = vpack.c.bf16 %v7942, %v7941
        %v8001 = vpack.c.bf16 %v7944, %v7943
        %v8002 = vpack.c.bf16 %v7946, %v7945
        %v8003 = vpack.c.bf16 %v7948, %v7947
        %v8004 = vpack.c.bf16 %v7950, %v7949
        %v8005 = vpack.c.bf16 %v7952, %v7951
        %v8006 = vpack.c.bf16 %v7954, %v7953
        %v8007 = vpack.c.bf16 %v7956, %v7955
        %v8008 = vpack.c.bf16 %v7958, %v7957
        %v8009 = vpack.c.bf16 %v7960, %v7959
        %v8010 = vpack.c.bf16 %v7962, %v7961
        %v8011 = vpack.c.bf16 %v7964, %v7963
        %v8012 = vpack.c.bf16 %v7966, %v7965
        %v8013 = vpack.c.bf16 %v7968, %v7967
        %v8014 = vpack.c.bf16 %v7970, %v7969
        %v8015 = vpack.c.bf16 %v7972, %v7971
        %v8016 = vpack.c.bf16 %v7974, %v7973
        %v8017 = vpack.c.bf16 %v7976, %v7975
        %v8018 = vpack.c.bf16 %v7978, %v7977
        %v8019 = vpack.c.bf16 %v7980, %v7979
        %v8020 = vpack.c.bf16 %v7982, %v7981
        %v8021 = vpack.c.bf16 %v7984, %v7983
        %v8022 = vpack.c.bf16 %v7986, %v7985
        %v8023 = vpack.c.bf16 %v7988, %v7987
        %v8024 = vpack.c.bf16 %v7990, %v7989
        %v8025 = vpack.c.bf16 %v7992, %v7991
        %v8026 = vpack.c.bf16 %v7994, %v7993
        %s8027 = scalar_lea.vmem [#allocation8], 384
        %v8028 = vld [vmem:[%s8027] sm:$0xf]
        %v8029 = vld [vmem:[%s8027 + $0x4] sm:$0xf]
        %v8030 = vld [vmem:[%s8027 + $0x8] sm:$0xf]
        %v8031 = vld [vmem:[%s8027 + $0xc] sm:$0xf]
        %v8032 = vld [vmem:[%s8027 + $0x10] sm:$0xf]
        %v8033 = vld [vmem:[%s8027 + $0x14] sm:$0xf]
        %v8034 = vld [vmem:[%s8027 + $0x18] sm:$0xf]
        %v8035 = vld [vmem:[%s8027 + $0x1c] sm:$0xf]
        %v8036 = vld [vmem:[%s8027 + $0x20] sm:$0xf]
        %v8037 = vld [vmem:[%s8027 + $0x24] sm:$0xf]
        %v8038 = vld [vmem:[%s8027 + $0x28] sm:$0xf]
        %v8039 = vld [vmem:[%s8027 + $0x2c] sm:$0xf]
        %v8040 = vld [vmem:[%s8027 + $0x30] sm:$0xf]
        %v8041 = vld [vmem:[%s8027 + $0x34] sm:$0xf]
        %v8042 = vld [vmem:[%s8027 + $0x38] sm:$0xf]
        %v8043 = vld [vmem:[%s8027 + $0x3c] sm:$0xf]
        %v8060 = vunpack.c.l.b16 %v8028
        %v8061 = vunpack.c.l.b16 %v8029
        %v8062 = vunpack.c.l.b16 %v8030
        %v8063 = vunpack.c.l.b16 %v8031
        %v8064 = vunpack.c.l.b16 %v8032
        %v8065 = vunpack.c.l.b16 %v8033
        %v8066 = vunpack.c.l.b16 %v8034
        %v8067 = vunpack.c.l.b16 %v8035
        %v8068 = vunpack.c.l.b16 %v8036
        %v8069 = vunpack.c.l.b16 %v8037
        %v8070 = vunpack.c.l.b16 %v8038
        %v8071 = vunpack.c.l.b16 %v8039
        %v8072 = vunpack.c.l.b16 %v8040
        %v8073 = vunpack.c.l.b16 %v8041
        %v8074 = vunpack.c.l.b16 %v8042
        %v8075 = vunpack.c.l.b16 %v8043
        %v8076 = vpack.c.b16 %v8061, %v8060
        %v8077 = vpack.c.b16 %v8063, %v8062
        %v8078 = vpack.c.b16 %v8065, %v8064
        %v8079 = vpack.c.b16 %v8067, %v8066
        %v8080 = vpack.c.b16 %v8069, %v8068
        %v8081 = vpack.c.b16 %v8071, %v8070
        %v8082 = vpack.c.b16 %v8073, %v8072
        %v8083 = vpack.c.b16 %v8075, %v8074
        %8092 = vmatprep.subr.bf16.mxu0 0
        %8093 = vmatpush1.bf16.msra.mxu0 %v8083
        %8094 = vmatprep.subr.bf16.mxu0 0
        %8095 = vmatpush1.bf16.msra.mxu0 %v8082
        %8096 = vmatprep.subr.bf16.mxu0 0
        %8097 = vmatpush1.bf16.msra.mxu0 %v8081
        %8098 = vmatprep.subr.bf16.mxu0 0
        %8099 = vmatpush1.bf16.msra.mxu0 %v8080
        %8100 = vmatprep.subr.bf16.mxu0 0
        %8101 = vmatpush1.bf16.msra.mxu0 %v8079
        %8102 = vmatprep.subr.bf16.mxu0 0
        %8103 = vmatpush1.bf16.msra.mxu0 %v8078
        %8104 = vmatprep.subr.bf16.mxu0 0
        %8105 = vmatpush1.bf16.msra.mxu0 %v8077
        %8106 = vmatprep.subr.bf16.mxu0 0
        %8107 = vmatpush1.bf16.msra.mxu0 %v8076
        %8108 = vmatprep.subr.bf16.mxu0 0
        %8109 = vmatpush2.bf16.msra.mxu0 0
        %8110 = vmatprep.subr.bf16.mxu0 0
        %8111 = vmatpush2.bf16.msra.mxu0 0
        %8112 = vmatprep.subr.bf16.mxu0 0
        %8113 = vmatpush2.bf16.msra.mxu0 0
        %8114 = vmatprep.subr.bf16.mxu0 0
        %8115 = vmatpush2.bf16.msra.mxu0 0
        %8116 = vmatprep.subr.bf16.mxu0 0
        %8117 = vmatpush2.bf16.msra.mxu0 0
        %8118 = vmatprep.subr.bf16.mxu0 0
        %8119 = vmatpush2.bf16.msra.mxu0 0
        %8120 = vmatprep.subr.bf16.mxu0 0
        %8121 = vmatpush2.bf16.msra.mxu0 0
        %8122 = vmatprep.subr.bf16.mxu0 0
        %8123 = vmatpush2.bf16.msra.mxu0 0
        %8124 = vmatprep.mubr.bf16.mxu0 0
        %8125 = vmatmul.mubr.bf16.gmra.mxu0 %v7995
        %v8126 = vpop.f32.mrf.mxu0
        %v8127 = vadd.f32 0.0, %v8126
        %v8128 = vpop.f32.mrf.mxu0
        %v8129 = vpop.f32.mrf.mxu0
        %v8130 = vadd.f32 0.0, %v8129
        %v8131 = vpop.f32.mrf.mxu0
        %8132 = vmatprep.mubr.bf16.mxu0 0
        %8133 = vmatmul.mubr.bf16.gmra.mxu0 %v7996
        %v8134 = vpop.f32.mrf.mxu0
        %v8135 = vadd.f32 0.0, %v8134
        %v8136 = vpop.f32.mrf.mxu0
        %v8137 = vpop.f32.mrf.mxu0
        %v8138 = vadd.f32 0.0, %v8137
        %v8139 = vpop.f32.mrf.mxu0
        %8140 = vmatprep.mubr.bf16.mxu0 0
        %8141 = vmatmul.mubr.bf16.gmra.mxu0 %v7997
        %v8142 = vpop.f32.mrf.mxu0
        %v8143 = vadd.f32 0.0, %v8142
        %v8144 = vpop.f32.mrf.mxu0
        %v8145 = vpop.f32.mrf.mxu0
        %v8146 = vadd.f32 0.0, %v8145
        %v8147 = vpop.f32.mrf.mxu0
        %8148 = vmatprep.mubr.bf16.mxu0 0
        %8149 = vmatmul.mubr.bf16.gmra.mxu0 %v7998
        %v8150 = vpop.f32.mrf.mxu0
        %v8151 = vadd.f32 0.0, %v8150
        %v8152 = vpop.f32.mrf.mxu0
        %v8153 = vpop.f32.mrf.mxu0
        %v8154 = vadd.f32 0.0, %v8153
        %v8155 = vpop.f32.mrf.mxu0
        %8156 = vmatprep.mubr.bf16.mxu0 0
        %8157 = vmatmul.mubr.bf16.gmra.mxu0 %v7999
        %v8158 = vpop.f32.mrf.mxu0
        %v8159 = vadd.f32 0.0, %v8158
        %v8160 = vpop.f32.mrf.mxu0
        %v8161 = vpop.f32.mrf.mxu0
        %v8162 = vadd.f32 0.0, %v8161
        %v8163 = vpop.f32.mrf.mxu0
        %8164 = vmatprep.mubr.bf16.mxu0 0
        %8165 = vmatmul.mubr.bf16.gmra.mxu0 %v8000
        %v8166 = vpop.f32.mrf.mxu0
        %v8167 = vadd.f32 0.0, %v8166
        %v8168 = vpop.f32.mrf.mxu0
        %v8169 = vpop.f32.mrf.mxu0
        %v8170 = vadd.f32 0.0, %v8169
        %v8171 = vpop.f32.mrf.mxu0
        %8172 = vmatprep.mubr.bf16.mxu0 0
        %8173 = vmatmul.mubr.bf16.gmra.mxu0 %v8001
        %v8174 = vpop.f32.mrf.mxu0
        %v8175 = vadd.f32 0.0, %v8174
        %v8176 = vpop.f32.mrf.mxu0
        %v8177 = vpop.f32.mrf.mxu0
        %v8178 = vadd.f32 0.0, %v8177
        %v8179 = vpop.f32.mrf.mxu0
        %8180 = vmatprep.mubr.bf16.mxu0 0
        %8181 = vmatmul.mubr.bf16.gmra.mxu0 %v8002
        %v8182 = vpop.f32.mrf.mxu0
        %v8183 = vadd.f32 0.0, %v8182
        %v8184 = vpop.f32.mrf.mxu0
        %v8185 = vpop.f32.mrf.mxu0
        %v8186 = vadd.f32 0.0, %v8185
        %v8187 = vpop.f32.mrf.mxu0
        %8188 = vmatprep.mubr.bf16.mxu0 0
        %8189 = vmatmul.mubr.bf16.gmra.mxu0 %v8003
        %v8190 = vpop.f32.mrf.mxu0
        %v8191 = vadd.f32 0.0, %v8190
        %v8192 = vpop.f32.mrf.mxu0
        %v8193 = vpop.f32.mrf.mxu0
        %v8194 = vadd.f32 0.0, %v8193
        %v8195 = vpop.f32.mrf.mxu0
        %8196 = vmatprep.mubr.bf16.mxu0 0
        %8197 = vmatmul.mubr.bf16.gmra.mxu0 %v8004
        %v8198 = vpop.f32.mrf.mxu0
        %v8199 = vadd.f32 0.0, %v8198
        %v8200 = vpop.f32.mrf.mxu0
        %v8201 = vpop.f32.mrf.mxu0
        %v8202 = vadd.f32 0.0, %v8201
        %v8203 = vpop.f32.mrf.mxu0
        %8204 = vmatprep.mubr.bf16.mxu0 0
        %8205 = vmatmul.mubr.bf16.gmra.mxu0 %v8005
        %v8206 = vpop.f32.mrf.mxu0
        %v8207 = vadd.f32 0.0, %v8206
        %v8208 = vpop.f32.mrf.mxu0
        %v8209 = vpop.f32.mrf.mxu0
        %v8210 = vadd.f32 0.0, %v8209
        %v8211 = vpop.f32.mrf.mxu0
        %8212 = vmatprep.mubr.bf16.mxu0 0
        %8213 = vmatmul.mubr.bf16.gmra.mxu0 %v8006
        %v8214 = vpop.f32.mrf.mxu0
        %v8215 = vadd.f32 0.0, %v8214
        %v8216 = vpop.f32.mrf.mxu0
        %v8217 = vpop.f32.mrf.mxu0
        %v8218 = vadd.f32 0.0, %v8217
        %v8219 = vpop.f32.mrf.mxu0
        %8220 = vmatprep.mubr.bf16.mxu0 0
        %8221 = vmatmul.mubr.bf16.gmra.mxu0 %v8007
        %v8222 = vpop.f32.mrf.mxu0
        %v8223 = vadd.f32 0.0, %v8222
        %v8224 = vpop.f32.mrf.mxu0
        %v8225 = vpop.f32.mrf.mxu0
        %v8226 = vadd.f32 0.0, %v8225
        %v8227 = vpop.f32.mrf.mxu0
        %8228 = vmatprep.mubr.bf16.mxu0 0
        %8229 = vmatmul.mubr.bf16.gmra.mxu0 %v8008
        %v8230 = vpop.f32.mrf.mxu0
        %v8231 = vadd.f32 0.0, %v8230
        %v8232 = vpop.f32.mrf.mxu0
        %v8233 = vpop.f32.mrf.mxu0
        %v8234 = vadd.f32 0.0, %v8233
        %v8235 = vpop.f32.mrf.mxu0
        %8236 = vmatprep.mubr.bf16.mxu0 0
        %8237 = vmatmul.mubr.bf16.gmra.mxu0 %v8009
        %v8238 = vpop.f32.mrf.mxu0
        %v8239 = vadd.f32 0.0, %v8238
        %v8240 = vpop.f32.mrf.mxu0
        %v8241 = vpop.f32.mrf.mxu0
        %v8242 = vadd.f32 0.0, %v8241
        %v8243 = vpop.f32.mrf.mxu0
        %8244 = vmatprep.mubr.bf16.mxu0 0
        %8245 = vmatmul.mubr.bf16.gmra.mxu0 %v8010
        %v8246 = vpop.f32.mrf.mxu0
        %v8247 = vadd.f32 0.0, %v8246
        %v8248 = vpop.f32.mrf.mxu0
        %v8249 = vpop.f32.mrf.mxu0
        %v8250 = vadd.f32 0.0, %v8249
        %v8251 = vpop.f32.mrf.mxu0
        %8252 = vmatprep.mubr.bf16.mxu0 0
        %8253 = vmatmul.mubr.bf16.gmra.mxu0 %v8011
        %v8254 = vpop.f32.mrf.mxu0
        %v8255 = vadd.f32 0.0, %v8254
        %v8256 = vpop.f32.mrf.mxu0
        %v8257 = vpop.f32.mrf.mxu0
        %v8258 = vadd.f32 0.0, %v8257
        %v8259 = vpop.f32.mrf.mxu0
        %8260 = vmatprep.mubr.bf16.mxu0 0
        %8261 = vmatmul.mubr.bf16.gmra.mxu0 %v8012
        %v8262 = vpop.f32.mrf.mxu0
        %v8263 = vadd.f32 0.0, %v8262
        %v8264 = vpop.f32.mrf.mxu0
        %v8265 = vpop.f32.mrf.mxu0
        %v8266 = vadd.f32 0.0, %v8265
        %v8267 = vpop.f32.mrf.mxu0
        %8268 = vmatprep.mubr.bf16.mxu0 0
        %8269 = vmatmul.mubr.bf16.gmra.mxu0 %v8013
        %v8270 = vpop.f32.mrf.mxu0
        %v8271 = vadd.f32 0.0, %v8270
        %v8272 = vpop.f32.mrf.mxu0
        %v8273 = vpop.f32.mrf.mxu0
        %v8274 = vadd.f32 0.0, %v8273
        %v8275 = vpop.f32.mrf.mxu0
        %8276 = vmatprep.mubr.bf16.mxu0 0
        %8277 = vmatmul.mubr.bf16.gmra.mxu0 %v8014
        %v8278 = vpop.f32.mrf.mxu0
        %v8279 = vadd.f32 0.0, %v8278
        %v8280 = vpop.f32.mrf.mxu0
        %v8281 = vpop.f32.mrf.mxu0
        %v8282 = vadd.f32 0.0, %v8281
        %v8283 = vpop.f32.mrf.mxu0
        %8284 = vmatprep.mubr.bf16.mxu0 0
        %8285 = vmatmul.mubr.bf16.gmra.mxu0 %v8015
        %v8286 = vpop.f32.mrf.mxu0
        %v8287 = vadd.f32 0.0, %v8286
        %v8288 = vpop.f32.mrf.mxu0
        %v8289 = vpop.f32.mrf.mxu0
        %v8290 = vadd.f32 0.0, %v8289
        %v8291 = vpop.f32.mrf.mxu0
        %8292 = vmatprep.mubr.bf16.mxu0 0
        %8293 = vmatmul.mubr.bf16.gmra.mxu0 %v8016
        %v8294 = vpop.f32.mrf.mxu0
        %v8295 = vadd.f32 0.0, %v8294
        %v8296 = vpop.f32.mrf.mxu0
        %v8297 = vpop.f32.mrf.mxu0
        %v8298 = vadd.f32 0.0, %v8297
        %v8299 = vpop.f32.mrf.mxu0
        %8300 = vmatprep.mubr.bf16.mxu0 0
        %8301 = vmatmul.mubr.bf16.gmra.mxu0 %v8017
        %v8302 = vpop.f32.mrf.mxu0
        %v8303 = vadd.f32 0.0, %v8302
        %v8304 = vpop.f32.mrf.mxu0
        %v8305 = vpop.f32.mrf.mxu0
        %v8306 = vadd.f32 0.0, %v8305
        %v8307 = vpop.f32.mrf.mxu0
        %8308 = vmatprep.mubr.bf16.mxu0 0
        %8309 = vmatmul.mubr.bf16.gmra.mxu0 %v8018
        %v8310 = vpop.f32.mrf.mxu0
        %v8311 = vadd.f32 0.0, %v8310
        %v8312 = vpop.f32.mrf.mxu0
        %v8313 = vpop.f32.mrf.mxu0
        %v8314 = vadd.f32 0.0, %v8313
        %v8315 = vpop.f32.mrf.mxu0
        %8316 = vmatprep.mubr.bf16.mxu0 0
        %8317 = vmatmul.mubr.bf16.gmra.mxu0 %v8019
        %v8318 = vpop.f32.mrf.mxu0
        %v8319 = vadd.f32 0.0, %v8318
        %v8320 = vpop.f32.mrf.mxu0
        %v8321 = vpop.f32.mrf.mxu0
        %v8322 = vadd.f32 0.0, %v8321
        %v8323 = vpop.f32.mrf.mxu0
        %8324 = vmatprep.mubr.bf16.mxu0 0
        %8325 = vmatmul.mubr.bf16.gmra.mxu0 %v8020
        %v8326 = vpop.f32.mrf.mxu0
        %v8327 = vadd.f32 0.0, %v8326
        %v8328 = vpop.f32.mrf.mxu0
        %v8329 = vpop.f32.mrf.mxu0
        %v8330 = vadd.f32 0.0, %v8329
        %v8331 = vpop.f32.mrf.mxu0
        %8332 = vmatprep.mubr.bf16.mxu0 0
        %8333 = vmatmul.mubr.bf16.gmra.mxu0 %v8021
        %v8334 = vpop.f32.mrf.mxu0
        %v8335 = vadd.f32 0.0, %v8334
        %v8336 = vpop.f32.mrf.mxu0
        %v8337 = vpop.f32.mrf.mxu0
        %v8338 = vadd.f32 0.0, %v8337
        %v8339 = vpop.f32.mrf.mxu0
        %8340 = vmatprep.mubr.bf16.mxu0 0
        %8341 = vmatmul.mubr.bf16.gmra.mxu0 %v8022
        %v8342 = vpop.f32.mrf.mxu0
        %v8343 = vadd.f32 0.0, %v8342
        %v8344 = vpop.f32.mrf.mxu0
        %v8345 = vpop.f32.mrf.mxu0
        %v8346 = vadd.f32 0.0, %v8345
        %v8347 = vpop.f32.mrf.mxu0
        %8348 = vmatprep.mubr.bf16.mxu0 0
        %8349 = vmatmul.mubr.bf16.gmra.mxu0 %v8023
        %v8350 = vpop.f32.mrf.mxu0
        %v8351 = vadd.f32 0.0, %v8350
        %v8352 = vpop.f32.mrf.mxu0
        %v8353 = vpop.f32.mrf.mxu0
        %v8354 = vadd.f32 0.0, %v8353
        %v8355 = vpop.f32.mrf.mxu0
        %8356 = vmatprep.mubr.bf16.mxu0 0
        %8357 = vmatmul.mubr.bf16.gmra.mxu0 %v8024
        %v8358 = vpop.f32.mrf.mxu0
        %v8359 = vadd.f32 0.0, %v8358
        %v8360 = vpop.f32.mrf.mxu0
        %v8361 = vpop.f32.mrf.mxu0
        %v8362 = vadd.f32 0.0, %v8361
        %v8363 = vpop.f32.mrf.mxu0
        %8364 = vmatprep.mubr.bf16.mxu0 0
        %8365 = vmatmul.mubr.bf16.gmra.mxu0 %v8025
        %v8366 = vpop.f32.mrf.mxu0
        %v8367 = vadd.f32 0.0, %v8366
        %v8368 = vpop.f32.mrf.mxu0
        %v8369 = vpop.f32.mrf.mxu0
        %v8370 = vadd.f32 0.0, %v8369
        %v8371 = vpop.f32.mrf.mxu0
        %8372 = vmatprep.mubr.bf16.mxu0 0
        %8373 = vmatmul.mubr.bf16.gmra.mxu0 %v8026
        %v8374 = vpop.f32.mrf.mxu0
        %v8375 = vadd.f32 0.0, %v8374
        %v8376 = vpop.f32.mrf.mxu0
        %v8377 = vpop.f32.mrf.mxu0
        %v8378 = vadd.f32 0.0, %v8377
        %v8379 = vpop.f32.mrf.mxu0
        %8380 = vdwg.mxu0
        %v8381 = vadd.f32 %v7866, %v8127
        %v8382 = vadd.f32 %v7867, %v8130
        %v8383 = vadd.f32 %v7868, %v8135
        %v8384 = vadd.f32 %v7869, %v8138
        %v8385 = vadd.f32 %v7870, %v8143
        %v8386 = vadd.f32 %v7871, %v8146
        %v8387 = vadd.f32 %v7872, %v8151
        %v8388 = vadd.f32 %v7873, %v8154
        %v8389 = vadd.f32 %v7874, %v8159
        %v8390 = vadd.f32 %v7875, %v8162
        %v8391 = vadd.f32 %v7876, %v8167
        %v8392 = vadd.f32 %v7877, %v8170
        %v8393 = vadd.f32 %v7878, %v8175
        %v8394 = vadd.f32 %v7879, %v8178
        %v8395 = vadd.f32 %v7880, %v8183
        %v8396 = vadd.f32 %v7881, %v8186
        %v8397 = vadd.f32 %v7882, %v8191
        %v8398 = vadd.f32 %v7883, %v8194
        %v8399 = vadd.f32 %v7884, %v8199
        %v8400 = vadd.f32 %v7885, %v8202
        %v8401 = vadd.f32 %v7886, %v8207
        %v8402 = vadd.f32 %v7887, %v8210
        %v8403 = vadd.f32 %v7888, %v8215
        %v8404 = vadd.f32 %v7889, %v8218
        %v8405 = vadd.f32 %v7890, %v8223
        %v8406 = vadd.f32 %v7891, %v8226
        %v8407 = vadd.f32 %v7892, %v8231
        %v8408 = vadd.f32 %v7893, %v8234
        %v8409 = vadd.f32 %v7894, %v8239
        %v8410 = vadd.f32 %v7895, %v8242
        %v8411 = vadd.f32 %v7896, %v8247
        %v8412 = vadd.f32 %v7897, %v8250
        %v8413 = vadd.f32 %v7898, %v8255
        %v8414 = vadd.f32 %v7899, %v8258
        %v8415 = vadd.f32 %v7900, %v8263
        %v8416 = vadd.f32 %v7901, %v8266
        %v8417 = vadd.f32 %v7902, %v8271
        %v8418 = vadd.f32 %v7903, %v8274
        %v8419 = vadd.f32 %v7904, %v8279
        %v8420 = vadd.f32 %v7905, %v8282
        %v8421 = vadd.f32 %v7906, %v8287
        %v8422 = vadd.f32 %v7907, %v8290
        %v8423 = vadd.f32 %v7908, %v8295
        %v8424 = vadd.f32 %v7909, %v8298
        %v8425 = vadd.f32 %v7910, %v8303
        %v8426 = vadd.f32 %v7911, %v8306
        %v8427 = vadd.f32 %v7912, %v8311
        %v8428 = vadd.f32 %v7913, %v8314
        %v8429 = vadd.f32 %v7914, %v8319
        %v8430 = vadd.f32 %v7915, %v8322
        %v8431 = vadd.f32 %v7916, %v8327
        %v8432 = vadd.f32 %v7917, %v8330
        %v8433 = vadd.f32 %v7918, %v8335
        %v8434 = vadd.f32 %v7919, %v8338
        %v8435 = vadd.f32 %v7920, %v8343
        %v8436 = vadd.f32 %v7921, %v8346
        %v8437 = vadd.f32 %v7922, %v8351
        %v8438 = vadd.f32 %v7923, %v8354
        %v8439 = vadd.f32 %v7924, %v8359
        %v8440 = vadd.f32 %v7925, %v8362
        %v8441 = vadd.f32 %v7926, %v8367
        %v8442 = vadd.f32 %v7927, %v8370
        %v8443 = vadd.f32 %v7928, %v8375
        %v8444 = vadd.f32 %v7929, %v8378
        %s8445 = scalar_lea.vmem [#allocation2], 168
        %v8446 = vld [vmem:[%s8445] sm:$0xff]
        %v8447 = vld [vmem:[%s8445 + $0x8] sm:$0xff]
        %v8448 = vld [vmem:[%s8445 + $0x10] sm:$0xff]
        %v8449 = vld [vmem:[%s8445 + $0x18] sm:$0xff]
        %v8450 = vld [vmem:[%s8445 + $0x20] sm:$0xff]
        %v8451 = vld [vmem:[%s8445 + $0x28] sm:$0xff]
        %v8452 = vld [vmem:[%s8445 + $0x30] sm:$0xff]
        %v8453 = vld [vmem:[%s8445 + $0x38] sm:$0xff]
        %v8454 = vld [vmem:[%s8445 + $0x50] sm:$0xff]
        %v8455 = vld [vmem:[%s8445 + $0x58] sm:$0xff]
        %v8456 = vld [vmem:[%s8445 + $0x60] sm:$0xff]
        %v8457 = vld [vmem:[%s8445 + $0x68] sm:$0xff]
        %v8458 = vld [vmem:[%s8445 + $0x70] sm:$0xff]
        %v8459 = vld [vmem:[%s8445 + $0x78] sm:$0xff]
        %v8460 = vld [vmem:[%s8445 + $0x80] sm:$0xff]
        %v8461 = vld [vmem:[%s8445 + $0x88] sm:$0xff]
        %v8462 = vld [vmem:[%s8445 + $0xa0] sm:$0xff]
        %v8463 = vld [vmem:[%s8445 + $0xa8] sm:$0xff]
        %v8464 = vld [vmem:[%s8445 + $0xb0] sm:$0xff]
        %v8465 = vld [vmem:[%s8445 + $0xb8] sm:$0xff]
        %v8466 = vld [vmem:[%s8445 + $0xc0] sm:$0xff]
        %v8467 = vld [vmem:[%s8445 + $0xc8] sm:$0xff]
        %v8468 = vld [vmem:[%s8445 + $0xd0] sm:$0xff]
        %v8469 = vld [vmem:[%s8445 + $0xd8] sm:$0xff]
        %v8470 = vld [vmem:[%s8445 + $0xf0] sm:$0xff]
        %v8471 = vld [vmem:[%s8445 + $0xf8] sm:$0xff]
        %v8472 = vld [vmem:[%s8445 + $0x100] sm:$0xff]
        %v8473 = vld [vmem:[%s8445 + $0x108] sm:$0xff]
        %v8474 = vld [vmem:[%s8445 + $0x110] sm:$0xff]
        %v8475 = vld [vmem:[%s8445 + $0x118] sm:$0xff]
        %v8476 = vld [vmem:[%s8445 + $0x120] sm:$0xff]
        %v8477 = vld [vmem:[%s8445 + $0x128] sm:$0xff]
        %v8478 = vld [vmem:[%s8445 + $0x140] sm:$0xff]
        %v8479 = vld [vmem:[%s8445 + $0x148] sm:$0xff]
        %v8480 = vld [vmem:[%s8445 + $0x150] sm:$0xff]
        %v8481 = vld [vmem:[%s8445 + $0x158] sm:$0xff]
        %v8482 = vld [vmem:[%s8445 + $0x160] sm:$0xff]
        %v8483 = vld [vmem:[%s8445 + $0x168] sm:$0xff]
        %v8484 = vld [vmem:[%s8445 + $0x170] sm:$0xff]
        %v8485 = vld [vmem:[%s8445 + $0x178] sm:$0xff]
        %v8486 = vld [vmem:[%s8445 + $0x190] sm:$0xff]
        %v8487 = vld [vmem:[%s8445 + $0x198] sm:$0xff]
        %v8488 = vld [vmem:[%s8445 + $0x1a0] sm:$0xff]
        %v8489 = vld [vmem:[%s8445 + $0x1a8] sm:$0xff]
        %v8490 = vld [vmem:[%s8445 + $0x1b0] sm:$0xff]
        %v8491 = vld [vmem:[%s8445 + $0x1b8] sm:$0xff]
        %v8492 = vld [vmem:[%s8445 + $0x1c0] sm:$0xff]
        %v8493 = vld [vmem:[%s8445 + $0x1c8] sm:$0xff]
        %v8494 = vld [vmem:[%s8445 + $0x1e0] sm:$0xff]
        %v8495 = vld [vmem:[%s8445 + $0x1e8] sm:$0xff]
        %v8496 = vld [vmem:[%s8445 + $0x1f0] sm:$0xff]
        %v8497 = vld [vmem:[%s8445 + $0x1f8] sm:$0xff]
        %v8498 = vld [vmem:[%s8445 + $0x200] sm:$0xff]
        %v8499 = vld [vmem:[%s8445 + $0x208] sm:$0xff]
        %v8500 = vld [vmem:[%s8445 + $0x210] sm:$0xff]
        %v8501 = vld [vmem:[%s8445 + $0x218] sm:$0xff]
        %v8502 = vld [vmem:[%s8445 + $0x230] sm:$0xff]
        %v8503 = vld [vmem:[%s8445 + $0x238] sm:$0xff]
        %v8504 = vld [vmem:[%s8445 + $0x240] sm:$0xff]
        %v8505 = vld [vmem:[%s8445 + $0x248] sm:$0xff]
        %v8506 = vld [vmem:[%s8445 + $0x250] sm:$0xff]
        %v8507 = vld [vmem:[%s8445 + $0x258] sm:$0xff]
        %v8508 = vld [vmem:[%s8445 + $0x260] sm:$0xff]
        %v8509 = vld [vmem:[%s8445 + $0x268] sm:$0xff]
        %v8510 = vpack.c.bf16 %v8447, %v8446
        %v8511 = vpack.c.bf16 %v8449, %v8448
        %v8512 = vpack.c.bf16 %v8451, %v8450
        %v8513 = vpack.c.bf16 %v8453, %v8452
        %v8514 = vpack.c.bf16 %v8455, %v8454
        %v8515 = vpack.c.bf16 %v8457, %v8456
        %v8516 = vpack.c.bf16 %v8459, %v8458
        %v8517 = vpack.c.bf16 %v8461, %v8460
        %v8518 = vpack.c.bf16 %v8463, %v8462
        %v8519 = vpack.c.bf16 %v8465, %v8464
        %v8520 = vpack.c.bf16 %v8467, %v8466
        %v8521 = vpack.c.bf16 %v8469, %v8468
        %v8522 = vpack.c.bf16 %v8471, %v8470
        %v8523 = vpack.c.bf16 %v8473, %v8472
        %v8524 = vpack.c.bf16 %v8475, %v8474
        %v8525 = vpack.c.bf16 %v8477, %v8476
        %v8526 = vpack.c.bf16 %v8479, %v8478
        %v8527 = vpack.c.bf16 %v8481, %v8480
        %v8528 = vpack.c.bf16 %v8483, %v8482
        %v8529 = vpack.c.bf16 %v8485, %v8484
        %v8530 = vpack.c.bf16 %v8487, %v8486
        %v8531 = vpack.c.bf16 %v8489, %v8488
        %v8532 = vpack.c.bf16 %v8491, %v8490
        %v8533 = vpack.c.bf16 %v8493, %v8492
        %v8534 = vpack.c.bf16 %v8495, %v8494
        %v8535 = vpack.c.bf16 %v8497, %v8496
        %v8536 = vpack.c.bf16 %v8499, %v8498
        %v8537 = vpack.c.bf16 %v8501, %v8500
        %v8538 = vpack.c.bf16 %v8503, %v8502
        %v8539 = vpack.c.bf16 %v8505, %v8504
        %v8540 = vpack.c.bf16 %v8507, %v8506
        %v8541 = vpack.c.bf16 %v8509, %v8508
        %s8542 = scalar_lea.vmem [#allocation8], 448
        %v8543 = vld [vmem:[%s8542] sm:$0xf]
        %v8544 = vld [vmem:[%s8542 + $0x4] sm:$0xf]
        %v8545 = vld [vmem:[%s8542 + $0x8] sm:$0xf]
        %v8546 = vld [vmem:[%s8542 + $0xc] sm:$0xf]
        %v8547 = vld [vmem:[%s8542 + $0x10] sm:$0xf]
        %v8548 = vld [vmem:[%s8542 + $0x14] sm:$0xf]
        %v8549 = vld [vmem:[%s8542 + $0x18] sm:$0xf]
        %v8550 = vld [vmem:[%s8542 + $0x1c] sm:$0xf]
        %v8551 = vld [vmem:[%s8542 + $0x20] sm:$0xf]
        %v8552 = vld [vmem:[%s8542 + $0x24] sm:$0xf]
        %v8553 = vld [vmem:[%s8542 + $0x28] sm:$0xf]
        %v8554 = vld [vmem:[%s8542 + $0x2c] sm:$0xf]
        %v8555 = vld [vmem:[%s8542 + $0x30] sm:$0xf]
        %v8556 = vld [vmem:[%s8542 + $0x34] sm:$0xf]
        %v8557 = vld [vmem:[%s8542 + $0x38] sm:$0xf]
        %v8558 = vld [vmem:[%s8542 + $0x3c] sm:$0xf]
        %v8575 = vunpack.c.l.b16 %v8543
        %v8576 = vunpack.c.l.b16 %v8544
        %v8577 = vunpack.c.l.b16 %v8545
        %v8578 = vunpack.c.l.b16 %v8546
        %v8579 = vunpack.c.l.b16 %v8547
        %v8580 = vunpack.c.l.b16 %v8548
        %v8581 = vunpack.c.l.b16 %v8549
        %v8582 = vunpack.c.l.b16 %v8550
        %v8583 = vunpack.c.l.b16 %v8551
        %v8584 = vunpack.c.l.b16 %v8552
        %v8585 = vunpack.c.l.b16 %v8553
        %v8586 = vunpack.c.l.b16 %v8554
        %v8587 = vunpack.c.l.b16 %v8555
        %v8588 = vunpack.c.l.b16 %v8556
        %v8589 = vunpack.c.l.b16 %v8557
        %v8590 = vunpack.c.l.b16 %v8558
        %v8591 = vpack.c.b16 %v8576, %v8575
        %v8592 = vpack.c.b16 %v8578, %v8577
        %v8593 = vpack.c.b16 %v8580, %v8579
        %v8594 = vpack.c.b16 %v8582, %v8581
        %v8595 = vpack.c.b16 %v8584, %v8583
        %v8596 = vpack.c.b16 %v8586, %v8585
        %v8597 = vpack.c.b16 %v8588, %v8587
        %v8598 = vpack.c.b16 %v8590, %v8589
        %8607 = vmatprep.subr.bf16.mxu0 0
        %8608 = vmatpush1.bf16.msra.mxu0 %v8598
        %8609 = vmatprep.subr.bf16.mxu0 0
        %8610 = vmatpush1.bf16.msra.mxu0 %v8597
        %8611 = vmatprep.subr.bf16.mxu0 0
        %8612 = vmatpush1.bf16.msra.mxu0 %v8596
        %8613 = vmatprep.subr.bf16.mxu0 0
        %8614 = vmatpush1.bf16.msra.mxu0 %v8595
        %8615 = vmatprep.subr.bf16.mxu0 0
        %8616 = vmatpush1.bf16.msra.mxu0 %v8594
        %8617 = vmatprep.subr.bf16.mxu0 0
        %8618 = vmatpush1.bf16.msra.mxu0 %v8593
        %8619 = vmatprep.subr.bf16.mxu0 0
        %8620 = vmatpush1.bf16.msra.mxu0 %v8592
        %8621 = vmatprep.subr.bf16.mxu0 0
        %8622 = vmatpush1.bf16.msra.mxu0 %v8591
        %8623 = vmatprep.subr.bf16.mxu0 0
        %8624 = vmatpush2.bf16.msra.mxu0 0
        %8625 = vmatprep.subr.bf16.mxu0 0
        %8626 = vmatpush2.bf16.msra.mxu0 0
        %8627 = vmatprep.subr.bf16.mxu0 0
        %8628 = vmatpush2.bf16.msra.mxu0 0
        %8629 = vmatprep.subr.bf16.mxu0 0
        %8630 = vmatpush2.bf16.msra.mxu0 0
        %8631 = vmatprep.subr.bf16.mxu0 0
        %8632 = vmatpush2.bf16.msra.mxu0 0
        %8633 = vmatprep.subr.bf16.mxu0 0
        %8634 = vmatpush2.bf16.msra.mxu0 0
        %8635 = vmatprep.subr.bf16.mxu0 0
        %8636 = vmatpush2.bf16.msra.mxu0 0
        %8637 = vmatprep.subr.bf16.mxu0 0
        %8638 = vmatpush2.bf16.msra.mxu0 0
        %8639 = vmatprep.mubr.bf16.mxu0 0
        %8640 = vmatmul.mubr.bf16.gmra.mxu0 %v8510
        %v8641 = vpop.f32.mrf.mxu0
        %v8642 = vadd.f32 0.0, %v8641
        %v8643 = vpop.f32.mrf.mxu0
        %v8644 = vpop.f32.mrf.mxu0
        %v8645 = vadd.f32 0.0, %v8644
        %v8646 = vpop.f32.mrf.mxu0
        %8647 = vmatprep.mubr.bf16.mxu0 0
        %8648 = vmatmul.mubr.bf16.gmra.mxu0 %v8511
        %v8649 = vpop.f32.mrf.mxu0
        %v8650 = vadd.f32 0.0, %v8649
        %v8651 = vpop.f32.mrf.mxu0
        %v8652 = vpop.f32.mrf.mxu0
        %v8653 = vadd.f32 0.0, %v8652
        %v8654 = vpop.f32.mrf.mxu0
        %8655 = vmatprep.mubr.bf16.mxu0 0
        %8656 = vmatmul.mubr.bf16.gmra.mxu0 %v8512
        %v8657 = vpop.f32.mrf.mxu0
        %v8658 = vadd.f32 0.0, %v8657
        %v8659 = vpop.f32.mrf.mxu0
        %v8660 = vpop.f32.mrf.mxu0
        %v8661 = vadd.f32 0.0, %v8660
        %v8662 = vpop.f32.mrf.mxu0
        %8663 = vmatprep.mubr.bf16.mxu0 0
        %8664 = vmatmul.mubr.bf16.gmra.mxu0 %v8513
        %v8665 = vpop.f32.mrf.mxu0
        %v8666 = vadd.f32 0.0, %v8665
        %v8667 = vpop.f32.mrf.mxu0
        %v8668 = vpop.f32.mrf.mxu0
        %v8669 = vadd.f32 0.0, %v8668
        %v8670 = vpop.f32.mrf.mxu0
        %8671 = vmatprep.mubr.bf16.mxu0 0
        %8672 = vmatmul.mubr.bf16.gmra.mxu0 %v8514
        %v8673 = vpop.f32.mrf.mxu0
        %v8674 = vadd.f32 0.0, %v8673
        %v8675 = vpop.f32.mrf.mxu0
        %v8676 = vpop.f32.mrf.mxu0
        %v8677 = vadd.f32 0.0, %v8676
        %v8678 = vpop.f32.mrf.mxu0
        %8679 = vmatprep.mubr.bf16.mxu0 0
        %8680 = vmatmul.mubr.bf16.gmra.mxu0 %v8515
        %v8681 = vpop.f32.mrf.mxu0
        %v8682 = vadd.f32 0.0, %v8681
        %v8683 = vpop.f32.mrf.mxu0
        %v8684 = vpop.f32.mrf.mxu0
        %v8685 = vadd.f32 0.0, %v8684
        %v8686 = vpop.f32.mrf.mxu0
        %8687 = vmatprep.mubr.bf16.mxu0 0
        %8688 = vmatmul.mubr.bf16.gmra.mxu0 %v8516
        %v8689 = vpop.f32.mrf.mxu0
        %v8690 = vadd.f32 0.0, %v8689
        %v8691 = vpop.f32.mrf.mxu0
        %v8692 = vpop.f32.mrf.mxu0
        %v8693 = vadd.f32 0.0, %v8692
        %v8694 = vpop.f32.mrf.mxu0
        %8695 = vmatprep.mubr.bf16.mxu0 0
        %8696 = vmatmul.mubr.bf16.gmra.mxu0 %v8517
        %v8697 = vpop.f32.mrf.mxu0
        %v8698 = vadd.f32 0.0, %v8697
        %v8699 = vpop.f32.mrf.mxu0
        %v8700 = vpop.f32.mrf.mxu0
        %v8701 = vadd.f32 0.0, %v8700
        %v8702 = vpop.f32.mrf.mxu0
        %8703 = vmatprep.mubr.bf16.mxu0 0
        %8704 = vmatmul.mubr.bf16.gmra.mxu0 %v8518
        %v8705 = vpop.f32.mrf.mxu0
        %v8706 = vadd.f32 0.0, %v8705
        %v8707 = vpop.f32.mrf.mxu0
        %v8708 = vpop.f32.mrf.mxu0
        %v8709 = vadd.f32 0.0, %v8708
        %v8710 = vpop.f32.mrf.mxu0
        %8711 = vmatprep.mubr.bf16.mxu0 0
        %8712 = vmatmul.mubr.bf16.gmra.mxu0 %v8519
        %v8713 = vpop.f32.mrf.mxu0
        %v8714 = vadd.f32 0.0, %v8713
        %v8715 = vpop.f32.mrf.mxu0
        %v8716 = vpop.f32.mrf.mxu0
        %v8717 = vadd.f32 0.0, %v8716
        %v8718 = vpop.f32.mrf.mxu0
        %8719 = vmatprep.mubr.bf16.mxu0 0
        %8720 = vmatmul.mubr.bf16.gmra.mxu0 %v8520
        %v8721 = vpop.f32.mrf.mxu0
        %v8722 = vadd.f32 0.0, %v8721
        %v8723 = vpop.f32.mrf.mxu0
        %v8724 = vpop.f32.mrf.mxu0
        %v8725 = vadd.f32 0.0, %v8724
        %v8726 = vpop.f32.mrf.mxu0
        %8727 = vmatprep.mubr.bf16.mxu0 0
        %8728 = vmatmul.mubr.bf16.gmra.mxu0 %v8521
        %v8729 = vpop.f32.mrf.mxu0
        %v8730 = vadd.f32 0.0, %v8729
        %v8731 = vpop.f32.mrf.mxu0
        %v8732 = vpop.f32.mrf.mxu0
        %v8733 = vadd.f32 0.0, %v8732
        %v8734 = vpop.f32.mrf.mxu0
        %8735 = vmatprep.mubr.bf16.mxu0 0
        %8736 = vmatmul.mubr.bf16.gmra.mxu0 %v8522
        %v8737 = vpop.f32.mrf.mxu0
        %v8738 = vadd.f32 0.0, %v8737
        %v8739 = vpop.f32.mrf.mxu0
        %v8740 = vpop.f32.mrf.mxu0
        %v8741 = vadd.f32 0.0, %v8740
        %v8742 = vpop.f32.mrf.mxu0
        %8743 = vmatprep.mubr.bf16.mxu0 0
        %8744 = vmatmul.mubr.bf16.gmra.mxu0 %v8523
        %v8745 = vpop.f32.mrf.mxu0
        %v8746 = vadd.f32 0.0, %v8745
        %v8747 = vpop.f32.mrf.mxu0
        %v8748 = vpop.f32.mrf.mxu0
        %v8749 = vadd.f32 0.0, %v8748
        %v8750 = vpop.f32.mrf.mxu0
        %8751 = vmatprep.mubr.bf16.mxu0 0
        %8752 = vmatmul.mubr.bf16.gmra.mxu0 %v8524
        %v8753 = vpop.f32.mrf.mxu0
        %v8754 = vadd.f32 0.0, %v8753
        %v8755 = vpop.f32.mrf.mxu0
        %v8756 = vpop.f32.mrf.mxu0
        %v8757 = vadd.f32 0.0, %v8756
        %v8758 = vpop.f32.mrf.mxu0
        %8759 = vmatprep.mubr.bf16.mxu0 0
        %8760 = vmatmul.mubr.bf16.gmra.mxu0 %v8525
        %v8761 = vpop.f32.mrf.mxu0
        %v8762 = vadd.f32 0.0, %v8761
        %v8763 = vpop.f32.mrf.mxu0
        %v8764 = vpop.f32.mrf.mxu0
        %v8765 = vadd.f32 0.0, %v8764
        %v8766 = vpop.f32.mrf.mxu0
        %8767 = vmatprep.mubr.bf16.mxu0 0
        %8768 = vmatmul.mubr.bf16.gmra.mxu0 %v8526
        %v8769 = vpop.f32.mrf.mxu0
        %v8770 = vadd.f32 0.0, %v8769
        %v8771 = vpop.f32.mrf.mxu0
        %v8772 = vpop.f32.mrf.mxu0
        %v8773 = vadd.f32 0.0, %v8772
        %v8774 = vpop.f32.mrf.mxu0
        %8775 = vmatprep.mubr.bf16.mxu0 0
        %8776 = vmatmul.mubr.bf16.gmra.mxu0 %v8527
        %v8777 = vpop.f32.mrf.mxu0
        %v8778 = vadd.f32 0.0, %v8777
        %v8779 = vpop.f32.mrf.mxu0
        %v8780 = vpop.f32.mrf.mxu0
        %v8781 = vadd.f32 0.0, %v8780
        %v8782 = vpop.f32.mrf.mxu0
        %8783 = vmatprep.mubr.bf16.mxu0 0
        %8784 = vmatmul.mubr.bf16.gmra.mxu0 %v8528
        %v8785 = vpop.f32.mrf.mxu0
        %v8786 = vadd.f32 0.0, %v8785
        %v8787 = vpop.f32.mrf.mxu0
        %v8788 = vpop.f32.mrf.mxu0
        %v8789 = vadd.f32 0.0, %v8788
        %v8790 = vpop.f32.mrf.mxu0
        %8791 = vmatprep.mubr.bf16.mxu0 0
        %8792 = vmatmul.mubr.bf16.gmra.mxu0 %v8529
        %v8793 = vpop.f32.mrf.mxu0
        %v8794 = vadd.f32 0.0, %v8793
        %v8795 = vpop.f32.mrf.mxu0
        %v8796 = vpop.f32.mrf.mxu0
        %v8797 = vadd.f32 0.0, %v8796
        %v8798 = vpop.f32.mrf.mxu0
        %8799 = vmatprep.mubr.bf16.mxu0 0
        %8800 = vmatmul.mubr.bf16.gmra.mxu0 %v8530
        %v8801 = vpop.f32.mrf.mxu0
        %v8802 = vadd.f32 0.0, %v8801
        %v8803 = vpop.f32.mrf.mxu0
        %v8804 = vpop.f32.mrf.mxu0
        %v8805 = vadd.f32 0.0, %v8804
        %v8806 = vpop.f32.mrf.mxu0
        %8807 = vmatprep.mubr.bf16.mxu0 0
        %8808 = vmatmul.mubr.bf16.gmra.mxu0 %v8531
        %v8809 = vpop.f32.mrf.mxu0
        %v8810 = vadd.f32 0.0, %v8809
        %v8811 = vpop.f32.mrf.mxu0
        %v8812 = vpop.f32.mrf.mxu0
        %v8813 = vadd.f32 0.0, %v8812
        %v8814 = vpop.f32.mrf.mxu0
        %8815 = vmatprep.mubr.bf16.mxu0 0
        %8816 = vmatmul.mubr.bf16.gmra.mxu0 %v8532
        %v8817 = vpop.f32.mrf.mxu0
        %v8818 = vadd.f32 0.0, %v8817
        %v8819 = vpop.f32.mrf.mxu0
        %v8820 = vpop.f32.mrf.mxu0
        %v8821 = vadd.f32 0.0, %v8820
        %v8822 = vpop.f32.mrf.mxu0
        %8823 = vmatprep.mubr.bf16.mxu0 0
        %8824 = vmatmul.mubr.bf16.gmra.mxu0 %v8533
        %v8825 = vpop.f32.mrf.mxu0
        %v8826 = vadd.f32 0.0, %v8825
        %v8827 = vpop.f32.mrf.mxu0
        %v8828 = vpop.f32.mrf.mxu0
        %v8829 = vadd.f32 0.0, %v8828
        %v8830 = vpop.f32.mrf.mxu0
        %8831 = vmatprep.mubr.bf16.mxu0 0
        %8832 = vmatmul.mubr.bf16.gmra.mxu0 %v8534
        %v8833 = vpop.f32.mrf.mxu0
        %v8834 = vadd.f32 0.0, %v8833
        %v8835 = vpop.f32.mrf.mxu0
        %v8836 = vpop.f32.mrf.mxu0
        %v8837 = vadd.f32 0.0, %v8836
        %v8838 = vpop.f32.mrf.mxu0
        %8839 = vmatprep.mubr.bf16.mxu0 0
        %8840 = vmatmul.mubr.bf16.gmra.mxu0 %v8535
        %v8841 = vpop.f32.mrf.mxu0
        %v8842 = vadd.f32 0.0, %v8841
        %v8843 = vpop.f32.mrf.mxu0
        %v8844 = vpop.f32.mrf.mxu0
        %v8845 = vadd.f32 0.0, %v8844
        %v8846 = vpop.f32.mrf.mxu0
        %8847 = vmatprep.mubr.bf16.mxu0 0
        %8848 = vmatmul.mubr.bf16.gmra.mxu0 %v8536
        %v8849 = vpop.f32.mrf.mxu0
        %v8850 = vadd.f32 0.0, %v8849
        %v8851 = vpop.f32.mrf.mxu0
        %v8852 = vpop.f32.mrf.mxu0
        %v8853 = vadd.f32 0.0, %v8852
        %v8854 = vpop.f32.mrf.mxu0
        %8855 = vmatprep.mubr.bf16.mxu0 0
        %8856 = vmatmul.mubr.bf16.gmra.mxu0 %v8537
        %v8857 = vpop.f32.mrf.mxu0
        %v8858 = vadd.f32 0.0, %v8857
        %v8859 = vpop.f32.mrf.mxu0
        %v8860 = vpop.f32.mrf.mxu0
        %v8861 = vadd.f32 0.0, %v8860
        %v8862 = vpop.f32.mrf.mxu0
        %8863 = vmatprep.mubr.bf16.mxu0 0
        %8864 = vmatmul.mubr.bf16.gmra.mxu0 %v8538
        %v8865 = vpop.f32.mrf.mxu0
        %v8866 = vadd.f32 0.0, %v8865
        %v8867 = vpop.f32.mrf.mxu0
        %v8868 = vpop.f32.mrf.mxu0
        %v8869 = vadd.f32 0.0, %v8868
        %v8870 = vpop.f32.mrf.mxu0
        %8871 = vmatprep.mubr.bf16.mxu0 0
        %8872 = vmatmul.mubr.bf16.gmra.mxu0 %v8539
        %v8873 = vpop.f32.mrf.mxu0
        %v8874 = vadd.f32 0.0, %v8873
        %v8875 = vpop.f32.mrf.mxu0
        %v8876 = vpop.f32.mrf.mxu0
        %v8877 = vadd.f32 0.0, %v8876
        %v8878 = vpop.f32.mrf.mxu0
        %8879 = vmatprep.mubr.bf16.mxu0 0
        %8880 = vmatmul.mubr.bf16.gmra.mxu0 %v8540
        %v8881 = vpop.f32.mrf.mxu0
        %v8882 = vadd.f32 0.0, %v8881
        %v8883 = vpop.f32.mrf.mxu0
        %v8884 = vpop.f32.mrf.mxu0
        %v8885 = vadd.f32 0.0, %v8884
        %v8886 = vpop.f32.mrf.mxu0
        %8887 = vmatprep.mubr.bf16.mxu0 0
        %8888 = vmatmul.mubr.bf16.gmra.mxu0 %v8541
        %v8889 = vpop.f32.mrf.mxu0
        %v8890 = vadd.f32 0.0, %v8889
        %v8891 = vpop.f32.mrf.mxu0
        %v8892 = vpop.f32.mrf.mxu0
        %v8893 = vadd.f32 0.0, %v8892
        %v8894 = vpop.f32.mrf.mxu0
        %8895 = vdwg.mxu0
        %v8896 = vadd.f32 %v8381, %v8642
        %v8897 = vadd.f32 %v8382, %v8645
        %v8898 = vadd.f32 %v8383, %v8650
        %v8899 = vadd.f32 %v8384, %v8653
        %v8900 = vadd.f32 %v8385, %v8658
        %v8901 = vadd.f32 %v8386, %v8661
        %v8902 = vadd.f32 %v8387, %v8666
        %v8903 = vadd.f32 %v8388, %v8669
        %v8904 = vadd.f32 %v8389, %v8674
        %v8905 = vadd.f32 %v8390, %v8677
        %v8906 = vadd.f32 %v8391, %v8682
        %v8907 = vadd.f32 %v8392, %v8685
        %v8908 = vadd.f32 %v8393, %v8690
        %v8909 = vadd.f32 %v8394, %v8693
        %v8910 = vadd.f32 %v8395, %v8698
        %v8911 = vadd.f32 %v8396, %v8701
        %v8912 = vadd.f32 %v8397, %v8706
        %v8913 = vadd.f32 %v8398, %v8709
        %v8914 = vadd.f32 %v8399, %v8714
        %v8915 = vadd.f32 %v8400, %v8717
        %v8916 = vadd.f32 %v8401, %v8722
        %v8917 = vadd.f32 %v8402, %v8725
        %v8918 = vadd.f32 %v8403, %v8730
        %v8919 = vadd.f32 %v8404, %v8733
        %v8920 = vadd.f32 %v8405, %v8738
        %v8921 = vadd.f32 %v8406, %v8741
        %v8922 = vadd.f32 %v8407, %v8746
        %v8923 = vadd.f32 %v8408, %v8749
        %v8924 = vadd.f32 %v8409, %v8754
        %v8925 = vadd.f32 %v8410, %v8757
        %v8926 = vadd.f32 %v8411, %v8762
        %v8927 = vadd.f32 %v8412, %v8765
        %v8928 = vadd.f32 %v8413, %v8770
        %v8929 = vadd.f32 %v8414, %v8773
        %v8930 = vadd.f32 %v8415, %v8778
        %v8931 = vadd.f32 %v8416, %v8781
        %v8932 = vadd.f32 %v8417, %v8786
        %v8933 = vadd.f32 %v8418, %v8789
        %v8934 = vadd.f32 %v8419, %v8794
        %v8935 = vadd.f32 %v8420, %v8797
        %v8936 = vadd.f32 %v8421, %v8802
        %v8937 = vadd.f32 %v8422, %v8805
        %v8938 = vadd.f32 %v8423, %v8810
        %v8939 = vadd.f32 %v8424, %v8813
        %v8940 = vadd.f32 %v8425, %v8818
        %v8941 = vadd.f32 %v8426, %v8821
        %v8942 = vadd.f32 %v8427, %v8826
        %v8943 = vadd.f32 %v8428, %v8829
        %v8944 = vadd.f32 %v8429, %v8834
        %v8945 = vadd.f32 %v8430, %v8837
        %v8946 = vadd.f32 %v8431, %v8842
        %v8947 = vadd.f32 %v8432, %v8845
        %v8948 = vadd.f32 %v8433, %v8850
        %v8949 = vadd.f32 %v8434, %v8853
        %v8950 = vadd.f32 %v8435, %v8858
        %v8951 = vadd.f32 %v8436, %v8861
        %v8952 = vadd.f32 %v8437, %v8866
        %v8953 = vadd.f32 %v8438, %v8869
        %v8954 = vadd.f32 %v8439, %v8874
        %v8955 = vadd.f32 %v8440, %v8877
        %v8956 = vadd.f32 %v8441, %v8882
        %v8957 = vadd.f32 %v8442, %v8885
        %v8958 = vadd.f32 %v8443, %v8890
        %v8959 = vadd.f32 %v8444, %v8893
        %s8960 = scalar_lea.vmem [#allocation2], 176
        %v8961 = vld [vmem:[%s8960] sm:$0xff]
        %v8962 = vld [vmem:[%s8960 + $0x8] sm:$0xff]
        %v8963 = vld [vmem:[%s8960 + $0x10] sm:$0xff]
        %v8964 = vld [vmem:[%s8960 + $0x18] sm:$0xff]
        %v8965 = vld [vmem:[%s8960 + $0x20] sm:$0xff]
        %v8966 = vld [vmem:[%s8960 + $0x28] sm:$0xff]
        %v8967 = vld [vmem:[%s8960 + $0x30] sm:$0xff]
        %v8968 = vld [vmem:[%s8960 + $0x38] sm:$0xff]
        %v8969 = vld [vmem:[%s8960 + $0x50] sm:$0xff]
        %v8970 = vld [vmem:[%s8960 + $0x58] sm:$0xff]
        %v8971 = vld [vmem:[%s8960 + $0x60] sm:$0xff]
        %v8972 = vld [vmem:[%s8960 + $0x68] sm:$0xff]
        %v8973 = vld [vmem:[%s8960 + $0x70] sm:$0xff]
        %v8974 = vld [vmem:[%s8960 + $0x78] sm:$0xff]
        %v8975 = vld [vmem:[%s8960 + $0x80] sm:$0xff]
        %v8976 = vld [vmem:[%s8960 + $0x88] sm:$0xff]
        %v8977 = vld [vmem:[%s8960 + $0xa0] sm:$0xff]
        %v8978 = vld [vmem:[%s8960 + $0xa8] sm:$0xff]
        %v8979 = vld [vmem:[%s8960 + $0xb0] sm:$0xff]
        %v8980 = vld [vmem:[%s8960 + $0xb8] sm:$0xff]
        %v8981 = vld [vmem:[%s8960 + $0xc0] sm:$0xff]
        %v8982 = vld [vmem:[%s8960 + $0xc8] sm:$0xff]
        %v8983 = vld [vmem:[%s8960 + $0xd0] sm:$0xff]
        %v8984 = vld [vmem:[%s8960 + $0xd8] sm:$0xff]
        %v8985 = vld [vmem:[%s8960 + $0xf0] sm:$0xff]
        %v8986 = vld [vmem:[%s8960 + $0xf8] sm:$0xff]
        %v8987 = vld [vmem:[%s8960 + $0x100] sm:$0xff]
        %v8988 = vld [vmem:[%s8960 + $0x108] sm:$0xff]
        %v8989 = vld [vmem:[%s8960 + $0x110] sm:$0xff]
        %v8990 = vld [vmem:[%s8960 + $0x118] sm:$0xff]
        %v8991 = vld [vmem:[%s8960 + $0x120] sm:$0xff]
        %v8992 = vld [vmem:[%s8960 + $0x128] sm:$0xff]
        %v8993 = vld [vmem:[%s8960 + $0x140] sm:$0xff]
        %v8994 = vld [vmem:[%s8960 + $0x148] sm:$0xff]
        %v8995 = vld [vmem:[%s8960 + $0x150] sm:$0xff]
        %v8996 = vld [vmem:[%s8960 + $0x158] sm:$0xff]
        %v8997 = vld [vmem:[%s8960 + $0x160] sm:$0xff]
        %v8998 = vld [vmem:[%s8960 + $0x168] sm:$0xff]
        %v8999 = vld [vmem:[%s8960 + $0x170] sm:$0xff]
        %v9000 = vld [vmem:[%s8960 + $0x178] sm:$0xff]
        %v9001 = vld [vmem:[%s8960 + $0x190] sm:$0xff]
        %v9002 = vld [vmem:[%s8960 + $0x198] sm:$0xff]
        %v9003 = vld [vmem:[%s8960 + $0x1a0] sm:$0xff]
        %v9004 = vld [vmem:[%s8960 + $0x1a8] sm:$0xff]
        %v9005 = vld [vmem:[%s8960 + $0x1b0] sm:$0xff]
        %v9006 = vld [vmem:[%s8960 + $0x1b8] sm:$0xff]
        %v9007 = vld [vmem:[%s8960 + $0x1c0] sm:$0xff]
        %v9008 = vld [vmem:[%s8960 + $0x1c8] sm:$0xff]
        %v9009 = vld [vmem:[%s8960 + $0x1e0] sm:$0xff]
        %v9010 = vld [vmem:[%s8960 + $0x1e8] sm:$0xff]
        %v9011 = vld [vmem:[%s8960 + $0x1f0] sm:$0xff]
        %v9012 = vld [vmem:[%s8960 + $0x1f8] sm:$0xff]
        %v9013 = vld [vmem:[%s8960 + $0x200] sm:$0xff]
        %v9014 = vld [vmem:[%s8960 + $0x208] sm:$0xff]
        %v9015 = vld [vmem:[%s8960 + $0x210] sm:$0xff]
        %v9016 = vld [vmem:[%s8960 + $0x218] sm:$0xff]
        %v9017 = vld [vmem:[%s8960 + $0x230] sm:$0xff]
        %v9018 = vld [vmem:[%s8960 + $0x238] sm:$0xff]
        %v9019 = vld [vmem:[%s8960 + $0x240] sm:$0xff]
        %v9020 = vld [vmem:[%s8960 + $0x248] sm:$0xff]
        %v9021 = vld [vmem:[%s8960 + $0x250] sm:$0xff]
        %v9022 = vld [vmem:[%s8960 + $0x258] sm:$0xff]
        %v9023 = vld [vmem:[%s8960 + $0x260] sm:$0xff]
        %v9024 = vld [vmem:[%s8960 + $0x268] sm:$0xff]
        %v9025 = vpack.c.bf16 %v8962, %v8961
        %v9026 = vpack.c.bf16 %v8964, %v8963
        %v9027 = vpack.c.bf16 %v8966, %v8965
        %v9028 = vpack.c.bf16 %v8968, %v8967
        %v9029 = vpack.c.bf16 %v8970, %v8969
        %v9030 = vpack.c.bf16 %v8972, %v8971
        %v9031 = vpack.c.bf16 %v8974, %v8973
        %v9032 = vpack.c.bf16 %v8976, %v8975
        %v9033 = vpack.c.bf16 %v8978, %v8977
        %v9034 = vpack.c.bf16 %v8980, %v8979
        %v9035 = vpack.c.bf16 %v8982, %v8981
        %v9036 = vpack.c.bf16 %v8984, %v8983
        %v9037 = vpack.c.bf16 %v8986, %v8985
        %v9038 = vpack.c.bf16 %v8988, %v8987
        %v9039 = vpack.c.bf16 %v8990, %v8989
        %v9040 = vpack.c.bf16 %v8992, %v8991
        %v9041 = vpack.c.bf16 %v8994, %v8993
        %v9042 = vpack.c.bf16 %v8996, %v8995
        %v9043 = vpack.c.bf16 %v8998, %v8997
        %v9044 = vpack.c.bf16 %v9000, %v8999
        %v9045 = vpack.c.bf16 %v9002, %v9001
        %v9046 = vpack.c.bf16 %v9004, %v9003
        %v9047 = vpack.c.bf16 %v9006, %v9005
        %v9048 = vpack.c.bf16 %v9008, %v9007
        %v9049 = vpack.c.bf16 %v9010, %v9009
        %v9050 = vpack.c.bf16 %v9012, %v9011
        %v9051 = vpack.c.bf16 %v9014, %v9013
        %v9052 = vpack.c.bf16 %v9016, %v9015
        %v9053 = vpack.c.bf16 %v9018, %v9017
        %v9054 = vpack.c.bf16 %v9020, %v9019
        %v9055 = vpack.c.bf16 %v9022, %v9021
        %v9056 = vpack.c.bf16 %v9024, %v9023
        %s9057 = scalar_lea.vmem [#allocation8], 512
        %v9058 = vld [vmem:[%s9057] sm:$0xf]
        %v9059 = vld [vmem:[%s9057 + $0x4] sm:$0xf]
        %v9060 = vld [vmem:[%s9057 + $0x8] sm:$0xf]
        %v9061 = vld [vmem:[%s9057 + $0xc] sm:$0xf]
        %v9062 = vld [vmem:[%s9057 + $0x10] sm:$0xf]
        %v9063 = vld [vmem:[%s9057 + $0x14] sm:$0xf]
        %v9064 = vld [vmem:[%s9057 + $0x18] sm:$0xf]
        %v9065 = vld [vmem:[%s9057 + $0x1c] sm:$0xf]
        %v9066 = vld [vmem:[%s9057 + $0x20] sm:$0xf]
        %v9067 = vld [vmem:[%s9057 + $0x24] sm:$0xf]
        %v9068 = vld [vmem:[%s9057 + $0x28] sm:$0xf]
        %v9069 = vld [vmem:[%s9057 + $0x2c] sm:$0xf]
        %v9070 = vld [vmem:[%s9057 + $0x30] sm:$0xf]
        %v9071 = vld [vmem:[%s9057 + $0x34] sm:$0xf]
        %v9072 = vld [vmem:[%s9057 + $0x38] sm:$0xf]
        %v9073 = vld [vmem:[%s9057 + $0x3c] sm:$0xf]
        %v9090 = vunpack.c.l.b16 %v9058
        %v9091 = vunpack.c.l.b16 %v9059
        %v9092 = vunpack.c.l.b16 %v9060
        %v9093 = vunpack.c.l.b16 %v9061
        %v9094 = vunpack.c.l.b16 %v9062
        %v9095 = vunpack.c.l.b16 %v9063
        %v9096 = vunpack.c.l.b16 %v9064
        %v9097 = vunpack.c.l.b16 %v9065
        %v9098 = vunpack.c.l.b16 %v9066
        %v9099 = vunpack.c.l.b16 %v9067
        %v9100 = vunpack.c.l.b16 %v9068
        %v9101 = vunpack.c.l.b16 %v9069
        %v9102 = vunpack.c.l.b16 %v9070
        %v9103 = vunpack.c.l.b16 %v9071
        %v9104 = vunpack.c.l.b16 %v9072
        %v9105 = vunpack.c.l.b16 %v9073
        %v9106 = vpack.c.b16 %v9091, %v9090
        %v9107 = vpack.c.b16 %v9093, %v9092
        %v9108 = vpack.c.b16 %v9095, %v9094
        %v9109 = vpack.c.b16 %v9097, %v9096
        %v9110 = vpack.c.b16 %v9099, %v9098
        %v9111 = vpack.c.b16 %v9101, %v9100
        %v9112 = vpack.c.b16 %v9103, %v9102
        %v9113 = vpack.c.b16 %v9105, %v9104
        %9122 = vmatprep.subr.bf16.mxu0 0
        %9123 = vmatpush1.bf16.msra.mxu0 %v9113
        %9124 = vmatprep.subr.bf16.mxu0 0
        %9125 = vmatpush1.bf16.msra.mxu0 %v9112
        %9126 = vmatprep.subr.bf16.mxu0 0
        %9127 = vmatpush1.bf16.msra.mxu0 %v9111
        %9128 = vmatprep.subr.bf16.mxu0 0
        %9129 = vmatpush1.bf16.msra.mxu0 %v9110
        %9130 = vmatprep.subr.bf16.mxu0 0
        %9131 = vmatpush1.bf16.msra.mxu0 %v9109
        %9132 = vmatprep.subr.bf16.mxu0 0
        %9133 = vmatpush1.bf16.msra.mxu0 %v9108
        %9134 = vmatprep.subr.bf16.mxu0 0
        %9135 = vmatpush1.bf16.msra.mxu0 %v9107
        %9136 = vmatprep.subr.bf16.mxu0 0
        %9137 = vmatpush1.bf16.msra.mxu0 %v9106
        %9138 = vmatprep.subr.bf16.mxu0 0
        %9139 = vmatpush2.bf16.msra.mxu0 0
        %9140 = vmatprep.subr.bf16.mxu0 0
        %9141 = vmatpush2.bf16.msra.mxu0 0
        %9142 = vmatprep.subr.bf16.mxu0 0
        %9143 = vmatpush2.bf16.msra.mxu0 0
        %9144 = vmatprep.subr.bf16.mxu0 0
        %9145 = vmatpush2.bf16.msra.mxu0 0
        %9146 = vmatprep.subr.bf16.mxu0 0
        %9147 = vmatpush2.bf16.msra.mxu0 0
        %9148 = vmatprep.subr.bf16.mxu0 0
        %9149 = vmatpush2.bf16.msra.mxu0 0
        %9150 = vmatprep.subr.bf16.mxu0 0
        %9151 = vmatpush2.bf16.msra.mxu0 0
        %9152 = vmatprep.subr.bf16.mxu0 0
        %9153 = vmatpush2.bf16.msra.mxu0 0
        %9154 = vmatprep.mubr.bf16.mxu0 0
        %9155 = vmatmul.mubr.bf16.gmra.mxu0 %v9025
        %v9156 = vpop.f32.mrf.mxu0
        %v9157 = vadd.f32 0.0, %v9156
        %v9158 = vpop.f32.mrf.mxu0
        %v9159 = vpop.f32.mrf.mxu0
        %v9160 = vadd.f32 0.0, %v9159
        %v9161 = vpop.f32.mrf.mxu0
        %9162 = vmatprep.mubr.bf16.mxu0 0
        %9163 = vmatmul.mubr.bf16.gmra.mxu0 %v9026
        %v9164 = vpop.f32.mrf.mxu0
        %v9165 = vadd.f32 0.0, %v9164
        %v9166 = vpop.f32.mrf.mxu0
        %v9167 = vpop.f32.mrf.mxu0
        %v9168 = vadd.f32 0.0, %v9167
        %v9169 = vpop.f32.mrf.mxu0
        %9170 = vmatprep.mubr.bf16.mxu0 0
        %9171 = vmatmul.mubr.bf16.gmra.mxu0 %v9027
        %v9172 = vpop.f32.mrf.mxu0
        %v9173 = vadd.f32 0.0, %v9172
        %v9174 = vpop.f32.mrf.mxu0
        %v9175 = vpop.f32.mrf.mxu0
        %v9176 = vadd.f32 0.0, %v9175
        %v9177 = vpop.f32.mrf.mxu0
        %9178 = vmatprep.mubr.bf16.mxu0 0
        %9179 = vmatmul.mubr.bf16.gmra.mxu0 %v9028
        %v9180 = vpop.f32.mrf.mxu0
        %v9181 = vadd.f32 0.0, %v9180
        %v9182 = vpop.f32.mrf.mxu0
        %v9183 = vpop.f32.mrf.mxu0
        %v9184 = vadd.f32 0.0, %v9183
        %v9185 = vpop.f32.mrf.mxu0
        %9186 = vmatprep.mubr.bf16.mxu0 0
        %9187 = vmatmul.mubr.bf16.gmra.mxu0 %v9029
        %v9188 = vpop.f32.mrf.mxu0
        %v9189 = vadd.f32 0.0, %v9188
        %v9190 = vpop.f32.mrf.mxu0
        %v9191 = vpop.f32.mrf.mxu0
        %v9192 = vadd.f32 0.0, %v9191
        %v9193 = vpop.f32.mrf.mxu0
        %9194 = vmatprep.mubr.bf16.mxu0 0
        %9195 = vmatmul.mubr.bf16.gmra.mxu0 %v9030
        %v9196 = vpop.f32.mrf.mxu0
        %v9197 = vadd.f32 0.0, %v9196
        %v9198 = vpop.f32.mrf.mxu0
        %v9199 = vpop.f32.mrf.mxu0
        %v9200 = vadd.f32 0.0, %v9199
        %v9201 = vpop.f32.mrf.mxu0
        %9202 = vmatprep.mubr.bf16.mxu0 0
        %9203 = vmatmul.mubr.bf16.gmra.mxu0 %v9031
        %v9204 = vpop.f32.mrf.mxu0
        %v9205 = vadd.f32 0.0, %v9204
        %v9206 = vpop.f32.mrf.mxu0
        %v9207 = vpop.f32.mrf.mxu0
        %v9208 = vadd.f32 0.0, %v9207
        %v9209 = vpop.f32.mrf.mxu0
        %9210 = vmatprep.mubr.bf16.mxu0 0
        %9211 = vmatmul.mubr.bf16.gmra.mxu0 %v9032
        %v9212 = vpop.f32.mrf.mxu0
        %v9213 = vadd.f32 0.0, %v9212
        %v9214 = vpop.f32.mrf.mxu0
        %v9215 = vpop.f32.mrf.mxu0
        %v9216 = vadd.f32 0.0, %v9215
        %v9217 = vpop.f32.mrf.mxu0
        %9218 = vmatprep.mubr.bf16.mxu0 0
        %9219 = vmatmul.mubr.bf16.gmra.mxu0 %v9033
        %v9220 = vpop.f32.mrf.mxu0
        %v9221 = vadd.f32 0.0, %v9220
        %v9222 = vpop.f32.mrf.mxu0
        %v9223 = vpop.f32.mrf.mxu0
        %v9224 = vadd.f32 0.0, %v9223
        %v9225 = vpop.f32.mrf.mxu0
        %9226 = vmatprep.mubr.bf16.mxu0 0
        %9227 = vmatmul.mubr.bf16.gmra.mxu0 %v9034
        %v9228 = vpop.f32.mrf.mxu0
        %v9229 = vadd.f32 0.0, %v9228
        %v9230 = vpop.f32.mrf.mxu0
        %v9231 = vpop.f32.mrf.mxu0
        %v9232 = vadd.f32 0.0, %v9231
        %v9233 = vpop.f32.mrf.mxu0
        %9234 = vmatprep.mubr.bf16.mxu0 0
        %9235 = vmatmul.mubr.bf16.gmra.mxu0 %v9035
        %v9236 = vpop.f32.mrf.mxu0
        %v9237 = vadd.f32 0.0, %v9236
        %v9238 = vpop.f32.mrf.mxu0
        %v9239 = vpop.f32.mrf.mxu0
        %v9240 = vadd.f32 0.0, %v9239
        %v9241 = vpop.f32.mrf.mxu0
        %9242 = vmatprep.mubr.bf16.mxu0 0
        %9243 = vmatmul.mubr.bf16.gmra.mxu0 %v9036
        %v9244 = vpop.f32.mrf.mxu0
        %v9245 = vadd.f32 0.0, %v9244
        %v9246 = vpop.f32.mrf.mxu0
        %v9247 = vpop.f32.mrf.mxu0
        %v9248 = vadd.f32 0.0, %v9247
        %v9249 = vpop.f32.mrf.mxu0
        %9250 = vmatprep.mubr.bf16.mxu0 0
        %9251 = vmatmul.mubr.bf16.gmra.mxu0 %v9037
        %v9252 = vpop.f32.mrf.mxu0
        %v9253 = vadd.f32 0.0, %v9252
        %v9254 = vpop.f32.mrf.mxu0
        %v9255 = vpop.f32.mrf.mxu0
        %v9256 = vadd.f32 0.0, %v9255
        %v9257 = vpop.f32.mrf.mxu0
        %9258 = vmatprep.mubr.bf16.mxu0 0
        %9259 = vmatmul.mubr.bf16.gmra.mxu0 %v9038
        %v9260 = vpop.f32.mrf.mxu0
        %v9261 = vadd.f32 0.0, %v9260
        %v9262 = vpop.f32.mrf.mxu0
        %v9263 = vpop.f32.mrf.mxu0
        %v9264 = vadd.f32 0.0, %v9263
        %v9265 = vpop.f32.mrf.mxu0
        %9266 = vmatprep.mubr.bf16.mxu0 0
        %9267 = vmatmul.mubr.bf16.gmra.mxu0 %v9039
        %v9268 = vpop.f32.mrf.mxu0
        %v9269 = vadd.f32 0.0, %v9268
        %v9270 = vpop.f32.mrf.mxu0
        %v9271 = vpop.f32.mrf.mxu0
        %v9272 = vadd.f32 0.0, %v9271
        %v9273 = vpop.f32.mrf.mxu0
        %9274 = vmatprep.mubr.bf16.mxu0 0
        %9275 = vmatmul.mubr.bf16.gmra.mxu0 %v9040
        %v9276 = vpop.f32.mrf.mxu0
        %v9277 = vadd.f32 0.0, %v9276
        %v9278 = vpop.f32.mrf.mxu0
        %v9279 = vpop.f32.mrf.mxu0
        %v9280 = vadd.f32 0.0, %v9279
        %v9281 = vpop.f32.mrf.mxu0
        %9282 = vmatprep.mubr.bf16.mxu0 0
        %9283 = vmatmul.mubr.bf16.gmra.mxu0 %v9041
        %v9284 = vpop.f32.mrf.mxu0
        %v9285 = vadd.f32 0.0, %v9284
        %v9286 = vpop.f32.mrf.mxu0
        %v9287 = vpop.f32.mrf.mxu0
        %v9288 = vadd.f32 0.0, %v9287
        %v9289 = vpop.f32.mrf.mxu0
        %9290 = vmatprep.mubr.bf16.mxu0 0
        %9291 = vmatmul.mubr.bf16.gmra.mxu0 %v9042
        %v9292 = vpop.f32.mrf.mxu0
        %v9293 = vadd.f32 0.0, %v9292
        %v9294 = vpop.f32.mrf.mxu0
        %v9295 = vpop.f32.mrf.mxu0
        %v9296 = vadd.f32 0.0, %v9295
        %v9297 = vpop.f32.mrf.mxu0
        %9298 = vmatprep.mubr.bf16.mxu0 0
        %9299 = vmatmul.mubr.bf16.gmra.mxu0 %v9043
        %v9300 = vpop.f32.mrf.mxu0
        %v9301 = vadd.f32 0.0, %v9300
        %v9302 = vpop.f32.mrf.mxu0
        %v9303 = vpop.f32.mrf.mxu0
        %v9304 = vadd.f32 0.0, %v9303
        %v9305 = vpop.f32.mrf.mxu0
        %9306 = vmatprep.mubr.bf16.mxu0 0
        %9307 = vmatmul.mubr.bf16.gmra.mxu0 %v9044
        %v9308 = vpop.f32.mrf.mxu0
        %v9309 = vadd.f32 0.0, %v9308
        %v9310 = vpop.f32.mrf.mxu0
        %v9311 = vpop.f32.mrf.mxu0
        %v9312 = vadd.f32 0.0, %v9311
        %v9313 = vpop.f32.mrf.mxu0
        %9314 = vmatprep.mubr.bf16.mxu0 0
        %9315 = vmatmul.mubr.bf16.gmra.mxu0 %v9045
        %v9316 = vpop.f32.mrf.mxu0
        %v9317 = vadd.f32 0.0, %v9316
        %v9318 = vpop.f32.mrf.mxu0
        %v9319 = vpop.f32.mrf.mxu0
        %v9320 = vadd.f32 0.0, %v9319
        %v9321 = vpop.f32.mrf.mxu0
        %9322 = vmatprep.mubr.bf16.mxu0 0
        %9323 = vmatmul.mubr.bf16.gmra.mxu0 %v9046
        %v9324 = vpop.f32.mrf.mxu0
        %v9325 = vadd.f32 0.0, %v9324
        %v9326 = vpop.f32.mrf.mxu0
        %v9327 = vpop.f32.mrf.mxu0
        %v9328 = vadd.f32 0.0, %v9327
        %v9329 = vpop.f32.mrf.mxu0
        %9330 = vmatprep.mubr.bf16.mxu0 0
        %9331 = vmatmul.mubr.bf16.gmra.mxu0 %v9047
        %v9332 = vpop.f32.mrf.mxu0
        %v9333 = vadd.f32 0.0, %v9332
        %v9334 = vpop.f32.mrf.mxu0
        %v9335 = vpop.f32.mrf.mxu0
        %v9336 = vadd.f32 0.0, %v9335
        %v9337 = vpop.f32.mrf.mxu0
        %9338 = vmatprep.mubr.bf16.mxu0 0
        %9339 = vmatmul.mubr.bf16.gmra.mxu0 %v9048
        %v9340 = vpop.f32.mrf.mxu0
        %v9341 = vadd.f32 0.0, %v9340
        %v9342 = vpop.f32.mrf.mxu0
        %v9343 = vpop.f32.mrf.mxu0
        %v9344 = vadd.f32 0.0, %v9343
        %v9345 = vpop.f32.mrf.mxu0
        %9346 = vmatprep.mubr.bf16.mxu0 0
        %9347 = vmatmul.mubr.bf16.gmra.mxu0 %v9049
        %v9348 = vpop.f32.mrf.mxu0
        %v9349 = vadd.f32 0.0, %v9348
        %v9350 = vpop.f32.mrf.mxu0
        %v9351 = vpop.f32.mrf.mxu0
        %v9352 = vadd.f32 0.0, %v9351
        %v9353 = vpop.f32.mrf.mxu0
        %9354 = vmatprep.mubr.bf16.mxu0 0
        %9355 = vmatmul.mubr.bf16.gmra.mxu0 %v9050
        %v9356 = vpop.f32.mrf.mxu0
        %v9357 = vadd.f32 0.0, %v9356
        %v9358 = vpop.f32.mrf.mxu0
        %v9359 = vpop.f32.mrf.mxu0
        %v9360 = vadd.f32 0.0, %v9359
        %v9361 = vpop.f32.mrf.mxu0
        %9362 = vmatprep.mubr.bf16.mxu0 0
        %9363 = vmatmul.mubr.bf16.gmra.mxu0 %v9051
        %v9364 = vpop.f32.mrf.mxu0
        %v9365 = vadd.f32 0.0, %v9364
        %v9366 = vpop.f32.mrf.mxu0
        %v9367 = vpop.f32.mrf.mxu0
        %v9368 = vadd.f32 0.0, %v9367
        %v9369 = vpop.f32.mrf.mxu0
        %9370 = vmatprep.mubr.bf16.mxu0 0
        %9371 = vmatmul.mubr.bf16.gmra.mxu0 %v9052
        %v9372 = vpop.f32.mrf.mxu0
        %v9373 = vadd.f32 0.0, %v9372
        %v9374 = vpop.f32.mrf.mxu0
        %v9375 = vpop.f32.mrf.mxu0
        %v9376 = vadd.f32 0.0, %v9375
        %v9377 = vpop.f32.mrf.mxu0
        %9378 = vmatprep.mubr.bf16.mxu0 0
        %9379 = vmatmul.mubr.bf16.gmra.mxu0 %v9053
        %v9380 = vpop.f32.mrf.mxu0
        %v9381 = vadd.f32 0.0, %v9380
        %v9382 = vpop.f32.mrf.mxu0
        %v9383 = vpop.f32.mrf.mxu0
        %v9384 = vadd.f32 0.0, %v9383
        %v9385 = vpop.f32.mrf.mxu0
        %9386 = vmatprep.mubr.bf16.mxu0 0
        %9387 = vmatmul.mubr.bf16.gmra.mxu0 %v9054
        %v9388 = vpop.f32.mrf.mxu0
        %v9389 = vadd.f32 0.0, %v9388
        %v9390 = vpop.f32.mrf.mxu0
        %v9391 = vpop.f32.mrf.mxu0
        %v9392 = vadd.f32 0.0, %v9391
        %v9393 = vpop.f32.mrf.mxu0
        %9394 = vmatprep.mubr.bf16.mxu0 0
        %9395 = vmatmul.mubr.bf16.gmra.mxu0 %v9055
        %v9396 = vpop.f32.mrf.mxu0
        %v9397 = vadd.f32 0.0, %v9396
        %v9398 = vpop.f32.mrf.mxu0
        %v9399 = vpop.f32.mrf.mxu0
        %v9400 = vadd.f32 0.0, %v9399
        %v9401 = vpop.f32.mrf.mxu0
        %9402 = vmatprep.mubr.bf16.mxu0 0
        %9403 = vmatmul.mubr.bf16.gmra.mxu0 %v9056
        %v9404 = vpop.f32.mrf.mxu0
        %v9405 = vadd.f32 0.0, %v9404
        %v9406 = vpop.f32.mrf.mxu0
        %v9407 = vpop.f32.mrf.mxu0
        %v9408 = vadd.f32 0.0, %v9407
        %v9409 = vpop.f32.mrf.mxu0
        %9410 = vdwg.mxu0
        %v9411 = vadd.f32 %v8896, %v9157
        %v9412 = vadd.f32 %v8897, %v9160
        %v9413 = vadd.f32 %v8898, %v9165
        %v9414 = vadd.f32 %v8899, %v9168
        %v9415 = vadd.f32 %v8900, %v9173
        %v9416 = vadd.f32 %v8901, %v9176
        %v9417 = vadd.f32 %v8902, %v9181
        %v9418 = vadd.f32 %v8903, %v9184
        %v9419 = vadd.f32 %v8904, %v9189
        %v9420 = vadd.f32 %v8905, %v9192
        %v9421 = vadd.f32 %v8906, %v9197
        %v9422 = vadd.f32 %v8907, %v9200
        %v9423 = vadd.f32 %v8908, %v9205
        %v9424 = vadd.f32 %v8909, %v9208
        %v9425 = vadd.f32 %v8910, %v9213
        %v9426 = vadd.f32 %v8911, %v9216
        %v9427 = vadd.f32 %v8912, %v9221
        %v9428 = vadd.f32 %v8913, %v9224
        %v9429 = vadd.f32 %v8914, %v9229
        %v9430 = vadd.f32 %v8915, %v9232
        %v9431 = vadd.f32 %v8916, %v9237
        %v9432 = vadd.f32 %v8917, %v9240
        %v9433 = vadd.f32 %v8918, %v9245
        %v9434 = vadd.f32 %v8919, %v9248
        %v9435 = vadd.f32 %v8920, %v9253
        %v9436 = vadd.f32 %v8921, %v9256
        %v9437 = vadd.f32 %v8922, %v9261
        %v9438 = vadd.f32 %v8923, %v9264
        %v9439 = vadd.f32 %v8924, %v9269
        %v9440 = vadd.f32 %v8925, %v9272
        %v9441 = vadd.f32 %v8926, %v9277
        %v9442 = vadd.f32 %v8927, %v9280
        %v9443 = vadd.f32 %v8928, %v9285
        %v9444 = vadd.f32 %v8929, %v9288
        %v9445 = vadd.f32 %v8930, %v9293
        %v9446 = vadd.f32 %v8931, %v9296
        %v9447 = vadd.f32 %v8932, %v9301
        %v9448 = vadd.f32 %v8933, %v9304
        %v9449 = vadd.f32 %v8934, %v9309
        %v9450 = vadd.f32 %v8935, %v9312
        %v9451 = vadd.f32 %v8936, %v9317
        %v9452 = vadd.f32 %v8937, %v9320
        %v9453 = vadd.f32 %v8938, %v9325
        %v9454 = vadd.f32 %v8939, %v9328
        %v9455 = vadd.f32 %v8940, %v9333
        %v9456 = vadd.f32 %v8941, %v9336
        %v9457 = vadd.f32 %v8942, %v9341
        %v9458 = vadd.f32 %v8943, %v9344
        %v9459 = vadd.f32 %v8944, %v9349
        %v9460 = vadd.f32 %v8945, %v9352
        %v9461 = vadd.f32 %v8946, %v9357
        %v9462 = vadd.f32 %v8947, %v9360
        %v9463 = vadd.f32 %v8948, %v9365
        %v9464 = vadd.f32 %v8949, %v9368
        %v9465 = vadd.f32 %v8950, %v9373
        %v9466 = vadd.f32 %v8951, %v9376
        %v9467 = vadd.f32 %v8952, %v9381
        %v9468 = vadd.f32 %v8953, %v9384
        %v9469 = vadd.f32 %v8954, %v9389
        %v9470 = vadd.f32 %v8955, %v9392
        %v9471 = vadd.f32 %v8956, %v9397
        %v9472 = vadd.f32 %v8957, %v9400
        %v9473 = vadd.f32 %v8958, %v9405
        %v9474 = vadd.f32 %v8959, %v9408
        %v9475 = vlaneseq
        %v9476 = vshrl.u32 %v9475, 7
        %v9477 = vsub.s32 2, %v9476
        %v9478 = vrot.slane %v961, %v9477
        %v9479 = vmul.f32 %v9411, %v9478
        %v9480 = vmul.f32 %v9412, %v9478
        %v9481 = vmul.f32 %v9413, %v9478
        %v9482 = vmul.f32 %v9414, %v9478
        %v9483 = vmul.f32 %v9415, %v9478
        %v9484 = vmul.f32 %v9416, %v9478
        %v9485 = vmul.f32 %v9417, %v9478
        %v9486 = vmul.f32 %v9418, %v9478
        %v9487 = vmul.f32 %v9419, %v9478
        %v9488 = vmul.f32 %v9420, %v9478
        %v9489 = vmul.f32 %v9421, %v9478
        %v9490 = vmul.f32 %v9422, %v9478
        %v9491 = vmul.f32 %v9423, %v9478
        %v9492 = vmul.f32 %v9424, %v9478
        %v9493 = vmul.f32 %v9425, %v9478
        %v9494 = vmul.f32 %v9426, %v9478
        %v9495 = vmul.f32 %v9427, %v9478
        %v9496 = vmul.f32 %v9428, %v9478
        %v9497 = vmul.f32 %v9429, %v9478
        %v9498 = vmul.f32 %v9430, %v9478
        %v9499 = vmul.f32 %v9431, %v9478
        %v9500 = vmul.f32 %v9432, %v9478
        %v9501 = vmul.f32 %v9433, %v9478
        %v9502 = vmul.f32 %v9434, %v9478
        %v9503 = vmul.f32 %v9435, %v9478
        %v9504 = vmul.f32 %v9436, %v9478
        %v9505 = vmul.f32 %v9437, %v9478
        %v9506 = vmul.f32 %v9438, %v9478
        %v9507 = vmul.f32 %v9439, %v9478
        %v9508 = vmul.f32 %v9440, %v9478
        %v9509 = vmul.f32 %v9441, %v9478
        %v9510 = vmul.f32 %v9442, %v9478
        %v9511 = vmul.f32 %v9443, %v9478
        %v9512 = vmul.f32 %v9444, %v9478
        %v9513 = vmul.f32 %v9445, %v9478
        %v9514 = vmul.f32 %v9446, %v9478
        %v9515 = vmul.f32 %v9447, %v9478
        %v9516 = vmul.f32 %v9448, %v9478
        %v9517 = vmul.f32 %v9449, %v9478
        %v9518 = vmul.f32 %v9450, %v9478
        %v9519 = vmul.f32 %v9451, %v9478
        %v9520 = vmul.f32 %v9452, %v9478
        %v9521 = vmul.f32 %v9453, %v9478
        %v9522 = vmul.f32 %v9454, %v9478
        %v9523 = vmul.f32 %v9455, %v9478
        %v9524 = vmul.f32 %v9456, %v9478
        %v9525 = vmul.f32 %v9457, %v9478
        %v9526 = vmul.f32 %v9458, %v9478
        %v9527 = vmul.f32 %v9459, %v9478
        %v9528 = vmul.f32 %v9460, %v9478
        %v9529 = vmul.f32 %v9461, %v9478
        %v9530 = vmul.f32 %v9462, %v9478
        %v9531 = vmul.f32 %v9463, %v9478
        %v9532 = vmul.f32 %v9464, %v9478
        %v9533 = vmul.f32 %v9465, %v9478
        %v9534 = vmul.f32 %v9466, %v9478
        %v9535 = vmul.f32 %v9467, %v9478
        %v9536 = vmul.f32 %v9468, %v9478
        %v9537 = vmul.f32 %v9469, %v9478
        %v9538 = vmul.f32 %v9470, %v9478
        %v9539 = vmul.f32 %v9471, %v9478
        %v9540 = vmul.f32 %v9472, %v9478
        %v9541 = vmul.f32 %v9473, %v9478
        %v9542 = vmul.f32 %v9474, %v9478
        %v9543 = vlaneseq
        %v9544 = vshrl.u32 %v9543, 7
        %v9545 = vsub.s32 3, %v9544
        %v9546 = vrot.slane %v961, %v9545
        %v9547 = vadd.f32 %v9479, %v9546
        %v9548 = vadd.f32 %v9480, %v9546
        %v9549 = vadd.f32 %v9481, %v9546
        %v9550 = vadd.f32 %v9482, %v9546
        %v9551 = vadd.f32 %v9483, %v9546
        %v9552 = vadd.f32 %v9484, %v9546
        %v9553 = vadd.f32 %v9485, %v9546
        %v9554 = vadd.f32 %v9486, %v9546
        %v9555 = vadd.f32 %v9487, %v9546
        %v9556 = vadd.f32 %v9488, %v9546
        %v9557 = vadd.f32 %v9489, %v9546
        %v9558 = vadd.f32 %v9490, %v9546
        %v9559 = vadd.f32 %v9491, %v9546
        %v9560 = vadd.f32 %v9492, %v9546
        %v9561 = vadd.f32 %v9493, %v9546
        %v9562 = vadd.f32 %v9494, %v9546
        %v9563 = vadd.f32 %v9495, %v9546
        %v9564 = vadd.f32 %v9496, %v9546
        %v9565 = vadd.f32 %v9497, %v9546
        %v9566 = vadd.f32 %v9498, %v9546
        %v9567 = vadd.f32 %v9499, %v9546
        %v9568 = vadd.f32 %v9500, %v9546
        %v9569 = vadd.f32 %v9501, %v9546
        %v9570 = vadd.f32 %v9502, %v9546
        %v9571 = vadd.f32 %v9503, %v9546
        %v9572 = vadd.f32 %v9504, %v9546
        %v9573 = vadd.f32 %v9505, %v9546
        %v9574 = vadd.f32 %v9506, %v9546
        %v9575 = vadd.f32 %v9507, %v9546
        %v9576 = vadd.f32 %v9508, %v9546
        %v9577 = vadd.f32 %v9509, %v9546
        %v9578 = vadd.f32 %v9510, %v9546
        %v9579 = vadd.f32 %v9511, %v9546
        %v9580 = vadd.f32 %v9512, %v9546
        %v9581 = vadd.f32 %v9513, %v9546
        %v9582 = vadd.f32 %v9514, %v9546
        %v9583 = vadd.f32 %v9515, %v9546
        %v9584 = vadd.f32 %v9516, %v9546
        %v9585 = vadd.f32 %v9517, %v9546
        %v9586 = vadd.f32 %v9518, %v9546
        %v9587 = vadd.f32 %v9519, %v9546
        %v9588 = vadd.f32 %v9520, %v9546
        %v9589 = vadd.f32 %v9521, %v9546
        %v9590 = vadd.f32 %v9522, %v9546
        %v9591 = vadd.f32 %v9523, %v9546
        %v9592 = vadd.f32 %v9524, %v9546
        %v9593 = vadd.f32 %v9525, %v9546
        %v9594 = vadd.f32 %v9526, %v9546
        %v9595 = vadd.f32 %v9527, %v9546
        %v9596 = vadd.f32 %v9528, %v9546
        %v9597 = vadd.f32 %v9529, %v9546
        %v9598 = vadd.f32 %v9530, %v9546
        %v9599 = vadd.f32 %v9531, %v9546
        %v9600 = vadd.f32 %v9532, %v9546
        %v9601 = vadd.f32 %v9533, %v9546
        %v9602 = vadd.f32 %v9534, %v9546
        %v9603 = vadd.f32 %v9535, %v9546
        %v9604 = vadd.f32 %v9536, %v9546
        %v9605 = vadd.f32 %v9537, %v9546
        %v9606 = vadd.f32 %v9538, %v9546
        %v9607 = vadd.f32 %v9539, %v9546
        %v9608 = vadd.f32 %v9540, %v9546
        %v9609 = vadd.f32 %v9541, %v9546
        %v9610 = vadd.f32 %v9542, %v9546
        %v9611 = vmax.f32 %v9547, 0.0
        %v9612 = vmax.f32 %v9548, 0.0
        %v9613 = vmax.f32 %v9549, 0.0
        %v9614 = vmax.f32 %v9550, 0.0
        %v9615 = vmax.f32 %v9551, 0.0
        %v9616 = vmax.f32 %v9552, 0.0
        %v9617 = vmax.f32 %v9553, 0.0
        %v9618 = vmax.f32 %v9554, 0.0
        %v9619 = vmax.f32 %v9555, 0.0
        %v9620 = vmax.f32 %v9556, 0.0
        %v9621 = vmax.f32 %v9557, 0.0
        %v9622 = vmax.f32 %v9558, 0.0
        %v9623 = vmax.f32 %v9559, 0.0
        %v9624 = vmax.f32 %v9560, 0.0
        %v9625 = vmax.f32 %v9561, 0.0
        %v9626 = vmax.f32 %v9562, 0.0
        %v9627 = vmax.f32 %v9563, 0.0
        %v9628 = vmax.f32 %v9564, 0.0
        %v9629 = vmax.f32 %v9565, 0.0
        %v9630 = vmax.f32 %v9566, 0.0
        %v9631 = vmax.f32 %v9567, 0.0
        %v9632 = vmax.f32 %v9568, 0.0
        %v9633 = vmax.f32 %v9569, 0.0
        %v9634 = vmax.f32 %v9570, 0.0
        %v9635 = vmax.f32 %v9571, 0.0
        %v9636 = vmax.f32 %v9572, 0.0
        %v9637 = vmax.f32 %v9573, 0.0
        %v9638 = vmax.f32 %v9574, 0.0
        %v9639 = vmax.f32 %v9575, 0.0
        %v9640 = vmax.f32 %v9576, 0.0
        %v9641 = vmax.f32 %v9577, 0.0
        %v9642 = vmax.f32 %v9578, 0.0
        %v9643 = vmax.f32 %v9579, 0.0
        %v9644 = vmax.f32 %v9580, 0.0
        %v9645 = vmax.f32 %v9581, 0.0
        %v9646 = vmax.f32 %v9582, 0.0
        %v9647 = vmax.f32 %v9583, 0.0
        %v9648 = vmax.f32 %v9584, 0.0
        %v9649 = vmax.f32 %v9585, 0.0
        %v9650 = vmax.f32 %v9586, 0.0
        %v9651 = vmax.f32 %v9587, 0.0
        %v9652 = vmax.f32 %v9588, 0.0
        %v9653 = vmax.f32 %v9589, 0.0
        %v9654 = vmax.f32 %v9590, 0.0
        %v9655 = vmax.f32 %v9591, 0.0
        %v9656 = vmax.f32 %v9592, 0.0
        %v9657 = vmax.f32 %v9593, 0.0
        %v9658 = vmax.f32 %v9594, 0.0
        %v9659 = vmax.f32 %v9595, 0.0
        %v9660 = vmax.f32 %v9596, 0.0
        %v9661 = vmax.f32 %v9597, 0.0
        %v9662 = vmax.f32 %v9598, 0.0
        %v9663 = vmax.f32 %v9599, 0.0
        %v9664 = vmax.f32 %v9600, 0.0
        %v9665 = vmax.f32 %v9601, 0.0
        %v9666 = vmax.f32 %v9602, 0.0
        %v9667 = vmax.f32 %v9603, 0.0
        %v9668 = vmax.f32 %v9604, 0.0
        %v9669 = vmax.f32 %v9605, 0.0
        %v9670 = vmax.f32 %v9606, 0.0
        %v9671 = vmax.f32 %v9607, 0.0
        %v9672 = vmax.f32 %v9608, 0.0
        %v9673 = vmax.f32 %v9609, 0.0
        %v9674 = vmax.f32 %v9610, 0.0
        %9675 = vst [vmem:[%s256] sm:$0xff] %v9611
        %9676 = vst [vmem:[%s256 + $0x8] sm:$0xff] %v9612
        %9677 = vst [vmem:[%s256 + $0x10] sm:$0xff] %v9613
        %9678 = vst [vmem:[%s256 + $0x18] sm:$0xff] %v9614
        %9679 = vst [vmem:[%s256 + $0x20] sm:$0xff] %v9615
        %9680 = vst [vmem:[%s256 + $0x28] sm:$0xff] %v9616
        %9681 = vst [vmem:[%s256 + $0x30] sm:$0xff] %v9617
        %9682 = vst [vmem:[%s256 + $0x38] sm:$0xff] %v9618
        %9683 = vst [vmem:[%s256 + $0x40] sm:$0xff] %v9619
        %9684 = vst [vmem:[%s256 + $0x48] sm:$0xff] %v9620
        %9685 = vst [vmem:[%s256 + $0x50] sm:$0xff] %v9621
        %9686 = vst [vmem:[%s256 + $0x58] sm:$0xff] %v9622
        %9687 = vst [vmem:[%s256 + $0x60] sm:$0xff] %v9623
        %9688 = vst [vmem:[%s256 + $0x68] sm:$0xff] %v9624
        %9689 = vst [vmem:[%s256 + $0x70] sm:$0xff] %v9625
        %9690 = vst [vmem:[%s256 + $0x78] sm:$0xff] %v9626
        %9691 = vst [vmem:[%s256 + $0x80] sm:$0xff] %v9627
        %9692 = vst [vmem:[%s256 + $0x88] sm:$0xff] %v9628
        %9693 = vst [vmem:[%s256 + $0x90] sm:$0xff] %v9629
        %9694 = vst [vmem:[%s256 + $0x98] sm:$0xff] %v9630
        %9695 = vst [vmem:[%s256 + $0xa0] sm:$0xff] %v9631
        %9696 = vst [vmem:[%s256 + $0xa8] sm:$0xff] %v9632
        %9697 = vst [vmem:[%s256 + $0xb0] sm:$0xff] %v9633
        %9698 = vst [vmem:[%s256 + $0xb8] sm:$0xff] %v9634
        %9699 = vst [vmem:[%s256 + $0xc0] sm:$0xff] %v9635
        %9700 = vst [vmem:[%s256 + $0xc8] sm:$0xff] %v9636
        %9701 = vst [vmem:[%s256 + $0xd0] sm:$0xff] %v9637
        %9702 = vst [vmem:[%s256 + $0xd8] sm:$0xff] %v9638
        %9703 = vst [vmem:[%s256 + $0xe0] sm:$0xff] %v9639
        %9704 = vst [vmem:[%s256 + $0xe8] sm:$0xff] %v9640
        %9705 = vst [vmem:[%s256 + $0xf0] sm:$0xff] %v9641
        %9706 = vst [vmem:[%s256 + $0xf8] sm:$0xff] %v9642
        %9707 = vst [vmem:[%s256 + $0x100] sm:$0xff] %v9643
        %9708 = vst [vmem:[%s256 + $0x108] sm:$0xff] %v9644
        %9709 = vst [vmem:[%s256 + $0x110] sm:$0xff] %v9645
        %9710 = vst [vmem:[%s256 + $0x118] sm:$0xff] %v9646
        %9711 = vst [vmem:[%s256 + $0x120] sm:$0xff] %v9647
        %9712 = vst [vmem:[%s256 + $0x128] sm:$0xff] %v9648
        %9713 = vst [vmem:[%s256 + $0x130] sm:$0xff] %v9649
        %9714 = vst [vmem:[%s256 + $0x138] sm:$0xff] %v9650
        %9715 = vst [vmem:[%s256 + $0x140] sm:$0xff] %v9651
        %9716 = vst [vmem:[%s256 + $0x148] sm:$0xff] %v9652
        %9717 = vst [vmem:[%s256 + $0x150] sm:$0xff] %v9653
        %9718 = vst [vmem:[%s256 + $0x158] sm:$0xff] %v9654
        %9719 = vst [vmem:[%s256 + $0x160] sm:$0xff] %v9655
        %9720 = vst [vmem:[%s256 + $0x168] sm:$0xff] %v9656
        %9721 = vst [vmem:[%s256 + $0x170] sm:$0xff] %v9657
        %9722 = vst [vmem:[%s256 + $0x178] sm:$0xff] %v9658
        %9723 = vst [vmem:[%s256 + $0x180] sm:$0xff] %v9659
        %9724 = vst [vmem:[%s256 + $0x188] sm:$0xff] %v9660
        %9725 = vst [vmem:[%s256 + $0x190] sm:$0xff] %v9661
        %9726 = vst [vmem:[%s256 + $0x198] sm:$0xff] %v9662
        %9727 = vst [vmem:[%s256 + $0x1a0] sm:$0xff] %v9663
        %9728 = vst [vmem:[%s256 + $0x1a8] sm:$0xff] %v9664
        %9729 = vst [vmem:[%s256 + $0x1b0] sm:$0xff] %v9665
        %9730 = vst [vmem:[%s256 + $0x1b8] sm:$0xff] %v9666
        %9731 = vst [vmem:[%s256 + $0x1c0] sm:$0xff] %v9667
        %9732 = vst [vmem:[%s256 + $0x1c8] sm:$0xff] %v9668
        %9733 = vst [vmem:[%s256 + $0x1d0] sm:$0xff] %v9669
        %9734 = vst [vmem:[%s256 + $0x1d8] sm:$0xff] %v9670
        %9735 = vst [vmem:[%s256 + $0x1e0] sm:$0xff] %v9671
        %9736 = vst [vmem:[%s256 + $0x1e8] sm:$0xff] %v9672
        %9737 = vst [vmem:[%s256 + $0x1f0] sm:$0xff] %v9673
        %9738 = vst [vmem:[%s256 + $0x1f8] sm:$0xff] %v9674
        %s9739 = sand.u32 %s120, 1
        %s9740 = scalar_lea.sflag [#allocation5], %s9739
        %s9741 = sand.u32 %s120, 1
        %s9742 = smul.addr %s9741, 512
        %s9743 = scalar_lea.vmem [#allocation11], %s9742
        // Predicated region
        $region53: #{tpu_custom_call.1} parent=35 // pred_check
          %p9744 = pneg %p130
        $region54: #{tpu_custom_call.1} parent=35 // pred_check_branch
          %9746 = sbr.rel (%p9744) target = $region56
        $region55: #{tpu_custom_call.1} parent=35 // pred_region
          %s9748 = ssub.s32 8192, 8192
          %9749 = vsyncadd %s9740, %s9748
          %s9750 = smul.addr %s23, 128
          %s9751 = scalar_lea.hbm %s4, %s9750
          %s9752 = sshll.u32 %s9743, 4
          %s9753 = int_to_ptr.vmem [resolvable:$true] %s9752
          %9758 = dma.vmem_to_hbm [thread:$0]  %s9753, 8192, %s9751, %s9740, 128, 256, 8
        $region56: #{tpu_custom_call.1} parent=35 // pred_fallthru
          _
      $region36: #{tpu_custom_call.1} parent=5 // pred_fallthru
        _
      %p9759 = scmp.le.s32.totalorder 2, %s18
      // Predicated region
      $region57: #{tpu_custom_call.1} parent=5 // pred_check
        %p9760 = pneg %p9759
      $region58: #{tpu_custom_call.1} parent=5 // pred_check_branch
        %9762 = sbr.rel (%p9760) target = $region60
      $region59: #{tpu_custom_call.1} parent=5 // pred_region
        %s9763 = ssub.s32 %s18, 2
        // Predicated region
        $region61: #{tpu_custom_call.1} parent=59 // pred_check
          %p9764 = pneg %p136
        $region62: #{tpu_custom_call.1} parent=59 // pred_check_branch
          %9766 = sbr.rel (%p9764) target = $region64
        $region63: #{tpu_custom_call.1} parent=59 // pred_region
          %s9767 = sand.u32 %s121, 1
          %s9768 = scalar_lea.sflag [#allocation5], %s9767
          %s9769 = sand.u32 %s121, 1
          %s9770 = smul.addr %s9769, 512
          %s9771 = scalar_lea.vmem [#allocation11], %s9770
          %9772 = dma.done %s9768, 8192
        $region64: #{tpu_custom_call.1} parent=59 // pred_fallthru
          _
      $region60: #{tpu_custom_call.1} parent=5 // pred_fallthru
        _
    $region6: #{tpu_custom_call.1} parent=1 // loop_footer
      %s22 = sadd.s32 1, %s18
    $region7: #{tpu_custom_call.1} parent=1 // loop_footer_branch
      %17 = sbr.rel target = $region3
    $region8: #{tpu_custom_call.1} parent=1 // loop_exit
      _
    %9773 = vsyncpa [#allocation4], 1
    %s9774 = scalar_lea.sflag [#allocation4], 1
    %9775 = vsyncpa %s9774, 1
    %9776 = vsyncpa [#allocation7], 1
    %9777 = vsyncpa [#allocation10], 1
    %9778 = vsyncpa [#allocation5], 1
    %s9779 = scalar_lea.sflag [#allocation5], 1
    %9780 = vsyncpa %s9779, 1

</llo_original>
